<compile_context>
chip_gen: v5e
topology: v5e:2x2
jax: 0.10.0
libtpu: 0.0.40
codegen_flags: <defaults>
</compile_context>

<pallas_src>
import functools

import jax
import jax.numpy as jnp
import numpy as np
from jax.experimental import pallas as pl
from jax.experimental.pallas import tpu as pltpu

EPS = 1e-5


# --------------------------------------------------------------------------
# In-kernel helpers
# --------------------------------------------------------------------------
def _conv3x3(xpad, w_ref, b_ref, H, W):
    """3x3 stride-1 conv + bias + ReLU from a zero-padded (H+2, W+2, Cin) value.

    The three dx-shifted views are sliced once and concatenated along K, so the
    conv becomes 3 dots of (H*W, 3*Cin) x (3*Cin, Cout) (weights pre-reshaped
    to (3, 3*Cin, Cout)) instead of 9 narrow taps.
    """
    cin = xpad.shape[-1]
    cout = w_ref.shape[-1]
    xcat = jnp.concatenate(
        [xpad[:, 0:W, :], xpad[:, 1:W + 1, :], xpad[:, 2:W + 2, :]], axis=-1)
    acc = jnp.zeros((H * W, cout), jnp.float32)
    for dy in range(3):
        acc = acc + jnp.dot(
            xcat[dy:dy + H].reshape(H * W, 3 * cin), w_ref[dy],
            preferred_element_type=jnp.float32)
    return jnp.maximum(acc + b_ref[...], 0.0)


# --------------------------------------------------------------------------
# The fused Inception kernel (one grid step = one batch element)
# --------------------------------------------------------------------------
def _inception_kernel(x_ref, wh_ref, bh_ref, wp_ref, bp_ref,
                      w2_ref, b2_ref, w3a_ref, b3a_ref, w3b_ref, b3b_ref,
                      out_ref, xpp, r2p, r3p, b3mp, *, H, W, dims):
    n1x1, n3x3r, n3x3, n5x5r, n5x5, pproj = dims
    del n3x3, pproj  # implied by weight shapes
    cin = x_ref.shape[-1]

    xv = x_ref[0]                              # (H, W, Cin) bf16, aligned read
    x_int = xv.reshape(H * W, cin)

    # ---- stage 1: ONE packed 1x1 head matmul: [b1 | b2-reduce | b3-reduce] ----
    head = jnp.maximum(
        jnp.dot(x_int, wh_ref[...], preferred_element_type=jnp.float32)
        + bh_ref[...], 0.0)
    b1v = head[:, :n1x1]
    r2 = head[:, n1x1:n1x1 + n3x3r].astype(jnp.bfloat16)
    r3 = head[:, n1x1 + n3x3r:].astype(jnp.bfloat16)

    # ---- branch 4: separable 3x3 stride-1 max pool + pool-proj 1x1 ----
    # -inf halo in VMEM scratch reproduces MaxPool2d(3, stride=1, padding=1).
    xpp[...] = jnp.full_like(xpp, -jnp.inf)
    xpp[1:H + 1, 1:W + 1, :] = xv
    xpv = xpp[...]
    tw = jnp.maximum(jnp.maximum(xpv[:, 0:W, :], xpv[:, 1:W + 1, :]),
                     xpv[:, 2:W + 2, :])
    pooled = jnp.maximum(jnp.maximum(tw[0:H], tw[1:H + 1]), tw[2:H + 2])
    b4v = jnp.maximum(
        jnp.dot(pooled.reshape(H * W, cin), wp_ref[...],
                preferred_element_type=jnp.float32) + bp_ref[...], 0.0)

    # ---- branch 2: 3x3 conv on r2 (zero-padded VMEM scratch, no HBM trip) ----
    r2p[...] = jnp.zeros_like(r2p)
    r2p[1:H + 1, 1:W + 1, :] = r2.reshape(H, W, n3x3r)
    b2v = _conv3x3(r2p[...], w2_ref, b2_ref, H, W)

    # ---- branch 3: two chained 3x3 convs on r3 ----
    r3p[...] = jnp.zeros_like(r3p)
    r3p[1:H + 1, 1:W + 1, :] = r3.reshape(H, W, n5x5r)
    b3m = _conv3x3(r3p[...], w3a_ref, b3a_ref, H, W)
    b3mp[...] = jnp.zeros_like(b3mp)
    b3mp[1:H + 1, 1:W + 1, :] = b3m.astype(jnp.bfloat16).reshape(H, W, n5x5)
    b3v = _conv3x3(b3mp[...], w3b_ref, b3b_ref, H, W)

    # ---- fused channel concat: one lane-dense store of the output slab ----
    out = jnp.concatenate([b1v, b2v, b3v, b4v], axis=-1)
    out_ref[...] = out.reshape(1, H, W, out.shape[-1]).astype(out_ref.dtype)


# --------------------------------------------------------------------------
# pallas_call wrapper
# --------------------------------------------------------------------------
def _full_spec(a):
    nd = a.ndim
    return pl.BlockSpec(a.shape, lambda n, _nd=nd: (0,) * _nd)


def inception_call(x, wh, bh, wp, bp, w2, b2, w3a, b3a, w3b, b3b, *, dims):
    N, H, W, cin = x.shape
    n1x1, n3x3r, n3x3, n5x5r, n5x5, pproj = dims
    ctot = n1x1 + n3x3 + n5x5 + pproj
    weights = (wh, bh, wp, bp, w2, b2, w3a, b3a, w3b, b3b)
    return pl.pallas_call(
        functools.partial(_inception_kernel, H=H, W=W, dims=dims),
        out_shape=jax.ShapeDtypeStruct((N, H, W, ctot), jnp.float32),
        grid=(N,),
        in_specs=[pl.BlockSpec((1, H, W, cin), lambda n: (n, 0, 0, 0))]
                 + [_full_spec(a) for a in weights],
        out_specs=pl.BlockSpec((1, H, W, ctot), lambda n: (n, 0, 0, 0)),
        scratch_shapes=[
            pltpu.VMEM((H + 2, W + 2, cin), jnp.bfloat16),    # -inf padded x
            pltpu.VMEM((H + 2, W + 2, n3x3r), jnp.bfloat16),  # padded b2-reduce
            pltpu.VMEM((H + 2, W + 2, n5x5r), jnp.bfloat16),  # padded b3-reduce
            pltpu.VMEM((H + 2, W + 2, n5x5), jnp.bfloat16),   # padded b3 mid
        ],
        compiler_params=pltpu.CompilerParams(
            dimension_semantics=("parallel",),
            vmem_limit_bytes=64 * 1024 * 1024),
    )(x, *weights)


# --------------------------------------------------------------------------
# Parameter init, BN folding
# --------------------------------------------------------------------------
def conv_bn_params(key, cin, cout, k):
    ks = jax.random.split(key, 6)
    return dict(
        w=0.1 * jax.random.normal(ks[0], (cout, cin, k, k), jnp.float32),
        b=0.1 * jax.random.normal(ks[1], (cout,), jnp.float32),
        gamma=1.0 + 0.1 * jax.random.normal(ks[2], (cout,), jnp.float32),
        beta=0.1 * jax.random.normal(ks[3], (cout,), jnp.float32),
        mean=0.1 * jax.random.normal(ks[4], (cout,), jnp.float32),
        var=0.5 + 0.1 * jnp.abs(jax.random.normal(ks[5], (cout,), jnp.float32)),
    )


def fold_conv_bn(p):
    # Inference-mode BN folded into the conv: the BN scale goes into the weight
    # columns, the rest into a per-channel f32 bias.  Weights cast to bf16.
    # 1x1 -> (cin, cout); 3x3 -> (3, 3*cin, cout) matching the dx-packed K
    # layout used by _conv3x3.
    scale = p["gamma"] * jax.lax.rsqrt(p["var"] + EPS)
    bias = ((p["b"] - p["mean"]) * scale + p["beta"]).reshape(1, -1)
    w = jnp.transpose(p["w"], (2, 3, 1, 0)) * scale      # (kh, kw, cin, cout)
    kh, kw, cin, cout = w.shape
    w = w.reshape(cin, cout) if kh == 1 else w.reshape(kh, kw * cin, cout)
    return w.astype(jnp.bfloat16), bias.astype(jnp.float32)


def init_inception_params(key, cin, n1x1, n3x3_red, n3x3, n5x5_red, n5x5, pool_proj):
    ks = jax.random.split(key, 7)
    return {
        "b1": [conv_bn_params(ks[0], cin, n1x1, 1)],
        "b2": [conv_bn_params(ks[1], cin, n3x3_red, 1),
               conv_bn_params(ks[2], n3x3_red, n3x3, 3)],
        "b3": [conv_bn_params(ks[3], cin, n5x5_red, 1),
               conv_bn_params(ks[4], n5x5_red, n5x5, 3),
               conv_bn_params(ks[5], n5x5, n5x5, 3)],
        "b4": [conv_bn_params(ks[6], cin, pool_proj, 1)],
    }


# --------------------------------------------------------------------------
# Forward
# --------------------------------------------------------------------------
@jax.jit
def inception_forward(x_nchw, params):
    # TODO(synk): keep the full network NHWC end-to-end and hoist these
    # boundary transposes out of the per-block wrapper.
    x = jnp.transpose(x_nchw, (0, 2, 3, 1)).astype(jnp.bfloat16)   # NCHW -> NHWC

    w1, b1 = fold_conv_bn(params["b1"][0])
    wr2, br2 = fold_conv_bn(params["b2"][0])
    w2, b2 = fold_conv_bn(params["b2"][1])
    wr3, br3 = fold_conv_bn(params["b3"][0])
    w3a, b3a = fold_conv_bn(params["b3"][1])
    w3b, b3b = fold_conv_bn(params["b3"][2])
    wp, bp = fold_conv_bn(params["b4"][0])

    # Pack the three stage-1 1x1 convs into one wide matmul.
    wh = jnp.concatenate([w1, wr2, wr3], axis=-1)
    bh = jnp.concatenate([b1, br2, br3], axis=-1)

    dims = (w1.shape[-1], wr2.shape[-1], w2.shape[-1],
            wr3.shape[-1], w3a.shape[-1], wp.shape[-1])
    out = inception_call(x, wh, bh, wp, bp, w2, b2, w3a, b3a, w3b, b3b, dims=dims)
    return jnp.transpose(out, (0, 3, 1, 2))                        # NHWC -> NCHW


# --------------------------------------------------------------------------
# Pure-JAX f32 reference (for correctness check)
# --------------------------------------------------------------------------
def _ref_conv_bn_relu(x, p, pad):
    y = jax.lax.conv_general_dilated(
        x, p["w"], (1, 1), [(pad, pad), (pad, pad)],
        dimension_numbers=("NCHW", "OIHW", "NCHW"))
    y = y + p["b"][None, :, None, None]
    y = (y - p["mean"][None, :, None, None]) / jnp.sqrt(p["var"][None, :, None, None] + EPS)
    y = y * p["gamma"][None, :, None, None] + p["beta"][None, :, None, None]
    return jnp.maximum(y, 0.0)


def ref_forward(x, params):
    b1 = _ref_conv_bn_relu(x, params["b1"][0], 0)
    b2 = _ref_conv_bn_relu(_ref_conv_bn_relu(x, params["b2"][0], 0), params["b2"][1], 1)
    b3 = _ref_conv_bn_relu(x, params["b3"][0], 0)
    b3 = _ref_conv_bn_relu(b3, params["b3"][1], 1)
    b3 = _ref_conv_bn_relu(b3, params["b3"][2], 1)
    mp = jax.lax.reduce_window(x, -jnp.inf, jax.lax.max,
                               (1, 1, 3, 3), (1, 1, 1, 1),
                               [(0, 0), (0, 0), (1, 1), (1, 1)])
    b4 = _ref_conv_bn_relu(mp, params["b4"][0], 0)
    return jnp.concatenate([b1, b2, b3, b4], axis=1)


# --------------------------------------------------------------------------
if __name__ == "__main__":
    key = jax.random.PRNGKey(0)
    k_x, k_p = jax.random.split(key)

    N, Cin, H, W = 2, 4, 16, 16
    n1x1, n3x3_red, n3x3, n5x5_red, n5x5, pool_proj = 8, 4, 8, 4, 8, 8

    x = jax.random.normal(k_x, (N, Cin, H, W), jnp.float32)
    params = init_inception_params(k_p, Cin, n1x1, n3x3_red, n3x3,
                                   n5x5_red, n5x5, pool_proj)

    out = jax.block_until_ready(inception_forward(x, params))
    expected = jax.block_until_ready(ref_forward(x, params))

    assert out.shape == (N, n1x1 + n3x3 + n5x5 + pool_proj, H, W), out.shape
    # bf16 matmul operands / intermediates => looser tolerance than pure f32.
    np.testing.assert_allclose(np.asarray(out), np.asarray(expected),
                               rtol=5e-2, atol=5e-2)
    print("KERNEL_OK")
</pallas_src>

<mosaic_0001>
module attributes {stable_mosaic.version = 11 : i64} {
  func.func @_inception_kernel(%arg0: i32, %arg1: memref<1x16x16x4xbf16, #tpu.memory_space<vmem>>, %arg2: memref<4x16xbf16, #tpu.memory_space<vmem>>, %arg3: memref<1x16xf32, #tpu.memory_space<vmem>>, %arg4: memref<4x8xbf16, #tpu.memory_space<vmem>>, %arg5: memref<1x8xf32, #tpu.memory_space<vmem>>, %arg6: memref<3x12x8xbf16, #tpu.memory_space<vmem>>, %arg7: memref<1x8xf32, #tpu.memory_space<vmem>>, %arg8: memref<3x12x8xbf16, #tpu.memory_space<vmem>>, %arg9: memref<1x8xf32, #tpu.memory_space<vmem>>, %arg10: memref<3x24x8xbf16, #tpu.memory_space<vmem>>, %arg11: memref<1x8xf32, #tpu.memory_space<vmem>>, %arg12: memref<1x16x16x32xf32, #tpu.memory_space<vmem>>, %arg13: memref<18x18x4xbf16, #tpu.memory_space<vmem>>, %arg14: memref<18x18x4xbf16, #tpu.memory_space<vmem>>, %arg15: memref<18x18x4xbf16, #tpu.memory_space<vmem>>, %arg16: memref<18x18x8xbf16, #tpu.memory_space<vmem>>) attributes {dimension_semantics = [#tpu.dimension_semantics<parallel>], iteration_bounds = array<i64: 2>, scalar_prefetch = 0 : i64, scratch_operands = 4 : i64, tpu.core_type = #tpu.core_type<tc>, window_params = [{transform_indices = @transform_0, window_bounds = array<i64: 1, 16, 16, 4>}, {pipeline_mode = #tpu.pipeline_mode<synchronous>, transform_indices = @transform_1, window_bounds = array<i64: 4, 16>}, {pipeline_mode = #tpu.pipeline_mode<synchronous>, transform_indices = @transform_2, window_bounds = array<i64: 1, 16>}, {pipeline_mode = #tpu.pipeline_mode<synchronous>, transform_indices = @transform_3, window_bounds = array<i64: 4, 8>}, {pipeline_mode = #tpu.pipeline_mode<synchronous>, transform_indices = @transform_4, window_bounds = array<i64: 1, 8>}, {pipeline_mode = #tpu.pipeline_mode<synchronous>, transform_indices = @transform_5, window_bounds = array<i64: 3, 12, 8>}, {pipeline_mode = #tpu.pipeline_mode<synchronous>, transform_indices = @transform_6, window_bounds = array<i64: 1, 8>}, {pipeline_mode = #tpu.pipeline_mode<synchronous>, transform_indices = @transform_7, window_bounds = array<i64: 3, 12, 8>}, {pipeline_mode = #tpu.pipeline_mode<synchronous>, transform_indices = @transform_8, window_bounds = array<i64: 1, 8>}, {pipeline_mode = #tpu.pipeline_mode<synchronous>, transform_indices = @transform_9, window_bounds = array<i64: 3, 24, 8>}, {pipeline_mode = #tpu.pipeline_mode<synchronous>, transform_indices = @transform_10, window_bounds = array<i64: 1, 8>}, {transform_indices = @transform_11, window_bounds = array<i64: 1, 16, 16, 32>}]} {
    %c0 = arith.constant 0 : index
    %c0_0 = arith.constant 0 : index
    %c0_1 = arith.constant 0 : index
    %c0_2 = arith.constant 0 : index
    %0 = vector.load %arg1[%c0, %c0_0, %c0_1, %c0_2] : memref<1x16x16x4xbf16, #tpu.memory_space<vmem>>, vector<1x16x16x4xbf16>
    %1 = vector.shape_cast %0 : vector<1x16x16x4xbf16> to vector<16x16x4xbf16>
    %2 = vector.shape_cast %1 : vector<16x16x4xbf16> to vector<256x4xbf16>
    %c0_3 = arith.constant 0 : index
    %c0_4 = arith.constant 0 : index
    %3 = vector.load %arg2[%c0_3, %c0_4] : memref<4x16xbf16, #tpu.memory_space<vmem>>, vector<4x16xbf16>
    %cst = arith.constant dense<0.000000e+00> : vector<256x16xf32>
    %4 = tpu.matmul %2, %3, %cst {dimension_numbers = #tpu.dot_dimension_numbers<[1], [0], [0], [1], [0, 0, 1, 1], [], []>} : vector<256x4xbf16>, vector<4x16xbf16>, vector<256x16xf32> -> vector<256x16xf32>
    %c0_5 = arith.constant 0 : index
    %c0_6 = arith.constant 0 : index
    %5 = vector.load %arg3[%c0_5, %c0_6] : memref<1x16xf32, #tpu.memory_space<vmem>>, vector<1x16xf32>
    %6 = vector.broadcast %5 : vector<1x16xf32> to vector<256x16xf32>
    %7 = arith.addf %4, %6 : vector<256x16xf32>
    %cst_7 = arith.constant 0.000000e+00 : f32
    %8 = vector.broadcast %cst_7 : f32 to vector<256x16xf32>
    %9 = arith.maximumf %7, %8 : vector<256x16xf32>
    %10 = vector.extract_strided_slice %9 {offsets = [0, 0], sizes = [256, 8], strides = [1, 1]} : vector<256x16xf32> to vector<256x8xf32>
    %11 = vector.extract_strided_slice %9 {offsets = [0, 8], sizes = [256, 4], strides = [1, 1]} : vector<256x16xf32> to vector<256x4xf32>
    %12 = arith.truncf %11 : vector<256x4xf32> to vector<256x4xbf16>
    %13 = vector.extract_strided_slice %9 {offsets = [0, 12], sizes = [256, 4], strides = [1, 1]} : vector<256x16xf32> to vector<256x4xf32>
    %14 = arith.truncf %13 : vector<256x4xf32> to vector<256x4xbf16>
    %cst_8 = arith.constant 0xFF80 : bf16
    %15 = vector.broadcast %cst_8 : bf16 to vector<18x18x4xbf16>
    %c0_9 = arith.constant 0 : index
    %c0_10 = arith.constant 0 : index
    %c0_11 = arith.constant 0 : index
    %16 = vector.load %arg13[%c0_9, %c0_10, %c0_11] : memref<18x18x4xbf16, #tpu.memory_space<vmem>>, vector<18x18x4xbf16>
    tpu.vector_store %arg13[%c0_9, %c0_10, %c0_11], %15 {strides = array<i32>} : memref<18x18x4xbf16, #tpu.memory_space<vmem>>, vector<18x18x4xbf16>,
    %c1 = arith.constant 1 : index
    %c1_12 = arith.constant 1 : index
    %c0_13 = arith.constant 0 : index
    %17 = vector.load %arg13[%c1, %c1_12, %c0_13] : memref<18x18x4xbf16, #tpu.memory_space<vmem>>, vector<16x16x4xbf16>
    tpu.vector_store %arg13[%c1, %c1_12, %c0_13], %1 {strides = array<i32>} : memref<18x18x4xbf16, #tpu.memory_space<vmem>>, vector<16x16x4xbf16>,
    %c0_14 = arith.constant 0 : index
    %c0_15 = arith.constant 0 : index
    %c0_16 = arith.constant 0 : index
    %18 = vector.load %arg13[%c0_14, %c0_15, %c0_16] : memref<18x18x4xbf16, #tpu.memory_space<vmem>>, vector<18x18x4xbf16>
    %19 = vector.extract_strided_slice %18 {offsets = [0, 0, 0], sizes = [18, 16, 4], strides = [1, 1, 1]} : vector<18x18x4xbf16> to vector<18x16x4xbf16>
    %20 = vector.extract_strided_slice %18 {offsets = [0, 1, 0], sizes = [18, 16, 4], strides = [1, 1, 1]} : vector<18x18x4xbf16> to vector<18x16x4xbf16>
    %21 = arith.maximumf %19, %20 : vector<18x16x4xbf16>
    %22 = vector.extract_strided_slice %18 {offsets = [0, 2, 0], sizes = [18, 16, 4], strides = [1, 1, 1]} : vector<18x18x4xbf16> to vector<18x16x4xbf16>
    %23 = arith.maximumf %21, %22 : vector<18x16x4xbf16>
    %24 = vector.extract_strided_slice %23 {offsets = [0, 0, 0], sizes = [16, 16, 4], strides = [1, 1, 1]} : vector<18x16x4xbf16> to vector<16x16x4xbf16>
    %25 = vector.extract_strided_slice %23 {offsets = [1, 0, 0], sizes = [16, 16, 4], strides = [1, 1, 1]} : vector<18x16x4xbf16> to vector<16x16x4xbf16>
    %26 = arith.maximumf %24, %25 : vector<16x16x4xbf16>
    %27 = vector.extract_strided_slice %23 {offsets = [2, 0, 0], sizes = [16, 16, 4], strides = [1, 1, 1]} : vector<18x16x4xbf16> to vector<16x16x4xbf16>
    %28 = arith.maximumf %26, %27 : vector<16x16x4xbf16>
    %29 = vector.shape_cast %28 : vector<16x16x4xbf16> to vector<256x4xbf16>
    %c0_17 = arith.constant 0 : index
    %c0_18 = arith.constant 0 : index
    %30 = vector.load %arg4[%c0_17, %c0_18] : memref<4x8xbf16, #tpu.memory_space<vmem>>, vector<4x8xbf16>
    %cst_19 = arith.constant dense<0.000000e+00> : vector<256x8xf32>
    %31 = tpu.matmul %29, %30, %cst_19 {dimension_numbers = #tpu.dot_dimension_numbers<[1], [0], [0], [1], [0, 0, 1, 1], [], []>} : vector<256x4xbf16>, vector<4x8xbf16>, vector<256x8xf32> -> vector<256x8xf32>
    %c0_20 = arith.constant 0 : index
    %c0_21 = arith.constant 0 : index
    %32 = vector.load %arg5[%c0_20, %c0_21] : memref<1x8xf32, #tpu.memory_space<vmem>>, vector<1x8xf32>
    %33 = vector.broadcast %32 : vector<1x8xf32> to vector<256x8xf32>
    %34 = arith.addf %31, %33 : vector<256x8xf32>
    %cst_22 = arith.constant 0.000000e+00 : f32
    %35 = vector.broadcast %cst_22 : f32 to vector<256x8xf32>
    %36 = arith.maximumf %34, %35 : vector<256x8xf32>
    %cst_23 = arith.constant 0.000000e+00 : bf16
    %37 = vector.broadcast %cst_23 : bf16 to vector<18x18x4xbf16>
    %c0_24 = arith.constant 0 : index
    %c0_25 = arith.constant 0 : index
    %c0_26 = arith.constant 0 : index
    %38 = vector.load %arg14[%c0_24, %c0_25, %c0_26] : memref<18x18x4xbf16, #tpu.memory_space<vmem>>, vector<18x18x4xbf16>
    tpu.vector_store %arg14[%c0_24, %c0_25, %c0_26], %37 {strides = array<i32>} : memref<18x18x4xbf16, #tpu.memory_space<vmem>>, vector<18x18x4xbf16>,
    %39 = vector.shape_cast %12 : vector<256x4xbf16> to vector<16x16x4xbf16>
    %c1_27 = arith.constant 1 : index
    %c1_28 = arith.constant 1 : index
    %c0_29 = arith.constant 0 : index
    %40 = vector.load %arg14[%c1_27, %c1_28, %c0_29] : memref<18x18x4xbf16, #tpu.memory_space<vmem>>, vector<16x16x4xbf16>
    tpu.vector_store %arg14[%c1_27, %c1_28, %c0_29], %39 {strides = array<i32>} : memref<18x18x4xbf16, #tpu.memory_space<vmem>>, vector<16x16x4xbf16>,
    %c0_30 = arith.constant 0 : index
    %c0_31 = arith.constant 0 : index
    %c0_32 = arith.constant 0 : index
    %41 = vector.load %arg14[%c0_30, %c0_31, %c0_32] : memref<18x18x4xbf16, #tpu.memory_space<vmem>>, vector<18x18x4xbf16>
    %42 = vector.extract_strided_slice %41 {offsets = [0, 0, 0], sizes = [18, 16, 4], strides = [1, 1, 1]} : vector<18x18x4xbf16> to vector<18x16x4xbf16>
    %43 = vector.extract_strided_slice %41 {offsets = [0, 1, 0], sizes = [18, 16, 4], strides = [1, 1, 1]} : vector<18x18x4xbf16> to vector<18x16x4xbf16>
    %44 = vector.extract_strided_slice %41 {offsets = [0, 2, 0], sizes = [18, 16, 4], strides = [1, 1, 1]} : vector<18x18x4xbf16> to vector<18x16x4xbf16>
    %45 = tpu.concatenate %42, %43, %44 in 2 : vector<18x16x4xbf16>, vector<18x16x4xbf16>, vector<18x16x4xbf16> -> vector<18x16x12xbf16>
    %cst_33 = arith.constant 0.000000e+00 : f32
    %46 = vector.broadcast %cst_33 : f32 to vector<256x8xf32>
    %47 = vector.extract_strided_slice %45 {offsets = [0, 0, 0], sizes = [16, 16, 12], strides = [1, 1, 1]} : vector<18x16x12xbf16> to vector<16x16x12xbf16>
    %48 = vector.shape_cast %47 : vector<16x16x12xbf16> to vector<256x12xbf16>
    %c0_34 = arith.constant 0 : index
    %c0_35 = arith.constant 0 : index
    %c0_36 = arith.constant 0 : index
    %49 = vector.load %arg6[%c0_34, %c0_35, %c0_36] : memref<3x12x8xbf16, #tpu.memory_space<vmem>>, vector<1x12x8xbf16>
    %50 = vector.shape_cast %49 : vector<1x12x8xbf16> to vector<12x8xbf16>
    %cst_37 = arith.constant dense<0.000000e+00> : vector<256x8xf32>
    %51 = tpu.matmul %48, %50, %cst_37 {dimension_numbers = #tpu.dot_dimension_numbers<[1], [0], [0], [1], [0, 0, 1, 1], [], []>} : vector<256x12xbf16>, vector<12x8xbf16>, vector<256x8xf32> -> vector<256x8xf32>
    %52 = arith.addf %46, %51 : vector<256x8xf32>
    %53 = vector.extract_strided_slice %45 {offsets = [1, 0, 0], sizes = [16, 16, 12], strides = [1, 1, 1]} : vector<18x16x12xbf16> to vector<16x16x12xbf16>
    %54 = vector.shape_cast %53 : vector<16x16x12xbf16> to vector<256x12xbf16>
    %c1_38 = arith.constant 1 : index
    %c0_39 = arith.constant 0 : index
    %c0_40 = arith.constant 0 : index
    %55 = vector.load %arg6[%c1_38, %c0_39, %c0_40] : memref<3x12x8xbf16, #tpu.memory_space<vmem>>, vector<1x12x8xbf16>
    %56 = vector.shape_cast %55 : vector<1x12x8xbf16> to vector<12x8xbf16>
    %cst_41 = arith.constant dense<0.000000e+00> : vector<256x8xf32>
    %57 = tpu.matmul %54, %56, %cst_41 {dimension_numbers = #tpu.dot_dimension_numbers<[1], [0], [0], [1], [0, 0, 1, 1], [], []>} : vector<256x12xbf16>, vector<12x8xbf16>, vector<256x8xf32> -> vector<256x8xf32>
    %58 = arith.addf %52, %57 : vector<256x8xf32>
    %59 = vector.extract_strided_slice %45 {offsets = [2, 0, 0], sizes = [16, 16, 12], strides = [1, 1, 1]} : vector<18x16x12xbf16> to vector<16x16x12xbf16>
    %60 = vector.shape_cast %59 : vector<16x16x12xbf16> to vector<256x12xbf16>
    %c2 = arith.constant 2 : index
    %c0_42 = arith.constant 0 : index
    %c0_43 = arith.constant 0 : index
    %61 = vector.load %arg6[%c2, %c0_42, %c0_43] : memref<3x12x8xbf16, #tpu.memory_space<vmem>>, vector<1x12x8xbf16>
    %62 = vector.shape_cast %61 : vector<1x12x8xbf16> to vector<12x8xbf16>
    %cst_44 = arith.constant dense<0.000000e+00> : vector<256x8xf32>
    %63 = tpu.matmul %60, %62, %cst_44 {dimension_numbers = #tpu.dot_dimension_numbers<[1], [0], [0], [1], [0, 0, 1, 1], [], []>} : vector<256x12xbf16>, vector<12x8xbf16>, vector<256x8xf32> -> vector<256x8xf32>
    %64 = arith.addf %58, %63 : vector<256x8xf32>
    %c0_45 = arith.constant 0 : index
    %c0_46 = arith.constant 0 : index
    %65 = vector.load %arg7[%c0_45, %c0_46] : memref<1x8xf32, #tpu.memory_space<vmem>>, vector<1x8xf32>
    %66 = vector.broadcast %65 : vector<1x8xf32> to vector<256x8xf32>
    %67 = arith.addf %64, %66 : vector<256x8xf32>
    %cst_47 = arith.constant 0.000000e+00 : f32
    %68 = vector.broadcast %cst_47 : f32 to vector<256x8xf32>
    %69 = arith.maximumf %67, %68 : vector<256x8xf32>
    %cst_48 = arith.constant 0.000000e+00 : bf16
    %70 = vector.broadcast %cst_48 : bf16 to vector<18x18x4xbf16>
    %c0_49 = arith.constant 0 : index
    %c0_50 = arith.constant 0 : index
    %c0_51 = arith.constant 0 : index
    %71 = vector.load %arg15[%c0_49, %c0_50, %c0_51] : memref<18x18x4xbf16, #tpu.memory_space<vmem>>, vector<18x18x4xbf16>
    tpu.vector_store %arg15[%c0_49, %c0_50, %c0_51], %70 {strides = array<i32>} : memref<18x18x4xbf16, #tpu.memory_space<vmem>>, vector<18x18x4xbf16>,
    %72 = vector.shape_cast %14 : vector<256x4xbf16> to vector<16x16x4xbf16>
    %c1_52 = arith.constant 1 : index
    %c1_53 = arith.constant 1 : index
    %c0_54 = arith.constant 0 : index
    %73 = vector.load %arg15[%c1_52, %c1_53, %c0_54] : memref<18x18x4xbf16, #tpu.memory_space<vmem>>, vector<16x16x4xbf16>
    tpu.vector_store %arg15[%c1_52, %c1_53, %c0_54], %72 {strides = array<i32>} : memref<18x18x4xbf16, #tpu.memory_space<vmem>>, vector<16x16x4xbf16>,
    %c0_55 = arith.constant 0 : index
    %c0_56 = arith.constant 0 : index
    %c0_57 = arith.constant 0 : index
    %74 = vector.load %arg15[%c0_55, %c0_56, %c0_57] : memref<18x18x4xbf16, #tpu.memory_space<vmem>>, vector<18x18x4xbf16>
    %75 = vector.extract_strided_slice %74 {offsets = [0, 0, 0], sizes = [18, 16, 4], strides = [1, 1, 1]} : vector<18x18x4xbf16> to vector<18x16x4xbf16>
    %76 = vector.extract_strided_slice %74 {offsets = [0, 1, 0], sizes = [18, 16, 4], strides = [1, 1, 1]} : vector<18x18x4xbf16> to vector<18x16x4xbf16>
    %77 = vector.extract_strided_slice %74 {offsets = [0, 2, 0], sizes = [18, 16, 4], strides = [1, 1, 1]} : vector<18x18x4xbf16> to vector<18x16x4xbf16>
    %78 = tpu.concatenate %75, %76, %77 in 2 : vector<18x16x4xbf16>, vector<18x16x4xbf16>, vector<18x16x4xbf16> -> vector<18x16x12xbf16>
    %cst_58 = arith.constant 0.000000e+00 : f32
    %79 = vector.broadcast %cst_58 : f32 to vector<256x8xf32>
    %80 = vector.extract_strided_slice %78 {offsets = [0, 0, 0], sizes = [16, 16, 12], strides = [1, 1, 1]} : vector<18x16x12xbf16> to vector<16x16x12xbf16>
    %81 = vector.shape_cast %80 : vector<16x16x12xbf16> to vector<256x12xbf16>
    %c0_59 = arith.constant 0 : index
    %c0_60 = arith.constant 0 : index
    %c0_61 = arith.constant 0 : index
    %82 = vector.load %arg8[%c0_59, %c0_60, %c0_61] : memref<3x12x8xbf16, #tpu.memory_space<vmem>>, vector<1x12x8xbf16>
    %83 = vector.shape_cast %82 : vector<1x12x8xbf16> to vector<12x8xbf16>
    %cst_62 = arith.constant dense<0.000000e+00> : vector<256x8xf32>
    %84 = tpu.matmul %81, %83, %cst_62 {dimension_numbers = #tpu.dot_dimension_numbers<[1], [0], [0], [1], [0, 0, 1, 1], [], []>} : vector<256x12xbf16>, vector<12x8xbf16>, vector<256x8xf32> -> vector<256x8xf32>
    %85 = arith.addf %79, %84 : vector<256x8xf32>
    %86 = vector.extract_strided_slice %78 {offsets = [1, 0, 0], sizes = [16, 16, 12], strides = [1, 1, 1]} : vector<18x16x12xbf16> to vector<16x16x12xbf16>
    %87 = vector.shape_cast %86 : vector<16x16x12xbf16> to vector<256x12xbf16>
    %c1_63 = arith.constant 1 : index
    %c0_64 = arith.constant 0 : index
    %c0_65 = arith.constant 0 : index
    %88 = vector.load %arg8[%c1_63, %c0_64, %c0_65] : memref<3x12x8xbf16, #tpu.memory_space<vmem>>, vector<1x12x8xbf16>
    %89 = vector.shape_cast %88 : vector<1x12x8xbf16> to vector<12x8xbf16>
    %cst_66 = arith.constant dense<0.000000e+00> : vector<256x8xf32>
    %90 = tpu.matmul %87, %89, %cst_66 {dimension_numbers = #tpu.dot_dimension_numbers<[1], [0], [0], [1], [0, 0, 1, 1], [], []>} : vector<256x12xbf16>, vector<12x8xbf16>, vector<256x8xf32> -> vector<256x8xf32>
    %91 = arith.addf %85, %90 : vector<256x8xf32>
    %92 = vector.extract_strided_slice %78 {offsets = [2, 0, 0], sizes = [16, 16, 12], strides = [1, 1, 1]} : vector<18x16x12xbf16> to vector<16x16x12xbf16>
    %93 = vector.shape_cast %92 : vector<16x16x12xbf16> to vector<256x12xbf16>
    %c2_67 = arith.constant 2 : index
    %c0_68 = arith.constant 0 : index
    %c0_69 = arith.constant 0 : index
    %94 = vector.load %arg8[%c2_67, %c0_68, %c0_69] : memref<3x12x8xbf16, #tpu.memory_space<vmem>>, vector<1x12x8xbf16>
    %95 = vector.shape_cast %94 : vector<1x12x8xbf16> to vector<12x8xbf16>
    %cst_70 = arith.constant dense<0.000000e+00> : vector<256x8xf32>
    %96 = tpu.matmul %93, %95, %cst_70 {dimension_numbers = #tpu.dot_dimension_numbers<[1], [0], [0], [1], [0, 0, 1, 1], [], []>} : vector<256x12xbf16>, vector<12x8xbf16>, vector<256x8xf32> -> vector<256x8xf32>
    %97 = arith.addf %91, %96 : vector<256x8xf32>
    %c0_71 = arith.constant 0 : index
    %c0_72 = arith.constant 0 : index
    %98 = vector.load %arg9[%c0_71, %c0_72] : memref<1x8xf32, #tpu.memory_space<vmem>>, vector<1x8xf32>
    %99 = vector.broadcast %98 : vector<1x8xf32> to vector<256x8xf32>
    %100 = arith.addf %97, %99 : vector<256x8xf32>
    %cst_73 = arith.constant 0.000000e+00 : f32
    %101 = vector.broadcast %cst_73 : f32 to vector<256x8xf32>
    %102 = arith.maximumf %100, %101 : vector<256x8xf32>
    %cst_74 = arith.constant 0.000000e+00 : bf16
    %103 = vector.broadcast %cst_74 : bf16 to vector<18x18x8xbf16>
    %c0_75 = arith.constant 0 : index
    %c0_76 = arith.constant 0 : index
    %c0_77 = arith.constant 0 : index
    %104 = vector.load %arg16[%c0_75, %c0_76, %c0_77] : memref<18x18x8xbf16, #tpu.memory_space<vmem>>, vector<18x18x8xbf16>
    tpu.vector_store %arg16[%c0_75, %c0_76, %c0_77], %103 {strides = array<i32>} : memref<18x18x8xbf16, #tpu.memory_space<vmem>>, vector<18x18x8xbf16>,
    %105 = arith.truncf %102 : vector<256x8xf32> to vector<256x8xbf16>
    %106 = vector.shape_cast %105 : vector<256x8xbf16> to vector<16x16x8xbf16>
    %c1_78 = arith.constant 1 : index
    %c1_79 = arith.constant 1 : index
    %c0_80 = arith.constant 0 : index
    %107 = vector.load %arg16[%c1_78, %c1_79, %c0_80] : memref<18x18x8xbf16, #tpu.memory_space<vmem>>, vector<16x16x8xbf16>
    tpu.vector_store %arg16[%c1_78, %c1_79, %c0_80], %106 {strides = array<i32>} : memref<18x18x8xbf16, #tpu.memory_space<vmem>>, vector<16x16x8xbf16>,
    %c0_81 = arith.constant 0 : index
    %c0_82 = arith.constant 0 : index
    %c0_83 = arith.constant 0 : index
    %108 = vector.load %arg16[%c0_81, %c0_82, %c0_83] : memref<18x18x8xbf16, #tpu.memory_space<vmem>>, vector<18x18x8xbf16>
    %109 = vector.extract_strided_slice %108 {offsets = [0, 0, 0], sizes = [18, 16, 8], strides = [1, 1, 1]} : vector<18x18x8xbf16> to vector<18x16x8xbf16>
    %110 = vector.extract_strided_slice %108 {offsets = [0, 1, 0], sizes = [18, 16, 8], strides = [1, 1, 1]} : vector<18x18x8xbf16> to vector<18x16x8xbf16>
    %111 = vector.extract_strided_slice %108 {offsets = [0, 2, 0], sizes = [18, 16, 8], strides = [1, 1, 1]} : vector<18x18x8xbf16> to vector<18x16x8xbf16>
    %112 = tpu.concatenate %109, %110, %111 in 2 : vector<18x16x8xbf16>, vector<18x16x8xbf16>, vector<18x16x8xbf16> -> vector<18x16x24xbf16>
    %cst_84 = arith.constant 0.000000e+00 : f32
    %113 = vector.broadcast %cst_84 : f32 to vector<256x8xf32>
    %114 = vector.extract_strided_slice %112 {offsets = [0, 0, 0], sizes = [16, 16, 24], strides = [1, 1, 1]} : vector<18x16x24xbf16> to vector<16x16x24xbf16>
    %115 = vector.shape_cast %114 : vector<16x16x24xbf16> to vector<256x24xbf16>
    %c0_85 = arith.constant 0 : index
    %c0_86 = arith.constant 0 : index
    %c0_87 = arith.constant 0 : index
    %116 = vector.load %arg10[%c0_85, %c0_86, %c0_87] : memref<3x24x8xbf16, #tpu.memory_space<vmem>>, vector<1x24x8xbf16>
    %117 = vector.shape_cast %116 : vector<1x24x8xbf16> to vector<24x8xbf16>
    %cst_88 = arith.constant dense<0.000000e+00> : vector<256x8xf32>
    %118 = tpu.matmul %115, %117, %cst_88 {dimension_numbers = #tpu.dot_dimension_numbers<[1], [0], [0], [1], [0, 0, 1, 1], [], []>} : vector<256x24xbf16>, vector<24x8xbf16>, vector<256x8xf32> -> vector<256x8xf32>
    %119 = arith.addf %113, %118 : vector<256x8xf32>
    %120 = vector.extract_strided_slice %112 {offsets = [1, 0, 0], sizes = [16, 16, 24], strides = [1, 1, 1]} : vector<18x16x24xbf16> to vector<16x16x24xbf16>
    %121 = vector.shape_cast %120 : vector<16x16x24xbf16> to vector<256x24xbf16>
    %c1_89 = arith.constant 1 : index
    %c0_90 = arith.constant 0 : index
    %c0_91 = arith.constant 0 : index
    %122 = vector.load %arg10[%c1_89, %c0_90, %c0_91] : memref<3x24x8xbf16, #tpu.memory_space<vmem>>, vector<1x24x8xbf16>
    %123 = vector.shape_cast %122 : vector<1x24x8xbf16> to vector<24x8xbf16>
    %cst_92 = arith.constant dense<0.000000e+00> : vector<256x8xf32>
    %124 = tpu.matmul %121, %123, %cst_92 {dimension_numbers = #tpu.dot_dimension_numbers<[1], [0], [0], [1], [0, 0, 1, 1], [], []>} : vector<256x24xbf16>, vector<24x8xbf16>, vector<256x8xf32> -> vector<256x8xf32>
    %125 = arith.addf %119, %124 : vector<256x8xf32>
    %126 = vector.extract_strided_slice %112 {offsets = [2, 0, 0], sizes = [16, 16, 24], strides = [1, 1, 1]} : vector<18x16x24xbf16> to vector<16x16x24xbf16>
    %127 = vector.shape_cast %126 : vector<16x16x24xbf16> to vector<256x24xbf16>
    %c2_93 = arith.constant 2 : index
    %c0_94 = arith.constant 0 : index
    %c0_95 = arith.constant 0 : index
    %128 = vector.load %arg10[%c2_93, %c0_94, %c0_95] : memref<3x24x8xbf16, #tpu.memory_space<vmem>>, vector<1x24x8xbf16>
    %129 = vector.shape_cast %128 : vector<1x24x8xbf16> to vector<24x8xbf16>
    %cst_96 = arith.constant dense<0.000000e+00> : vector<256x8xf32>
    %130 = tpu.matmul %127, %129, %cst_96 {dimension_numbers = #tpu.dot_dimension_numbers<[1], [0], [0], [1], [0, 0, 1, 1], [], []>} : vector<256x24xbf16>, vector<24x8xbf16>, vector<256x8xf32> -> vector<256x8xf32>
    %131 = arith.addf %125, %130 : vector<256x8xf32>
    %c0_97 = arith.constant 0 : index
    %c0_98 = arith.constant 0 : index
    %132 = vector.load %arg11[%c0_97, %c0_98] : memref<1x8xf32, #tpu.memory_space<vmem>>, vector<1x8xf32>
    %133 = vector.broadcast %132 : vector<1x8xf32> to vector<256x8xf32>
    %134 = arith.addf %131, %133 : vector<256x8xf32>
    %cst_99 = arith.constant 0.000000e+00 : f32
    %135 = vector.broadcast %cst_99 : f32 to vector<256x8xf32>
    %136 = arith.maximumf %134, %135 : vector<256x8xf32>
    %137 = tpu.concatenate %10, %69, %136, %36 in 1 : vector<256x8xf32>, vector<256x8xf32>, vector<256x8xf32>, vector<256x8xf32> -> vector<256x32xf32>
    %138 = vector.shape_cast %137 : vector<256x32xf32> to vector<1x16x16x32xf32>
    %c0_100 = arith.constant 0 : index
    %c0_101 = arith.constant 0 : index
    %c0_102 = arith.constant 0 : index
    %c0_103 = arith.constant 0 : index
    %139 = vector.load %arg12[%c0_100, %c0_101, %c0_102, %c0_103] : memref<1x16x16x32xf32, #tpu.memory_space<vmem>>, vector<1x16x16x32xf32>
    tpu.vector_store %arg12[%c0_100, %c0_101, %c0_102, %c0_103], %138 {strides = array<i32>} : memref<1x16x16x32xf32, #tpu.memory_space<vmem>>, vector<1x16x16x32xf32>,
    return
  }
  func.func @transform_0(%arg0: i32) -> (i32, i32, i32, i32) {
    %c0_i32 = arith.constant 0 : i32
    %c0_i32_0 = arith.constant 0 : i32
    %c0_i32_1 = arith.constant 0 : i32
    %c0_i32_2 = arith.constant 0 : i32
    return %arg0, %c0_i32, %c0_i32_0, %c0_i32_1 : i32, i32, i32, i32
  }
  func.func @transform_1(%arg0: i32) -> (i32, i32) {
    %c0_i32 = arith.constant 0 : i32
    %c0_i32_0 = arith.constant 0 : i32
    %c0_i32_1 = arith.constant 0 : i32
    return %c0_i32, %c0_i32_0 : i32, i32
  }
  func.func @transform_2(%arg0: i32) -> (i32, i32) {
    %c0_i32 = arith.constant 0 : i32
    %c0_i32_0 = arith.constant 0 : i32
    %c0_i32_1 = arith.constant 0 : i32
    return %c0_i32, %c0_i32_0 : i32, i32
  }
  func.func @transform_3(%arg0: i32) -> (i32, i32) {
    %c0_i32 = arith.constant 0 : i32
    %c0_i32_0 = arith.constant 0 : i32
    %c0_i32_1 = arith.constant 0 : i32
    return %c0_i32, %c0_i32_0 : i32, i32
  }
  func.func @transform_4(%arg0: i32) -> (i32, i32) {
    %c0_i32 = arith.constant 0 : i32
    %c0_i32_0 = arith.constant 0 : i32
    %c0_i32_1 = arith.constant 0 : i32
    return %c0_i32, %c0_i32_0 : i32, i32
  }
  func.func @transform_5(%arg0: i32) -> (i32, i32, i32) {
    %c0_i32 = arith.constant 0 : i32
    %c0_i32_0 = arith.constant 0 : i32
    %c0_i32_1 = arith.constant 0 : i32
    %c0_i32_2 = arith.constant 0 : i32
    return %c0_i32, %c0_i32_0, %c0_i32_1 : i32, i32, i32
  }
  func.func @transform_6(%arg0: i32) -> (i32, i32) {
    %c0_i32 = arith.constant 0 : i32
    %c0_i32_0 = arith.constant 0 : i32
    %c0_i32_1 = arith.constant 0 : i32
    return %c0_i32, %c0_i32_0 : i32, i32
  }
  func.func @transform_7(%arg0: i32) -> (i32, i32, i32) {
    %c0_i32 = arith.constant 0 : i32
    %c0_i32_0 = arith.constant 0 : i32
    %c0_i32_1 = arith.constant 0 : i32
    %c0_i32_2 = arith.constant 0 : i32
    return %c0_i32, %c0_i32_0, %c0_i32_1 : i32, i32, i32
  }
  func.func @transform_8(%arg0: i32) -> (i32, i32) {
    %c0_i32 = arith.constant 0 : i32
    %c0_i32_0 = arith.constant 0 : i32
    %c0_i32_1 = arith.constant 0 : i32
    return %c0_i32, %c0_i32_0 : i32, i32
  }
  func.func @transform_9(%arg0: i32) -> (i32, i32, i32) {
    %c0_i32 = arith.constant 0 : i32
    %c0_i32_0 = arith.constant 0 : i32
    %c0_i32_1 = arith.constant 0 : i32
    %c0_i32_2 = arith.constant 0 : i32
    return %c0_i32, %c0_i32_0, %c0_i32_1 : i32, i32, i32
  }
  func.func @transform_10(%arg0: i32) -> (i32, i32) {
    %c0_i32 = arith.constant 0 : i32
    %c0_i32_0 = arith.constant 0 : i32
    %c0_i32_1 = arith.constant 0 : i32
    return %c0_i32, %c0_i32_0 : i32, i32
  }
  func.func @transform_11(%arg0: i32) -> (i32, i32, i32, i32) {
    %c0_i32 = arith.constant 0 : i32
    %c0_i32_0 = arith.constant 0 : i32
    %c0_i32_1 = arith.constant 0 : i32
    %c0_i32_2 = arith.constant 0 : i32
    return %arg0, %c0_i32, %c0_i32_0, %c0_i32_1 : i32, i32, i32, i32
  }
}

</mosaic_0001>

<llo_original>
// kernel: inception_forward.1
$region0: #{inception_forward.1}
  #allocation0 [shape = 'u32[]', space=smem, size = 0x4, offset = 0x4, fixed_abs, tag = 'smem constant byte address 0x4 - core index']
  #allocation1 [shape = 'u32[72,128]{1,0:T(1,128)}', space=vmem, size = 0x9000, scoped, tag = 'internal scratch']
  #allocation2 [shape = 'bf16[18,18,4]{2,1,0:T(8,128)(2,1)}', space=vmem, size = 0x1b000, scoped, tag = 'scratch operand']
  #allocation3 [shape = 'bf16[18,18,4]{2,1,0:T(8,128)(2,1)}', space=vmem, size = 0x1b000, scoped, tag = 'scratch operand']
  #allocation4 [shape = 'bf16[18,18,4]{2,1,0:T(8,128)(2,1)}', space=vmem, size = 0x1b000, scoped, tag = 'scratch operand']
  #allocation5 [shape = 'bf16[18,18,8]{2,1,0:T(8,128)(2,1)}', space=vmem, size = 0x1b000, scoped, tag = 'scratch operand']
  %s0 = inlined_call_operand.vmem [shape: bf16[2,16,16,4], index: 0, kind: input, shape index: {}]
  %s1 = inlined_call_operand.vmem [shape: bf16[4,16], index: 1, kind: input, shape index: {}]
  %s2 = inlined_call_operand.vmem [shape: f32[1,16], index: 2, kind: input, shape index: {}]
  %s3 = inlined_call_operand.vmem [shape: bf16[4,8], index: 3, kind: input, shape index: {}]
  %s4 = inlined_call_operand.vmem [shape: f32[1,8], index: 4, kind: input, shape index: {}]
  %s5 = inlined_call_operand.vmem [shape: bf16[3,12,8], index: 5, kind: input, shape index: {}]
  %s6 = inlined_call_operand.vmem [shape: f32[1,8], index: 6, kind: input, shape index: {}]
  %s7 = inlined_call_operand.vmem [shape: bf16[3,12,8], index: 7, kind: input, shape index: {}]
  %s8 = inlined_call_operand.vmem [shape: f32[1,8], index: 8, kind: input, shape index: {}]
  %s9 = inlined_call_operand.vmem [shape: bf16[3,24,8], index: 9, kind: input, shape index: {}]
  %s10 = inlined_call_operand.vmem [shape: f32[1,8], index: 10, kind: input, shape index: {}]
  %s11 = inlined_call_operand.hbm [shape: f32[2,16,16,32], index: 11, kind: output, shape index: {}]
  %s12 = sld [smem:[#allocation0]]
  $region77: #{inception_forward.1} parent=0
    _
  %s14 = ssub.s32 1, %s12
  %s15 = scalar_select 0, %s14, %s12
  $region1: #{inception_forward.1} parent=0
    #allocation6 [shape = 'u8[262144]{0}', space=vmem, size = 0x40000, scoped, tag = 'output window, operand 0']
    #allocation7 [shape = 's32[2]{0}', space=sflag, size = 0x8, scoped, tag = 'scoped memory for inception_forward.1']
    %16 = vsyncpa [#allocation7], 0
    %s17 = scalar_lea.sflag [#allocation7], 1
    %18 = vsyncpa %s17, 0
    loop: start=0, step=1, limit=4
    $region2: #{inception_forward.1} parent=1 // loop_pre_header
      _
    $region3: #{inception_forward.1} parent=1 // loop_header
      %s20 = sphi 0, %s24
      %p21 = scmp.ge.s32.totalorder %s20, 4
      %s30 = sphi 0, %s32
      %s33 = sphi 0, %s30
      %s34 = sphi 0, %s33
      %s50 = sphi 0, %s34
      %s54 = sphi 0, %s54
      %s56 = sphi 0, %s54
      %s57 = sphi 0, %s56
      %s71 = sphi 0, %s57
      %s75 = sphi 0, %s75
      %s77 = sphi 0, %s75
      %s78 = sphi 0, %s77
      %s92 = sphi 0, %s78
      %s96 = sphi 0, %s96
      %s98 = sphi 0, %s96
      %s99 = sphi 0, %s98
      %s113 = sphi 0, %s99
      %s117 = sphi 0, %s117
      %s119 = sphi 0, %s117
      %s120 = sphi 0, %s119
      %s134 = sphi 0, %s120
      %s138 = sphi 0, %s138
      %s140 = sphi 0, %s138
      %s141 = sphi 0, %s140
      %s155 = sphi 0, %s141
      %s159 = sphi 0, %s159
      %s161 = sphi 0, %s159
      %s162 = sphi 0, %s161
      %s176 = sphi 0, %s162
      %s180 = sphi 0, %s180
      %s182 = sphi 0, %s180
      %s183 = sphi 0, %s182
      %s197 = sphi 0, %s183
      %s201 = sphi 0, %s201
      %s203 = sphi 0, %s201
      %s204 = sphi 0, %s203
      %s218 = sphi 0, %s204
      %s222 = sphi 0, %s222
      %s224 = sphi 0, %s222
      %s225 = sphi 0, %s224
      %s239 = sphi 0, %s225
      %s243 = sphi 0, %s243
      %s245 = sphi 0, %s243
      %s246 = sphi 0, %s245
      %s260 = sphi 0, %s246
      %s266 = sphi 0, %s268
      %s269 = sphi 0, %s266
      %s270 = sphi 0, %s269
      %s286 = sphi 0, %s270
    $region4: #{inception_forward.1} parent=1 // loop_header_branch
      %23 = sbr.rel (%p21) target = $region8
    $region5: #{inception_forward.1} parent=1 // loop_body
      %s25 = ssub.s32 %s20, 1
      %s26 = ssub.s32 %s20, 2
      %s27 = sadd.s32 %s20, 1
      %s28 = ssub.s32 %s20, %s27
      %p29 = scmp.eq.s32.totalorder %s28, 0
      %s31 = sadd.s32 %s30, 1
      %s32 = scalar_select %p29, %s30, %s31
      %p35 = pneg %p29
      %p36 = scmp.eq.s32.totalorder %s20, 1
      %p37 = por %p35, %p36
      %p38 = scmp.ne.s32.totalorder %s30, %s33
      %p39 = scmp.eq.s32.totalorder %s20, 0
      %p40 = por %p38, %p39
      %p41 = scmp.ne.s32.totalorder %s30, %s33
      %p42 = scmp.eq.s32.totalorder %s25, 1
      %p43 = por %p41, %p42
      %p44 = scmp.ne.s32.totalorder %s33, %s34
      %p45 = scmp.eq.s32.totalorder %s25, 0
      %p46 = por %p44, %p45
      %p47 = scmp.ne.s32.totalorder %s33, %s34
      %p48 = scmp.eq.s32.totalorder %s26, 1
      %p49 = por %p47, %p48
      %p51 = scmp.ne.s32.totalorder %s34, %s50
      %p52 = scmp.eq.s32.totalorder %s26, 0
      %p53 = por %p51, %p52
      %s55 = sadd.s32 %s54, 1
      %p58 = scmp.eq.s32.totalorder %s20, 1
      %p59 = scmp.ne.s32.totalorder %s54, %s56
      %p60 = scmp.eq.s32.totalorder %s20, 0
      %p61 = por %p59, %p60
      %p62 = scmp.ne.s32.totalorder %s54, %s56
      %p63 = scmp.eq.s32.totalorder %s25, 1
      %p64 = por %p62, %p63
      %p65 = scmp.ne.s32.totalorder %s56, %s57
      %p66 = scmp.eq.s32.totalorder %s25, 0
      %p67 = por %p65, %p66
      %p68 = scmp.ne.s32.totalorder %s56, %s57
      %p69 = scmp.eq.s32.totalorder %s26, 1
      %p70 = por %p68, %p69
      %p72 = scmp.ne.s32.totalorder %s57, %s71
      %p73 = scmp.eq.s32.totalorder %s26, 0
      %p74 = por %p72, %p73
      %s76 = sadd.s32 %s75, 1
      %p79 = scmp.eq.s32.totalorder %s20, 1
      %p80 = scmp.ne.s32.totalorder %s75, %s77
      %p81 = scmp.eq.s32.totalorder %s20, 0
      %p82 = por %p80, %p81
      %p83 = scmp.ne.s32.totalorder %s75, %s77
      %p84 = scmp.eq.s32.totalorder %s25, 1
      %p85 = por %p83, %p84
      %p86 = scmp.ne.s32.totalorder %s77, %s78
      %p87 = scmp.eq.s32.totalorder %s25, 0
      %p88 = por %p86, %p87
      %p89 = scmp.ne.s32.totalorder %s77, %s78
      %p90 = scmp.eq.s32.totalorder %s26, 1
      %p91 = por %p89, %p90
      %p93 = scmp.ne.s32.totalorder %s78, %s92
      %p94 = scmp.eq.s32.totalorder %s26, 0
      %p95 = por %p93, %p94
      %s97 = sadd.s32 %s96, 1
      %p100 = scmp.eq.s32.totalorder %s20, 1
      %p101 = scmp.ne.s32.totalorder %s96, %s98
      %p102 = scmp.eq.s32.totalorder %s20, 0
      %p103 = por %p101, %p102
      %p104 = scmp.ne.s32.totalorder %s96, %s98
      %p105 = scmp.eq.s32.totalorder %s25, 1
      %p106 = por %p104, %p105
      %p107 = scmp.ne.s32.totalorder %s98, %s99
      %p108 = scmp.eq.s32.totalorder %s25, 0
      %p109 = por %p107, %p108
      %p110 = scmp.ne.s32.totalorder %s98, %s99
      %p111 = scmp.eq.s32.totalorder %s26, 1
      %p112 = por %p110, %p111
      %p114 = scmp.ne.s32.totalorder %s99, %s113
      %p115 = scmp.eq.s32.totalorder %s26, 0
      %p116 = por %p114, %p115
      %s118 = sadd.s32 %s117, 1
      %p121 = scmp.eq.s32.totalorder %s20, 1
      %p122 = scmp.ne.s32.totalorder %s117, %s119
      %p123 = scmp.eq.s32.totalorder %s20, 0
      %p124 = por %p122, %p123
      %p125 = scmp.ne.s32.totalorder %s117, %s119
      %p126 = scmp.eq.s32.totalorder %s25, 1
      %p127 = por %p125, %p126
      %p128 = scmp.ne.s32.totalorder %s119, %s120
      %p129 = scmp.eq.s32.totalorder %s25, 0
      %p130 = por %p128, %p129
      %p131 = scmp.ne.s32.totalorder %s119, %s120
      %p132 = scmp.eq.s32.totalorder %s26, 1
      %p133 = por %p131, %p132
      %p135 = scmp.ne.s32.totalorder %s120, %s134
      %p136 = scmp.eq.s32.totalorder %s26, 0
      %p137 = por %p135, %p136
      %s139 = sadd.s32 %s138, 1
      %p142 = scmp.eq.s32.totalorder %s20, 1
      %p143 = scmp.ne.s32.totalorder %s138, %s140
      %p144 = scmp.eq.s32.totalorder %s20, 0
      %p145 = por %p143, %p144
      %p146 = scmp.ne.s32.totalorder %s138, %s140
      %p147 = scmp.eq.s32.totalorder %s25, 1
      %p148 = por %p146, %p147
      %p149 = scmp.ne.s32.totalorder %s140, %s141
      %p150 = scmp.eq.s32.totalorder %s25, 0
      %p151 = por %p149, %p150
      %p152 = scmp.ne.s32.totalorder %s140, %s141
      %p153 = scmp.eq.s32.totalorder %s26, 1
      %p154 = por %p152, %p153
      %p156 = scmp.ne.s32.totalorder %s141, %s155
      %p157 = scmp.eq.s32.totalorder %s26, 0
      %p158 = por %p156, %p157
      %s160 = sadd.s32 %s159, 1
      %p163 = scmp.eq.s32.totalorder %s20, 1
      %p164 = scmp.ne.s32.totalorder %s159, %s161
      %p165 = scmp.eq.s32.totalorder %s20, 0
      %p166 = por %p164, %p165
      %p167 = scmp.ne.s32.totalorder %s159, %s161
      %p168 = scmp.eq.s32.totalorder %s25, 1
      %p169 = por %p167, %p168
      %p170 = scmp.ne.s32.totalorder %s161, %s162
      %p171 = scmp.eq.s32.totalorder %s25, 0
      %p172 = por %p170, %p171
      %p173 = scmp.ne.s32.totalorder %s161, %s162
      %p174 = scmp.eq.s32.totalorder %s26, 1
      %p175 = por %p173, %p174
      %p177 = scmp.ne.s32.totalorder %s162, %s176
      %p178 = scmp.eq.s32.totalorder %s26, 0
      %p179 = por %p177, %p178
      %s181 = sadd.s32 %s180, 1
      %p184 = scmp.eq.s32.totalorder %s20, 1
      %p185 = scmp.ne.s32.totalorder %s180, %s182
      %p186 = scmp.eq.s32.totalorder %s20, 0
      %p187 = por %p185, %p186
      %p188 = scmp.ne.s32.totalorder %s180, %s182
      %p189 = scmp.eq.s32.totalorder %s25, 1
      %p190 = por %p188, %p189
      %p191 = scmp.ne.s32.totalorder %s182, %s183
      %p192 = scmp.eq.s32.totalorder %s25, 0
      %p193 = por %p191, %p192
      %p194 = scmp.ne.s32.totalorder %s182, %s183
      %p195 = scmp.eq.s32.totalorder %s26, 1
      %p196 = por %p194, %p195
      %p198 = scmp.ne.s32.totalorder %s183, %s197
      %p199 = scmp.eq.s32.totalorder %s26, 0
      %p200 = por %p198, %p199
      %s202 = sadd.s32 %s201, 1
      %p205 = scmp.eq.s32.totalorder %s20, 1
      %p206 = scmp.ne.s32.totalorder %s201, %s203
      %p207 = scmp.eq.s32.totalorder %s20, 0
      %p208 = por %p206, %p207
      %p209 = scmp.ne.s32.totalorder %s201, %s203
      %p210 = scmp.eq.s32.totalorder %s25, 1
      %p211 = por %p209, %p210
      %p212 = scmp.ne.s32.totalorder %s203, %s204
      %p213 = scmp.eq.s32.totalorder %s25, 0
      %p214 = por %p212, %p213
      %p215 = scmp.ne.s32.totalorder %s203, %s204
      %p216 = scmp.eq.s32.totalorder %s26, 1
      %p217 = por %p215, %p216
      %p219 = scmp.ne.s32.totalorder %s204, %s218
      %p220 = scmp.eq.s32.totalorder %s26, 0
      %p221 = por %p219, %p220
      %s223 = sadd.s32 %s222, 1
      %p226 = scmp.eq.s32.totalorder %s20, 1
      %p227 = scmp.ne.s32.totalorder %s222, %s224
      %p228 = scmp.eq.s32.totalorder %s20, 0
      %p229 = por %p227, %p228
      %p230 = scmp.ne.s32.totalorder %s222, %s224
      %p231 = scmp.eq.s32.totalorder %s25, 1
      %p232 = por %p230, %p231
      %p233 = scmp.ne.s32.totalorder %s224, %s225
      %p234 = scmp.eq.s32.totalorder %s25, 0
      %p235 = por %p233, %p234
      %p236 = scmp.ne.s32.totalorder %s224, %s225
      %p237 = scmp.eq.s32.totalorder %s26, 1
      %p238 = por %p236, %p237
      %p240 = scmp.ne.s32.totalorder %s225, %s239
      %p241 = scmp.eq.s32.totalorder %s26, 0
      %p242 = por %p240, %p241
      %s244 = sadd.s32 %s243, 1
      %p247 = scmp.eq.s32.totalorder %s20, 1
      %p248 = scmp.ne.s32.totalorder %s243, %s245
      %p249 = scmp.eq.s32.totalorder %s20, 0
      %p250 = por %p248, %p249
      %p251 = scmp.ne.s32.totalorder %s243, %s245
      %p252 = scmp.eq.s32.totalorder %s25, 1
      %p253 = por %p251, %p252
      %p254 = scmp.ne.s32.totalorder %s245, %s246
      %p255 = scmp.eq.s32.totalorder %s25, 0
      %p256 = por %p254, %p255
      %p257 = scmp.ne.s32.totalorder %s245, %s246
      %p258 = scmp.eq.s32.totalorder %s26, 1
      %p259 = por %p257, %p258
      %p261 = scmp.ne.s32.totalorder %s246, %s260
      %p262 = scmp.eq.s32.totalorder %s26, 0
      %p263 = por %p261, %p262
      %s264 = ssub.s32 %s20, %s27
      %p265 = scmp.eq.s32.totalorder %s264, 0
      %s267 = sadd.s32 %s266, 1
      %s268 = scalar_select %p265, %s266, %s267
      %p271 = pneg %p265
      %p272 = scmp.eq.s32.totalorder %s20, 1
      %p273 = por %p271, %p272
      %p274 = scmp.ne.s32.totalorder %s266, %s269
      %p275 = scmp.eq.s32.totalorder %s20, 0
      %p276 = por %p274, %p275
      %p277 = scmp.ne.s32.totalorder %s266, %s269
      %p278 = scmp.eq.s32.totalorder %s25, 1
      %p279 = por %p277, %p278
      %p280 = scmp.ne.s32.totalorder %s269, %s270
      %p281 = scmp.eq.s32.totalorder %s25, 0
      %p282 = por %p280, %p281
      %p283 = scmp.ne.s32.totalorder %s269, %s270
      %p284 = scmp.eq.s32.totalorder %s26, 1
      %p285 = por %p283, %p284
      %p287 = scmp.ne.s32.totalorder %s270, %s286
      %p288 = scmp.eq.s32.totalorder %s26, 0
      %p289 = por %p287, %p288
      %p290 = scmp.le.s32.totalorder 1, %s20
      %p291 = scmp.lt.s32.totalorder %s20, 3
      %p292 = pnand %p290, %p291
      %p293 = pneg %p292
      // Predicated region
      $region9: #{inception_forward.1} parent=5 // pred_check
        _
      $region10: #{inception_forward.1} parent=5 // pred_check_branch
        %295 = sbr.rel (%p292) target = $region12
      $region11: #{inception_forward.1} parent=5 // pred_region
        %s296 = ssub.s32 %s20, 1
        // Predicated region
        $region13: #{inception_forward.1} parent=11 // pred_check
          %p297 = pneg %p67
        $region14: #{inception_forward.1} parent=11 // pred_check_branch
          %299 = sbr.rel (%p297) target = $region16
        $region15: #{inception_forward.1} parent=11 // pred_region
          _
        $region16: #{inception_forward.1} parent=11 // pred_fallthru
          _
        // Predicated region
        $region17: #{inception_forward.1} parent=11 // pred_check
          %p300 = pneg %p88
        $region18: #{inception_forward.1} parent=11 // pred_check_branch
          %302 = sbr.rel (%p300) target = $region20
        $region19: #{inception_forward.1} parent=11 // pred_region
          _
        $region20: #{inception_forward.1} parent=11 // pred_fallthru
          _
        // Predicated region
        $region21: #{inception_forward.1} parent=11 // pred_check
          %p303 = pneg %p109
        $region22: #{inception_forward.1} parent=11 // pred_check_branch
          %305 = sbr.rel (%p303) target = $region24
        $region23: #{inception_forward.1} parent=11 // pred_region
          _
        $region24: #{inception_forward.1} parent=11 // pred_fallthru
          _
        // Predicated region
        $region25: #{inception_forward.1} parent=11 // pred_check
          %p306 = pneg %p130
        $region26: #{inception_forward.1} parent=11 // pred_check_branch
          %308 = sbr.rel (%p306) target = $region28
        $region27: #{inception_forward.1} parent=11 // pred_region
          _
        $region28: #{inception_forward.1} parent=11 // pred_fallthru
          _
        // Predicated region
        $region29: #{inception_forward.1} parent=11 // pred_check
          %p309 = pneg %p151
        $region30: #{inception_forward.1} parent=11 // pred_check_branch
          %311 = sbr.rel (%p309) target = $region32
        $region31: #{inception_forward.1} parent=11 // pred_region
          _
        $region32: #{inception_forward.1} parent=11 // pred_fallthru
          _
        // Predicated region
        $region33: #{inception_forward.1} parent=11 // pred_check
          %p312 = pneg %p172
        $region34: #{inception_forward.1} parent=11 // pred_check_branch
          %314 = sbr.rel (%p312) target = $region36
        $region35: #{inception_forward.1} parent=11 // pred_region
          _
        $region36: #{inception_forward.1} parent=11 // pred_fallthru
          _
        // Predicated region
        $region37: #{inception_forward.1} parent=11 // pred_check
          %p315 = pneg %p193
        $region38: #{inception_forward.1} parent=11 // pred_check_branch
          %317 = sbr.rel (%p315) target = $region40
        $region39: #{inception_forward.1} parent=11 // pred_region
          _
        $region40: #{inception_forward.1} parent=11 // pred_fallthru
          _
        // Predicated region
        $region41: #{inception_forward.1} parent=11 // pred_check
          %p318 = pneg %p214
        $region42: #{inception_forward.1} parent=11 // pred_check_branch
          %320 = sbr.rel (%p318) target = $region44
        $region43: #{inception_forward.1} parent=11 // pred_region
          _
        $region44: #{inception_forward.1} parent=11 // pred_fallthru
          _
        // Predicated region
        $region45: #{inception_forward.1} parent=11 // pred_check
          %p321 = pneg %p235
        $region46: #{inception_forward.1} parent=11 // pred_check_branch
          %323 = sbr.rel (%p321) target = $region48
        $region47: #{inception_forward.1} parent=11 // pred_region
          _
        $region48: #{inception_forward.1} parent=11 // pred_fallthru
          _
        // Predicated region
        $region49: #{inception_forward.1} parent=11 // pred_check
          %p324 = pneg %p256
        $region50: #{inception_forward.1} parent=11 // pred_check_branch
          %326 = sbr.rel (%p324) target = $region52
        $region51: #{inception_forward.1} parent=11 // pred_region
          _
        $region52: #{inception_forward.1} parent=11 // pred_fallthru
          _
      $region12: #{inception_forward.1} parent=5 // pred_fallthru
        _
      %p327 = scmp.lt.s32.totalorder %s20, 2
      // Predicated region
      $region53: #{inception_forward.1} parent=5 // pred_check
        %p328 = pneg %p327
      $region54: #{inception_forward.1} parent=5 // pred_check_branch
        %330 = sbr.rel (%p328) target = $region56
      $region55: #{inception_forward.1} parent=5 // pred_region
        // Predicated region
        $region57: #{inception_forward.1} parent=55 // pred_check
          %p331 = pneg %p40
        $region58: #{inception_forward.1} parent=55 // pred_check_branch
          %333 = sbr.rel (%p331) target = $region60
        $region59: #{inception_forward.1} parent=55 // pred_region
          %p334 = scmp.lt.s32.totalorder %s20, 1
          %s335 = scalar_select %p334, %s20, 1
          %s336 = smul.addr %s335, 32
          %s337 = smul.addr %s336, 4
          %s338 = scalar_lea.vmem %s0, %s337
        $region60: #{inception_forward.1} parent=55 // pred_fallthru
          _
      $region56: #{inception_forward.1} parent=5 // pred_fallthru
        _
      %p339 = scmp.le.s32.totalorder 1, %s20
      %p340 = scmp.lt.s32.totalorder %s20, 3
      %p341 = pnand %p339, %p340
      %p342 = pneg %p341
      // Predicated region
      $region61: #{inception_forward.1} parent=5 // pred_check
        _
      $region62: #{inception_forward.1} parent=5 // pred_check_branch
        %344 = sbr.rel (%p341) target = $region64
      $region63: #{inception_forward.1} parent=5 // pred_region
        %s345 = ssub.s32 %s20, 1
        %p346 = scmp.lt.s32.totalorder %s25, 1
        %s347 = scalar_select %p346, %s25, 1
        %s348 = smul.addr %s347, 32
        %s349 = smul.addr %s348, 4
        %s350 = scalar_lea.vmem %s0, %s349
        %p351 = pneg %p46
        %p352 = pneg %p43
        %p353 = pneg %p67
        %p354 = pneg %p64
        %p355 = pneg %p88
        %p356 = pneg %p85
        %p357 = pneg %p109
        %p358 = pneg %p106
        %p359 = pneg %p130
        %p360 = pneg %p127
        %p361 = pneg %p151
        %p362 = pneg %p148
        %p363 = pneg %p172
        %p364 = pneg %p169
        %p365 = pneg %p193
        %p366 = pneg %p190
        %p367 = pneg %p214
        %p368 = pneg %p211
        %p369 = pneg %p235
        %p370 = pneg %p232
        %p371 = pneg %p256
        %p372 = pneg %p253
        %p373 = pneg %p282
        %p374 = pneg %p279
        %s375 = sand.u32 %s269, 1
        %s376 = scalar_lea.sflag [#allocation7], %s375
        %s377 = sand.u32 %s269, 1
        %s378 = smul.addr %s377, 256
        %s379 = scalar_lea.vmem [#allocation6], %s378
        %p380 = scmp.lt.s32.totalorder %s25, 1
        %s381 = scalar_select %p380, %s25, 1
        %s382 = smul.addr %s381, 32
        %s383 = smul.addr %s382, 4
        %s384 = scalar_lea.vmem %s0, %s383
        %v387 = vld [vmem:[%s384] sm:$0xf]
        %v388 = vld [vmem:[%s384 + $0x4] sm:$0xf]
        %v389 = vld [vmem:[%s384 + $0x8] sm:$0xf]
        %v390 = vld [vmem:[%s384 + $0xc] sm:$0xf]
        %v391 = vld [vmem:[%s384 + $0x10] sm:$0xf]
        %v392 = vld [vmem:[%s384 + $0x14] sm:$0xf]
        %v393 = vld [vmem:[%s384 + $0x18] sm:$0xf]
        %v394 = vld [vmem:[%s384 + $0x1c] sm:$0xf]
        %v395 = vld [vmem:[%s384 + $0x20] sm:$0xf]
        %v396 = vld [vmem:[%s384 + $0x24] sm:$0xf]
        %v397 = vld [vmem:[%s384 + $0x28] sm:$0xf]
        %v398 = vld [vmem:[%s384 + $0x2c] sm:$0xf]
        %v399 = vld [vmem:[%s384 + $0x30] sm:$0xf]
        %v400 = vld [vmem:[%s384 + $0x34] sm:$0xf]
        %v401 = vld [vmem:[%s384 + $0x38] sm:$0xf]
        %v402 = vld [vmem:[%s384 + $0x3c] sm:$0xf]
        %v403 = vld [vmem:[%s384 + $0x40] sm:$0xf]
        %v404 = vld [vmem:[%s384 + $0x44] sm:$0xf]
        %v405 = vld [vmem:[%s384 + $0x48] sm:$0xf]
        %v406 = vld [vmem:[%s384 + $0x4c] sm:$0xf]
        %v407 = vld [vmem:[%s384 + $0x50] sm:$0xf]
        %v408 = vld [vmem:[%s384 + $0x54] sm:$0xf]
        %v409 = vld [vmem:[%s384 + $0x58] sm:$0xf]
        %v410 = vld [vmem:[%s384 + $0x5c] sm:$0xf]
        %v411 = vld [vmem:[%s384 + $0x60] sm:$0xf]
        %v412 = vld [vmem:[%s384 + $0x64] sm:$0xf]
        %v413 = vld [vmem:[%s384 + $0x68] sm:$0xf]
        %v414 = vld [vmem:[%s384 + $0x6c] sm:$0xf]
        %v415 = vld [vmem:[%s384 + $0x70] sm:$0xf]
        %v416 = vld [vmem:[%s384 + $0x74] sm:$0xf]
        %v417 = vld [vmem:[%s384 + $0x78] sm:$0xf]
        %v418 = vld [vmem:[%s384 + $0x7c] sm:$0xf]
        %v419 = vld [vmem:[%s1] sm:$0x3]
        %v420 = vld [vmem:[%s2] sm:$0x1]
        %v422 = vperm.slane %v420, 0
        %v456 = vunpack.c.l.b16 %v387
        %v457 = vunpack.c.l.b16 %v388
        %v458 = vunpack.c.l.b16 %v389
        %v459 = vunpack.c.l.b16 %v390
        %v460 = vunpack.c.l.b16 %v391
        %v461 = vunpack.c.l.b16 %v392
        %v462 = vunpack.c.l.b16 %v393
        %v463 = vunpack.c.l.b16 %v394
        %v464 = vunpack.c.l.b16 %v395
        %v465 = vunpack.c.l.b16 %v396
        %v466 = vunpack.c.l.b16 %v397
        %v467 = vunpack.c.l.b16 %v398
        %v468 = vunpack.c.l.b16 %v399
        %v469 = vunpack.c.l.b16 %v400
        %v470 = vunpack.c.l.b16 %v401
        %v471 = vunpack.c.l.b16 %v402
        %v472 = vunpack.c.l.b16 %v403
        %v473 = vunpack.c.l.b16 %v404
        %v474 = vunpack.c.l.b16 %v405
        %v475 = vunpack.c.l.b16 %v406
        %v476 = vunpack.c.l.b16 %v407
        %v477 = vunpack.c.l.b16 %v408
        %v478 = vunpack.c.l.b16 %v409
        %v479 = vunpack.c.l.b16 %v410
        %v480 = vunpack.c.l.b16 %v411
        %v481 = vunpack.c.l.b16 %v412
        %v482 = vunpack.c.l.b16 %v413
        %v483 = vunpack.c.l.b16 %v414
        %v484 = vunpack.c.l.b16 %v415
        %v485 = vunpack.c.l.b16 %v416
        %v486 = vunpack.c.l.b16 %v417
        %v487 = vunpack.c.l.b16 %v418
        %v488 = vpack.c.b16 %v457, %v456
        %v489 = vpack.c.b16 %v459, %v458
        %v490 = vpack.c.b16 %v461, %v460
        %v491 = vpack.c.b16 %v463, %v462
        %v492 = vpack.c.b16 %v465, %v464
        %v493 = vpack.c.b16 %v467, %v466
        %v494 = vpack.c.b16 %v469, %v468
        %v495 = vpack.c.b16 %v471, %v470
        %v496 = vpack.c.b16 %v473, %v472
        %v497 = vpack.c.b16 %v475, %v474
        %v498 = vpack.c.b16 %v477, %v476
        %v499 = vpack.c.b16 %v479, %v478
        %v500 = vpack.c.b16 %v481, %v480
        %v501 = vpack.c.b16 %v483, %v482
        %v502 = vpack.c.b16 %v485, %v484
        %v503 = vpack.c.b16 %v487, %v486
        %vm504 = vcmask 31744
        %v506 = vsel %vm504, %v488, 0
        %v509 = vsel %vm504, %v489, 0
        %v512 = vsel %vm504, %v490, 0
        %v515 = vsel %vm504, %v491, 0
        %v518 = vsel %vm504, %v492, 0
        %v521 = vsel %vm504, %v493, 0
        %v524 = vsel %vm504, %v494, 0
        %v527 = vsel %vm504, %v495, 0
        %v530 = vsel %vm504, %v496, 0
        %v533 = vsel %vm504, %v497, 0
        %v536 = vsel %vm504, %v498, 0
        %v539 = vsel %vm504, %v499, 0
        %v542 = vsel %vm504, %v500, 0
        %v545 = vsel %vm504, %v501, 0
        %v548 = vsel %vm504, %v502, 0
        %v551 = vsel %vm504, %v503, 0
        %vm553 = vcmask 1041408
        %v555 = vsel %vm553, %v419, 0
        %557 = vmatpush.bf16.msra.mxu0 0
        %558 = vmatpush.bf16.msra.mxu0 0
        %559 = vmatpush.bf16.msra.mxu0 0
        %560 = vmatpush.bf16.msra.mxu0 0
        %561 = vmatpush.bf16.msra.mxu0 0
        %562 = vmatpush.bf16.msra.mxu0 0
        %563 = vmatpush.bf16.msra.mxu0 0
        %564 = vmatpush.bf16.msra.mxu0 %v555
        %565 = vmatmul.bf16.gmra.mxu0 %v506
        %v566 = vpop.f32.mrf.mxu0
        %v567 = vadd.f32 %v422, %v566
        %v568 = vpop.f32.mrf.mxu0
        %v569 = vadd.f32 %v422, %v568
        %570 = vmatmul.bf16.gmra.mxu0 %v509
        %v571 = vpop.f32.mrf.mxu0
        %v572 = vadd.f32 %v422, %v571
        %v573 = vpop.f32.mrf.mxu0
        %v574 = vadd.f32 %v422, %v573
        %575 = vmatmul.bf16.gmra.mxu0 %v512
        %v576 = vpop.f32.mrf.mxu0
        %v577 = vadd.f32 %v422, %v576
        %v578 = vpop.f32.mrf.mxu0
        %v579 = vadd.f32 %v422, %v578
        %580 = vmatmul.bf16.gmra.mxu0 %v515
        %v581 = vpop.f32.mrf.mxu0
        %v582 = vadd.f32 %v422, %v581
        %v583 = vpop.f32.mrf.mxu0
        %v584 = vadd.f32 %v422, %v583
        %585 = vmatmul.bf16.gmra.mxu0 %v518
        %v586 = vpop.f32.mrf.mxu0
        %v587 = vadd.f32 %v422, %v586
        %v588 = vpop.f32.mrf.mxu0
        %v589 = vadd.f32 %v422, %v588
        %590 = vmatmul.bf16.gmra.mxu0 %v521
        %v591 = vpop.f32.mrf.mxu0
        %v592 = vadd.f32 %v422, %v591
        %v593 = vpop.f32.mrf.mxu0
        %v594 = vadd.f32 %v422, %v593
        %595 = vmatmul.bf16.gmra.mxu0 %v524
        %v596 = vpop.f32.mrf.mxu0
        %v597 = vadd.f32 %v422, %v596
        %v598 = vpop.f32.mrf.mxu0
        %v599 = vadd.f32 %v422, %v598
        %600 = vmatmul.bf16.gmra.mxu0 %v527
        %v601 = vpop.f32.mrf.mxu0
        %v602 = vadd.f32 %v422, %v601
        %v603 = vpop.f32.mrf.mxu0
        %v604 = vadd.f32 %v422, %v603
        %605 = vmatmul.bf16.gmra.mxu0 %v530
        %v606 = vpop.f32.mrf.mxu0
        %v607 = vadd.f32 %v422, %v606
        %v608 = vpop.f32.mrf.mxu0
        %v609 = vadd.f32 %v422, %v608
        %610 = vmatmul.bf16.gmra.mxu0 %v533
        %v611 = vpop.f32.mrf.mxu0
        %v612 = vadd.f32 %v422, %v611
        %v613 = vpop.f32.mrf.mxu0
        %v614 = vadd.f32 %v422, %v613
        %615 = vmatmul.bf16.gmra.mxu0 %v536
        %v616 = vpop.f32.mrf.mxu0
        %v617 = vadd.f32 %v422, %v616
        %v618 = vpop.f32.mrf.mxu0
        %v619 = vadd.f32 %v422, %v618
        %620 = vmatmul.bf16.gmra.mxu0 %v539
        %v621 = vpop.f32.mrf.mxu0
        %v622 = vadd.f32 %v422, %v621
        %v623 = vpop.f32.mrf.mxu0
        %v624 = vadd.f32 %v422, %v623
        %625 = vmatmul.bf16.gmra.mxu0 %v542
        %v626 = vpop.f32.mrf.mxu0
        %v627 = vadd.f32 %v422, %v626
        %v628 = vpop.f32.mrf.mxu0
        %v629 = vadd.f32 %v422, %v628
        %630 = vmatmul.bf16.gmra.mxu0 %v545
        %v631 = vpop.f32.mrf.mxu0
        %v632 = vadd.f32 %v422, %v631
        %v633 = vpop.f32.mrf.mxu0
        %v634 = vadd.f32 %v422, %v633
        %635 = vmatmul.bf16.gmra.mxu0 %v548
        %v636 = vpop.f32.mrf.mxu0
        %v637 = vadd.f32 %v422, %v636
        %v638 = vpop.f32.mrf.mxu0
        %v639 = vadd.f32 %v422, %v638
        %640 = vmatmul.bf16.gmra.mxu0 %v551
        %v641 = vpop.f32.mrf.mxu0
        %v642 = vadd.f32 %v422, %v641
        %v643 = vpop.f32.mrf.mxu0
        %v644 = vadd.f32 %v422, %v643
        %645 = vdwg.mxu0
        %v646 = vmax.f32 %v567, 0.0
        %v647 = vmax.f32 %v569, 0.0
        %v648 = vmax.f32 %v572, 0.0
        %v649 = vmax.f32 %v574, 0.0
        %v650 = vmax.f32 %v577, 0.0
        %v651 = vmax.f32 %v579, 0.0
        %v652 = vmax.f32 %v582, 0.0
        %v653 = vmax.f32 %v584, 0.0
        %v654 = vmax.f32 %v587, 0.0
        %v655 = vmax.f32 %v589, 0.0
        %v656 = vmax.f32 %v592, 0.0
        %v657 = vmax.f32 %v594, 0.0
        %v658 = vmax.f32 %v597, 0.0
        %v659 = vmax.f32 %v599, 0.0
        %v660 = vmax.f32 %v602, 0.0
        %v661 = vmax.f32 %v604, 0.0
        %v662 = vmax.f32 %v607, 0.0
        %v663 = vmax.f32 %v609, 0.0
        %v664 = vmax.f32 %v612, 0.0
        %v665 = vmax.f32 %v614, 0.0
        %v666 = vmax.f32 %v617, 0.0
        %v667 = vmax.f32 %v619, 0.0
        %v668 = vmax.f32 %v622, 0.0
        %v669 = vmax.f32 %v624, 0.0
        %v670 = vmax.f32 %v627, 0.0
        %v671 = vmax.f32 %v629, 0.0
        %v672 = vmax.f32 %v632, 0.0
        %v673 = vmax.f32 %v634, 0.0
        %v674 = vmax.f32 %v637, 0.0
        %v675 = vmax.f32 %v639, 0.0
        %v676 = vmax.f32 %v642, 0.0
        %v677 = vmax.f32 %v644, 0.0
        %v678 = vpack.c.bf16 %v646, %v646
        %v679 = vpack.c.bf16 %v647, %v647
        %v680 = vpack.c.bf16 %v648, %v648
        %v681 = vpack.c.bf16 %v649, %v649
        %v682 = vpack.c.bf16 %v650, %v650
        %v683 = vpack.c.bf16 %v651, %v651
        %v684 = vpack.c.bf16 %v652, %v652
        %v685 = vpack.c.bf16 %v653, %v653
        %v686 = vpack.c.bf16 %v654, %v654
        %v687 = vpack.c.bf16 %v655, %v655
        %v688 = vpack.c.bf16 %v656, %v656
        %v689 = vpack.c.bf16 %v657, %v657
        %v690 = vpack.c.bf16 %v658, %v658
        %v691 = vpack.c.bf16 %v659, %v659
        %v692 = vpack.c.bf16 %v660, %v660
        %v693 = vpack.c.bf16 %v661, %v661
        %v694 = vpack.c.bf16 %v662, %v662
        %v695 = vpack.c.bf16 %v663, %v663
        %v696 = vpack.c.bf16 %v664, %v664
        %v697 = vpack.c.bf16 %v665, %v665
        %v698 = vpack.c.bf16 %v666, %v666
        %v699 = vpack.c.bf16 %v667, %v667
        %v700 = vpack.c.bf16 %v668, %v668
        %v701 = vpack.c.bf16 %v669, %v669
        %v702 = vpack.c.bf16 %v670, %v670
        %v703 = vpack.c.bf16 %v671, %v671
        %v704 = vpack.c.bf16 %v672, %v672
        %v705 = vpack.c.bf16 %v673, %v673
        %v706 = vpack.c.bf16 %v674, %v674
        %v707 = vpack.c.bf16 %v675, %v675
        %v708 = vpack.c.bf16 %v676, %v676
        %v709 = vpack.c.bf16 %v677, %v677
        %vm710 = vcmask 27648
        %711 = vst.msk [vmem:[#allocation2] sm:$0xf] %vm710, 4286644096
        %712 = vst.msk [vmem:[#allocation2 + $0x4] sm:$0xf] %vm710, 4286644096
        %vm713 = vcmask 24576
        %714 = vst.msk [vmem:[#allocation2 + $0x8] sm:$0x1] %vm713, 4286644096
        %715 = vst.msk [vmem:[#allocation2 + $0xc] sm:$0xf] %vm710, 4286644096
        %716 = vst.msk [vmem:[#allocation2 + $0x10] sm:$0xf] %vm710, 4286644096
        %717 = vst.msk [vmem:[#allocation2 + $0x14] sm:$0x1] %vm713, 4286644096
        %718 = vst.msk [vmem:[#allocation2 + $0x18] sm:$0xf] %vm710, 4286644096
        %719 = vst.msk [vmem:[#allocation2 + $0x1c] sm:$0xf] %vm710, 4286644096
        %720 = vst.msk [vmem:[#allocation2 + $0x20] sm:$0x1] %vm713, 4286644096
        %721 = vst.msk [vmem:[#allocation2 + $0x24] sm:$0xf] %vm710, 4286644096
        %722 = vst.msk [vmem:[#allocation2 + $0x28] sm:$0xf] %vm710, 4286644096
        %723 = vst.msk [vmem:[#allocation2 + $0x2c] sm:$0x1] %vm713, 4286644096
        %724 = vst.msk [vmem:[#allocation2 + $0x30] sm:$0xf] %vm710, 4286644096
        %725 = vst.msk [vmem:[#allocation2 + $0x34] sm:$0xf] %vm710, 4286644096
        %726 = vst.msk [vmem:[#allocation2 + $0x38] sm:$0x1] %vm713, 4286644096
        %727 = vst.msk [vmem:[#allocation2 + $0x3c] sm:$0xf] %vm710, 4286644096
        %728 = vst.msk [vmem:[#allocation2 + $0x40] sm:$0xf] %vm710, 4286644096
        %729 = vst.msk [vmem:[#allocation2 + $0x44] sm:$0x1] %vm713, 4286644096
        %730 = vst.msk [vmem:[#allocation2 + $0x48] sm:$0xf] %vm710, 4286644096
        %731 = vst.msk [vmem:[#allocation2 + $0x4c] sm:$0xf] %vm710, 4286644096
        %732 = vst.msk [vmem:[#allocation2 + $0x50] sm:$0x1] %vm713, 4286644096
        %733 = vst.msk [vmem:[#allocation2 + $0x54] sm:$0xf] %vm710, 4286644096
        %734 = vst.msk [vmem:[#allocation2 + $0x58] sm:$0xf] %vm710, 4286644096
        %735 = vst.msk [vmem:[#allocation2 + $0x5c] sm:$0x1] %vm713, 4286644096
        %736 = vst.msk [vmem:[#allocation2 + $0x60] sm:$0xf] %vm710, 4286644096
        %737 = vst.msk [vmem:[#allocation2 + $0x64] sm:$0xf] %vm710, 4286644096
        %738 = vst.msk [vmem:[#allocation2 + $0x68] sm:$0x1] %vm713, 4286644096
        %739 = vst.msk [vmem:[#allocation2 + $0x6c] sm:$0xf] %vm710, 4286644096
        %740 = vst.msk [vmem:[#allocation2 + $0x70] sm:$0xf] %vm710, 4286644096
        %741 = vst.msk [vmem:[#allocation2 + $0x74] sm:$0x1] %vm713, 4286644096
        %742 = vst.msk [vmem:[#allocation2 + $0x78] sm:$0xf] %vm710, 4286644096
        %743 = vst.msk [vmem:[#allocation2 + $0x7c] sm:$0xf] %vm710, 4286644096
        %744 = vst.msk [vmem:[#allocation2 + $0x80] sm:$0x1] %vm713, 4286644096
        %745 = vst.msk [vmem:[#allocation2 + $0x84] sm:$0xf] %vm710, 4286644096
        %746 = vst.msk [vmem:[#allocation2 + $0x88] sm:$0xf] %vm710, 4286644096
        %747 = vst.msk [vmem:[#allocation2 + $0x8c] sm:$0x1] %vm713, 4286644096
        %748 = vst.msk [vmem:[#allocation2 + $0x90] sm:$0xf] %vm710, 4286644096
        %749 = vst.msk [vmem:[#allocation2 + $0x94] sm:$0xf] %vm710, 4286644096
        %750 = vst.msk [vmem:[#allocation2 + $0x98] sm:$0x1] %vm713, 4286644096
        %751 = vst.msk [vmem:[#allocation2 + $0x9c] sm:$0xf] %vm710, 4286644096
        %752 = vst.msk [vmem:[#allocation2 + $0xa0] sm:$0xf] %vm710, 4286644096
        %753 = vst.msk [vmem:[#allocation2 + $0xa4] sm:$0x1] %vm713, 4286644096
        %754 = vst.msk [vmem:[#allocation2 + $0xa8] sm:$0xf] %vm710, 4286644096
        %755 = vst.msk [vmem:[#allocation2 + $0xac] sm:$0xf] %vm710, 4286644096
        %756 = vst.msk [vmem:[#allocation2 + $0xb0] sm:$0x1] %vm713, 4286644096
        %757 = vst.msk [vmem:[#allocation2 + $0xb4] sm:$0xf] %vm710, 4286644096
        %758 = vst.msk [vmem:[#allocation2 + $0xb8] sm:$0xf] %vm710, 4286644096
        %759 = vst.msk [vmem:[#allocation2 + $0xbc] sm:$0x1] %vm713, 4286644096
        %760 = vst.msk [vmem:[#allocation2 + $0xc0] sm:$0xf] %vm710, 4286644096
        %761 = vst.msk [vmem:[#allocation2 + $0xc4] sm:$0xf] %vm710, 4286644096
        %762 = vst.msk [vmem:[#allocation2 + $0xc8] sm:$0x1] %vm713, 4286644096
        %763 = vst.msk [vmem:[#allocation2 + $0xcc] sm:$0xf] %vm710, 4286644096
        %764 = vst.msk [vmem:[#allocation2 + $0xd0] sm:$0xf] %vm710, 4286644096
        %765 = vst.msk [vmem:[#allocation2 + $0xd4] sm:$0x1] %vm713, 4286644096
        %vm766 = vsmask.f32 256
        %vm767 = vsmask.f32 4368
        %vm768 = vmor %vm766, %vm767
        %v770 = vshrl.u32 %v387, 16
        %v772 = vrot.slane %v770, 7
        %v773 = vshll.u32 %v387, 16
        %v775 = vor.u32 %v772, %v773
        %v776 = vrot.slane %v772, 4
        %v778 = vshrl.u32 %v388, 16
        %v780 = vrot.slane %v778, 7
        %v781 = vshll.u32 %v388, 16
        %v783 = vor.u32 %v780, %v781
        %v784 = vsel %vm768, %v776, %v783
        %v785 = vrot.slane %v780, 4
        %v787 = vshrl.u32 %v389, 16
        %v789 = vrot.slane %v787, 7
        %v790 = vshll.u32 %v389, 16
        %v792 = vor.u32 %v789, %v790
        %v793 = vrot.slane %v789, 4
        %v795 = vshrl.u32 %v390, 16
        %v797 = vrot.slane %v795, 7
        %v798 = vshll.u32 %v390, 16
        %v800 = vor.u32 %v797, %v798
        %v801 = vsel %vm768, %v793, %v800
        %v802 = vrot.slane %v797, 4
        %v804 = vshrl.u32 %v391, 16
        %v806 = vrot.slane %v804, 7
        %v807 = vshll.u32 %v391, 16
        %v809 = vor.u32 %v806, %v807
        %v810 = vrot.slane %v806, 4
        %v812 = vshrl.u32 %v392, 16
        %v814 = vrot.slane %v812, 7
        %v815 = vshll.u32 %v392, 16
        %v817 = vor.u32 %v814, %v815
        %v818 = vsel %vm768, %v810, %v817
        %v819 = vrot.slane %v814, 4
        %v821 = vshrl.u32 %v393, 16
        %v823 = vrot.slane %v821, 7
        %v824 = vshll.u32 %v393, 16
        %v826 = vor.u32 %v823, %v824
        %v827 = vrot.slane %v823, 4
        %v829 = vshrl.u32 %v394, 16
        %v831 = vrot.slane %v829, 7
        %v832 = vshll.u32 %v394, 16
        %v834 = vor.u32 %v831, %v832
        %v835 = vsel %vm768, %v827, %v834
        %v836 = vrot.slane %v831, 4
        %v838 = vshrl.u32 %v395, 16
        %v840 = vrot.slane %v838, 7
        %v841 = vshll.u32 %v395, 16
        %v843 = vor.u32 %v840, %v841
        %v844 = vrot.slane %v840, 4
        %v846 = vshrl.u32 %v396, 16
        %v848 = vrot.slane %v846, 7
        %v849 = vshll.u32 %v396, 16
        %v851 = vor.u32 %v848, %v849
        %v852 = vsel %vm768, %v844, %v851
        %v853 = vrot.slane %v848, 4
        %v855 = vshrl.u32 %v397, 16
        %v857 = vrot.slane %v855, 7
        %v858 = vshll.u32 %v397, 16
        %v860 = vor.u32 %v857, %v858
        %v861 = vrot.slane %v857, 4
        %v863 = vshrl.u32 %v398, 16
        %v865 = vrot.slane %v863, 7
        %v866 = vshll.u32 %v398, 16
        %v868 = vor.u32 %v865, %v866
        %v869 = vsel %vm768, %v861, %v868
        %v870 = vrot.slane %v865, 4
        %v872 = vshrl.u32 %v399, 16
        %v874 = vrot.slane %v872, 7
        %v875 = vshll.u32 %v399, 16
        %v877 = vor.u32 %v874, %v875
        %v878 = vrot.slane %v874, 4
        %v880 = vshrl.u32 %v400, 16
        %v882 = vrot.slane %v880, 7
        %v883 = vshll.u32 %v400, 16
        %v885 = vor.u32 %v882, %v883
        %v886 = vsel %vm768, %v878, %v885
        %v887 = vrot.slane %v882, 4
        %v889 = vshrl.u32 %v401, 16
        %v891 = vrot.slane %v889, 7
        %v892 = vshll.u32 %v401, 16
        %v894 = vor.u32 %v891, %v892
        %v895 = vrot.slane %v891, 4
        %v897 = vshrl.u32 %v402, 16
        %v899 = vrot.slane %v897, 7
        %v900 = vshll.u32 %v402, 16
        %v902 = vor.u32 %v899, %v900
        %v903 = vsel %vm768, %v895, %v902
        %v904 = vrot.slane %v899, 4
        %v906 = vshrl.u32 %v403, 16
        %v908 = vrot.slane %v906, 7
        %v909 = vshll.u32 %v403, 16
        %v911 = vor.u32 %v908, %v909
        %v912 = vrot.slane %v908, 4
        %v914 = vshrl.u32 %v404, 16
        %v916 = vrot.slane %v914, 7
        %v917 = vshll.u32 %v404, 16
        %v919 = vor.u32 %v916, %v917
        %v920 = vsel %vm768, %v912, %v919
        %v921 = vrot.slane %v916, 4
        %v923 = vshrl.u32 %v405, 16
        %v925 = vrot.slane %v923, 7
        %v926 = vshll.u32 %v405, 16
        %v928 = vor.u32 %v925, %v926
        %v929 = vrot.slane %v925, 4
        %v931 = vshrl.u32 %v406, 16
        %v933 = vrot.slane %v931, 7
        %v934 = vshll.u32 %v406, 16
        %v936 = vor.u32 %v933, %v934
        %v937 = vsel %vm768, %v929, %v936
        %v938 = vrot.slane %v933, 4
        %v940 = vshrl.u32 %v407, 16
        %v942 = vrot.slane %v940, 7
        %v943 = vshll.u32 %v407, 16
        %v945 = vor.u32 %v942, %v943
        %v946 = vrot.slane %v942, 4
        %v948 = vshrl.u32 %v408, 16
        %v950 = vrot.slane %v948, 7
        %v951 = vshll.u32 %v408, 16
        %v953 = vor.u32 %v950, %v951
        %v954 = vsel %vm768, %v946, %v953
        %v955 = vrot.slane %v950, 4
        %v957 = vshrl.u32 %v409, 16
        %v959 = vrot.slane %v957, 7
        %v960 = vshll.u32 %v409, 16
        %v962 = vor.u32 %v959, %v960
        %v963 = vrot.slane %v959, 4
        %v965 = vshrl.u32 %v410, 16
        %v967 = vrot.slane %v965, 7
        %v968 = vshll.u32 %v410, 16
        %v970 = vor.u32 %v967, %v968
        %v971 = vsel %vm768, %v963, %v970
        %v972 = vrot.slane %v967, 4
        %v974 = vshrl.u32 %v411, 16
        %v976 = vrot.slane %v974, 7
        %v977 = vshll.u32 %v411, 16
        %v979 = vor.u32 %v976, %v977
        %v980 = vrot.slane %v976, 4
        %v982 = vshrl.u32 %v412, 16
        %v984 = vrot.slane %v982, 7
        %v985 = vshll.u32 %v412, 16
        %v987 = vor.u32 %v984, %v985
        %v988 = vsel %vm768, %v980, %v987
        %v989 = vrot.slane %v984, 4
        %v991 = vshrl.u32 %v413, 16
        %v993 = vrot.slane %v991, 7
        %v994 = vshll.u32 %v413, 16
        %v996 = vor.u32 %v993, %v994
        %v997 = vrot.slane %v993, 4
        %v999 = vshrl.u32 %v414, 16
        %v1001 = vrot.slane %v999, 7
        %v1002 = vshll.u32 %v414, 16
        %v1004 = vor.u32 %v1001, %v1002
        %v1005 = vsel %vm768, %v997, %v1004
        %v1006 = vrot.slane %v1001, 4
        %v1008 = vshrl.u32 %v415, 16
        %v1010 = vrot.slane %v1008, 7
        %v1011 = vshll.u32 %v415, 16
        %v1013 = vor.u32 %v1010, %v1011
        %v1014 = vrot.slane %v1010, 4
        %v1016 = vshrl.u32 %v416, 16
        %v1018 = vrot.slane %v1016, 7
        %v1019 = vshll.u32 %v416, 16
        %v1021 = vor.u32 %v1018, %v1019
        %v1022 = vsel %vm768, %v1014, %v1021
        %v1023 = vrot.slane %v1018, 4
        %v1025 = vshrl.u32 %v417, 16
        %v1027 = vrot.slane %v1025, 7
        %v1028 = vshll.u32 %v417, 16
        %v1030 = vor.u32 %v1027, %v1028
        %v1031 = vrot.slane %v1027, 4
        %v1033 = vshrl.u32 %v418, 16
        %v1035 = vrot.slane %v1033, 7
        %v1036 = vshll.u32 %v418, 16
        %v1038 = vor.u32 %v1035, %v1036
        %v1039 = vsel %vm768, %v1031, %v1038
        %v1040 = vrot.slane %v1035, 4
        %s1089 = scalar_lea.vmem [#allocation2], 12
        %vm1090 = vcmask 27648
        %vm1091 = vsmask.f32 7938
        %vm1092 = vmand %vm1090, %vm1091
        %v1093 = vld [vmem:[%s1089] sm:$0xf]
        %v1094 = vsel %vm1092, %v775, %v1093
        %1095 = vst [vmem:[%s1089] sm:$0xf] %v1094
        %1096 = vst.msk [vmem:[%s1089 + $0x4] sm:$0xf] %vm710, %v784
        %vm1097 = vcmask 24576
        %vm1098 = vmand %vm1097, %vm766
        %v1099 = vld [vmem:[%s1089 + $0x8] sm:$0x1]
        %v1100 = vsel %vm1098, %v785, %v1099
        %1101 = vst [vmem:[%s1089 + $0x8] sm:$0x1] %v1100
        %v1102 = vld [vmem:[%s1089 + $0xc] sm:$0xf]
        %v1103 = vsel %vm1092, %v792, %v1102
        %1104 = vst [vmem:[%s1089 + $0xc] sm:$0xf] %v1103
        %1105 = vst.msk [vmem:[%s1089 + $0x10] sm:$0xf] %vm710, %v801
        %v1106 = vld [vmem:[%s1089 + $0x14] sm:$0x1]
        %v1107 = vsel %vm1098, %v802, %v1106
        %1108 = vst [vmem:[%s1089 + $0x14] sm:$0x1] %v1107
        %v1109 = vld [vmem:[%s1089 + $0x18] sm:$0xf]
        %v1110 = vsel %vm1092, %v809, %v1109
        %1111 = vst [vmem:[%s1089 + $0x18] sm:$0xf] %v1110
        %1112 = vst.msk [vmem:[%s1089 + $0x1c] sm:$0xf] %vm710, %v818
        %v1113 = vld [vmem:[%s1089 + $0x20] sm:$0x1]
        %v1114 = vsel %vm1098, %v819, %v1113
        %1115 = vst [vmem:[%s1089 + $0x20] sm:$0x1] %v1114
        %v1116 = vld [vmem:[%s1089 + $0x24] sm:$0xf]
        %v1117 = vsel %vm1092, %v826, %v1116
        %1118 = vst [vmem:[%s1089 + $0x24] sm:$0xf] %v1117
        %1119 = vst.msk [vmem:[%s1089 + $0x28] sm:$0xf] %vm710, %v835
        %v1120 = vld [vmem:[%s1089 + $0x2c] sm:$0x1]
        %v1121 = vsel %vm1098, %v836, %v1120
        %1122 = vst [vmem:[%s1089 + $0x2c] sm:$0x1] %v1121
        %v1123 = vld [vmem:[%s1089 + $0x30] sm:$0xf]
        %v1124 = vsel %vm1092, %v843, %v1123
        %1125 = vst [vmem:[%s1089 + $0x30] sm:$0xf] %v1124
        %1126 = vst.msk [vmem:[%s1089 + $0x34] sm:$0xf] %vm710, %v852
        %v1127 = vld [vmem:[%s1089 + $0x38] sm:$0x1]
        %v1128 = vsel %vm1098, %v853, %v1127
        %1129 = vst [vmem:[%s1089 + $0x38] sm:$0x1] %v1128
        %v1130 = vld [vmem:[%s1089 + $0x3c] sm:$0xf]
        %v1131 = vsel %vm1092, %v860, %v1130
        %1132 = vst [vmem:[%s1089 + $0x3c] sm:$0xf] %v1131
        %1133 = vst.msk [vmem:[%s1089 + $0x40] sm:$0xf] %vm710, %v869
        %v1134 = vld [vmem:[%s1089 + $0x44] sm:$0x1]
        %v1135 = vsel %vm1098, %v870, %v1134
        %1136 = vst [vmem:[%s1089 + $0x44] sm:$0x1] %v1135
        %v1137 = vld [vmem:[%s1089 + $0x48] sm:$0xf]
        %v1138 = vsel %vm1092, %v877, %v1137
        %1139 = vst [vmem:[%s1089 + $0x48] sm:$0xf] %v1138
        %1140 = vst.msk [vmem:[%s1089 + $0x4c] sm:$0xf] %vm710, %v886
        %v1141 = vld [vmem:[%s1089 + $0x50] sm:$0x1]
        %v1142 = vsel %vm1098, %v887, %v1141
        %1143 = vst [vmem:[%s1089 + $0x50] sm:$0x1] %v1142
        %v1144 = vld [vmem:[%s1089 + $0x54] sm:$0xf]
        %v1145 = vsel %vm1092, %v894, %v1144
        %1146 = vst [vmem:[%s1089 + $0x54] sm:$0xf] %v1145
        %1147 = vst.msk [vmem:[%s1089 + $0x58] sm:$0xf] %vm710, %v903
        %v1148 = vld [vmem:[%s1089 + $0x5c] sm:$0x1]
        %v1149 = vsel %vm1098, %v904, %v1148
        %1150 = vst [vmem:[%s1089 + $0x5c] sm:$0x1] %v1149
        %v1151 = vld [vmem:[%s1089 + $0x60] sm:$0xf]
        %v1152 = vsel %vm1092, %v911, %v1151
        %1153 = vst [vmem:[%s1089 + $0x60] sm:$0xf] %v1152
        %1154 = vst.msk [vmem:[%s1089 + $0x64] sm:$0xf] %vm710, %v920
        %v1155 = vld [vmem:[%s1089 + $0x68] sm:$0x1]
        %v1156 = vsel %vm1098, %v921, %v1155
        %1157 = vst [vmem:[%s1089 + $0x68] sm:$0x1] %v1156
        %v1158 = vld [vmem:[%s1089 + $0x6c] sm:$0xf]
        %v1159 = vsel %vm1092, %v928, %v1158
        %1160 = vst [vmem:[%s1089 + $0x6c] sm:$0xf] %v1159
        %1161 = vst.msk [vmem:[%s1089 + $0x70] sm:$0xf] %vm710, %v937
        %v1162 = vld [vmem:[%s1089 + $0x74] sm:$0x1]
        %v1163 = vsel %vm1098, %v938, %v1162
        %1164 = vst [vmem:[%s1089 + $0x74] sm:$0x1] %v1163
        %v1165 = vld [vmem:[%s1089 + $0x78] sm:$0xf]
        %v1166 = vsel %vm1092, %v945, %v1165
        %1167 = vst [vmem:[%s1089 + $0x78] sm:$0xf] %v1166
        %1168 = vst.msk [vmem:[%s1089 + $0x7c] sm:$0xf] %vm710, %v954
        %v1169 = vld [vmem:[%s1089 + $0x80] sm:$0x1]
        %v1170 = vsel %vm1098, %v955, %v1169
        %1171 = vst [vmem:[%s1089 + $0x80] sm:$0x1] %v1170
        %v1172 = vld [vmem:[%s1089 + $0x84] sm:$0xf]
        %v1173 = vsel %vm1092, %v962, %v1172
        %1174 = vst [vmem:[%s1089 + $0x84] sm:$0xf] %v1173
        %1175 = vst.msk [vmem:[%s1089 + $0x88] sm:$0xf] %vm710, %v971
        %v1176 = vld [vmem:[%s1089 + $0x8c] sm:$0x1]
        %v1177 = vsel %vm1098, %v972, %v1176
        %1178 = vst [vmem:[%s1089 + $0x8c] sm:$0x1] %v1177
        %v1179 = vld [vmem:[%s1089 + $0x90] sm:$0xf]
        %v1180 = vsel %vm1092, %v979, %v1179
        %1181 = vst [vmem:[%s1089 + $0x90] sm:$0xf] %v1180
        %1182 = vst.msk [vmem:[%s1089 + $0x94] sm:$0xf] %vm710, %v988
        %v1183 = vld [vmem:[%s1089 + $0x98] sm:$0x1]
        %v1184 = vsel %vm1098, %v989, %v1183
        %1185 = vst [vmem:[%s1089 + $0x98] sm:$0x1] %v1184
        %v1186 = vld [vmem:[%s1089 + $0x9c] sm:$0xf]
        %v1187 = vsel %vm1092, %v996, %v1186
        %1188 = vst [vmem:[%s1089 + $0x9c] sm:$0xf] %v1187
        %1189 = vst.msk [vmem:[%s1089 + $0xa0] sm:$0xf] %vm710, %v1005
        %v1190 = vld [vmem:[%s1089 + $0xa4] sm:$0x1]
        %v1191 = vsel %vm1098, %v1006, %v1190
        %1192 = vst [vmem:[%s1089 + $0xa4] sm:$0x1] %v1191
        %v1193 = vld [vmem:[%s1089 + $0xa8] sm:$0xf]
        %v1194 = vsel %vm1092, %v1013, %v1193
        %1195 = vst [vmem:[%s1089 + $0xa8] sm:$0xf] %v1194
        %1196 = vst.msk [vmem:[%s1089 + $0xac] sm:$0xf] %vm710, %v1022
        %v1197 = vld [vmem:[%s1089 + $0xb0] sm:$0x1]
        %v1198 = vsel %vm1098, %v1023, %v1197
        %1199 = vst [vmem:[%s1089 + $0xb0] sm:$0x1] %v1198
        %v1200 = vld [vmem:[%s1089 + $0xb4] sm:$0xf]
        %v1201 = vsel %vm1092, %v1030, %v1200
        %1202 = vst [vmem:[%s1089 + $0xb4] sm:$0xf] %v1201
        %1203 = vst.msk [vmem:[%s1089 + $0xb8] sm:$0xf] %vm710, %v1039
        %v1204 = vld [vmem:[%s1089 + $0xbc] sm:$0x1]
        %v1205 = vsel %vm1098, %v1040, %v1204
        %1206 = vst [vmem:[%s1089 + $0xbc] sm:$0x1] %v1205
        %v1207 = vld [vmem:[#allocation2] sm:$0xf]
        %v1208 = vld [vmem:[#allocation2 + $0x4] sm:$0xf]
        %v1209 = vld [vmem:[#allocation2 + $0x8] sm:$0x1]
        %v1210 = vld [vmem:[#allocation2 + $0xc] sm:$0xf]
        %v1211 = vld [vmem:[#allocation2 + $0x10] sm:$0xf]
        %v1212 = vld [vmem:[#allocation2 + $0x14] sm:$0x1]
        %v1213 = vld [vmem:[#allocation2 + $0x18] sm:$0xf]
        %v1214 = vld [vmem:[#allocation2 + $0x1c] sm:$0xf]
        %v1215 = vld [vmem:[#allocation2 + $0x20] sm:$0x1]
        %v1216 = vld [vmem:[#allocation2 + $0x24] sm:$0xf]
        %v1217 = vld [vmem:[#allocation2 + $0x28] sm:$0xf]
        %v1218 = vld [vmem:[#allocation2 + $0x2c] sm:$0x1]
        %v1219 = vld [vmem:[#allocation2 + $0x30] sm:$0xf]
        %v1220 = vld [vmem:[#allocation2 + $0x34] sm:$0xf]
        %v1221 = vld [vmem:[#allocation2 + $0x38] sm:$0x1]
        %v1222 = vld [vmem:[#allocation2 + $0x3c] sm:$0xf]
        %v1223 = vld [vmem:[#allocation2 + $0x40] sm:$0xf]
        %v1224 = vld [vmem:[#allocation2 + $0x44] sm:$0x1]
        %v1225 = vld [vmem:[#allocation2 + $0x48] sm:$0xf]
        %v1226 = vld [vmem:[#allocation2 + $0x4c] sm:$0xf]
        %v1227 = vld [vmem:[#allocation2 + $0x50] sm:$0x1]
        %v1228 = vld [vmem:[#allocation2 + $0x54] sm:$0xf]
        %v1229 = vld [vmem:[#allocation2 + $0x58] sm:$0xf]
        %v1230 = vld [vmem:[#allocation2 + $0x5c] sm:$0x1]
        %v1231 = vld [vmem:[#allocation2 + $0x60] sm:$0xf]
        %v1232 = vld [vmem:[#allocation2 + $0x64] sm:$0xf]
        %v1233 = vld [vmem:[#allocation2 + $0x68] sm:$0x1]
        %v1234 = vld [vmem:[#allocation2 + $0x6c] sm:$0xf]
        %v1235 = vld [vmem:[#allocation2 + $0x70] sm:$0xf]
        %v1236 = vld [vmem:[#allocation2 + $0x74] sm:$0x1]
        %v1237 = vld [vmem:[#allocation2 + $0x78] sm:$0xf]
        %v1238 = vld [vmem:[#allocation2 + $0x7c] sm:$0xf]
        %v1239 = vld [vmem:[#allocation2 + $0x80] sm:$0x1]
        %v1240 = vld [vmem:[#allocation2 + $0x84] sm:$0xf]
        %v1241 = vld [vmem:[#allocation2 + $0x88] sm:$0xf]
        %v1242 = vld [vmem:[#allocation2 + $0x8c] sm:$0x1]
        %v1243 = vld [vmem:[#allocation2 + $0x90] sm:$0xf]
        %v1244 = vld [vmem:[#allocation2 + $0x94] sm:$0xf]
        %v1245 = vld [vmem:[#allocation2 + $0x98] sm:$0x1]
        %v1246 = vld [vmem:[#allocation2 + $0x9c] sm:$0xf]
        %v1247 = vld [vmem:[#allocation2 + $0xa0] sm:$0xf]
        %v1248 = vld [vmem:[#allocation2 + $0xa4] sm:$0x1]
        %v1249 = vld [vmem:[#allocation2 + $0xa8] sm:$0xf]
        %v1250 = vld [vmem:[#allocation2 + $0xac] sm:$0xf]
        %v1251 = vld [vmem:[#allocation2 + $0xb0] sm:$0x1]
        %v1252 = vld [vmem:[#allocation2 + $0xb4] sm:$0xf]
        %v1253 = vld [vmem:[#allocation2 + $0xb8] sm:$0xf]
        %v1254 = vld [vmem:[#allocation2 + $0xbc] sm:$0x1]
        %v1255 = vld [vmem:[#allocation2 + $0xc0] sm:$0xf]
        %v1256 = vld [vmem:[#allocation2 + $0xc4] sm:$0xf]
        %v1257 = vld [vmem:[#allocation2 + $0xc8] sm:$0x1]
        %v1258 = vld [vmem:[#allocation2 + $0xcc] sm:$0xf]
        %v1259 = vld [vmem:[#allocation2 + $0xd0] sm:$0xf]
        %v1260 = vld [vmem:[#allocation2 + $0xd4] sm:$0x1]
        %v1261 = vunpack.c.l.bf16 %v1207
        %v1262 = vunpack.c.l.bf16 %v1208
        %v1263 = vunpack.c.l.bf16 %v1210
        %v1264 = vunpack.c.l.bf16 %v1211
        %v1265 = vunpack.c.l.bf16 %v1213
        %v1266 = vunpack.c.l.bf16 %v1214
        %v1267 = vunpack.c.l.bf16 %v1216
        %v1268 = vunpack.c.l.bf16 %v1217
        %v1269 = vunpack.c.l.bf16 %v1219
        %v1270 = vunpack.c.l.bf16 %v1220
        %v1271 = vunpack.c.l.bf16 %v1222
        %v1272 = vunpack.c.l.bf16 %v1223
        %v1273 = vunpack.c.l.bf16 %v1225
        %v1274 = vunpack.c.l.bf16 %v1226
        %v1275 = vunpack.c.l.bf16 %v1228
        %v1276 = vunpack.c.l.bf16 %v1229
        %v1277 = vunpack.c.l.bf16 %v1231
        %v1278 = vunpack.c.l.bf16 %v1232
        %v1279 = vunpack.c.l.bf16 %v1234
        %v1280 = vunpack.c.l.bf16 %v1235
        %v1281 = vunpack.c.l.bf16 %v1237
        %v1282 = vunpack.c.l.bf16 %v1238
        %v1283 = vunpack.c.l.bf16 %v1240
        %v1284 = vunpack.c.l.bf16 %v1241
        %v1285 = vunpack.c.l.bf16 %v1243
        %v1286 = vunpack.c.l.bf16 %v1244
        %v1287 = vunpack.c.l.bf16 %v1246
        %v1288 = vunpack.c.l.bf16 %v1247
        %v1289 = vunpack.c.l.bf16 %v1249
        %v1290 = vunpack.c.l.bf16 %v1250
        %v1291 = vunpack.c.l.bf16 %v1252
        %v1292 = vunpack.c.l.bf16 %v1253
        %v1293 = vunpack.c.l.bf16 %v1255
        %v1294 = vunpack.c.l.bf16 %v1256
        %v1295 = vunpack.c.l.bf16 %v1258
        %v1296 = vunpack.c.l.bf16 %v1259
        %v1297 = vunpack.c.l.bf16 %v1209
        %v1298 = vunpack.c.l.bf16 %v1212
        %v1299 = vunpack.c.l.bf16 %v1215
        %v1300 = vunpack.c.l.bf16 %v1218
        %v1301 = vunpack.c.l.bf16 %v1221
        %v1302 = vunpack.c.l.bf16 %v1224
        %v1303 = vunpack.c.l.bf16 %v1227
        %v1304 = vunpack.c.l.bf16 %v1230
        %v1305 = vunpack.c.l.bf16 %v1233
        %v1306 = vunpack.c.l.bf16 %v1236
        %v1307 = vunpack.c.l.bf16 %v1239
        %v1308 = vunpack.c.l.bf16 %v1242
        %v1309 = vunpack.c.l.bf16 %v1245
        %v1310 = vunpack.c.l.bf16 %v1248
        %v1311 = vunpack.c.l.bf16 %v1251
        %v1312 = vunpack.c.l.bf16 %v1254
        %v1313 = vunpack.c.l.bf16 %v1257
        %v1314 = vunpack.c.l.bf16 %v1260
        %vm1369 = vcmask 1046528
        %v1370 = vrot.slane %v1261, 1
        %v1371 = vrot.slane %v1262, 1
        %v1372 = vsel %vm1369, %v1370, %v1371
        %v1373 = vrot.slane %v1297, 1
        %v1374 = vsel %vm1369, %v1371, %v1373
        %v1375 = vrot.slane %v1263, 1
        %v1376 = vrot.slane %v1264, 1
        %v1377 = vsel %vm1369, %v1375, %v1376
        %v1378 = vrot.slane %v1298, 1
        %v1379 = vsel %vm1369, %v1376, %v1378
        %v1380 = vrot.slane %v1265, 1
        %v1381 = vrot.slane %v1266, 1
        %v1382 = vsel %vm1369, %v1380, %v1381
        %v1383 = vrot.slane %v1299, 1
        %v1384 = vsel %vm1369, %v1381, %v1383
        %v1385 = vrot.slane %v1267, 1
        %v1386 = vrot.slane %v1268, 1
        %v1387 = vsel %vm1369, %v1385, %v1386
        %v1388 = vrot.slane %v1300, 1
        %v1389 = vsel %vm1369, %v1386, %v1388
        %v1390 = vrot.slane %v1269, 1
        %v1391 = vrot.slane %v1270, 1
        %v1392 = vsel %vm1369, %v1390, %v1391
        %v1393 = vrot.slane %v1301, 1
        %v1394 = vsel %vm1369, %v1391, %v1393
        %v1395 = vrot.slane %v1271, 1
        %v1396 = vrot.slane %v1272, 1
        %v1397 = vsel %vm1369, %v1395, %v1396
        %v1398 = vrot.slane %v1302, 1
        %v1399 = vsel %vm1369, %v1396, %v1398
        %v1400 = vrot.slane %v1273, 1
        %v1401 = vrot.slane %v1274, 1
        %v1402 = vsel %vm1369, %v1400, %v1401
        %v1403 = vrot.slane %v1303, 1
        %v1404 = vsel %vm1369, %v1401, %v1403
        %v1405 = vrot.slane %v1275, 1
        %v1406 = vrot.slane %v1276, 1
        %v1407 = vsel %vm1369, %v1405, %v1406
        %v1408 = vrot.slane %v1304, 1
        %v1409 = vsel %vm1369, %v1406, %v1408
        %v1410 = vrot.slane %v1277, 1
        %v1411 = vrot.slane %v1278, 1
        %v1412 = vsel %vm1369, %v1410, %v1411
        %v1413 = vrot.slane %v1305, 1
        %v1414 = vsel %vm1369, %v1411, %v1413
        %v1415 = vrot.slane %v1279, 1
        %v1416 = vrot.slane %v1280, 1
        %v1417 = vsel %vm1369, %v1415, %v1416
        %v1418 = vrot.slane %v1306, 1
        %v1419 = vsel %vm1369, %v1416, %v1418
        %v1420 = vrot.slane %v1281, 1
        %v1421 = vrot.slane %v1282, 1
        %v1422 = vsel %vm1369, %v1420, %v1421
        %v1423 = vrot.slane %v1307, 1
        %v1424 = vsel %vm1369, %v1421, %v1423
        %v1425 = vrot.slane %v1283, 1
        %v1426 = vrot.slane %v1284, 1
        %v1427 = vsel %vm1369, %v1425, %v1426
        %v1428 = vrot.slane %v1308, 1
        %v1429 = vsel %vm1369, %v1426, %v1428
        %v1430 = vrot.slane %v1285, 1
        %v1431 = vrot.slane %v1286, 1
        %v1432 = vsel %vm1369, %v1430, %v1431
        %v1433 = vrot.slane %v1309, 1
        %v1434 = vsel %vm1369, %v1431, %v1433
        %v1435 = vrot.slane %v1287, 1
        %v1436 = vrot.slane %v1288, 1
        %v1437 = vsel %vm1369, %v1435, %v1436
        %v1438 = vrot.slane %v1310, 1
        %v1439 = vsel %vm1369, %v1436, %v1438
        %v1440 = vrot.slane %v1289, 1
        %v1441 = vrot.slane %v1290, 1
        %v1442 = vsel %vm1369, %v1440, %v1441
        %v1443 = vrot.slane %v1311, 1
        %v1444 = vsel %vm1369, %v1441, %v1443
        %v1445 = vrot.slane %v1291, 1
        %v1446 = vrot.slane %v1292, 1
        %v1447 = vsel %vm1369, %v1445, %v1446
        %v1448 = vrot.slane %v1312, 1
        %v1449 = vsel %vm1369, %v1446, %v1448
        %v1450 = vrot.slane %v1293, 1
        %v1451 = vrot.slane %v1294, 1
        %v1452 = vsel %vm1369, %v1450, %v1451
        %v1453 = vrot.slane %v1313, 1
        %v1454 = vsel %vm1369, %v1451, %v1453
        %v1455 = vrot.slane %v1295, 1
        %v1456 = vrot.slane %v1296, 1
        %v1457 = vsel %vm1369, %v1455, %v1456
        %v1458 = vrot.slane %v1314, 1
        %v1459 = vsel %vm1369, %v1456, %v1458
        %v1496 = vmax.f32 %v1261, %v1372
        %v1497 = vmax.f32 %v1262, %v1374
        %v1498 = vmax.f32 %v1263, %v1377
        %v1499 = vmax.f32 %v1264, %v1379
        %v1500 = vmax.f32 %v1265, %v1382
        %v1501 = vmax.f32 %v1266, %v1384
        %v1502 = vmax.f32 %v1267, %v1387
        %v1503 = vmax.f32 %v1268, %v1389
        %v1504 = vmax.f32 %v1269, %v1392
        %v1505 = vmax.f32 %v1270, %v1394
        %v1506 = vmax.f32 %v1271, %v1397
        %v1507 = vmax.f32 %v1272, %v1399
        %v1508 = vmax.f32 %v1273, %v1402
        %v1509 = vmax.f32 %v1274, %v1404
        %v1510 = vmax.f32 %v1275, %v1407
        %v1511 = vmax.f32 %v1276, %v1409
        %v1512 = vmax.f32 %v1277, %v1412
        %v1513 = vmax.f32 %v1278, %v1414
        %v1514 = vmax.f32 %v1279, %v1417
        %v1515 = vmax.f32 %v1280, %v1419
        %v1516 = vmax.f32 %v1281, %v1422
        %v1517 = vmax.f32 %v1282, %v1424
        %v1518 = vmax.f32 %v1283, %v1427
        %v1519 = vmax.f32 %v1284, %v1429
        %v1520 = vmax.f32 %v1285, %v1432
        %v1521 = vmax.f32 %v1286, %v1434
        %v1522 = vmax.f32 %v1287, %v1437
        %v1523 = vmax.f32 %v1288, %v1439
        %v1524 = vmax.f32 %v1289, %v1442
        %v1525 = vmax.f32 %v1290, %v1444
        %v1526 = vmax.f32 %v1291, %v1447
        %v1527 = vmax.f32 %v1292, %v1449
        %v1528 = vmax.f32 %v1293, %v1452
        %v1529 = vmax.f32 %v1294, %v1454
        %v1530 = vmax.f32 %v1295, %v1457
        %v1531 = vmax.f32 %v1296, %v1459
        %v1532 = vpack.c.bf16 %v1496, %v1496
        %v1533 = vpack.c.bf16 %v1497, %v1497
        %v1534 = vpack.c.bf16 %v1498, %v1498
        %v1535 = vpack.c.bf16 %v1499, %v1499
        %v1536 = vpack.c.bf16 %v1500, %v1500
        %v1537 = vpack.c.bf16 %v1501, %v1501
        %v1538 = vpack.c.bf16 %v1502, %v1502
        %v1539 = vpack.c.bf16 %v1503, %v1503
        %v1540 = vpack.c.bf16 %v1504, %v1504
        %v1541 = vpack.c.bf16 %v1505, %v1505
        %v1542 = vpack.c.bf16 %v1506, %v1506
        %v1543 = vpack.c.bf16 %v1507, %v1507
        %v1544 = vpack.c.bf16 %v1508, %v1508
        %v1545 = vpack.c.bf16 %v1509, %v1509
        %v1546 = vpack.c.bf16 %v1510, %v1510
        %v1547 = vpack.c.bf16 %v1511, %v1511
        %v1548 = vpack.c.bf16 %v1512, %v1512
        %v1549 = vpack.c.bf16 %v1513, %v1513
        %v1550 = vpack.c.bf16 %v1514, %v1514
        %v1551 = vpack.c.bf16 %v1515, %v1515
        %v1552 = vpack.c.bf16 %v1516, %v1516
        %v1553 = vpack.c.bf16 %v1517, %v1517
        %v1554 = vpack.c.bf16 %v1518, %v1518
        %v1555 = vpack.c.bf16 %v1519, %v1519
        %v1556 = vpack.c.bf16 %v1520, %v1520
        %v1557 = vpack.c.bf16 %v1521, %v1521
        %v1558 = vpack.c.bf16 %v1522, %v1522
        %v1559 = vpack.c.bf16 %v1523, %v1523
        %v1560 = vpack.c.bf16 %v1524, %v1524
        %v1561 = vpack.c.bf16 %v1525, %v1525
        %v1562 = vpack.c.bf16 %v1526, %v1526
        %v1563 = vpack.c.bf16 %v1527, %v1527
        %v1564 = vpack.c.bf16 %v1528, %v1528
        %v1565 = vpack.c.bf16 %v1529, %v1529
        %v1566 = vpack.c.bf16 %v1530, %v1530
        %v1567 = vpack.c.bf16 %v1531, %v1531
        %v1568 = vunpack.c.l.bf16 %v1532
        %v1569 = vunpack.c.l.bf16 %v1533
        %v1570 = vunpack.c.l.bf16 %v1534
        %v1571 = vunpack.c.l.bf16 %v1535
        %v1572 = vunpack.c.l.bf16 %v1536
        %v1573 = vunpack.c.l.bf16 %v1537
        %v1574 = vunpack.c.l.bf16 %v1538
        %v1575 = vunpack.c.l.bf16 %v1539
        %v1576 = vunpack.c.l.bf16 %v1540
        %v1577 = vunpack.c.l.bf16 %v1541
        %v1578 = vunpack.c.l.bf16 %v1542
        %v1579 = vunpack.c.l.bf16 %v1543
        %v1580 = vunpack.c.l.bf16 %v1544
        %v1581 = vunpack.c.l.bf16 %v1545
        %v1582 = vunpack.c.l.bf16 %v1546
        %v1583 = vunpack.c.l.bf16 %v1547
        %v1584 = vunpack.c.l.bf16 %v1548
        %v1585 = vunpack.c.l.bf16 %v1549
        %v1586 = vunpack.c.l.bf16 %v1550
        %v1587 = vunpack.c.l.bf16 %v1551
        %v1588 = vunpack.c.l.bf16 %v1552
        %v1589 = vunpack.c.l.bf16 %v1553
        %v1590 = vunpack.c.l.bf16 %v1554
        %v1591 = vunpack.c.l.bf16 %v1555
        %v1592 = vunpack.c.l.bf16 %v1556
        %v1593 = vunpack.c.l.bf16 %v1557
        %v1594 = vunpack.c.l.bf16 %v1558
        %v1595 = vunpack.c.l.bf16 %v1559
        %v1596 = vunpack.c.l.bf16 %v1560
        %v1597 = vunpack.c.l.bf16 %v1561
        %v1598 = vunpack.c.l.bf16 %v1562
        %v1599 = vunpack.c.l.bf16 %v1563
        %v1600 = vunpack.c.l.bf16 %v1564
        %v1601 = vunpack.c.l.bf16 %v1565
        %v1602 = vunpack.c.l.bf16 %v1566
        %v1603 = vunpack.c.l.bf16 %v1567
        %vm1604 = vcmask 1045504
        %v1605 = vrot.slane %v1261, 2
        %v1606 = vrot.slane %v1262, 2
        %v1607 = vsel %vm1604, %v1605, %v1606
        %v1608 = vrot.slane %v1297, 2
        %v1609 = vsel %vm1604, %v1606, %v1608
        %v1610 = vrot.slane %v1263, 2
        %v1611 = vrot.slane %v1264, 2
        %v1612 = vsel %vm1604, %v1610, %v1611
        %v1613 = vrot.slane %v1298, 2
        %v1614 = vsel %vm1604, %v1611, %v1613
        %v1615 = vrot.slane %v1265, 2
        %v1616 = vrot.slane %v1266, 2
        %v1617 = vsel %vm1604, %v1615, %v1616
        %v1618 = vrot.slane %v1299, 2
        %v1619 = vsel %vm1604, %v1616, %v1618
        %v1620 = vrot.slane %v1267, 2
        %v1621 = vrot.slane %v1268, 2
        %v1622 = vsel %vm1604, %v1620, %v1621
        %v1623 = vrot.slane %v1300, 2
        %v1624 = vsel %vm1604, %v1621, %v1623
        %v1625 = vrot.slane %v1269, 2
        %v1626 = vrot.slane %v1270, 2
        %v1627 = vsel %vm1604, %v1625, %v1626
        %v1628 = vrot.slane %v1301, 2
        %v1629 = vsel %vm1604, %v1626, %v1628
        %v1630 = vrot.slane %v1271, 2
        %v1631 = vrot.slane %v1272, 2
        %v1632 = vsel %vm1604, %v1630, %v1631
        %v1633 = vrot.slane %v1302, 2
        %v1634 = vsel %vm1604, %v1631, %v1633
        %v1635 = vrot.slane %v1273, 2
        %v1636 = vrot.slane %v1274, 2
        %v1637 = vsel %vm1604, %v1635, %v1636
        %v1638 = vrot.slane %v1303, 2
        %v1639 = vsel %vm1604, %v1636, %v1638
        %v1640 = vrot.slane %v1275, 2
        %v1641 = vrot.slane %v1276, 2
        %v1642 = vsel %vm1604, %v1640, %v1641
        %v1643 = vrot.slane %v1304, 2
        %v1644 = vsel %vm1604, %v1641, %v1643
        %v1645 = vrot.slane %v1277, 2
        %v1646 = vrot.slane %v1278, 2
        %v1647 = vsel %vm1604, %v1645, %v1646
        %v1648 = vrot.slane %v1305, 2
        %v1649 = vsel %vm1604, %v1646, %v1648
        %v1650 = vrot.slane %v1279, 2
        %v1651 = vrot.slane %v1280, 2
        %v1652 = vsel %vm1604, %v1650, %v1651
        %v1653 = vrot.slane %v1306, 2
        %v1654 = vsel %vm1604, %v1651, %v1653
        %v1655 = vrot.slane %v1281, 2
        %v1656 = vrot.slane %v1282, 2
        %v1657 = vsel %vm1604, %v1655, %v1656
        %v1658 = vrot.slane %v1307, 2
        %v1659 = vsel %vm1604, %v1656, %v1658
        %v1660 = vrot.slane %v1283, 2
        %v1661 = vrot.slane %v1284, 2
        %v1662 = vsel %vm1604, %v1660, %v1661
        %v1663 = vrot.slane %v1308, 2
        %v1664 = vsel %vm1604, %v1661, %v1663
        %v1665 = vrot.slane %v1285, 2
        %v1666 = vrot.slane %v1286, 2
        %v1667 = vsel %vm1604, %v1665, %v1666
        %v1668 = vrot.slane %v1309, 2
        %v1669 = vsel %vm1604, %v1666, %v1668
        %v1670 = vrot.slane %v1287, 2
        %v1671 = vrot.slane %v1288, 2
        %v1672 = vsel %vm1604, %v1670, %v1671
        %v1673 = vrot.slane %v1310, 2
        %v1674 = vsel %vm1604, %v1671, %v1673
        %v1675 = vrot.slane %v1289, 2
        %v1676 = vrot.slane %v1290, 2
        %v1677 = vsel %vm1604, %v1675, %v1676
        %v1678 = vrot.slane %v1311, 2
        %v1679 = vsel %vm1604, %v1676, %v1678
        %v1680 = vrot.slane %v1291, 2
        %v1681 = vrot.slane %v1292, 2
        %v1682 = vsel %vm1604, %v1680, %v1681
        %v1683 = vrot.slane %v1312, 2
        %v1684 = vsel %vm1604, %v1681, %v1683
        %v1685 = vrot.slane %v1293, 2
        %v1686 = vrot.slane %v1294, 2
        %v1687 = vsel %vm1604, %v1685, %v1686
        %v1688 = vrot.slane %v1313, 2
        %v1689 = vsel %vm1604, %v1686, %v1688
        %v1690 = vrot.slane %v1295, 2
        %v1691 = vrot.slane %v1296, 2
        %v1692 = vsel %vm1604, %v1690, %v1691
        %v1693 = vrot.slane %v1314, 2
        %v1694 = vsel %vm1604, %v1691, %v1693
        %v1731 = vmax.f32 %v1568, %v1607
        %v1732 = vmax.f32 %v1569, %v1609
        %v1733 = vmax.f32 %v1570, %v1612
        %v1734 = vmax.f32 %v1571, %v1614
        %v1735 = vmax.f32 %v1572, %v1617
        %v1736 = vmax.f32 %v1573, %v1619
        %v1737 = vmax.f32 %v1574, %v1622
        %v1738 = vmax.f32 %v1575, %v1624
        %v1739 = vmax.f32 %v1576, %v1627
        %v1740 = vmax.f32 %v1577, %v1629
        %v1741 = vmax.f32 %v1578, %v1632
        %v1742 = vmax.f32 %v1579, %v1634
        %v1743 = vmax.f32 %v1580, %v1637
        %v1744 = vmax.f32 %v1581, %v1639
        %v1745 = vmax.f32 %v1582, %v1642
        %v1746 = vmax.f32 %v1583, %v1644
        %v1747 = vmax.f32 %v1584, %v1647
        %v1748 = vmax.f32 %v1585, %v1649
        %v1749 = vmax.f32 %v1586, %v1652
        %v1750 = vmax.f32 %v1587, %v1654
        %v1751 = vmax.f32 %v1588, %v1657
        %v1752 = vmax.f32 %v1589, %v1659
        %v1753 = vmax.f32 %v1590, %v1662
        %v1754 = vmax.f32 %v1591, %v1664
        %v1755 = vmax.f32 %v1592, %v1667
        %v1756 = vmax.f32 %v1593, %v1669
        %v1757 = vmax.f32 %v1594, %v1672
        %v1758 = vmax.f32 %v1595, %v1674
        %v1759 = vmax.f32 %v1596, %v1677
        %v1760 = vmax.f32 %v1597, %v1679
        %v1761 = vmax.f32 %v1598, %v1682
        %v1762 = vmax.f32 %v1599, %v1684
        %v1763 = vmax.f32 %v1600, %v1687
        %v1764 = vmax.f32 %v1601, %v1689
        %v1765 = vmax.f32 %v1602, %v1692
        %v1766 = vmax.f32 %v1603, %v1694
        %v1767 = vpack.c.bf16 %v1731, %v1731
        %v1768 = vpack.c.bf16 %v1732, %v1732
        %v1769 = vpack.c.bf16 %v1733, %v1733
        %v1770 = vpack.c.bf16 %v1734, %v1734
        %v1771 = vpack.c.bf16 %v1735, %v1735
        %v1772 = vpack.c.bf16 %v1736, %v1736
        %v1773 = vpack.c.bf16 %v1737, %v1737
        %v1774 = vpack.c.bf16 %v1738, %v1738
        %v1775 = vpack.c.bf16 %v1739, %v1739
        %v1776 = vpack.c.bf16 %v1740, %v1740
        %v1777 = vpack.c.bf16 %v1741, %v1741
        %v1778 = vpack.c.bf16 %v1742, %v1742
        %v1779 = vpack.c.bf16 %v1743, %v1743
        %v1780 = vpack.c.bf16 %v1744, %v1744
        %v1781 = vpack.c.bf16 %v1745, %v1745
        %v1782 = vpack.c.bf16 %v1746, %v1746
        %v1783 = vpack.c.bf16 %v1747, %v1747
        %v1784 = vpack.c.bf16 %v1748, %v1748
        %v1785 = vpack.c.bf16 %v1749, %v1749
        %v1786 = vpack.c.bf16 %v1750, %v1750
        %v1787 = vpack.c.bf16 %v1751, %v1751
        %v1788 = vpack.c.bf16 %v1752, %v1752
        %v1789 = vpack.c.bf16 %v1753, %v1753
        %v1790 = vpack.c.bf16 %v1754, %v1754
        %v1791 = vpack.c.bf16 %v1755, %v1755
        %v1792 = vpack.c.bf16 %v1756, %v1756
        %v1793 = vpack.c.bf16 %v1757, %v1757
        %v1794 = vpack.c.bf16 %v1758, %v1758
        %v1795 = vpack.c.bf16 %v1759, %v1759
        %v1796 = vpack.c.bf16 %v1760, %v1760
        %v1797 = vpack.c.bf16 %v1761, %v1761
        %v1798 = vpack.c.bf16 %v1762, %v1762
        %v1799 = vpack.c.bf16 %v1763, %v1763
        %v1800 = vpack.c.bf16 %v1764, %v1764
        %v1801 = vpack.c.bf16 %v1765, %v1765
        %v1802 = vpack.c.bf16 %v1766, %v1766
        %v1803 = vunpack.c.l.bf16 %v1767
        %v1804 = vunpack.c.l.bf16 %v1768
        %v1805 = vunpack.c.l.bf16 %v1769
        %v1806 = vunpack.c.l.bf16 %v1770
        %v1807 = vunpack.c.l.bf16 %v1771
        %v1808 = vunpack.c.l.bf16 %v1772
        %v1809 = vunpack.c.l.bf16 %v1773
        %v1810 = vunpack.c.l.bf16 %v1774
        %v1811 = vunpack.c.l.bf16 %v1775
        %v1812 = vunpack.c.l.bf16 %v1776
        %v1813 = vunpack.c.l.bf16 %v1777
        %v1814 = vunpack.c.l.bf16 %v1778
        %v1815 = vunpack.c.l.bf16 %v1779
        %v1816 = vunpack.c.l.bf16 %v1780
        %v1817 = vunpack.c.l.bf16 %v1781
        %v1818 = vunpack.c.l.bf16 %v1782
        %v1819 = vunpack.c.l.bf16 %v1783
        %v1820 = vunpack.c.l.bf16 %v1784
        %v1821 = vunpack.c.l.bf16 %v1785
        %v1822 = vunpack.c.l.bf16 %v1786
        %v1823 = vunpack.c.l.bf16 %v1787
        %v1824 = vunpack.c.l.bf16 %v1788
        %v1825 = vunpack.c.l.bf16 %v1789
        %v1826 = vunpack.c.l.bf16 %v1790
        %v1827 = vunpack.c.l.bf16 %v1791
        %v1828 = vunpack.c.l.bf16 %v1792
        %v1829 = vunpack.c.l.bf16 %v1793
        %v1830 = vunpack.c.l.bf16 %v1794
        %v1831 = vunpack.c.l.bf16 %v1795
        %v1832 = vunpack.c.l.bf16 %v1796
        %v1833 = vunpack.c.l.bf16 %v1797
        %v1834 = vunpack.c.l.bf16 %v1798
        %v1835 = vunpack.c.l.bf16 %v1799
        %v1836 = vunpack.c.l.bf16 %v1800
        %v1837 = vmax.f32 %v1803, %v1805
        %v1838 = vmax.f32 %v1804, %v1806
        %v1839 = vmax.f32 %v1805, %v1807
        %v1840 = vmax.f32 %v1806, %v1808
        %v1841 = vmax.f32 %v1807, %v1809
        %v1842 = vmax.f32 %v1808, %v1810
        %v1843 = vmax.f32 %v1809, %v1811
        %v1844 = vmax.f32 %v1810, %v1812
        %v1845 = vmax.f32 %v1811, %v1813
        %v1846 = vmax.f32 %v1812, %v1814
        %v1847 = vmax.f32 %v1813, %v1815
        %v1848 = vmax.f32 %v1814, %v1816
        %v1849 = vmax.f32 %v1815, %v1817
        %v1850 = vmax.f32 %v1816, %v1818
        %v1851 = vmax.f32 %v1817, %v1819
        %v1852 = vmax.f32 %v1818, %v1820
        %v1853 = vmax.f32 %v1819, %v1821
        %v1854 = vmax.f32 %v1820, %v1822
        %v1855 = vmax.f32 %v1821, %v1823
        %v1856 = vmax.f32 %v1822, %v1824
        %v1857 = vmax.f32 %v1823, %v1825
        %v1858 = vmax.f32 %v1824, %v1826
        %v1859 = vmax.f32 %v1825, %v1827
        %v1860 = vmax.f32 %v1826, %v1828
        %v1861 = vmax.f32 %v1827, %v1829
        %v1862 = vmax.f32 %v1828, %v1830
        %v1863 = vmax.f32 %v1829, %v1831
        %v1864 = vmax.f32 %v1830, %v1832
        %v1865 = vmax.f32 %v1831, %v1833
        %v1866 = vmax.f32 %v1832, %v1834
        %v1867 = vmax.f32 %v1833, %v1835
        %v1868 = vmax.f32 %v1834, %v1836
        %v1869 = vpack.c.bf16 %v1837, %v1837
        %v1870 = vpack.c.bf16 %v1838, %v1838
        %v1871 = vpack.c.bf16 %v1839, %v1839
        %v1872 = vpack.c.bf16 %v1840, %v1840
        %v1873 = vpack.c.bf16 %v1841, %v1841
        %v1874 = vpack.c.bf16 %v1842, %v1842
        %v1875 = vpack.c.bf16 %v1843, %v1843
        %v1876 = vpack.c.bf16 %v1844, %v1844
        %v1877 = vpack.c.bf16 %v1845, %v1845
        %v1878 = vpack.c.bf16 %v1846, %v1846
        %v1879 = vpack.c.bf16 %v1847, %v1847
        %v1880 = vpack.c.bf16 %v1848, %v1848
        %v1881 = vpack.c.bf16 %v1849, %v1849
        %v1882 = vpack.c.bf16 %v1850, %v1850
        %v1883 = vpack.c.bf16 %v1851, %v1851
        %v1884 = vpack.c.bf16 %v1852, %v1852
        %v1885 = vpack.c.bf16 %v1853, %v1853
        %v1886 = vpack.c.bf16 %v1854, %v1854
        %v1887 = vpack.c.bf16 %v1855, %v1855
        %v1888 = vpack.c.bf16 %v1856, %v1856
        %v1889 = vpack.c.bf16 %v1857, %v1857
        %v1890 = vpack.c.bf16 %v1858, %v1858
        %v1891 = vpack.c.bf16 %v1859, %v1859
        %v1892 = vpack.c.bf16 %v1860, %v1860
        %v1893 = vpack.c.bf16 %v1861, %v1861
        %v1894 = vpack.c.bf16 %v1862, %v1862
        %v1895 = vpack.c.bf16 %v1863, %v1863
        %v1896 = vpack.c.bf16 %v1864, %v1864
        %v1897 = vpack.c.bf16 %v1865, %v1865
        %v1898 = vpack.c.bf16 %v1866, %v1866
        %v1899 = vpack.c.bf16 %v1867, %v1867
        %v1900 = vpack.c.bf16 %v1868, %v1868
        %v1901 = vunpack.c.l.bf16 %v1869
        %v1902 = vunpack.c.l.bf16 %v1870
        %v1903 = vunpack.c.l.bf16 %v1871
        %v1904 = vunpack.c.l.bf16 %v1872
        %v1905 = vunpack.c.l.bf16 %v1873
        %v1906 = vunpack.c.l.bf16 %v1874
        %v1907 = vunpack.c.l.bf16 %v1875
        %v1908 = vunpack.c.l.bf16 %v1876
        %v1909 = vunpack.c.l.bf16 %v1877
        %v1910 = vunpack.c.l.bf16 %v1878
        %v1911 = vunpack.c.l.bf16 %v1879
        %v1912 = vunpack.c.l.bf16 %v1880
        %v1913 = vunpack.c.l.bf16 %v1881
        %v1914 = vunpack.c.l.bf16 %v1882
        %v1915 = vunpack.c.l.bf16 %v1883
        %v1916 = vunpack.c.l.bf16 %v1884
        %v1917 = vunpack.c.l.bf16 %v1885
        %v1918 = vunpack.c.l.bf16 %v1886
        %v1919 = vunpack.c.l.bf16 %v1887
        %v1920 = vunpack.c.l.bf16 %v1888
        %v1921 = vunpack.c.l.bf16 %v1889
        %v1922 = vunpack.c.l.bf16 %v1890
        %v1923 = vunpack.c.l.bf16 %v1891
        %v1924 = vunpack.c.l.bf16 %v1892
        %v1925 = vunpack.c.l.bf16 %v1893
        %v1926 = vunpack.c.l.bf16 %v1894
        %v1927 = vunpack.c.l.bf16 %v1895
        %v1928 = vunpack.c.l.bf16 %v1896
        %v1929 = vunpack.c.l.bf16 %v1897
        %v1930 = vunpack.c.l.bf16 %v1898
        %v1931 = vunpack.c.l.bf16 %v1899
        %v1932 = vunpack.c.l.bf16 %v1900
        %v1933 = vunpack.c.l.bf16 %v1801
        %v1934 = vunpack.c.l.bf16 %v1802
        %v1935 = vmax.f32 %v1901, %v1807
        %v1936 = vmax.f32 %v1902, %v1808
        %v1937 = vmax.f32 %v1903, %v1809
        %v1938 = vmax.f32 %v1904, %v1810
        %v1939 = vmax.f32 %v1905, %v1811
        %v1940 = vmax.f32 %v1906, %v1812
        %v1941 = vmax.f32 %v1907, %v1813
        %v1942 = vmax.f32 %v1908, %v1814
        %v1943 = vmax.f32 %v1909, %v1815
        %v1944 = vmax.f32 %v1910, %v1816
        %v1945 = vmax.f32 %v1911, %v1817
        %v1946 = vmax.f32 %v1912, %v1818
        %v1947 = vmax.f32 %v1913, %v1819
        %v1948 = vmax.f32 %v1914, %v1820
        %v1949 = vmax.f32 %v1915, %v1821
        %v1950 = vmax.f32 %v1916, %v1822
        %v1951 = vmax.f32 %v1917, %v1823
        %v1952 = vmax.f32 %v1918, %v1824
        %v1953 = vmax.f32 %v1919, %v1825
        %v1954 = vmax.f32 %v1920, %v1826
        %v1955 = vmax.f32 %v1921, %v1827
        %v1956 = vmax.f32 %v1922, %v1828
        %v1957 = vmax.f32 %v1923, %v1829
        %v1958 = vmax.f32 %v1924, %v1830
        %v1959 = vmax.f32 %v1925, %v1831
        %v1960 = vmax.f32 %v1926, %v1832
        %v1961 = vmax.f32 %v1927, %v1833
        %v1962 = vmax.f32 %v1928, %v1834
        %v1963 = vmax.f32 %v1929, %v1835
        %v1964 = vmax.f32 %v1930, %v1836
        %v1965 = vmax.f32 %v1931, %v1933
        %v1966 = vmax.f32 %v1932, %v1934
        %v1967 = vpack.c.bf16 %v1935, %v1935
        %v1968 = vpack.c.bf16 %v1936, %v1936
        %v1969 = vpack.c.bf16 %v1937, %v1937
        %v1970 = vpack.c.bf16 %v1938, %v1938
        %v1971 = vpack.c.bf16 %v1939, %v1939
        %v1972 = vpack.c.bf16 %v1940, %v1940
        %v1973 = vpack.c.bf16 %v1941, %v1941
        %v1974 = vpack.c.bf16 %v1942, %v1942
        %v1975 = vpack.c.bf16 %v1943, %v1943
        %v1976 = vpack.c.bf16 %v1944, %v1944
        %v1977 = vpack.c.bf16 %v1945, %v1945
        %v1978 = vpack.c.bf16 %v1946, %v1946
        %v1979 = vpack.c.bf16 %v1947, %v1947
        %v1980 = vpack.c.bf16 %v1948, %v1948
        %v1981 = vpack.c.bf16 %v1949, %v1949
        %v1982 = vpack.c.bf16 %v1950, %v1950
        %v1983 = vpack.c.bf16 %v1951, %v1951
        %v1984 = vpack.c.bf16 %v1952, %v1952
        %v1985 = vpack.c.bf16 %v1953, %v1953
        %v1986 = vpack.c.bf16 %v1954, %v1954
        %v1987 = vpack.c.bf16 %v1955, %v1955
        %v1988 = vpack.c.bf16 %v1956, %v1956
        %v1989 = vpack.c.bf16 %v1957, %v1957
        %v1990 = vpack.c.bf16 %v1958, %v1958
        %v1991 = vpack.c.bf16 %v1959, %v1959
        %v1992 = vpack.c.bf16 %v1960, %v1960
        %v1993 = vpack.c.bf16 %v1961, %v1961
        %v1994 = vpack.c.bf16 %v1962, %v1962
        %v1995 = vpack.c.bf16 %v1963, %v1963
        %v1996 = vpack.c.bf16 %v1964, %v1964
        %v1997 = vpack.c.bf16 %v1965, %v1965
        %v1998 = vpack.c.bf16 %v1966, %v1966
        %v1999 = vld [vmem:[%s3] sm:$0x3]
        %v2000 = vld [vmem:[%s4] sm:$0x1]
        %v2002 = vperm.slane %v2000, 0
        %v2036 = vunpack.c.l.b16 %v1967
        %v2037 = vunpack.c.l.b16 %v1968
        %v2038 = vunpack.c.l.b16 %v1969
        %v2039 = vunpack.c.l.b16 %v1970
        %v2040 = vunpack.c.l.b16 %v1971
        %v2041 = vunpack.c.l.b16 %v1972
        %v2042 = vunpack.c.l.b16 %v1973
        %v2043 = vunpack.c.l.b16 %v1974
        %v2044 = vunpack.c.l.b16 %v1975
        %v2045 = vunpack.c.l.b16 %v1976
        %v2046 = vunpack.c.l.b16 %v1977
        %v2047 = vunpack.c.l.b16 %v1978
        %v2048 = vunpack.c.l.b16 %v1979
        %v2049 = vunpack.c.l.b16 %v1980
        %v2050 = vunpack.c.l.b16 %v1981
        %v2051 = vunpack.c.l.b16 %v1982
        %v2052 = vunpack.c.l.b16 %v1983
        %v2053 = vunpack.c.l.b16 %v1984
        %v2054 = vunpack.c.l.b16 %v1985
        %v2055 = vunpack.c.l.b16 %v1986
        %v2056 = vunpack.c.l.b16 %v1987
        %v2057 = vunpack.c.l.b16 %v1988
        %v2058 = vunpack.c.l.b16 %v1989
        %v2059 = vunpack.c.l.b16 %v1990
        %v2060 = vunpack.c.l.b16 %v1991
        %v2061 = vunpack.c.l.b16 %v1992
        %v2062 = vunpack.c.l.b16 %v1993
        %v2063 = vunpack.c.l.b16 %v1994
        %v2064 = vunpack.c.l.b16 %v1995
        %v2065 = vunpack.c.l.b16 %v1996
        %v2066 = vunpack.c.l.b16 %v1997
        %v2067 = vunpack.c.l.b16 %v1998
        %v2068 = vpack.c.b16 %v2037, %v2036
        %v2069 = vpack.c.b16 %v2039, %v2038
        %v2070 = vpack.c.b16 %v2041, %v2040
        %v2071 = vpack.c.b16 %v2043, %v2042
        %v2072 = vpack.c.b16 %v2045, %v2044
        %v2073 = vpack.c.b16 %v2047, %v2046
        %v2074 = vpack.c.b16 %v2049, %v2048
        %v2075 = vpack.c.b16 %v2051, %v2050
        %v2076 = vpack.c.b16 %v2053, %v2052
        %v2077 = vpack.c.b16 %v2055, %v2054
        %v2078 = vpack.c.b16 %v2057, %v2056
        %v2079 = vpack.c.b16 %v2059, %v2058
        %v2080 = vpack.c.b16 %v2061, %v2060
        %v2081 = vpack.c.b16 %v2063, %v2062
        %v2082 = vpack.c.b16 %v2065, %v2064
        %v2083 = vpack.c.b16 %v2067, %v2066
        %v2085 = vsel %vm504, %v2068, 0
        %v2088 = vsel %vm504, %v2069, 0
        %v2091 = vsel %vm504, %v2070, 0
        %v2094 = vsel %vm504, %v2071, 0
        %v2097 = vsel %vm504, %v2072, 0
        %v2100 = vsel %vm504, %v2073, 0
        %v2103 = vsel %vm504, %v2074, 0
        %v2106 = vsel %vm504, %v2075, 0
        %v2109 = vsel %vm504, %v2076, 0
        %v2112 = vsel %vm504, %v2077, 0
        %v2115 = vsel %vm504, %v2078, 0
        %v2118 = vsel %vm504, %v2079, 0
        %v2121 = vsel %vm504, %v2080, 0
        %v2124 = vsel %vm504, %v2081, 0
        %v2127 = vsel %vm504, %v2082, 0
        %v2130 = vsel %vm504, %v2083, 0
        %v2133 = vsel %vm553, %v1999, 0
        %2135 = vmatpush.bf16.msra.mxu0 0
        %2136 = vmatpush.bf16.msra.mxu0 0
        %2137 = vmatpush.bf16.msra.mxu0 0
        %2138 = vmatpush.bf16.msra.mxu0 0
        %2139 = vmatpush.bf16.msra.mxu0 0
        %2140 = vmatpush.bf16.msra.mxu0 0
        %2141 = vmatpush.bf16.msra.mxu0 0
        %2142 = vmatpush.bf16.msra.mxu0 %v2133
        %2143 = vmatmul.bf16.gmra.mxu0 %v2085
        %v2144 = vpop.f32.mrf.mxu0
        %v2145 = vadd.f32 %v2002, %v2144
        %v2146 = vpop.f32.mrf.mxu0
        %v2147 = vadd.f32 %v2002, %v2146
        %2148 = vmatmul.bf16.gmra.mxu0 %v2088
        %v2149 = vpop.f32.mrf.mxu0
        %v2150 = vadd.f32 %v2002, %v2149
        %v2151 = vpop.f32.mrf.mxu0
        %v2152 = vadd.f32 %v2002, %v2151
        %2153 = vmatmul.bf16.gmra.mxu0 %v2091
        %v2154 = vpop.f32.mrf.mxu0
        %v2155 = vadd.f32 %v2002, %v2154
        %v2156 = vpop.f32.mrf.mxu0
        %v2157 = vadd.f32 %v2002, %v2156
        %2158 = vmatmul.bf16.gmra.mxu0 %v2094
        %v2159 = vpop.f32.mrf.mxu0
        %v2160 = vadd.f32 %v2002, %v2159
        %v2161 = vpop.f32.mrf.mxu0
        %v2162 = vadd.f32 %v2002, %v2161
        %2163 = vmatmul.bf16.gmra.mxu0 %v2097
        %v2164 = vpop.f32.mrf.mxu0
        %v2165 = vadd.f32 %v2002, %v2164
        %v2166 = vpop.f32.mrf.mxu0
        %v2167 = vadd.f32 %v2002, %v2166
        %2168 = vmatmul.bf16.gmra.mxu0 %v2100
        %v2169 = vpop.f32.mrf.mxu0
        %v2170 = vadd.f32 %v2002, %v2169
        %v2171 = vpop.f32.mrf.mxu0
        %v2172 = vadd.f32 %v2002, %v2171
        %2173 = vmatmul.bf16.gmra.mxu0 %v2103
        %v2174 = vpop.f32.mrf.mxu0
        %v2175 = vadd.f32 %v2002, %v2174
        %v2176 = vpop.f32.mrf.mxu0
        %v2177 = vadd.f32 %v2002, %v2176
        %2178 = vmatmul.bf16.gmra.mxu0 %v2106
        %v2179 = vpop.f32.mrf.mxu0
        %v2180 = vadd.f32 %v2002, %v2179
        %v2181 = vpop.f32.mrf.mxu0
        %v2182 = vadd.f32 %v2002, %v2181
        %2183 = vmatmul.bf16.gmra.mxu0 %v2109
        %v2184 = vpop.f32.mrf.mxu0
        %v2185 = vadd.f32 %v2002, %v2184
        %v2186 = vpop.f32.mrf.mxu0
        %v2187 = vadd.f32 %v2002, %v2186
        %2188 = vmatmul.bf16.gmra.mxu0 %v2112
        %v2189 = vpop.f32.mrf.mxu0
        %v2190 = vadd.f32 %v2002, %v2189
        %v2191 = vpop.f32.mrf.mxu0
        %v2192 = vadd.f32 %v2002, %v2191
        %2193 = vmatmul.bf16.gmra.mxu0 %v2115
        %v2194 = vpop.f32.mrf.mxu0
        %v2195 = vadd.f32 %v2002, %v2194
        %v2196 = vpop.f32.mrf.mxu0
        %v2197 = vadd.f32 %v2002, %v2196
        %2198 = vmatmul.bf16.gmra.mxu0 %v2118
        %v2199 = vpop.f32.mrf.mxu0
        %v2200 = vadd.f32 %v2002, %v2199
        %v2201 = vpop.f32.mrf.mxu0
        %v2202 = vadd.f32 %v2002, %v2201
        %2203 = vmatmul.bf16.gmra.mxu0 %v2121
        %v2204 = vpop.f32.mrf.mxu0
        %v2205 = vadd.f32 %v2002, %v2204
        %v2206 = vpop.f32.mrf.mxu0
        %v2207 = vadd.f32 %v2002, %v2206
        %2208 = vmatmul.bf16.gmra.mxu0 %v2124
        %v2209 = vpop.f32.mrf.mxu0
        %v2210 = vadd.f32 %v2002, %v2209
        %v2211 = vpop.f32.mrf.mxu0
        %v2212 = vadd.f32 %v2002, %v2211
        %2213 = vmatmul.bf16.gmra.mxu0 %v2127
        %v2214 = vpop.f32.mrf.mxu0
        %v2215 = vadd.f32 %v2002, %v2214
        %v2216 = vpop.f32.mrf.mxu0
        %v2217 = vadd.f32 %v2002, %v2216
        %2218 = vmatmul.bf16.gmra.mxu0 %v2130
        %v2219 = vpop.f32.mrf.mxu0
        %v2220 = vadd.f32 %v2002, %v2219
        %v2221 = vpop.f32.mrf.mxu0
        %v2222 = vadd.f32 %v2002, %v2221
        %2223 = vdwg.mxu0
        %v2224 = vmax.f32 %v2145, 0.0
        %v2225 = vmax.f32 %v2147, 0.0
        %v2226 = vmax.f32 %v2150, 0.0
        %v2227 = vmax.f32 %v2152, 0.0
        %v2228 = vmax.f32 %v2155, 0.0
        %v2229 = vmax.f32 %v2157, 0.0
        %v2230 = vmax.f32 %v2160, 0.0
        %v2231 = vmax.f32 %v2162, 0.0
        %v2232 = vmax.f32 %v2165, 0.0
        %v2233 = vmax.f32 %v2167, 0.0
        %v2234 = vmax.f32 %v2170, 0.0
        %v2235 = vmax.f32 %v2172, 0.0
        %v2236 = vmax.f32 %v2175, 0.0
        %v2237 = vmax.f32 %v2177, 0.0
        %v2238 = vmax.f32 %v2180, 0.0
        %v2239 = vmax.f32 %v2182, 0.0
        %v2240 = vmax.f32 %v2185, 0.0
        %v2241 = vmax.f32 %v2187, 0.0
        %v2242 = vmax.f32 %v2190, 0.0
        %v2243 = vmax.f32 %v2192, 0.0
        %v2244 = vmax.f32 %v2195, 0.0
        %v2245 = vmax.f32 %v2197, 0.0
        %v2246 = vmax.f32 %v2200, 0.0
        %v2247 = vmax.f32 %v2202, 0.0
        %v2248 = vmax.f32 %v2205, 0.0
        %v2249 = vmax.f32 %v2207, 0.0
        %v2250 = vmax.f32 %v2210, 0.0
        %v2251 = vmax.f32 %v2212, 0.0
        %v2252 = vmax.f32 %v2215, 0.0
        %v2253 = vmax.f32 %v2217, 0.0
        %v2254 = vmax.f32 %v2220, 0.0
        %v2255 = vmax.f32 %v2222, 0.0
        %2256 = vst.msk [vmem:[#allocation3] sm:$0xf] %vm710, 0
        %2257 = vst.msk [vmem:[#allocation3 + $0x4] sm:$0xf] %vm710, 0
        %2258 = vst.msk [vmem:[#allocation3 + $0x8] sm:$0x1] %vm713, 0
        %2259 = vst.msk [vmem:[#allocation3 + $0xc] sm:$0xf] %vm710, 0
        %2260 = vst.msk [vmem:[#allocation3 + $0x10] sm:$0xf] %vm710, 0
        %2261 = vst.msk [vmem:[#allocation3 + $0x14] sm:$0x1] %vm713, 0
        %2262 = vst.msk [vmem:[#allocation3 + $0x18] sm:$0xf] %vm710, 0
        %2263 = vst.msk [vmem:[#allocation3 + $0x1c] sm:$0xf] %vm710, 0
        %2264 = vst.msk [vmem:[#allocation3 + $0x20] sm:$0x1] %vm713, 0
        %2265 = vst.msk [vmem:[#allocation3 + $0x24] sm:$0xf] %vm710, 0
        %2266 = vst.msk [vmem:[#allocation3 + $0x28] sm:$0xf] %vm710, 0
        %2267 = vst.msk [vmem:[#allocation3 + $0x2c] sm:$0x1] %vm713, 0
        %2268 = vst.msk [vmem:[#allocation3 + $0x30] sm:$0xf] %vm710, 0
        %2269 = vst.msk [vmem:[#allocation3 + $0x34] sm:$0xf] %vm710, 0
        %2270 = vst.msk [vmem:[#allocation3 + $0x38] sm:$0x1] %vm713, 0
        %2271 = vst.msk [vmem:[#allocation3 + $0x3c] sm:$0xf] %vm710, 0
        %2272 = vst.msk [vmem:[#allocation3 + $0x40] sm:$0xf] %vm710, 0
        %2273 = vst.msk [vmem:[#allocation3 + $0x44] sm:$0x1] %vm713, 0
        %2274 = vst.msk [vmem:[#allocation3 + $0x48] sm:$0xf] %vm710, 0
        %2275 = vst.msk [vmem:[#allocation3 + $0x4c] sm:$0xf] %vm710, 0
        %2276 = vst.msk [vmem:[#allocation3 + $0x50] sm:$0x1] %vm713, 0
        %2277 = vst.msk [vmem:[#allocation3 + $0x54] sm:$0xf] %vm710, 0
        %2278 = vst.msk [vmem:[#allocation3 + $0x58] sm:$0xf] %vm710, 0
        %2279 = vst.msk [vmem:[#allocation3 + $0x5c] sm:$0x1] %vm713, 0
        %2280 = vst.msk [vmem:[#allocation3 + $0x60] sm:$0xf] %vm710, 0
        %2281 = vst.msk [vmem:[#allocation3 + $0x64] sm:$0xf] %vm710, 0
        %2282 = vst.msk [vmem:[#allocation3 + $0x68] sm:$0x1] %vm713, 0
        %2283 = vst.msk [vmem:[#allocation3 + $0x6c] sm:$0xf] %vm710, 0
        %2284 = vst.msk [vmem:[#allocation3 + $0x70] sm:$0xf] %vm710, 0
        %2285 = vst.msk [vmem:[#allocation3 + $0x74] sm:$0x1] %vm713, 0
        %2286 = vst.msk [vmem:[#allocation3 + $0x78] sm:$0xf] %vm710, 0
        %2287 = vst.msk [vmem:[#allocation3 + $0x7c] sm:$0xf] %vm710, 0
        %2288 = vst.msk [vmem:[#allocation3 + $0x80] sm:$0x1] %vm713, 0
        %2289 = vst.msk [vmem:[#allocation3 + $0x84] sm:$0xf] %vm710, 0
        %2290 = vst.msk [vmem:[#allocation3 + $0x88] sm:$0xf] %vm710, 0
        %2291 = vst.msk [vmem:[#allocation3 + $0x8c] sm:$0x1] %vm713, 0
        %2292 = vst.msk [vmem:[#allocation3 + $0x90] sm:$0xf] %vm710, 0
        %2293 = vst.msk [vmem:[#allocation3 + $0x94] sm:$0xf] %vm710, 0
        %2294 = vst.msk [vmem:[#allocation3 + $0x98] sm:$0x1] %vm713, 0
        %2295 = vst.msk [vmem:[#allocation3 + $0x9c] sm:$0xf] %vm710, 0
        %2296 = vst.msk [vmem:[#allocation3 + $0xa0] sm:$0xf] %vm710, 0
        %2297 = vst.msk [vmem:[#allocation3 + $0xa4] sm:$0x1] %vm713, 0
        %2298 = vst.msk [vmem:[#allocation3 + $0xa8] sm:$0xf] %vm710, 0
        %2299 = vst.msk [vmem:[#allocation3 + $0xac] sm:$0xf] %vm710, 0
        %2300 = vst.msk [vmem:[#allocation3 + $0xb0] sm:$0x1] %vm713, 0
        %2301 = vst.msk [vmem:[#allocation3 + $0xb4] sm:$0xf] %vm710, 0
        %2302 = vst.msk [vmem:[#allocation3 + $0xb8] sm:$0xf] %vm710, 0
        %2303 = vst.msk [vmem:[#allocation3 + $0xbc] sm:$0x1] %vm713, 0
        %2304 = vst.msk [vmem:[#allocation3 + $0xc0] sm:$0xf] %vm710, 0
        %2305 = vst.msk [vmem:[#allocation3 + $0xc4] sm:$0xf] %vm710, 0
        %2306 = vst.msk [vmem:[#allocation3 + $0xc8] sm:$0x1] %vm713, 0
        %2307 = vst.msk [vmem:[#allocation3 + $0xcc] sm:$0xf] %vm710, 0
        %2308 = vst.msk [vmem:[#allocation3 + $0xd0] sm:$0xf] %vm710, 0
        %2309 = vst.msk [vmem:[#allocation3 + $0xd4] sm:$0x1] %vm713, 0
        %v2311 = vshrl.u32 %v678, 16
        %v2313 = vrot.slane %v2311, 7
        %v2314 = vshll.u32 %v678, 16
        %v2316 = vor.u32 %v2313, %v2314
        %v2317 = vrot.slane %v2313, 4
        %v2319 = vshrl.u32 %v679, 16
        %v2321 = vrot.slane %v2319, 7
        %v2322 = vshll.u32 %v679, 16
        %v2324 = vor.u32 %v2321, %v2322
        %v2325 = vsel %vm768, %v2317, %v2324
        %v2326 = vrot.slane %v2321, 4
        %v2328 = vshrl.u32 %v680, 16
        %v2330 = vrot.slane %v2328, 7
        %v2331 = vshll.u32 %v680, 16
        %v2333 = vor.u32 %v2330, %v2331
        %v2334 = vrot.slane %v2330, 4
        %v2336 = vshrl.u32 %v681, 16
        %v2338 = vrot.slane %v2336, 7
        %v2339 = vshll.u32 %v681, 16
        %v2341 = vor.u32 %v2338, %v2339
        %v2342 = vsel %vm768, %v2334, %v2341
        %v2343 = vrot.slane %v2338, 4
        %v2345 = vshrl.u32 %v682, 16
        %v2347 = vrot.slane %v2345, 7
        %v2348 = vshll.u32 %v682, 16
        %v2350 = vor.u32 %v2347, %v2348
        %v2351 = vrot.slane %v2347, 4
        %v2353 = vshrl.u32 %v683, 16
        %v2355 = vrot.slane %v2353, 7
        %v2356 = vshll.u32 %v683, 16
        %v2358 = vor.u32 %v2355, %v2356
        %v2359 = vsel %vm768, %v2351, %v2358
        %v2360 = vrot.slane %v2355, 4
        %v2362 = vshrl.u32 %v684, 16
        %v2364 = vrot.slane %v2362, 7
        %v2365 = vshll.u32 %v684, 16
        %v2367 = vor.u32 %v2364, %v2365
        %v2368 = vrot.slane %v2364, 4
        %v2370 = vshrl.u32 %v685, 16
        %v2372 = vrot.slane %v2370, 7
        %v2373 = vshll.u32 %v685, 16
        %v2375 = vor.u32 %v2372, %v2373
        %v2376 = vsel %vm768, %v2368, %v2375
        %v2377 = vrot.slane %v2372, 4
        %v2379 = vshrl.u32 %v686, 16
        %v2381 = vrot.slane %v2379, 7
        %v2382 = vshll.u32 %v686, 16
        %v2384 = vor.u32 %v2381, %v2382
        %v2385 = vrot.slane %v2381, 4
        %v2387 = vshrl.u32 %v687, 16
        %v2389 = vrot.slane %v2387, 7
        %v2390 = vshll.u32 %v687, 16
        %v2392 = vor.u32 %v2389, %v2390
        %v2393 = vsel %vm768, %v2385, %v2392
        %v2394 = vrot.slane %v2389, 4
        %v2396 = vshrl.u32 %v688, 16
        %v2398 = vrot.slane %v2396, 7
        %v2399 = vshll.u32 %v688, 16
        %v2401 = vor.u32 %v2398, %v2399
        %v2402 = vrot.slane %v2398, 4
        %v2404 = vshrl.u32 %v689, 16
        %v2406 = vrot.slane %v2404, 7
        %v2407 = vshll.u32 %v689, 16
        %v2409 = vor.u32 %v2406, %v2407
        %v2410 = vsel %vm768, %v2402, %v2409
        %v2411 = vrot.slane %v2406, 4
        %v2413 = vshrl.u32 %v690, 16
        %v2415 = vrot.slane %v2413, 7
        %v2416 = vshll.u32 %v690, 16
        %v2418 = vor.u32 %v2415, %v2416
        %v2419 = vrot.slane %v2415, 4
        %v2421 = vshrl.u32 %v691, 16
        %v2423 = vrot.slane %v2421, 7
        %v2424 = vshll.u32 %v691, 16
        %v2426 = vor.u32 %v2423, %v2424
        %v2427 = vsel %vm768, %v2419, %v2426
        %v2428 = vrot.slane %v2423, 4
        %v2430 = vshrl.u32 %v692, 16
        %v2432 = vrot.slane %v2430, 7
        %v2433 = vshll.u32 %v692, 16
        %v2435 = vor.u32 %v2432, %v2433
        %v2436 = vrot.slane %v2432, 4
        %v2438 = vshrl.u32 %v693, 16
        %v2440 = vrot.slane %v2438, 7
        %v2441 = vshll.u32 %v693, 16
        %v2443 = vor.u32 %v2440, %v2441
        %v2444 = vsel %vm768, %v2436, %v2443
        %v2445 = vrot.slane %v2440, 4
        %v2447 = vshrl.u32 %v694, 16
        %v2449 = vrot.slane %v2447, 7
        %v2450 = vshll.u32 %v694, 16
        %v2452 = vor.u32 %v2449, %v2450
        %v2453 = vrot.slane %v2449, 4
        %v2455 = vshrl.u32 %v695, 16
        %v2457 = vrot.slane %v2455, 7
        %v2458 = vshll.u32 %v695, 16
        %v2460 = vor.u32 %v2457, %v2458
        %v2461 = vsel %vm768, %v2453, %v2460
        %v2462 = vrot.slane %v2457, 4
        %v2464 = vshrl.u32 %v696, 16
        %v2466 = vrot.slane %v2464, 7
        %v2467 = vshll.u32 %v696, 16
        %v2469 = vor.u32 %v2466, %v2467
        %v2470 = vrot.slane %v2466, 4
        %v2472 = vshrl.u32 %v697, 16
        %v2474 = vrot.slane %v2472, 7
        %v2475 = vshll.u32 %v697, 16
        %v2477 = vor.u32 %v2474, %v2475
        %v2478 = vsel %vm768, %v2470, %v2477
        %v2479 = vrot.slane %v2474, 4
        %v2481 = vshrl.u32 %v698, 16
        %v2483 = vrot.slane %v2481, 7
        %v2484 = vshll.u32 %v698, 16
        %v2486 = vor.u32 %v2483, %v2484
        %v2487 = vrot.slane %v2483, 4
        %v2489 = vshrl.u32 %v699, 16
        %v2491 = vrot.slane %v2489, 7
        %v2492 = vshll.u32 %v699, 16
        %v2494 = vor.u32 %v2491, %v2492
        %v2495 = vsel %vm768, %v2487, %v2494
        %v2496 = vrot.slane %v2491, 4
        %v2498 = vshrl.u32 %v700, 16
        %v2500 = vrot.slane %v2498, 7
        %v2501 = vshll.u32 %v700, 16
        %v2503 = vor.u32 %v2500, %v2501
        %v2504 = vrot.slane %v2500, 4
        %v2506 = vshrl.u32 %v701, 16
        %v2508 = vrot.slane %v2506, 7
        %v2509 = vshll.u32 %v701, 16
        %v2511 = vor.u32 %v2508, %v2509
        %v2512 = vsel %vm768, %v2504, %v2511
        %v2513 = vrot.slane %v2508, 4
        %v2515 = vshrl.u32 %v702, 16
        %v2517 = vrot.slane %v2515, 7
        %v2518 = vshll.u32 %v702, 16
        %v2520 = vor.u32 %v2517, %v2518
        %v2521 = vrot.slane %v2517, 4
        %v2523 = vshrl.u32 %v703, 16
        %v2525 = vrot.slane %v2523, 7
        %v2526 = vshll.u32 %v703, 16
        %v2528 = vor.u32 %v2525, %v2526
        %v2529 = vsel %vm768, %v2521, %v2528
        %v2530 = vrot.slane %v2525, 4
        %v2532 = vshrl.u32 %v704, 16
        %v2534 = vrot.slane %v2532, 7
        %v2535 = vshll.u32 %v704, 16
        %v2537 = vor.u32 %v2534, %v2535
        %v2538 = vrot.slane %v2534, 4
        %v2540 = vshrl.u32 %v705, 16
        %v2542 = vrot.slane %v2540, 7
        %v2543 = vshll.u32 %v705, 16
        %v2545 = vor.u32 %v2542, %v2543
        %v2546 = vsel %vm768, %v2538, %v2545
        %v2547 = vrot.slane %v2542, 4
        %v2549 = vshrl.u32 %v706, 16
        %v2551 = vrot.slane %v2549, 7
        %v2552 = vshll.u32 %v706, 16
        %v2554 = vor.u32 %v2551, %v2552
        %v2555 = vrot.slane %v2551, 4
        %v2557 = vshrl.u32 %v707, 16
        %v2559 = vrot.slane %v2557, 7
        %v2560 = vshll.u32 %v707, 16
        %v2562 = vor.u32 %v2559, %v2560
        %v2563 = vsel %vm768, %v2555, %v2562
        %v2564 = vrot.slane %v2559, 4
        %v2566 = vshrl.u32 %v708, 16
        %v2568 = vrot.slane %v2566, 7
        %v2569 = vshll.u32 %v708, 16
        %v2571 = vor.u32 %v2568, %v2569
        %v2572 = vrot.slane %v2568, 4
        %v2574 = vshrl.u32 %v709, 16
        %v2576 = vrot.slane %v2574, 7
        %v2577 = vshll.u32 %v709, 16
        %v2579 = vor.u32 %v2576, %v2577
        %v2580 = vsel %vm768, %v2572, %v2579
        %v2581 = vrot.slane %v2576, 4
        %2582 = vrot.lane.b32.xlu0 %v2316, 120
        %v2583 = vpop.permute.xlu0 %2582
        %2584 = vrot.lane.b32.xlu0 %v2325, 120
        %v2585 = vpop.permute.xlu0 %2584
        %2586 = vrot.lane.b32.xlu0 %v2326, 120
        %v2587 = vpop.permute.xlu0 %2586
        %2588 = vrot.lane.b32.xlu0 %v2333, 120
        %v2589 = vpop.permute.xlu0 %2588
        %2590 = vrot.lane.b32.xlu0 %v2342, 120
        %v2591 = vpop.permute.xlu0 %2590
        %2592 = vrot.lane.b32.xlu0 %v2343, 120
        %v2593 = vpop.permute.xlu0 %2592
        %2594 = vrot.lane.b32.xlu0 %v2350, 120
        %v2595 = vpop.permute.xlu0 %2594
        %2596 = vrot.lane.b32.xlu0 %v2359, 120
        %v2597 = vpop.permute.xlu0 %2596
        %2598 = vrot.lane.b32.xlu0 %v2360, 120
        %v2599 = vpop.permute.xlu0 %2598
        %2600 = vrot.lane.b32.xlu0 %v2367, 120
        %v2601 = vpop.permute.xlu0 %2600
        %2602 = vrot.lane.b32.xlu0 %v2376, 120
        %v2603 = vpop.permute.xlu0 %2602
        %2604 = vrot.lane.b32.xlu0 %v2377, 120
        %v2605 = vpop.permute.xlu0 %2604
        %2606 = vrot.lane.b32.xlu0 %v2384, 120
        %v2607 = vpop.permute.xlu0 %2606
        %2608 = vrot.lane.b32.xlu0 %v2393, 120
        %v2609 = vpop.permute.xlu0 %2608
        %2610 = vrot.lane.b32.xlu0 %v2394, 120
        %v2611 = vpop.permute.xlu0 %2610
        %2612 = vrot.lane.b32.xlu0 %v2401, 120
        %v2613 = vpop.permute.xlu0 %2612
        %2614 = vrot.lane.b32.xlu0 %v2410, 120
        %v2615 = vpop.permute.xlu0 %2614
        %2616 = vrot.lane.b32.xlu0 %v2411, 120
        %v2617 = vpop.permute.xlu0 %2616
        %2618 = vrot.lane.b32.xlu0 %v2418, 120
        %v2619 = vpop.permute.xlu0 %2618
        %2620 = vrot.lane.b32.xlu0 %v2427, 120
        %v2621 = vpop.permute.xlu0 %2620
        %2622 = vrot.lane.b32.xlu0 %v2428, 120
        %v2623 = vpop.permute.xlu0 %2622
        %2624 = vrot.lane.b32.xlu0 %v2435, 120
        %v2625 = vpop.permute.xlu0 %2624
        %2626 = vrot.lane.b32.xlu0 %v2444, 120
        %v2627 = vpop.permute.xlu0 %2626
        %2628 = vrot.lane.b32.xlu0 %v2445, 120
        %v2629 = vpop.permute.xlu0 %2628
        %2630 = vrot.lane.b32.xlu0 %v2452, 120
        %v2631 = vpop.permute.xlu0 %2630
        %2632 = vrot.lane.b32.xlu0 %v2461, 120
        %v2633 = vpop.permute.xlu0 %2632
        %2634 = vrot.lane.b32.xlu0 %v2462, 120
        %v2635 = vpop.permute.xlu0 %2634
        %2636 = vrot.lane.b32.xlu0 %v2469, 120
        %v2637 = vpop.permute.xlu0 %2636
        %2638 = vrot.lane.b32.xlu0 %v2478, 120
        %v2639 = vpop.permute.xlu0 %2638
        %2640 = vrot.lane.b32.xlu0 %v2479, 120
        %v2641 = vpop.permute.xlu0 %2640
        %2642 = vrot.lane.b32.xlu0 %v2486, 120
        %v2643 = vpop.permute.xlu0 %2642
        %2644 = vrot.lane.b32.xlu0 %v2495, 120
        %v2645 = vpop.permute.xlu0 %2644
        %2646 = vrot.lane.b32.xlu0 %v2496, 120
        %v2647 = vpop.permute.xlu0 %2646
        %2648 = vrot.lane.b32.xlu0 %v2503, 120
        %v2649 = vpop.permute.xlu0 %2648
        %2650 = vrot.lane.b32.xlu0 %v2512, 120
        %v2651 = vpop.permute.xlu0 %2650
        %2652 = vrot.lane.b32.xlu0 %v2513, 120
        %v2653 = vpop.permute.xlu0 %2652
        %2654 = vrot.lane.b32.xlu0 %v2520, 120
        %v2655 = vpop.permute.xlu0 %2654
        %2656 = vrot.lane.b32.xlu0 %v2529, 120
        %v2657 = vpop.permute.xlu0 %2656
        %2658 = vrot.lane.b32.xlu0 %v2530, 120
        %v2659 = vpop.permute.xlu0 %2658
        %2660 = vrot.lane.b32.xlu0 %v2537, 120
        %v2661 = vpop.permute.xlu0 %2660
        %2662 = vrot.lane.b32.xlu0 %v2546, 120
        %v2663 = vpop.permute.xlu0 %2662
        %2664 = vrot.lane.b32.xlu0 %v2547, 120
        %v2665 = vpop.permute.xlu0 %2664
        %2666 = vrot.lane.b32.xlu0 %v2554, 120
        %v2667 = vpop.permute.xlu0 %2666
        %2668 = vrot.lane.b32.xlu0 %v2563, 120
        %v2669 = vpop.permute.xlu0 %2668
        %2670 = vrot.lane.b32.xlu0 %v2564, 120
        %v2671 = vpop.permute.xlu0 %2670
        %2672 = vrot.lane.b32.xlu0 %v2571, 120
        %v2673 = vpop.permute.xlu0 %2672
        %2674 = vrot.lane.b32.xlu0 %v2580, 120
        %v2675 = vpop.permute.xlu0 %2674
        %2676 = vrot.lane.b32.xlu0 %v2581, 120
        %v2677 = vpop.permute.xlu0 %2676
        %s2726 = scalar_lea.vmem [#allocation3], 12
        %v2727 = vld [vmem:[%s2726] sm:$0xf]
        %v2728 = vsel %vm1092, %v2583, %v2727
        %2729 = vst [vmem:[%s2726] sm:$0xf] %v2728
        %2730 = vst.msk [vmem:[%s2726 + $0x4] sm:$0xf] %vm710, %v2585
        %v2731 = vld [vmem:[%s2726 + $0x8] sm:$0x1]
        %v2732 = vsel %vm1098, %v2587, %v2731
        %2733 = vst [vmem:[%s2726 + $0x8] sm:$0x1] %v2732
        %v2734 = vld [vmem:[%s2726 + $0xc] sm:$0xf]
        %v2735 = vsel %vm1092, %v2589, %v2734
        %2736 = vst [vmem:[%s2726 + $0xc] sm:$0xf] %v2735
        %2737 = vst.msk [vmem:[%s2726 + $0x10] sm:$0xf] %vm710, %v2591
        %v2738 = vld [vmem:[%s2726 + $0x14] sm:$0x1]
        %v2739 = vsel %vm1098, %v2593, %v2738
        %2740 = vst [vmem:[%s2726 + $0x14] sm:$0x1] %v2739
        %v2741 = vld [vmem:[%s2726 + $0x18] sm:$0xf]
        %v2742 = vsel %vm1092, %v2595, %v2741
        %2743 = vst [vmem:[%s2726 + $0x18] sm:$0xf] %v2742
        %2744 = vst.msk [vmem:[%s2726 + $0x1c] sm:$0xf] %vm710, %v2597
        %v2745 = vld [vmem:[%s2726 + $0x20] sm:$0x1]
        %v2746 = vsel %vm1098, %v2599, %v2745
        %2747 = vst [vmem:[%s2726 + $0x20] sm:$0x1] %v2746
        %v2748 = vld [vmem:[%s2726 + $0x24] sm:$0xf]
        %v2749 = vsel %vm1092, %v2601, %v2748
        %2750 = vst [vmem:[%s2726 + $0x24] sm:$0xf] %v2749
        %2751 = vst.msk [vmem:[%s2726 + $0x28] sm:$0xf] %vm710, %v2603
        %v2752 = vld [vmem:[%s2726 + $0x2c] sm:$0x1]
        %v2753 = vsel %vm1098, %v2605, %v2752
        %2754 = vst [vmem:[%s2726 + $0x2c] sm:$0x1] %v2753
        %v2755 = vld [vmem:[%s2726 + $0x30] sm:$0xf]
        %v2756 = vsel %vm1092, %v2607, %v2755
        %2757 = vst [vmem:[%s2726 + $0x30] sm:$0xf] %v2756
        %2758 = vst.msk [vmem:[%s2726 + $0x34] sm:$0xf] %vm710, %v2609
        %v2759 = vld [vmem:[%s2726 + $0x38] sm:$0x1]
        %v2760 = vsel %vm1098, %v2611, %v2759
        %2761 = vst [vmem:[%s2726 + $0x38] sm:$0x1] %v2760
        %v2762 = vld [vmem:[%s2726 + $0x3c] sm:$0xf]
        %v2763 = vsel %vm1092, %v2613, %v2762
        %2764 = vst [vmem:[%s2726 + $0x3c] sm:$0xf] %v2763
        %2765 = vst.msk [vmem:[%s2726 + $0x40] sm:$0xf] %vm710, %v2615
        %v2766 = vld [vmem:[%s2726 + $0x44] sm:$0x1]
        %v2767 = vsel %vm1098, %v2617, %v2766
        %2768 = vst [vmem:[%s2726 + $0x44] sm:$0x1] %v2767
        %v2769 = vld [vmem:[%s2726 + $0x48] sm:$0xf]
        %v2770 = vsel %vm1092, %v2619, %v2769
        %2771 = vst [vmem:[%s2726 + $0x48] sm:$0xf] %v2770
        %2772 = vst.msk [vmem:[%s2726 + $0x4c] sm:$0xf] %vm710, %v2621
        %v2773 = vld [vmem:[%s2726 + $0x50] sm:$0x1]
        %v2774 = vsel %vm1098, %v2623, %v2773
        %2775 = vst [vmem:[%s2726 + $0x50] sm:$0x1] %v2774
        %v2776 = vld [vmem:[%s2726 + $0x54] sm:$0xf]
        %v2777 = vsel %vm1092, %v2625, %v2776
        %2778 = vst [vmem:[%s2726 + $0x54] sm:$0xf] %v2777
        %2779 = vst.msk [vmem:[%s2726 + $0x58] sm:$0xf] %vm710, %v2627
        %v2780 = vld [vmem:[%s2726 + $0x5c] sm:$0x1]
        %v2781 = vsel %vm1098, %v2629, %v2780
        %2782 = vst [vmem:[%s2726 + $0x5c] sm:$0x1] %v2781
        %v2783 = vld [vmem:[%s2726 + $0x60] sm:$0xf]
        %v2784 = vsel %vm1092, %v2631, %v2783
        %2785 = vst [vmem:[%s2726 + $0x60] sm:$0xf] %v2784
        %2786 = vst.msk [vmem:[%s2726 + $0x64] sm:$0xf] %vm710, %v2633
        %v2787 = vld [vmem:[%s2726 + $0x68] sm:$0x1]
        %v2788 = vsel %vm1098, %v2635, %v2787
        %2789 = vst [vmem:[%s2726 + $0x68] sm:$0x1] %v2788
        %v2790 = vld [vmem:[%s2726 + $0x6c] sm:$0xf]
        %v2791 = vsel %vm1092, %v2637, %v2790
        %2792 = vst [vmem:[%s2726 + $0x6c] sm:$0xf] %v2791
        %2793 = vst.msk [vmem:[%s2726 + $0x70] sm:$0xf] %vm710, %v2639
        %v2794 = vld [vmem:[%s2726 + $0x74] sm:$0x1]
        %v2795 = vsel %vm1098, %v2641, %v2794
        %2796 = vst [vmem:[%s2726 + $0x74] sm:$0x1] %v2795
        %v2797 = vld [vmem:[%s2726 + $0x78] sm:$0xf]
        %v2798 = vsel %vm1092, %v2643, %v2797
        %2799 = vst [vmem:[%s2726 + $0x78] sm:$0xf] %v2798
        %2800 = vst.msk [vmem:[%s2726 + $0x7c] sm:$0xf] %vm710, %v2645
        %v2801 = vld [vmem:[%s2726 + $0x80] sm:$0x1]
        %v2802 = vsel %vm1098, %v2647, %v2801
        %2803 = vst [vmem:[%s2726 + $0x80] sm:$0x1] %v2802
        %v2804 = vld [vmem:[%s2726 + $0x84] sm:$0xf]
        %v2805 = vsel %vm1092, %v2649, %v2804
        %2806 = vst [vmem:[%s2726 + $0x84] sm:$0xf] %v2805
        %2807 = vst.msk [vmem:[%s2726 + $0x88] sm:$0xf] %vm710, %v2651
        %v2808 = vld [vmem:[%s2726 + $0x8c] sm:$0x1]
        %v2809 = vsel %vm1098, %v2653, %v2808
        %2810 = vst [vmem:[%s2726 + $0x8c] sm:$0x1] %v2809
        %v2811 = vld [vmem:[%s2726 + $0x90] sm:$0xf]
        %v2812 = vsel %vm1092, %v2655, %v2811
        %2813 = vst [vmem:[%s2726 + $0x90] sm:$0xf] %v2812
        %2814 = vst.msk [vmem:[%s2726 + $0x94] sm:$0xf] %vm710, %v2657
        %v2815 = vld [vmem:[%s2726 + $0x98] sm:$0x1]
        %v2816 = vsel %vm1098, %v2659, %v2815
        %2817 = vst [vmem:[%s2726 + $0x98] sm:$0x1] %v2816
        %v2818 = vld [vmem:[%s2726 + $0x9c] sm:$0xf]
        %v2819 = vsel %vm1092, %v2661, %v2818
        %2820 = vst [vmem:[%s2726 + $0x9c] sm:$0xf] %v2819
        %2821 = vst.msk [vmem:[%s2726 + $0xa0] sm:$0xf] %vm710, %v2663
        %v2822 = vld [vmem:[%s2726 + $0xa4] sm:$0x1]
        %v2823 = vsel %vm1098, %v2665, %v2822
        %2824 = vst [vmem:[%s2726 + $0xa4] sm:$0x1] %v2823
        %v2825 = vld [vmem:[%s2726 + $0xa8] sm:$0xf]
        %v2826 = vsel %vm1092, %v2667, %v2825
        %2827 = vst [vmem:[%s2726 + $0xa8] sm:$0xf] %v2826
        %2828 = vst.msk [vmem:[%s2726 + $0xac] sm:$0xf] %vm710, %v2669
        %v2829 = vld [vmem:[%s2726 + $0xb0] sm:$0x1]
        %v2830 = vsel %vm1098, %v2671, %v2829
        %2831 = vst [vmem:[%s2726 + $0xb0] sm:$0x1] %v2830
        %v2832 = vld [vmem:[%s2726 + $0xb4] sm:$0xf]
        %v2833 = vsel %vm1092, %v2673, %v2832
        %2834 = vst [vmem:[%s2726 + $0xb4] sm:$0xf] %v2833
        %2835 = vst.msk [vmem:[%s2726 + $0xb8] sm:$0xf] %vm710, %v2675
        %v2836 = vld [vmem:[%s2726 + $0xbc] sm:$0x1]
        %v2837 = vsel %vm1098, %v2677, %v2836
        %2838 = vst [vmem:[%s2726 + $0xbc] sm:$0x1] %v2837
        %v2839 = vld [vmem:[#allocation3] sm:$0xf]
        %v2840 = vld [vmem:[#allocation3 + $0x4] sm:$0xf]
        %v2841 = vld [vmem:[#allocation3 + $0x8] sm:$0x1]
        %v2842 = vld [vmem:[#allocation3 + $0xc] sm:$0xf]
        %v2843 = vld [vmem:[#allocation3 + $0x10] sm:$0xf]
        %v2844 = vld [vmem:[#allocation3 + $0x14] sm:$0x1]
        %v2845 = vld [vmem:[#allocation3 + $0x18] sm:$0xf]
        %v2846 = vld [vmem:[#allocation3 + $0x1c] sm:$0xf]
        %v2847 = vld [vmem:[#allocation3 + $0x20] sm:$0x1]
        %v2848 = vld [vmem:[#allocation3 + $0x24] sm:$0xf]
        %v2849 = vld [vmem:[#allocation3 + $0x28] sm:$0xf]
        %v2850 = vld [vmem:[#allocation3 + $0x2c] sm:$0x1]
        %v2851 = vld [vmem:[#allocation3 + $0x30] sm:$0xf]
        %v2852 = vld [vmem:[#allocation3 + $0x34] sm:$0xf]
        %v2853 = vld [vmem:[#allocation3 + $0x38] sm:$0x1]
        %v2854 = vld [vmem:[#allocation3 + $0x3c] sm:$0xf]
        %v2855 = vld [vmem:[#allocation3 + $0x40] sm:$0xf]
        %v2856 = vld [vmem:[#allocation3 + $0x44] sm:$0x1]
        %v2857 = vld [vmem:[#allocation3 + $0x48] sm:$0xf]
        %v2858 = vld [vmem:[#allocation3 + $0x4c] sm:$0xf]
        %v2859 = vld [vmem:[#allocation3 + $0x50] sm:$0x1]
        %v2860 = vld [vmem:[#allocation3 + $0x54] sm:$0xf]
        %v2861 = vld [vmem:[#allocation3 + $0x58] sm:$0xf]
        %v2862 = vld [vmem:[#allocation3 + $0x5c] sm:$0x1]
        %v2863 = vld [vmem:[#allocation3 + $0x60] sm:$0xf]
        %v2864 = vld [vmem:[#allocation3 + $0x64] sm:$0xf]
        %v2865 = vld [vmem:[#allocation3 + $0x68] sm:$0x1]
        %v2866 = vld [vmem:[#allocation3 + $0x6c] sm:$0xf]
        %v2867 = vld [vmem:[#allocation3 + $0x70] sm:$0xf]
        %v2868 = vld [vmem:[#allocation3 + $0x74] sm:$0x1]
        %v2869 = vld [vmem:[#allocation3 + $0x78] sm:$0xf]
        %v2870 = vld [vmem:[#allocation3 + $0x7c] sm:$0xf]
        %v2871 = vld [vmem:[#allocation3 + $0x80] sm:$0x1]
        %v2872 = vld [vmem:[#allocation3 + $0x84] sm:$0xf]
        %v2873 = vld [vmem:[#allocation3 + $0x88] sm:$0xf]
        %v2874 = vld [vmem:[#allocation3 + $0x8c] sm:$0x1]
        %v2875 = vld [vmem:[#allocation3 + $0x90] sm:$0xf]
        %v2876 = vld [vmem:[#allocation3 + $0x94] sm:$0xf]
        %v2877 = vld [vmem:[#allocation3 + $0x98] sm:$0x1]
        %v2878 = vld [vmem:[#allocation3 + $0x9c] sm:$0xf]
        %v2879 = vld [vmem:[#allocation3 + $0xa0] sm:$0xf]
        %v2880 = vld [vmem:[#allocation3 + $0xa4] sm:$0x1]
        %v2881 = vld [vmem:[#allocation3 + $0xa8] sm:$0xf]
        %v2882 = vld [vmem:[#allocation3 + $0xac] sm:$0xf]
        %v2883 = vld [vmem:[#allocation3 + $0xb0] sm:$0x1]
        %v2884 = vld [vmem:[#allocation3 + $0xb4] sm:$0xf]
        %v2885 = vld [vmem:[#allocation3 + $0xb8] sm:$0xf]
        %v2886 = vld [vmem:[#allocation3 + $0xbc] sm:$0x1]
        %v2887 = vld [vmem:[#allocation3 + $0xc0] sm:$0xf]
        %v2888 = vld [vmem:[#allocation3 + $0xc4] sm:$0xf]
        %v2889 = vld [vmem:[#allocation3 + $0xc8] sm:$0x1]
        %v2890 = vld [vmem:[#allocation3 + $0xcc] sm:$0xf]
        %v2891 = vld [vmem:[#allocation3 + $0xd0] sm:$0xf]
        %v2892 = vld [vmem:[#allocation3 + $0xd4] sm:$0x1]
        %v2929 = vunpack.c.l.b16 %v2839
        %v2930 = vunpack.c.l.b16 %v2840
        %v2931 = vunpack.c.l.b16 %v2842
        %v2932 = vunpack.c.l.b16 %v2843
        %v2933 = vunpack.c.l.b16 %v2845
        %v2934 = vunpack.c.l.b16 %v2846
        %v2935 = vunpack.c.l.b16 %v2848
        %v2936 = vunpack.c.l.b16 %v2849
        %v2937 = vunpack.c.l.b16 %v2851
        %v2938 = vunpack.c.l.b16 %v2852
        %v2939 = vunpack.c.l.b16 %v2854
        %v2940 = vunpack.c.l.b16 %v2855
        %v2941 = vunpack.c.l.b16 %v2857
        %v2942 = vunpack.c.l.b16 %v2858
        %v2943 = vunpack.c.l.b16 %v2860
        %v2944 = vunpack.c.l.b16 %v2861
        %v2945 = vunpack.c.l.b16 %v2863
        %v2946 = vunpack.c.l.b16 %v2864
        %v2947 = vunpack.c.l.b16 %v2866
        %v2948 = vunpack.c.l.b16 %v2867
        %v2949 = vunpack.c.l.b16 %v2869
        %v2950 = vunpack.c.l.b16 %v2870
        %v2951 = vunpack.c.l.b16 %v2872
        %v2952 = vunpack.c.l.b16 %v2873
        %v2953 = vunpack.c.l.b16 %v2875
        %v2954 = vunpack.c.l.b16 %v2876
        %v2955 = vunpack.c.l.b16 %v2878
        %v2956 = vunpack.c.l.b16 %v2879
        %v2957 = vunpack.c.l.b16 %v2881
        %v2958 = vunpack.c.l.b16 %v2882
        %v2959 = vunpack.c.l.b16 %v2884
        %v2960 = vunpack.c.l.b16 %v2885
        %v2961 = vunpack.c.l.b16 %v2887
        %v2962 = vunpack.c.l.b16 %v2888
        %v2963 = vunpack.c.l.b16 %v2890
        %v2964 = vunpack.c.l.b16 %v2891
        %v2965 = vpack.c.b16 %v2930, %v2929
        %v2966 = vpack.c.b16 %v2932, %v2931
        %v2967 = vpack.c.b16 %v2934, %v2933
        %v2968 = vpack.c.b16 %v2936, %v2935
        %v2969 = vpack.c.b16 %v2938, %v2937
        %v2970 = vpack.c.b16 %v2940, %v2939
        %v2971 = vpack.c.b16 %v2942, %v2941
        %v2972 = vpack.c.b16 %v2944, %v2943
        %v2973 = vpack.c.b16 %v2946, %v2945
        %v2974 = vpack.c.b16 %v2948, %v2947
        %v2975 = vpack.c.b16 %v2950, %v2949
        %v2976 = vpack.c.b16 %v2952, %v2951
        %v2977 = vpack.c.b16 %v2954, %v2953
        %v2978 = vpack.c.b16 %v2956, %v2955
        %v2979 = vpack.c.b16 %v2958, %v2957
        %v2980 = vpack.c.b16 %v2960, %v2959
        %v2981 = vpack.c.b16 %v2962, %v2961
        %v2982 = vpack.c.b16 %v2964, %v2963
        %v3001 = vunpack.c.l.b16 %v2841
        %v3002 = vunpack.c.l.b16 %v2844
        %v3003 = vunpack.c.l.b16 %v2847
        %v3004 = vunpack.c.l.b16 %v2850
        %v3005 = vunpack.c.l.b16 %v2853
        %v3006 = vunpack.c.l.b16 %v2856
        %v3007 = vunpack.c.l.b16 %v2859
        %v3008 = vunpack.c.l.b16 %v2862
        %v3009 = vunpack.c.l.b16 %v2865
        %v3010 = vunpack.c.l.b16 %v2868
        %v3011 = vunpack.c.l.b16 %v2871
        %v3012 = vunpack.c.l.b16 %v2874
        %v3013 = vunpack.c.l.b16 %v2877
        %v3014 = vunpack.c.l.b16 %v2880
        %v3015 = vunpack.c.l.b16 %v2883
        %v3016 = vunpack.c.l.b16 %v2886
        %v3017 = vunpack.c.l.b16 %v2889
        %v3018 = vunpack.c.l.b16 %v2892
        %v3019 = vpack.c.b16 %v3001, %v3001
        %v3020 = vpack.c.b16 %v3002, %v3002
        %v3021 = vpack.c.b16 %v3003, %v3003
        %v3022 = vpack.c.b16 %v3004, %v3004
        %v3023 = vpack.c.b16 %v3005, %v3005
        %v3024 = vpack.c.b16 %v3006, %v3006
        %v3025 = vpack.c.b16 %v3007, %v3007
        %v3026 = vpack.c.b16 %v3008, %v3008
        %v3027 = vpack.c.b16 %v3009, %v3009
        %v3028 = vpack.c.b16 %v3010, %v3010
        %v3029 = vpack.c.b16 %v3011, %v3011
        %v3030 = vpack.c.b16 %v3012, %v3012
        %v3031 = vpack.c.b16 %v3013, %v3013
        %v3032 = vpack.c.b16 %v3014, %v3014
        %v3033 = vpack.c.b16 %v3015, %v3015
        %v3034 = vpack.c.b16 %v3016, %v3016
        %v3035 = vpack.c.b16 %v3017, %v3017
        %v3036 = vpack.c.b16 %v3018, %v3018
        %vm3037 = vsmask.f32 7424
        %v3039 = vshrl.u32 %v2965, 16
        %v3041 = vshll.u32 %v2965, 16
        %v3043 = vrot.slane %v3041, 1
        %v3044 = vor.u32 %v3039, %v3043
        %v3046 = vshll.u32 %v3019, 16
        %v3048 = vrot.slane %v3046, 1
        %v3049 = vsel %vm3037, %v3044, %v3048
        %v3051 = vshrl.u32 %v2966, 16
        %v3053 = vshll.u32 %v2966, 16
        %v3055 = vrot.slane %v3053, 1
        %v3056 = vor.u32 %v3051, %v3055
        %v3058 = vshll.u32 %v3020, 16
        %v3060 = vrot.slane %v3058, 1
        %v3061 = vsel %vm3037, %v3056, %v3060
        %v3063 = vshrl.u32 %v2967, 16
        %v3065 = vshll.u32 %v2967, 16
        %v3067 = vrot.slane %v3065, 1
        %v3068 = vor.u32 %v3063, %v3067
        %v3070 = vshll.u32 %v3021, 16
        %v3072 = vrot.slane %v3070, 1
        %v3073 = vsel %vm3037, %v3068, %v3072
        %v3075 = vshrl.u32 %v2968, 16
        %v3077 = vshll.u32 %v2968, 16
        %v3079 = vrot.slane %v3077, 1
        %v3080 = vor.u32 %v3075, %v3079
        %v3082 = vshll.u32 %v3022, 16
        %v3084 = vrot.slane %v3082, 1
        %v3085 = vsel %vm3037, %v3080, %v3084
        %v3087 = vshrl.u32 %v2969, 16
        %v3089 = vshll.u32 %v2969, 16
        %v3091 = vrot.slane %v3089, 1
        %v3092 = vor.u32 %v3087, %v3091
        %v3094 = vshll.u32 %v3023, 16
        %v3096 = vrot.slane %v3094, 1
        %v3097 = vsel %vm3037, %v3092, %v3096
        %v3099 = vshrl.u32 %v2970, 16
        %v3101 = vshll.u32 %v2970, 16
        %v3103 = vrot.slane %v3101, 1
        %v3104 = vor.u32 %v3099, %v3103
        %v3106 = vshll.u32 %v3024, 16
        %v3108 = vrot.slane %v3106, 1
        %v3109 = vsel %vm3037, %v3104, %v3108
        %v3111 = vshrl.u32 %v2971, 16
        %v3113 = vshll.u32 %v2971, 16
        %v3115 = vrot.slane %v3113, 1
        %v3116 = vor.u32 %v3111, %v3115
        %v3118 = vshll.u32 %v3025, 16
        %v3120 = vrot.slane %v3118, 1
        %v3121 = vsel %vm3037, %v3116, %v3120
        %v3123 = vshrl.u32 %v2972, 16
        %v3125 = vshll.u32 %v2972, 16
        %v3127 = vrot.slane %v3125, 1
        %v3128 = vor.u32 %v3123, %v3127
        %v3130 = vshll.u32 %v3026, 16
        %v3132 = vrot.slane %v3130, 1
        %v3133 = vsel %vm3037, %v3128, %v3132
        %v3135 = vshrl.u32 %v2973, 16
        %v3137 = vshll.u32 %v2973, 16
        %v3139 = vrot.slane %v3137, 1
        %v3140 = vor.u32 %v3135, %v3139
        %v3142 = vshll.u32 %v3027, 16
        %v3144 = vrot.slane %v3142, 1
        %v3145 = vsel %vm3037, %v3140, %v3144
        %v3147 = vshrl.u32 %v2974, 16
        %v3149 = vshll.u32 %v2974, 16
        %v3151 = vrot.slane %v3149, 1
        %v3152 = vor.u32 %v3147, %v3151
        %v3154 = vshll.u32 %v3028, 16
        %v3156 = vrot.slane %v3154, 1
        %v3157 = vsel %vm3037, %v3152, %v3156
        %v3159 = vshrl.u32 %v2975, 16
        %v3161 = vshll.u32 %v2975, 16
        %v3163 = vrot.slane %v3161, 1
        %v3164 = vor.u32 %v3159, %v3163
        %v3166 = vshll.u32 %v3029, 16
        %v3168 = vrot.slane %v3166, 1
        %v3169 = vsel %vm3037, %v3164, %v3168
        %v3171 = vshrl.u32 %v2976, 16
        %v3173 = vshll.u32 %v2976, 16
        %v3175 = vrot.slane %v3173, 1
        %v3176 = vor.u32 %v3171, %v3175
        %v3178 = vshll.u32 %v3030, 16
        %v3180 = vrot.slane %v3178, 1
        %v3181 = vsel %vm3037, %v3176, %v3180
        %v3183 = vshrl.u32 %v2977, 16
        %v3185 = vshll.u32 %v2977, 16
        %v3187 = vrot.slane %v3185, 1
        %v3188 = vor.u32 %v3183, %v3187
        %v3190 = vshll.u32 %v3031, 16
        %v3192 = vrot.slane %v3190, 1
        %v3193 = vsel %vm3037, %v3188, %v3192
        %v3195 = vshrl.u32 %v2978, 16
        %v3197 = vshll.u32 %v2978, 16
        %v3199 = vrot.slane %v3197, 1
        %v3200 = vor.u32 %v3195, %v3199
        %v3202 = vshll.u32 %v3032, 16
        %v3204 = vrot.slane %v3202, 1
        %v3205 = vsel %vm3037, %v3200, %v3204
        %v3207 = vshrl.u32 %v2979, 16
        %v3209 = vshll.u32 %v2979, 16
        %v3211 = vrot.slane %v3209, 1
        %v3212 = vor.u32 %v3207, %v3211
        %v3214 = vshll.u32 %v3033, 16
        %v3216 = vrot.slane %v3214, 1
        %v3217 = vsel %vm3037, %v3212, %v3216
        %v3219 = vshrl.u32 %v2980, 16
        %v3221 = vshll.u32 %v2980, 16
        %v3223 = vrot.slane %v3221, 1
        %v3224 = vor.u32 %v3219, %v3223
        %v3226 = vshll.u32 %v3034, 16
        %v3228 = vrot.slane %v3226, 1
        %v3229 = vsel %vm3037, %v3224, %v3228
        %v3231 = vshrl.u32 %v2981, 16
        %v3233 = vshll.u32 %v2981, 16
        %v3235 = vrot.slane %v3233, 1
        %v3236 = vor.u32 %v3231, %v3235
        %v3238 = vshll.u32 %v3035, 16
        %v3240 = vrot.slane %v3238, 1
        %v3241 = vsel %vm3037, %v3236, %v3240
        %v3243 = vshrl.u32 %v2982, 16
        %v3245 = vshll.u32 %v2982, 16
        %v3247 = vrot.slane %v3245, 1
        %v3248 = vor.u32 %v3243, %v3247
        %v3250 = vshll.u32 %v3036, 16
        %v3252 = vrot.slane %v3250, 1
        %v3253 = vsel %vm3037, %v3248, %v3252
        %3254 = vrot.lane.b32.xlu0 %v3049, 4
        %v3255 = vpop.permute.xlu0 %3254
        %3256 = vrot.lane.b32.xlu0 %v3061, 4
        %v3257 = vpop.permute.xlu0 %3256
        %3258 = vrot.lane.b32.xlu0 %v3073, 4
        %v3259 = vpop.permute.xlu0 %3258
        %3260 = vrot.lane.b32.xlu0 %v3085, 4
        %v3261 = vpop.permute.xlu0 %3260
        %3262 = vrot.lane.b32.xlu0 %v3097, 4
        %v3263 = vpop.permute.xlu0 %3262
        %3264 = vrot.lane.b32.xlu0 %v3109, 4
        %v3265 = vpop.permute.xlu0 %3264
        %3266 = vrot.lane.b32.xlu0 %v3121, 4
        %v3267 = vpop.permute.xlu0 %3266
        %3268 = vrot.lane.b32.xlu0 %v3133, 4
        %v3269 = vpop.permute.xlu0 %3268
        %3270 = vrot.lane.b32.xlu0 %v3145, 4
        %v3271 = vpop.permute.xlu0 %3270
        %3272 = vrot.lane.b32.xlu0 %v3157, 4
        %v3273 = vpop.permute.xlu0 %3272
        %3274 = vrot.lane.b32.xlu0 %v3169, 4
        %v3275 = vpop.permute.xlu0 %3274
        %3276 = vrot.lane.b32.xlu0 %v3181, 4
        %v3277 = vpop.permute.xlu0 %3276
        %3278 = vrot.lane.b32.xlu0 %v3193, 4
        %v3279 = vpop.permute.xlu0 %3278
        %3280 = vrot.lane.b32.xlu0 %v3205, 4
        %v3281 = vpop.permute.xlu0 %3280
        %3282 = vrot.lane.b32.xlu0 %v3217, 4
        %v3283 = vpop.permute.xlu0 %3282
        %3284 = vrot.lane.b32.xlu0 %v3229, 4
        %v3285 = vpop.permute.xlu0 %3284
        %3286 = vrot.lane.b32.xlu0 %v3241, 4
        %v3287 = vpop.permute.xlu0 %3286
        %3288 = vrot.lane.b32.xlu0 %v3253, 4
        %v3289 = vpop.permute.xlu0 %3288
        %vm3290 = vcmask 1046528
        %v3291 = vrot.slane %v2965, 1
        %v3292 = vrot.slane %v3019, 1
        %v3293 = vsel %vm3290, %v3291, %v3292
        %v3294 = vrot.slane %v2966, 1
        %v3295 = vrot.slane %v3020, 1
        %v3296 = vsel %vm3290, %v3294, %v3295
        %v3297 = vrot.slane %v2967, 1
        %v3298 = vrot.slane %v3021, 1
        %v3299 = vsel %vm3290, %v3297, %v3298
        %v3300 = vrot.slane %v2968, 1
        %v3301 = vrot.slane %v3022, 1
        %v3302 = vsel %vm3290, %v3300, %v3301
        %v3303 = vrot.slane %v2969, 1
        %v3304 = vrot.slane %v3023, 1
        %v3305 = vsel %vm3290, %v3303, %v3304
        %v3306 = vrot.slane %v2970, 1
        %v3307 = vrot.slane %v3024, 1
        %v3308 = vsel %vm3290, %v3306, %v3307
        %v3309 = vrot.slane %v2971, 1
        %v3310 = vrot.slane %v3025, 1
        %v3311 = vsel %vm3290, %v3309, %v3310
        %v3312 = vrot.slane %v2972, 1
        %v3313 = vrot.slane %v3026, 1
        %v3314 = vsel %vm3290, %v3312, %v3313
        %v3315 = vrot.slane %v2973, 1
        %v3316 = vrot.slane %v3027, 1
        %v3317 = vsel %vm3290, %v3315, %v3316
        %v3318 = vrot.slane %v2974, 1
        %v3319 = vrot.slane %v3028, 1
        %v3320 = vsel %vm3290, %v3318, %v3319
        %v3321 = vrot.slane %v2975, 1
        %v3322 = vrot.slane %v3029, 1
        %v3323 = vsel %vm3290, %v3321, %v3322
        %v3324 = vrot.slane %v2976, 1
        %v3325 = vrot.slane %v3030, 1
        %v3326 = vsel %vm3290, %v3324, %v3325
        %v3327 = vrot.slane %v2977, 1
        %v3328 = vrot.slane %v3031, 1
        %v3329 = vsel %vm3290, %v3327, %v3328
        %v3330 = vrot.slane %v2978, 1
        %v3331 = vrot.slane %v3032, 1
        %v3332 = vsel %vm3290, %v3330, %v3331
        %v3333 = vrot.slane %v2979, 1
        %v3334 = vrot.slane %v3033, 1
        %v3335 = vsel %vm3290, %v3333, %v3334
        %v3336 = vrot.slane %v2980, 1
        %v3337 = vrot.slane %v3034, 1
        %v3338 = vsel %vm3290, %v3336, %v3337
        %v3339 = vrot.slane %v2981, 1
        %v3340 = vrot.slane %v3035, 1
        %v3341 = vsel %vm3290, %v3339, %v3340
        %v3342 = vrot.slane %v2982, 1
        %v3343 = vrot.slane %v3036, 1
        %v3344 = vsel %vm3290, %v3342, %v3343
        %3345 = vrot.lane.b32.xlu0 %v3293, 8
        %v3346 = vpop.permute.xlu0 %3345
        %3347 = vrot.lane.b32.xlu0 %v3296, 8
        %v3348 = vpop.permute.xlu0 %3347
        %3349 = vrot.lane.b32.xlu0 %v3299, 8
        %v3350 = vpop.permute.xlu0 %3349
        %3351 = vrot.lane.b32.xlu0 %v3302, 8
        %v3352 = vpop.permute.xlu0 %3351
        %3353 = vrot.lane.b32.xlu0 %v3305, 8
        %v3354 = vpop.permute.xlu0 %3353
        %3355 = vrot.lane.b32.xlu0 %v3308, 8
        %v3356 = vpop.permute.xlu0 %3355
        %3357 = vrot.lane.b32.xlu0 %v3311, 8
        %v3358 = vpop.permute.xlu0 %3357
        %3359 = vrot.lane.b32.xlu0 %v3314, 8
        %v3360 = vpop.permute.xlu0 %3359
        %3361 = vrot.lane.b32.xlu0 %v3317, 8
        %v3362 = vpop.permute.xlu0 %3361
        %3363 = vrot.lane.b32.xlu0 %v3320, 8
        %v3364 = vpop.permute.xlu0 %3363
        %3365 = vrot.lane.b32.xlu0 %v3323, 8
        %v3366 = vpop.permute.xlu0 %3365
        %3367 = vrot.lane.b32.xlu0 %v3326, 8
        %v3368 = vpop.permute.xlu0 %3367
        %3369 = vrot.lane.b32.xlu0 %v3329, 8
        %v3370 = vpop.permute.xlu0 %3369
        %3371 = vrot.lane.b32.xlu0 %v3332, 8
        %v3372 = vpop.permute.xlu0 %3371
        %3373 = vrot.lane.b32.xlu0 %v3335, 8
        %v3374 = vpop.permute.xlu0 %3373
        %3375 = vrot.lane.b32.xlu0 %v3338, 8
        %v3376 = vpop.permute.xlu0 %3375
        %3377 = vrot.lane.b32.xlu0 %v3341, 8
        %v3378 = vpop.permute.xlu0 %3377
        %3379 = vrot.lane.b32.xlu0 %v3344, 8
        %v3380 = vpop.permute.xlu0 %3379
        %v3382 = vsel %vm504, %v2965, %v3255
        %v3384 = vsel %vm504, %v2966, %v3257
        %v3386 = vsel %vm504, %v2967, %v3259
        %v3388 = vsel %vm504, %v2968, %v3261
        %v3390 = vsel %vm504, %v2969, %v3263
        %v3392 = vsel %vm504, %v2970, %v3265
        %v3394 = vsel %vm504, %v2971, %v3267
        %v3396 = vsel %vm504, %v2972, %v3269
        %v3398 = vsel %vm504, %v2973, %v3271
        %v3400 = vsel %vm504, %v2974, %v3273
        %v3402 = vsel %vm504, %v2975, %v3275
        %v3404 = vsel %vm504, %v2976, %v3277
        %v3406 = vsel %vm504, %v2977, %v3279
        %v3408 = vsel %vm504, %v2978, %v3281
        %v3410 = vsel %vm504, %v2979, %v3283
        %v3412 = vsel %vm504, %v2980, %v3285
        %v3414 = vsel %vm504, %v2981, %v3287
        %v3416 = vsel %vm504, %v2982, %v3289
        %vm3417 = vcmask 64512
        %v3419 = vsel %vm3417, %v3382, %v3346
        %v3421 = vsel %vm3417, %v3384, %v3348
        %v3423 = vsel %vm3417, %v3386, %v3350
        %v3425 = vsel %vm3417, %v3388, %v3352
        %v3427 = vsel %vm3417, %v3390, %v3354
        %v3429 = vsel %vm3417, %v3392, %v3356
        %v3431 = vsel %vm3417, %v3394, %v3358
        %v3433 = vsel %vm3417, %v3396, %v3360
        %v3435 = vsel %vm3417, %v3398, %v3362
        %v3437 = vsel %vm3417, %v3400, %v3364
        %v3439 = vsel %vm3417, %v3402, %v3366
        %v3441 = vsel %vm3417, %v3404, %v3368
        %v3443 = vsel %vm3417, %v3406, %v3370
        %v3445 = vsel %vm3417, %v3408, %v3372
        %v3447 = vsel %vm3417, %v3410, %v3374
        %v3449 = vsel %vm3417, %v3412, %v3376
        %v3451 = vsel %vm3417, %v3414, %v3378
        %v3453 = vsel %vm3417, %v3416, %v3380
        %v3454 = vld [vmem:[%s5] sm:$0xf]
        %v3455 = vld [vmem:[%s5 + $0x4] sm:$0x3]
        %s3456 = scalar_lea.vmem %s5, 8
        %v3457 = vld [vmem:[%s3456] sm:$0xf]
        %v3458 = vld [vmem:[%s3456 + $0x4] sm:$0x3]
        %v3461 = vunpack.c.l.b16 %v3457
        %v3462 = vunpack.c.l.b16 %v3458
        %v3463 = vpack.c.b16 %v3462, %v3461
        %vm3464 = vcmask 97280
        %v3465 = vsel %vm3464, %v3421, 0
        %v3467 = vsel %vm3464, %v3423, 0
        %v3469 = vsel %vm3464, %v3425, 0
        %v3471 = vsel %vm3464, %v3427, 0
        %v3473 = vsel %vm3464, %v3429, 0
        %v3475 = vsel %vm3464, %v3431, 0
        %v3477 = vsel %vm3464, %v3433, 0
        %v3479 = vsel %vm3464, %v3435, 0
        %v3481 = vsel %vm3464, %v3437, 0
        %v3483 = vsel %vm3464, %v3439, 0
        %v3485 = vsel %vm3464, %v3441, 0
        %v3487 = vsel %vm3464, %v3443, 0
        %v3489 = vsel %vm3464, %v3445, 0
        %v3491 = vsel %vm3464, %v3447, 0
        %v3493 = vsel %vm3464, %v3449, 0
        %v3495 = vsel %vm3464, %v3451, 0
        %v3498 = vsel %vm1604, %v3463, 0
        %3500 = vmatpush.bf16.msra.mxu0 0
        %3501 = vmatpush.bf16.msra.mxu0 0
        %3502 = vmatpush.bf16.msra.mxu0 0
        %3503 = vmatpush.bf16.msra.mxu0 0
        %3504 = vmatpush.bf16.msra.mxu0 0
        %3505 = vmatpush.bf16.msra.mxu0 0
        %3506 = vmatpush.bf16.msra.mxu0 0
        %3507 = vmatpush.bf16.msra.mxu0 %v3498
        %3508 = vmatmul.bf16.gmra.mxu0 %v3465
        %v3509 = vpop.f32.mrf.mxu0
        %v3510 = vadd.f32 0.0, %v3509
        %v3511 = vpop.f32.mrf.mxu0
        %v3512 = vadd.f32 0.0, %v3511
        %3513 = vmatmul.bf16.gmra.mxu0 %v3467
        %v3514 = vpop.f32.mrf.mxu0
        %v3515 = vadd.f32 0.0, %v3514
        %v3516 = vpop.f32.mrf.mxu0
        %v3517 = vadd.f32 0.0, %v3516
        %3518 = vmatmul.bf16.gmra.mxu0 %v3469
        %v3519 = vpop.f32.mrf.mxu0
        %v3520 = vadd.f32 0.0, %v3519
        %v3521 = vpop.f32.mrf.mxu0
        %v3522 = vadd.f32 0.0, %v3521
        %3523 = vmatmul.bf16.gmra.mxu0 %v3471
        %v3524 = vpop.f32.mrf.mxu0
        %v3525 = vadd.f32 0.0, %v3524
        %v3526 = vpop.f32.mrf.mxu0
        %v3527 = vadd.f32 0.0, %v3526
        %3528 = vmatmul.bf16.gmra.mxu0 %v3473
        %v3529 = vpop.f32.mrf.mxu0
        %v3530 = vadd.f32 0.0, %v3529
        %v3531 = vpop.f32.mrf.mxu0
        %v3532 = vadd.f32 0.0, %v3531
        %3533 = vmatmul.bf16.gmra.mxu0 %v3475
        %v3534 = vpop.f32.mrf.mxu0
        %v3535 = vadd.f32 0.0, %v3534
        %v3536 = vpop.f32.mrf.mxu0
        %v3537 = vadd.f32 0.0, %v3536
        %3538 = vmatmul.bf16.gmra.mxu0 %v3477
        %v3539 = vpop.f32.mrf.mxu0
        %v3540 = vadd.f32 0.0, %v3539
        %v3541 = vpop.f32.mrf.mxu0
        %v3542 = vadd.f32 0.0, %v3541
        %3543 = vmatmul.bf16.gmra.mxu0 %v3479
        %v3544 = vpop.f32.mrf.mxu0
        %v3545 = vadd.f32 0.0, %v3544
        %v3546 = vpop.f32.mrf.mxu0
        %v3547 = vadd.f32 0.0, %v3546
        %3548 = vmatmul.bf16.gmra.mxu0 %v3481
        %v3549 = vpop.f32.mrf.mxu0
        %v3550 = vadd.f32 0.0, %v3549
        %v3551 = vpop.f32.mrf.mxu0
        %v3552 = vadd.f32 0.0, %v3551
        %3553 = vmatmul.bf16.gmra.mxu0 %v3483
        %v3554 = vpop.f32.mrf.mxu0
        %v3555 = vadd.f32 0.0, %v3554
        %v3556 = vpop.f32.mrf.mxu0
        %v3557 = vadd.f32 0.0, %v3556
        %3558 = vmatmul.bf16.gmra.mxu0 %v3485
        %v3559 = vpop.f32.mrf.mxu0
        %v3560 = vadd.f32 0.0, %v3559
        %v3561 = vpop.f32.mrf.mxu0
        %v3562 = vadd.f32 0.0, %v3561
        %3563 = vmatmul.bf16.gmra.mxu0 %v3487
        %v3564 = vpop.f32.mrf.mxu0
        %v3565 = vadd.f32 0.0, %v3564
        %v3566 = vpop.f32.mrf.mxu0
        %v3567 = vadd.f32 0.0, %v3566
        %3568 = vmatmul.bf16.gmra.mxu0 %v3489
        %v3569 = vpop.f32.mrf.mxu0
        %v3570 = vadd.f32 0.0, %v3569
        %v3571 = vpop.f32.mrf.mxu0
        %v3572 = vadd.f32 0.0, %v3571
        %3573 = vmatmul.bf16.gmra.mxu0 %v3491
        %v3574 = vpop.f32.mrf.mxu0
        %v3575 = vadd.f32 0.0, %v3574
        %v3576 = vpop.f32.mrf.mxu0
        %v3577 = vadd.f32 0.0, %v3576
        %3578 = vmatmul.bf16.gmra.mxu0 %v3493
        %v3579 = vpop.f32.mrf.mxu0
        %v3580 = vadd.f32 0.0, %v3579
        %v3581 = vpop.f32.mrf.mxu0
        %v3582 = vadd.f32 0.0, %v3581
        %3583 = vmatmul.bf16.gmra.mxu0 %v3495
        %v3584 = vpop.f32.mrf.mxu0
        %v3585 = vadd.f32 0.0, %v3584
        %v3586 = vpop.f32.mrf.mxu0
        %v3587 = vadd.f32 0.0, %v3586
        %3588 = vdwg.mxu0
        %v3591 = vunpack.c.l.b16 %v3454
        %v3592 = vunpack.c.l.b16 %v3455
        %v3593 = vpack.c.b16 %v3592, %v3591
        %v3594 = vsel %vm3464, %v3419, 0
        %v3597 = vsel %vm1604, %v3593, 0
        %3599 = vmatpush.bf16.msra.mxu0 0
        %3600 = vmatpush.bf16.msra.mxu0 0
        %3601 = vmatpush.bf16.msra.mxu0 0
        %3602 = vmatpush.bf16.msra.mxu0 0
        %3603 = vmatpush.bf16.msra.mxu0 0
        %3604 = vmatpush.bf16.msra.mxu0 0
        %3605 = vmatpush.bf16.msra.mxu0 0
        %3606 = vmatpush.bf16.msra.mxu0 %v3597
        %3607 = vmatmul.bf16.gmra.mxu0 %v3594
        %v3608 = vpop.f32.mrf.mxu0
        %v3609 = vadd.f32 %v3510, %v3608
        %v3610 = vpop.f32.mrf.mxu0
        %v3611 = vadd.f32 %v3512, %v3610
        %3612 = vmatmul.bf16.gmra.mxu0 %v3465
        %v3613 = vpop.f32.mrf.mxu0
        %v3614 = vadd.f32 %v3515, %v3613
        %v3615 = vpop.f32.mrf.mxu0
        %v3616 = vadd.f32 %v3517, %v3615
        %3617 = vmatmul.bf16.gmra.mxu0 %v3467
        %v3618 = vpop.f32.mrf.mxu0
        %v3619 = vadd.f32 %v3520, %v3618
        %v3620 = vpop.f32.mrf.mxu0
        %v3621 = vadd.f32 %v3522, %v3620
        %3622 = vmatmul.bf16.gmra.mxu0 %v3469
        %v3623 = vpop.f32.mrf.mxu0
        %v3624 = vadd.f32 %v3525, %v3623
        %v3625 = vpop.f32.mrf.mxu0
        %v3626 = vadd.f32 %v3527, %v3625
        %3627 = vmatmul.bf16.gmra.mxu0 %v3471
        %v3628 = vpop.f32.mrf.mxu0
        %v3629 = vadd.f32 %v3530, %v3628
        %v3630 = vpop.f32.mrf.mxu0
        %v3631 = vadd.f32 %v3532, %v3630
        %3632 = vmatmul.bf16.gmra.mxu0 %v3473
        %v3633 = vpop.f32.mrf.mxu0
        %v3634 = vadd.f32 %v3535, %v3633
        %v3635 = vpop.f32.mrf.mxu0
        %v3636 = vadd.f32 %v3537, %v3635
        %3637 = vmatmul.bf16.gmra.mxu0 %v3475
        %v3638 = vpop.f32.mrf.mxu0
        %v3639 = vadd.f32 %v3540, %v3638
        %v3640 = vpop.f32.mrf.mxu0
        %v3641 = vadd.f32 %v3542, %v3640
        %3642 = vmatmul.bf16.gmra.mxu0 %v3477
        %v3643 = vpop.f32.mrf.mxu0
        %v3644 = vadd.f32 %v3545, %v3643
        %v3645 = vpop.f32.mrf.mxu0
        %v3646 = vadd.f32 %v3547, %v3645
        %3647 = vmatmul.bf16.gmra.mxu0 %v3479
        %v3648 = vpop.f32.mrf.mxu0
        %v3649 = vadd.f32 %v3550, %v3648
        %v3650 = vpop.f32.mrf.mxu0
        %v3651 = vadd.f32 %v3552, %v3650
        %3652 = vmatmul.bf16.gmra.mxu0 %v3481
        %v3653 = vpop.f32.mrf.mxu0
        %v3654 = vadd.f32 %v3555, %v3653
        %v3655 = vpop.f32.mrf.mxu0
        %v3656 = vadd.f32 %v3557, %v3655
        %3657 = vmatmul.bf16.gmra.mxu0 %v3483
        %v3658 = vpop.f32.mrf.mxu0
        %v3659 = vadd.f32 %v3560, %v3658
        %v3660 = vpop.f32.mrf.mxu0
        %v3661 = vadd.f32 %v3562, %v3660
        %3662 = vmatmul.bf16.gmra.mxu0 %v3485
        %v3663 = vpop.f32.mrf.mxu0
        %v3664 = vadd.f32 %v3565, %v3663
        %v3665 = vpop.f32.mrf.mxu0
        %v3666 = vadd.f32 %v3567, %v3665
        %3667 = vmatmul.bf16.gmra.mxu0 %v3487
        %v3668 = vpop.f32.mrf.mxu0
        %v3669 = vadd.f32 %v3570, %v3668
        %v3670 = vpop.f32.mrf.mxu0
        %v3671 = vadd.f32 %v3572, %v3670
        %3672 = vmatmul.bf16.gmra.mxu0 %v3489
        %v3673 = vpop.f32.mrf.mxu0
        %v3674 = vadd.f32 %v3575, %v3673
        %v3675 = vpop.f32.mrf.mxu0
        %v3676 = vadd.f32 %v3577, %v3675
        %3677 = vmatmul.bf16.gmra.mxu0 %v3491
        %v3678 = vpop.f32.mrf.mxu0
        %v3679 = vadd.f32 %v3580, %v3678
        %v3680 = vpop.f32.mrf.mxu0
        %v3681 = vadd.f32 %v3582, %v3680
        %3682 = vmatmul.bf16.gmra.mxu0 %v3493
        %v3683 = vpop.f32.mrf.mxu0
        %v3684 = vadd.f32 %v3585, %v3683
        %v3685 = vpop.f32.mrf.mxu0
        %v3686 = vadd.f32 %v3587, %v3685
        %3687 = vdwg.mxu0
        %s3688 = scalar_lea.vmem %s5, 16
        %v3689 = vld [vmem:[%s3688] sm:$0xf]
        %v3690 = vld [vmem:[%s3688 + $0x4] sm:$0x3]
        %v3693 = vunpack.c.l.b16 %v3689
        %v3694 = vunpack.c.l.b16 %v3690
        %v3695 = vpack.c.b16 %v3694, %v3693
        %v3696 = vsel %vm3464, %v3453, 0
        %v3699 = vsel %vm1604, %v3695, 0
        %3701 = vmatpush.bf16.msra.mxu0 0
        %3702 = vmatpush.bf16.msra.mxu0 0
        %3703 = vmatpush.bf16.msra.mxu0 0
        %3704 = vmatpush.bf16.msra.mxu0 0
        %3705 = vmatpush.bf16.msra.mxu0 0
        %3706 = vmatpush.bf16.msra.mxu0 0
        %3707 = vmatpush.bf16.msra.mxu0 0
        %3708 = vmatpush.bf16.msra.mxu0 %v3699
        %3709 = vmatmul.bf16.gmra.mxu0 %v3467
        %v3710 = vpop.f32.mrf.mxu0
        %v3711 = vadd.f32 0.0, %v3710
        %v3712 = vpop.f32.mrf.mxu0
        %v3713 = vadd.f32 0.0, %v3712
        %3714 = vmatmul.bf16.gmra.mxu0 %v3469
        %v3715 = vpop.f32.mrf.mxu0
        %v3716 = vadd.f32 0.0, %v3715
        %v3717 = vpop.f32.mrf.mxu0
        %v3718 = vadd.f32 0.0, %v3717
        %3719 = vmatmul.bf16.gmra.mxu0 %v3471
        %v3720 = vpop.f32.mrf.mxu0
        %v3721 = vadd.f32 0.0, %v3720
        %v3722 = vpop.f32.mrf.mxu0
        %v3723 = vadd.f32 0.0, %v3722
        %3724 = vmatmul.bf16.gmra.mxu0 %v3473
        %v3725 = vpop.f32.mrf.mxu0
        %v3726 = vadd.f32 0.0, %v3725
        %v3727 = vpop.f32.mrf.mxu0
        %v3728 = vadd.f32 0.0, %v3727
        %3729 = vmatmul.bf16.gmra.mxu0 %v3475
        %v3730 = vpop.f32.mrf.mxu0
        %v3731 = vadd.f32 0.0, %v3730
        %v3732 = vpop.f32.mrf.mxu0
        %v3733 = vadd.f32 0.0, %v3732
        %3734 = vmatmul.bf16.gmra.mxu0 %v3477
        %v3735 = vpop.f32.mrf.mxu0
        %v3736 = vadd.f32 0.0, %v3735
        %v3737 = vpop.f32.mrf.mxu0
        %v3738 = vadd.f32 0.0, %v3737
        %3739 = vmatmul.bf16.gmra.mxu0 %v3479
        %v3740 = vpop.f32.mrf.mxu0
        %v3741 = vadd.f32 0.0, %v3740
        %v3742 = vpop.f32.mrf.mxu0
        %v3743 = vadd.f32 0.0, %v3742
        %3744 = vmatmul.bf16.gmra.mxu0 %v3481
        %v3745 = vpop.f32.mrf.mxu0
        %v3746 = vadd.f32 0.0, %v3745
        %v3747 = vpop.f32.mrf.mxu0
        %v3748 = vadd.f32 0.0, %v3747
        %3749 = vmatmul.bf16.gmra.mxu0 %v3483
        %v3750 = vpop.f32.mrf.mxu0
        %v3751 = vadd.f32 0.0, %v3750
        %v3752 = vpop.f32.mrf.mxu0
        %v3753 = vadd.f32 0.0, %v3752
        %3754 = vmatmul.bf16.gmra.mxu0 %v3485
        %v3755 = vpop.f32.mrf.mxu0
        %v3756 = vadd.f32 0.0, %v3755
        %v3757 = vpop.f32.mrf.mxu0
        %v3758 = vadd.f32 0.0, %v3757
        %3759 = vmatmul.bf16.gmra.mxu0 %v3487
        %v3760 = vpop.f32.mrf.mxu0
        %v3761 = vadd.f32 0.0, %v3760
        %v3762 = vpop.f32.mrf.mxu0
        %v3763 = vadd.f32 0.0, %v3762
        %3764 = vmatmul.bf16.gmra.mxu0 %v3489
        %v3765 = vpop.f32.mrf.mxu0
        %v3766 = vadd.f32 0.0, %v3765
        %v3767 = vpop.f32.mrf.mxu0
        %v3768 = vadd.f32 0.0, %v3767
        %3769 = vmatmul.bf16.gmra.mxu0 %v3491
        %v3770 = vpop.f32.mrf.mxu0
        %v3771 = vadd.f32 0.0, %v3770
        %v3772 = vpop.f32.mrf.mxu0
        %v3773 = vadd.f32 0.0, %v3772
        %3774 = vmatmul.bf16.gmra.mxu0 %v3493
        %v3775 = vpop.f32.mrf.mxu0
        %v3776 = vadd.f32 0.0, %v3775
        %v3777 = vpop.f32.mrf.mxu0
        %v3778 = vadd.f32 0.0, %v3777
        %3779 = vmatmul.bf16.gmra.mxu0 %v3495
        %v3780 = vpop.f32.mrf.mxu0
        %v3781 = vadd.f32 0.0, %v3780
        %v3782 = vpop.f32.mrf.mxu0
        %v3783 = vadd.f32 0.0, %v3782
        %3784 = vmatmul.bf16.gmra.mxu0 %v3696
        %v3785 = vpop.f32.mrf.mxu0
        %v3786 = vadd.f32 0.0, %v3785
        %v3787 = vpop.f32.mrf.mxu0
        %v3788 = vadd.f32 0.0, %v3787
        %3789 = vdwg.mxu0
        %v3790 = vadd.f32 %v3609, %v3711
        %v3791 = vadd.f32 %v3611, %v3713
        %v3792 = vadd.f32 %v3614, %v3716
        %v3793 = vadd.f32 %v3616, %v3718
        %v3794 = vadd.f32 %v3619, %v3721
        %v3795 = vadd.f32 %v3621, %v3723
        %v3796 = vadd.f32 %v3624, %v3726
        %v3797 = vadd.f32 %v3626, %v3728
        %v3798 = vadd.f32 %v3629, %v3731
        %v3799 = vadd.f32 %v3631, %v3733
        %v3800 = vadd.f32 %v3634, %v3736
        %v3801 = vadd.f32 %v3636, %v3738
        %v3802 = vadd.f32 %v3639, %v3741
        %v3803 = vadd.f32 %v3641, %v3743
        %v3804 = vadd.f32 %v3644, %v3746
        %v3805 = vadd.f32 %v3646, %v3748
        %v3806 = vadd.f32 %v3649, %v3751
        %v3807 = vadd.f32 %v3651, %v3753
        %v3808 = vadd.f32 %v3654, %v3756
        %v3809 = vadd.f32 %v3656, %v3758
        %v3810 = vadd.f32 %v3659, %v3761
        %v3811 = vadd.f32 %v3661, %v3763
        %v3812 = vadd.f32 %v3664, %v3766
        %v3813 = vadd.f32 %v3666, %v3768
        %v3814 = vadd.f32 %v3669, %v3771
        %v3815 = vadd.f32 %v3671, %v3773
        %v3816 = vadd.f32 %v3674, %v3776
        %v3817 = vadd.f32 %v3676, %v3778
        %v3818 = vadd.f32 %v3679, %v3781
        %v3819 = vadd.f32 %v3681, %v3783
        %v3820 = vadd.f32 %v3684, %v3786
        %v3821 = vadd.f32 %v3686, %v3788
        %v3822 = vld [vmem:[%s6] sm:$0x1]
        %v3824 = vperm.slane %v3822, 0
        %v3826 = vadd.f32 %v3790, %v3824
        %v3827 = vadd.f32 %v3791, %v3824
        %v3828 = vadd.f32 %v3792, %v3824
        %v3829 = vadd.f32 %v3793, %v3824
        %v3830 = vadd.f32 %v3794, %v3824
        %v3831 = vadd.f32 %v3795, %v3824
        %v3832 = vadd.f32 %v3796, %v3824
        %v3833 = vadd.f32 %v3797, %v3824
        %v3834 = vadd.f32 %v3798, %v3824
        %v3835 = vadd.f32 %v3799, %v3824
        %v3836 = vadd.f32 %v3800, %v3824
        %v3837 = vadd.f32 %v3801, %v3824
        %v3838 = vadd.f32 %v3802, %v3824
        %v3839 = vadd.f32 %v3803, %v3824
        %v3840 = vadd.f32 %v3804, %v3824
        %v3841 = vadd.f32 %v3805, %v3824
        %v3842 = vadd.f32 %v3806, %v3824
        %v3843 = vadd.f32 %v3807, %v3824
        %v3844 = vadd.f32 %v3808, %v3824
        %v3845 = vadd.f32 %v3809, %v3824
        %v3846 = vadd.f32 %v3810, %v3824
        %v3847 = vadd.f32 %v3811, %v3824
        %v3848 = vadd.f32 %v3812, %v3824
        %v3849 = vadd.f32 %v3813, %v3824
        %v3850 = vadd.f32 %v3814, %v3824
        %v3851 = vadd.f32 %v3815, %v3824
        %v3852 = vadd.f32 %v3816, %v3824
        %v3853 = vadd.f32 %v3817, %v3824
        %v3854 = vadd.f32 %v3818, %v3824
        %v3855 = vadd.f32 %v3819, %v3824
        %v3856 = vadd.f32 %v3820, %v3824
        %v3857 = vadd.f32 %v3821, %v3824
        %v3858 = vmax.f32 %v3826, 0.0
        %v3859 = vmax.f32 %v3827, 0.0
        %v3860 = vmax.f32 %v3828, 0.0
        %v3861 = vmax.f32 %v3829, 0.0
        %v3862 = vmax.f32 %v3830, 0.0
        %v3863 = vmax.f32 %v3831, 0.0
        %v3864 = vmax.f32 %v3832, 0.0
        %v3865 = vmax.f32 %v3833, 0.0
        %v3866 = vmax.f32 %v3834, 0.0
        %v3867 = vmax.f32 %v3835, 0.0
        %v3868 = vmax.f32 %v3836, 0.0
        %v3869 = vmax.f32 %v3837, 0.0
        %v3870 = vmax.f32 %v3838, 0.0
        %v3871 = vmax.f32 %v3839, 0.0
        %v3872 = vmax.f32 %v3840, 0.0
        %v3873 = vmax.f32 %v3841, 0.0
        %v3874 = vmax.f32 %v3842, 0.0
        %v3875 = vmax.f32 %v3843, 0.0
        %v3876 = vmax.f32 %v3844, 0.0
        %v3877 = vmax.f32 %v3845, 0.0
        %v3878 = vmax.f32 %v3846, 0.0
        %v3879 = vmax.f32 %v3847, 0.0
        %v3880 = vmax.f32 %v3848, 0.0
        %v3881 = vmax.f32 %v3849, 0.0
        %v3882 = vmax.f32 %v3850, 0.0
        %v3883 = vmax.f32 %v3851, 0.0
        %v3884 = vmax.f32 %v3852, 0.0
        %v3885 = vmax.f32 %v3853, 0.0
        %v3886 = vmax.f32 %v3854, 0.0
        %v3887 = vmax.f32 %v3855, 0.0
        %v3888 = vmax.f32 %v3856, 0.0
        %v3889 = vmax.f32 %v3857, 0.0
        %3890 = vst.msk [vmem:[#allocation4] sm:$0xf] %vm710, 0
        %3891 = vst.msk [vmem:[#allocation4 + $0x4] sm:$0xf] %vm710, 0
        %3892 = vst.msk [vmem:[#allocation4 + $0x8] sm:$0x1] %vm713, 0
        %3893 = vst.msk [vmem:[#allocation4 + $0xc] sm:$0xf] %vm710, 0
        %3894 = vst.msk [vmem:[#allocation4 + $0x10] sm:$0xf] %vm710, 0
        %3895 = vst.msk [vmem:[#allocation4 + $0x14] sm:$0x1] %vm713, 0
        %3896 = vst.msk [vmem:[#allocation4 + $0x18] sm:$0xf] %vm710, 0
        %3897 = vst.msk [vmem:[#allocation4 + $0x1c] sm:$0xf] %vm710, 0
        %3898 = vst.msk [vmem:[#allocation4 + $0x20] sm:$0x1] %vm713, 0
        %3899 = vst.msk [vmem:[#allocation4 + $0x24] sm:$0xf] %vm710, 0
        %3900 = vst.msk [vmem:[#allocation4 + $0x28] sm:$0xf] %vm710, 0
        %3901 = vst.msk [vmem:[#allocation4 + $0x2c] sm:$0x1] %vm713, 0
        %3902 = vst.msk [vmem:[#allocation4 + $0x30] sm:$0xf] %vm710, 0
        %3903 = vst.msk [vmem:[#allocation4 + $0x34] sm:$0xf] %vm710, 0
        %3904 = vst.msk [vmem:[#allocation4 + $0x38] sm:$0x1] %vm713, 0
        %3905 = vst.msk [vmem:[#allocation4 + $0x3c] sm:$0xf] %vm710, 0
        %3906 = vst.msk [vmem:[#allocation4 + $0x40] sm:$0xf] %vm710, 0
        %3907 = vst.msk [vmem:[#allocation4 + $0x44] sm:$0x1] %vm713, 0
        %3908 = vst.msk [vmem:[#allocation4 + $0x48] sm:$0xf] %vm710, 0
        %3909 = vst.msk [vmem:[#allocation4 + $0x4c] sm:$0xf] %vm710, 0
        %3910 = vst.msk [vmem:[#allocation4 + $0x50] sm:$0x1] %vm713, 0
        %3911 = vst.msk [vmem:[#allocation4 + $0x54] sm:$0xf] %vm710, 0
        %3912 = vst.msk [vmem:[#allocation4 + $0x58] sm:$0xf] %vm710, 0
        %3913 = vst.msk [vmem:[#allocation4 + $0x5c] sm:$0x1] %vm713, 0
        %3914 = vst.msk [vmem:[#allocation4 + $0x60] sm:$0xf] %vm710, 0
        %3915 = vst.msk [vmem:[#allocation4 + $0x64] sm:$0xf] %vm710, 0
        %3916 = vst.msk [vmem:[#allocation4 + $0x68] sm:$0x1] %vm713, 0
        %3917 = vst.msk [vmem:[#allocation4 + $0x6c] sm:$0xf] %vm710, 0
        %3918 = vst.msk [vmem:[#allocation4 + $0x70] sm:$0xf] %vm710, 0
        %3919 = vst.msk [vmem:[#allocation4 + $0x74] sm:$0x1] %vm713, 0
        %3920 = vst.msk [vmem:[#allocation4 + $0x78] sm:$0xf] %vm710, 0
        %3921 = vst.msk [vmem:[#allocation4 + $0x7c] sm:$0xf] %vm710, 0
        %3922 = vst.msk [vmem:[#allocation4 + $0x80] sm:$0x1] %vm713, 0
        %3923 = vst.msk [vmem:[#allocation4 + $0x84] sm:$0xf] %vm710, 0
        %3924 = vst.msk [vmem:[#allocation4 + $0x88] sm:$0xf] %vm710, 0
        %3925 = vst.msk [vmem:[#allocation4 + $0x8c] sm:$0x1] %vm713, 0
        %3926 = vst.msk [vmem:[#allocation4 + $0x90] sm:$0xf] %vm710, 0
        %3927 = vst.msk [vmem:[#allocation4 + $0x94] sm:$0xf] %vm710, 0
        %3928 = vst.msk [vmem:[#allocation4 + $0x98] sm:$0x1] %vm713, 0
        %3929 = vst.msk [vmem:[#allocation4 + $0x9c] sm:$0xf] %vm710, 0
        %3930 = vst.msk [vmem:[#allocation4 + $0xa0] sm:$0xf] %vm710, 0
        %3931 = vst.msk [vmem:[#allocation4 + $0xa4] sm:$0x1] %vm713, 0
        %3932 = vst.msk [vmem:[#allocation4 + $0xa8] sm:$0xf] %vm710, 0
        %3933 = vst.msk [vmem:[#allocation4 + $0xac] sm:$0xf] %vm710, 0
        %3934 = vst.msk [vmem:[#allocation4 + $0xb0] sm:$0x1] %vm713, 0
        %3935 = vst.msk [vmem:[#allocation4 + $0xb4] sm:$0xf] %vm710, 0
        %3936 = vst.msk [vmem:[#allocation4 + $0xb8] sm:$0xf] %vm710, 0
        %3937 = vst.msk [vmem:[#allocation4 + $0xbc] sm:$0x1] %vm713, 0
        %3938 = vst.msk [vmem:[#allocation4 + $0xc0] sm:$0xf] %vm710, 0
        %3939 = vst.msk [vmem:[#allocation4 + $0xc4] sm:$0xf] %vm710, 0
        %3940 = vst.msk [vmem:[#allocation4 + $0xc8] sm:$0x1] %vm713, 0
        %3941 = vst.msk [vmem:[#allocation4 + $0xcc] sm:$0xf] %vm710, 0
        %3942 = vst.msk [vmem:[#allocation4 + $0xd0] sm:$0xf] %vm710, 0
        %3943 = vst.msk [vmem:[#allocation4 + $0xd4] sm:$0x1] %vm713, 0
        %3944 = vrot.lane.b32.xlu0 %v2316, 116
        %v3945 = vpop.permute.xlu0 %3944
        %3946 = vrot.lane.b32.xlu0 %v2325, 116
        %v3947 = vpop.permute.xlu0 %3946
        %3948 = vrot.lane.b32.xlu0 %v2326, 116
        %v3949 = vpop.permute.xlu0 %3948
        %3950 = vrot.lane.b32.xlu0 %v2333, 116
        %v3951 = vpop.permute.xlu0 %3950
        %3952 = vrot.lane.b32.xlu0 %v2342, 116
        %v3953 = vpop.permute.xlu0 %3952
        %3954 = vrot.lane.b32.xlu0 %v2343, 116
        %v3955 = vpop.permute.xlu0 %3954
        %3956 = vrot.lane.b32.xlu0 %v2350, 116
        %v3957 = vpop.permute.xlu0 %3956
        %3958 = vrot.lane.b32.xlu0 %v2359, 116
        %v3959 = vpop.permute.xlu0 %3958
        %3960 = vrot.lane.b32.xlu0 %v2360, 116
        %v3961 = vpop.permute.xlu0 %3960
        %3962 = vrot.lane.b32.xlu0 %v2367, 116
        %v3963 = vpop.permute.xlu0 %3962
        %3964 = vrot.lane.b32.xlu0 %v2376, 116
        %v3965 = vpop.permute.xlu0 %3964
        %3966 = vrot.lane.b32.xlu0 %v2377, 116
        %v3967 = vpop.permute.xlu0 %3966
        %3968 = vrot.lane.b32.xlu0 %v2384, 116
        %v3969 = vpop.permute.xlu0 %3968
        %3970 = vrot.lane.b32.xlu0 %v2393, 116
        %v3971 = vpop.permute.xlu0 %3970
        %3972 = vrot.lane.b32.xlu0 %v2394, 116
        %v3973 = vpop.permute.xlu0 %3972
        %3974 = vrot.lane.b32.xlu0 %v2401, 116
        %v3975 = vpop.permute.xlu0 %3974
        %3976 = vrot.lane.b32.xlu0 %v2410, 116
        %v3977 = vpop.permute.xlu0 %3976
        %3978 = vrot.lane.b32.xlu0 %v2411, 116
        %v3979 = vpop.permute.xlu0 %3978
        %3980 = vrot.lane.b32.xlu0 %v2418, 116
        %v3981 = vpop.permute.xlu0 %3980
        %3982 = vrot.lane.b32.xlu0 %v2427, 116
        %v3983 = vpop.permute.xlu0 %3982
        %3984 = vrot.lane.b32.xlu0 %v2428, 116
        %v3985 = vpop.permute.xlu0 %3984
        %3986 = vrot.lane.b32.xlu0 %v2435, 116
        %v3987 = vpop.permute.xlu0 %3986
        %3988 = vrot.lane.b32.xlu0 %v2444, 116
        %v3989 = vpop.permute.xlu0 %3988
        %3990 = vrot.lane.b32.xlu0 %v2445, 116
        %v3991 = vpop.permute.xlu0 %3990
        %3992 = vrot.lane.b32.xlu0 %v2452, 116
        %v3993 = vpop.permute.xlu0 %3992
        %3994 = vrot.lane.b32.xlu0 %v2461, 116
        %v3995 = vpop.permute.xlu0 %3994
        %3996 = vrot.lane.b32.xlu0 %v2462, 116
        %v3997 = vpop.permute.xlu0 %3996
        %3998 = vrot.lane.b32.xlu0 %v2469, 116
        %v3999 = vpop.permute.xlu0 %3998
        %4000 = vrot.lane.b32.xlu0 %v2478, 116
        %v4001 = vpop.permute.xlu0 %4000
        %4002 = vrot.lane.b32.xlu0 %v2479, 116
        %v4003 = vpop.permute.xlu0 %4002
        %4004 = vrot.lane.b32.xlu0 %v2486, 116
        %v4005 = vpop.permute.xlu0 %4004
        %4006 = vrot.lane.b32.xlu0 %v2495, 116
        %v4007 = vpop.permute.xlu0 %4006
        %4008 = vrot.lane.b32.xlu0 %v2496, 116
        %v4009 = vpop.permute.xlu0 %4008
        %4010 = vrot.lane.b32.xlu0 %v2503, 116
        %v4011 = vpop.permute.xlu0 %4010
        %4012 = vrot.lane.b32.xlu0 %v2512, 116
        %v4013 = vpop.permute.xlu0 %4012
        %4014 = vrot.lane.b32.xlu0 %v2513, 116
        %v4015 = vpop.permute.xlu0 %4014
        %4016 = vrot.lane.b32.xlu0 %v2520, 116
        %v4017 = vpop.permute.xlu0 %4016
        %4018 = vrot.lane.b32.xlu0 %v2529, 116
        %v4019 = vpop.permute.xlu0 %4018
        %4020 = vrot.lane.b32.xlu0 %v2530, 116
        %v4021 = vpop.permute.xlu0 %4020
        %4022 = vrot.lane.b32.xlu0 %v2537, 116
        %v4023 = vpop.permute.xlu0 %4022
        %4024 = vrot.lane.b32.xlu0 %v2546, 116
        %v4025 = vpop.permute.xlu0 %4024
        %4026 = vrot.lane.b32.xlu0 %v2547, 116
        %v4027 = vpop.permute.xlu0 %4026
        %4028 = vrot.lane.b32.xlu0 %v2554, 116
        %v4029 = vpop.permute.xlu0 %4028
        %4030 = vrot.lane.b32.xlu0 %v2563, 116
        %v4031 = vpop.permute.xlu0 %4030
        %4032 = vrot.lane.b32.xlu0 %v2564, 116
        %v4033 = vpop.permute.xlu0 %4032
        %4034 = vrot.lane.b32.xlu0 %v2571, 116
        %v4035 = vpop.permute.xlu0 %4034
        %4036 = vrot.lane.b32.xlu0 %v2580, 116
        %v4037 = vpop.permute.xlu0 %4036
        %4038 = vrot.lane.b32.xlu0 %v2581, 116
        %v4039 = vpop.permute.xlu0 %4038
        %s4088 = scalar_lea.vmem [#allocation4], 12
        %v4089 = vld [vmem:[%s4088] sm:$0xf]
        %v4090 = vsel %vm1092, %v3945, %v4089
        %4091 = vst [vmem:[%s4088] sm:$0xf] %v4090
        %4092 = vst.msk [vmem:[%s4088 + $0x4] sm:$0xf] %vm710, %v3947
        %v4093 = vld [vmem:[%s4088 + $0x8] sm:$0x1]
        %v4094 = vsel %vm1098, %v3949, %v4093
        %4095 = vst [vmem:[%s4088 + $0x8] sm:$0x1] %v4094
        %v4096 = vld [vmem:[%s4088 + $0xc] sm:$0xf]
        %v4097 = vsel %vm1092, %v3951, %v4096
        %4098 = vst [vmem:[%s4088 + $0xc] sm:$0xf] %v4097
        %4099 = vst.msk [vmem:[%s4088 + $0x10] sm:$0xf] %vm710, %v3953
        %v4100 = vld [vmem:[%s4088 + $0x14] sm:$0x1]
        %v4101 = vsel %vm1098, %v3955, %v4100
        %4102 = vst [vmem:[%s4088 + $0x14] sm:$0x1] %v4101
        %v4103 = vld [vmem:[%s4088 + $0x18] sm:$0xf]
        %v4104 = vsel %vm1092, %v3957, %v4103
        %4105 = vst [vmem:[%s4088 + $0x18] sm:$0xf] %v4104
        %4106 = vst.msk [vmem:[%s4088 + $0x1c] sm:$0xf] %vm710, %v3959
        %v4107 = vld [vmem:[%s4088 + $0x20] sm:$0x1]
        %v4108 = vsel %vm1098, %v3961, %v4107
        %4109 = vst [vmem:[%s4088 + $0x20] sm:$0x1] %v4108
        %v4110 = vld [vmem:[%s4088 + $0x24] sm:$0xf]
        %v4111 = vsel %vm1092, %v3963, %v4110
        %4112 = vst [vmem:[%s4088 + $0x24] sm:$0xf] %v4111
        %4113 = vst.msk [vmem:[%s4088 + $0x28] sm:$0xf] %vm710, %v3965
        %v4114 = vld [vmem:[%s4088 + $0x2c] sm:$0x1]
        %v4115 = vsel %vm1098, %v3967, %v4114
        %4116 = vst [vmem:[%s4088 + $0x2c] sm:$0x1] %v4115
        %v4117 = vld [vmem:[%s4088 + $0x30] sm:$0xf]
        %v4118 = vsel %vm1092, %v3969, %v4117
        %4119 = vst [vmem:[%s4088 + $0x30] sm:$0xf] %v4118
        %4120 = vst.msk [vmem:[%s4088 + $0x34] sm:$0xf] %vm710, %v3971
        %v4121 = vld [vmem:[%s4088 + $0x38] sm:$0x1]
        %v4122 = vsel %vm1098, %v3973, %v4121
        %4123 = vst [vmem:[%s4088 + $0x38] sm:$0x1] %v4122
        %v4124 = vld [vmem:[%s4088 + $0x3c] sm:$0xf]
        %v4125 = vsel %vm1092, %v3975, %v4124
        %4126 = vst [vmem:[%s4088 + $0x3c] sm:$0xf] %v4125
        %4127 = vst.msk [vmem:[%s4088 + $0x40] sm:$0xf] %vm710, %v3977
        %v4128 = vld [vmem:[%s4088 + $0x44] sm:$0x1]
        %v4129 = vsel %vm1098, %v3979, %v4128
        %4130 = vst [vmem:[%s4088 + $0x44] sm:$0x1] %v4129
        %v4131 = vld [vmem:[%s4088 + $0x48] sm:$0xf]
        %v4132 = vsel %vm1092, %v3981, %v4131
        %4133 = vst [vmem:[%s4088 + $0x48] sm:$0xf] %v4132
        %4134 = vst.msk [vmem:[%s4088 + $0x4c] sm:$0xf] %vm710, %v3983
        %v4135 = vld [vmem:[%s4088 + $0x50] sm:$0x1]
        %v4136 = vsel %vm1098, %v3985, %v4135
        %4137 = vst [vmem:[%s4088 + $0x50] sm:$0x1] %v4136
        %v4138 = vld [vmem:[%s4088 + $0x54] sm:$0xf]
        %v4139 = vsel %vm1092, %v3987, %v4138
        %4140 = vst [vmem:[%s4088 + $0x54] sm:$0xf] %v4139
        %4141 = vst.msk [vmem:[%s4088 + $0x58] sm:$0xf] %vm710, %v3989
        %v4142 = vld [vmem:[%s4088 + $0x5c] sm:$0x1]
        %v4143 = vsel %vm1098, %v3991, %v4142
        %4144 = vst [vmem:[%s4088 + $0x5c] sm:$0x1] %v4143
        %v4145 = vld [vmem:[%s4088 + $0x60] sm:$0xf]
        %v4146 = vsel %vm1092, %v3993, %v4145
        %4147 = vst [vmem:[%s4088 + $0x60] sm:$0xf] %v4146
        %4148 = vst.msk [vmem:[%s4088 + $0x64] sm:$0xf] %vm710, %v3995
        %v4149 = vld [vmem:[%s4088 + $0x68] sm:$0x1]
        %v4150 = vsel %vm1098, %v3997, %v4149
        %4151 = vst [vmem:[%s4088 + $0x68] sm:$0x1] %v4150
        %v4152 = vld [vmem:[%s4088 + $0x6c] sm:$0xf]
        %v4153 = vsel %vm1092, %v3999, %v4152
        %4154 = vst [vmem:[%s4088 + $0x6c] sm:$0xf] %v4153
        %4155 = vst.msk [vmem:[%s4088 + $0x70] sm:$0xf] %vm710, %v4001
        %v4156 = vld [vmem:[%s4088 + $0x74] sm:$0x1]
        %v4157 = vsel %vm1098, %v4003, %v4156
        %4158 = vst [vmem:[%s4088 + $0x74] sm:$0x1] %v4157
        %v4159 = vld [vmem:[%s4088 + $0x78] sm:$0xf]
        %v4160 = vsel %vm1092, %v4005, %v4159
        %4161 = vst [vmem:[%s4088 + $0x78] sm:$0xf] %v4160
        %4162 = vst.msk [vmem:[%s4088 + $0x7c] sm:$0xf] %vm710, %v4007
        %v4163 = vld [vmem:[%s4088 + $0x80] sm:$0x1]
        %v4164 = vsel %vm1098, %v4009, %v4163
        %4165 = vst [vmem:[%s4088 + $0x80] sm:$0x1] %v4164
        %v4166 = vld [vmem:[%s4088 + $0x84] sm:$0xf]
        %v4167 = vsel %vm1092, %v4011, %v4166
        %4168 = vst [vmem:[%s4088 + $0x84] sm:$0xf] %v4167
        %4169 = vst.msk [vmem:[%s4088 + $0x88] sm:$0xf] %vm710, %v4013
        %v4170 = vld [vmem:[%s4088 + $0x8c] sm:$0x1]
        %v4171 = vsel %vm1098, %v4015, %v4170
        %4172 = vst [vmem:[%s4088 + $0x8c] sm:$0x1] %v4171
        %v4173 = vld [vmem:[%s4088 + $0x90] sm:$0xf]
        %v4174 = vsel %vm1092, %v4017, %v4173
        %4175 = vst [vmem:[%s4088 + $0x90] sm:$0xf] %v4174
        %4176 = vst.msk [vmem:[%s4088 + $0x94] sm:$0xf] %vm710, %v4019
        %v4177 = vld [vmem:[%s4088 + $0x98] sm:$0x1]
        %v4178 = vsel %vm1098, %v4021, %v4177
        %4179 = vst [vmem:[%s4088 + $0x98] sm:$0x1] %v4178
        %v4180 = vld [vmem:[%s4088 + $0x9c] sm:$0xf]
        %v4181 = vsel %vm1092, %v4023, %v4180
        %4182 = vst [vmem:[%s4088 + $0x9c] sm:$0xf] %v4181
        %4183 = vst.msk [vmem:[%s4088 + $0xa0] sm:$0xf] %vm710, %v4025
        %v4184 = vld [vmem:[%s4088 + $0xa4] sm:$0x1]
        %v4185 = vsel %vm1098, %v4027, %v4184
        %4186 = vst [vmem:[%s4088 + $0xa4] sm:$0x1] %v4185
        %v4187 = vld [vmem:[%s4088 + $0xa8] sm:$0xf]
        %v4188 = vsel %vm1092, %v4029, %v4187
        %4189 = vst [vmem:[%s4088 + $0xa8] sm:$0xf] %v4188
        %4190 = vst.msk [vmem:[%s4088 + $0xac] sm:$0xf] %vm710, %v4031
        %v4191 = vld [vmem:[%s4088 + $0xb0] sm:$0x1]
        %v4192 = vsel %vm1098, %v4033, %v4191
        %4193 = vst [vmem:[%s4088 + $0xb0] sm:$0x1] %v4192
        %v4194 = vld [vmem:[%s4088 + $0xb4] sm:$0xf]
        %v4195 = vsel %vm1092, %v4035, %v4194
        %4196 = vst [vmem:[%s4088 + $0xb4] sm:$0xf] %v4195
        %4197 = vst.msk [vmem:[%s4088 + $0xb8] sm:$0xf] %vm710, %v4037
        %v4198 = vld [vmem:[%s4088 + $0xbc] sm:$0x1]
        %v4199 = vsel %vm1098, %v4039, %v4198
        %4200 = vst [vmem:[%s4088 + $0xbc] sm:$0x1] %v4199
        %v4201 = vld [vmem:[#allocation4] sm:$0xf]
        %v4202 = vld [vmem:[#allocation4 + $0x4] sm:$0xf]
        %v4203 = vld [vmem:[#allocation4 + $0x8] sm:$0x1]
        %v4204 = vld [vmem:[#allocation4 + $0xc] sm:$0xf]
        %v4205 = vld [vmem:[#allocation4 + $0x10] sm:$0xf]
        %v4206 = vld [vmem:[#allocation4 + $0x14] sm:$0x1]
        %v4207 = vld [vmem:[#allocation4 + $0x18] sm:$0xf]
        %v4208 = vld [vmem:[#allocation4 + $0x1c] sm:$0xf]
        %v4209 = vld [vmem:[#allocation4 + $0x20] sm:$0x1]
        %v4210 = vld [vmem:[#allocation4 + $0x24] sm:$0xf]
        %v4211 = vld [vmem:[#allocation4 + $0x28] sm:$0xf]
        %v4212 = vld [vmem:[#allocation4 + $0x2c] sm:$0x1]
        %v4213 = vld [vmem:[#allocation4 + $0x30] sm:$0xf]
        %v4214 = vld [vmem:[#allocation4 + $0x34] sm:$0xf]
        %v4215 = vld [vmem:[#allocation4 + $0x38] sm:$0x1]
        %v4216 = vld [vmem:[#allocation4 + $0x3c] sm:$0xf]
        %v4217 = vld [vmem:[#allocation4 + $0x40] sm:$0xf]
        %v4218 = vld [vmem:[#allocation4 + $0x44] sm:$0x1]
        %v4219 = vld [vmem:[#allocation4 + $0x48] sm:$0xf]
        %v4220 = vld [vmem:[#allocation4 + $0x4c] sm:$0xf]
        %v4221 = vld [vmem:[#allocation4 + $0x50] sm:$0x1]
        %v4222 = vld [vmem:[#allocation4 + $0x54] sm:$0xf]
        %v4223 = vld [vmem:[#allocation4 + $0x58] sm:$0xf]
        %v4224 = vld [vmem:[#allocation4 + $0x5c] sm:$0x1]
        %v4225 = vld [vmem:[#allocation4 + $0x60] sm:$0xf]
        %v4226 = vld [vmem:[#allocation4 + $0x64] sm:$0xf]
        %v4227 = vld [vmem:[#allocation4 + $0x68] sm:$0x1]
        %v4228 = vld [vmem:[#allocation4 + $0x6c] sm:$0xf]
        %v4229 = vld [vmem:[#allocation4 + $0x70] sm:$0xf]
        %v4230 = vld [vmem:[#allocation4 + $0x74] sm:$0x1]
        %v4231 = vld [vmem:[#allocation4 + $0x78] sm:$0xf]
        %v4232 = vld [vmem:[#allocation4 + $0x7c] sm:$0xf]
        %v4233 = vld [vmem:[#allocation4 + $0x80] sm:$0x1]
        %v4234 = vld [vmem:[#allocation4 + $0x84] sm:$0xf]
        %v4235 = vld [vmem:[#allocation4 + $0x88] sm:$0xf]
        %v4236 = vld [vmem:[#allocation4 + $0x8c] sm:$0x1]
        %v4237 = vld [vmem:[#allocation4 + $0x90] sm:$0xf]
        %v4238 = vld [vmem:[#allocation4 + $0x94] sm:$0xf]
        %v4239 = vld [vmem:[#allocation4 + $0x98] sm:$0x1]
        %v4240 = vld [vmem:[#allocation4 + $0x9c] sm:$0xf]
        %v4241 = vld [vmem:[#allocation4 + $0xa0] sm:$0xf]
        %v4242 = vld [vmem:[#allocation4 + $0xa4] sm:$0x1]
        %v4243 = vld [vmem:[#allocation4 + $0xa8] sm:$0xf]
        %v4244 = vld [vmem:[#allocation4 + $0xac] sm:$0xf]
        %v4245 = vld [vmem:[#allocation4 + $0xb0] sm:$0x1]
        %v4246 = vld [vmem:[#allocation4 + $0xb4] sm:$0xf]
        %v4247 = vld [vmem:[#allocation4 + $0xb8] sm:$0xf]
        %v4248 = vld [vmem:[#allocation4 + $0xbc] sm:$0x1]
        %v4249 = vld [vmem:[#allocation4 + $0xc0] sm:$0xf]
        %v4250 = vld [vmem:[#allocation4 + $0xc4] sm:$0xf]
        %v4251 = vld [vmem:[#allocation4 + $0xc8] sm:$0x1]
        %v4252 = vld [vmem:[#allocation4 + $0xcc] sm:$0xf]
        %v4253 = vld [vmem:[#allocation4 + $0xd0] sm:$0xf]
        %v4254 = vld [vmem:[#allocation4 + $0xd4] sm:$0x1]
        %v4291 = vunpack.c.l.b16 %v4201
        %v4292 = vunpack.c.l.b16 %v4202
        %v4293 = vunpack.c.l.b16 %v4204
        %v4294 = vunpack.c.l.b16 %v4205
        %v4295 = vunpack.c.l.b16 %v4207
        %v4296 = vunpack.c.l.b16 %v4208
        %v4297 = vunpack.c.l.b16 %v4210
        %v4298 = vunpack.c.l.b16 %v4211
        %v4299 = vunpack.c.l.b16 %v4213
        %v4300 = vunpack.c.l.b16 %v4214
        %v4301 = vunpack.c.l.b16 %v4216
        %v4302 = vunpack.c.l.b16 %v4217
        %v4303 = vunpack.c.l.b16 %v4219
        %v4304 = vunpack.c.l.b16 %v4220
        %v4305 = vunpack.c.l.b16 %v4222
        %v4306 = vunpack.c.l.b16 %v4223
        %v4307 = vunpack.c.l.b16 %v4225
        %v4308 = vunpack.c.l.b16 %v4226
        %v4309 = vunpack.c.l.b16 %v4228
        %v4310 = vunpack.c.l.b16 %v4229
        %v4311 = vunpack.c.l.b16 %v4231
        %v4312 = vunpack.c.l.b16 %v4232
        %v4313 = vunpack.c.l.b16 %v4234
        %v4314 = vunpack.c.l.b16 %v4235
        %v4315 = vunpack.c.l.b16 %v4237
        %v4316 = vunpack.c.l.b16 %v4238
        %v4317 = vunpack.c.l.b16 %v4240
        %v4318 = vunpack.c.l.b16 %v4241
        %v4319 = vunpack.c.l.b16 %v4243
        %v4320 = vunpack.c.l.b16 %v4244
        %v4321 = vunpack.c.l.b16 %v4246
        %v4322 = vunpack.c.l.b16 %v4247
        %v4323 = vunpack.c.l.b16 %v4249
        %v4324 = vunpack.c.l.b16 %v4250
        %v4325 = vunpack.c.l.b16 %v4252
        %v4326 = vunpack.c.l.b16 %v4253
        %v4327 = vpack.c.b16 %v4292, %v4291
        %v4328 = vpack.c.b16 %v4294, %v4293
        %v4329 = vpack.c.b16 %v4296, %v4295
        %v4330 = vpack.c.b16 %v4298, %v4297
        %v4331 = vpack.c.b16 %v4300, %v4299
        %v4332 = vpack.c.b16 %v4302, %v4301
        %v4333 = vpack.c.b16 %v4304, %v4303
        %v4334 = vpack.c.b16 %v4306, %v4305
        %v4335 = vpack.c.b16 %v4308, %v4307
        %v4336 = vpack.c.b16 %v4310, %v4309
        %v4337 = vpack.c.b16 %v4312, %v4311
        %v4338 = vpack.c.b16 %v4314, %v4313
        %v4339 = vpack.c.b16 %v4316, %v4315
        %v4340 = vpack.c.b16 %v4318, %v4317
        %v4341 = vpack.c.b16 %v4320, %v4319
        %v4342 = vpack.c.b16 %v4322, %v4321
        %v4343 = vpack.c.b16 %v4324, %v4323
        %v4344 = vpack.c.b16 %v4326, %v4325
        %v4363 = vunpack.c.l.b16 %v4203
        %v4364 = vunpack.c.l.b16 %v4206
        %v4365 = vunpack.c.l.b16 %v4209
        %v4366 = vunpack.c.l.b16 %v4212
        %v4367 = vunpack.c.l.b16 %v4215
        %v4368 = vunpack.c.l.b16 %v4218
        %v4369 = vunpack.c.l.b16 %v4221
        %v4370 = vunpack.c.l.b16 %v4224
        %v4371 = vunpack.c.l.b16 %v4227
        %v4372 = vunpack.c.l.b16 %v4230
        %v4373 = vunpack.c.l.b16 %v4233
        %v4374 = vunpack.c.l.b16 %v4236
        %v4375 = vunpack.c.l.b16 %v4239
        %v4376 = vunpack.c.l.b16 %v4242
        %v4377 = vunpack.c.l.b16 %v4245
        %v4378 = vunpack.c.l.b16 %v4248
        %v4379 = vunpack.c.l.b16 %v4251
        %v4380 = vunpack.c.l.b16 %v4254
        %v4381 = vpack.c.b16 %v4363, %v4363
        %v4382 = vpack.c.b16 %v4364, %v4364
        %v4383 = vpack.c.b16 %v4365, %v4365
        %v4384 = vpack.c.b16 %v4366, %v4366
        %v4385 = vpack.c.b16 %v4367, %v4367
        %v4386 = vpack.c.b16 %v4368, %v4368
        %v4387 = vpack.c.b16 %v4369, %v4369
        %v4388 = vpack.c.b16 %v4370, %v4370
        %v4389 = vpack.c.b16 %v4371, %v4371
        %v4390 = vpack.c.b16 %v4372, %v4372
        %v4391 = vpack.c.b16 %v4373, %v4373
        %v4392 = vpack.c.b16 %v4374, %v4374
        %v4393 = vpack.c.b16 %v4375, %v4375
        %v4394 = vpack.c.b16 %v4376, %v4376
        %v4395 = vpack.c.b16 %v4377, %v4377
        %v4396 = vpack.c.b16 %v4378, %v4378
        %v4397 = vpack.c.b16 %v4379, %v4379
        %v4398 = vpack.c.b16 %v4380, %v4380
        %v4400 = vshrl.u32 %v4327, 16
        %v4402 = vshll.u32 %v4327, 16
        %v4404 = vrot.slane %v4402, 1
        %v4405 = vor.u32 %v4400, %v4404
        %v4407 = vshll.u32 %v4381, 16
        %v4409 = vrot.slane %v4407, 1
        %v4410 = vsel %vm3037, %v4405, %v4409
        %v4412 = vshrl.u32 %v4328, 16
        %v4414 = vshll.u32 %v4328, 16
        %v4416 = vrot.slane %v4414, 1
        %v4417 = vor.u32 %v4412, %v4416
        %v4419 = vshll.u32 %v4382, 16
        %v4421 = vrot.slane %v4419, 1
        %v4422 = vsel %vm3037, %v4417, %v4421
        %v4424 = vshrl.u32 %v4329, 16
        %v4426 = vshll.u32 %v4329, 16
        %v4428 = vrot.slane %v4426, 1
        %v4429 = vor.u32 %v4424, %v4428
        %v4431 = vshll.u32 %v4383, 16
        %v4433 = vrot.slane %v4431, 1
        %v4434 = vsel %vm3037, %v4429, %v4433
        %v4436 = vshrl.u32 %v4330, 16
        %v4438 = vshll.u32 %v4330, 16
        %v4440 = vrot.slane %v4438, 1
        %v4441 = vor.u32 %v4436, %v4440
        %v4443 = vshll.u32 %v4384, 16
        %v4445 = vrot.slane %v4443, 1
        %v4446 = vsel %vm3037, %v4441, %v4445
        %v4448 = vshrl.u32 %v4331, 16
        %v4450 = vshll.u32 %v4331, 16
        %v4452 = vrot.slane %v4450, 1
        %v4453 = vor.u32 %v4448, %v4452
        %v4455 = vshll.u32 %v4385, 16
        %v4457 = vrot.slane %v4455, 1
        %v4458 = vsel %vm3037, %v4453, %v4457
        %v4460 = vshrl.u32 %v4332, 16
        %v4462 = vshll.u32 %v4332, 16
        %v4464 = vrot.slane %v4462, 1
        %v4465 = vor.u32 %v4460, %v4464
        %v4467 = vshll.u32 %v4386, 16
        %v4469 = vrot.slane %v4467, 1
        %v4470 = vsel %vm3037, %v4465, %v4469
        %v4472 = vshrl.u32 %v4333, 16
        %v4474 = vshll.u32 %v4333, 16
        %v4476 = vrot.slane %v4474, 1
        %v4477 = vor.u32 %v4472, %v4476
        %v4479 = vshll.u32 %v4387, 16
        %v4481 = vrot.slane %v4479, 1
        %v4482 = vsel %vm3037, %v4477, %v4481
        %v4484 = vshrl.u32 %v4334, 16
        %v4486 = vshll.u32 %v4334, 16
        %v4488 = vrot.slane %v4486, 1
        %v4489 = vor.u32 %v4484, %v4488
        %v4491 = vshll.u32 %v4388, 16
        %v4493 = vrot.slane %v4491, 1
        %v4494 = vsel %vm3037, %v4489, %v4493
        %v4496 = vshrl.u32 %v4335, 16
        %v4498 = vshll.u32 %v4335, 16
        %v4500 = vrot.slane %v4498, 1
        %v4501 = vor.u32 %v4496, %v4500
        %v4503 = vshll.u32 %v4389, 16
        %v4505 = vrot.slane %v4503, 1
        %v4506 = vsel %vm3037, %v4501, %v4505
        %v4508 = vshrl.u32 %v4336, 16
        %v4510 = vshll.u32 %v4336, 16
        %v4512 = vrot.slane %v4510, 1
        %v4513 = vor.u32 %v4508, %v4512
        %v4515 = vshll.u32 %v4390, 16
        %v4517 = vrot.slane %v4515, 1
        %v4518 = vsel %vm3037, %v4513, %v4517
        %v4520 = vshrl.u32 %v4337, 16
        %v4522 = vshll.u32 %v4337, 16
        %v4524 = vrot.slane %v4522, 1
        %v4525 = vor.u32 %v4520, %v4524
        %v4527 = vshll.u32 %v4391, 16
        %v4529 = vrot.slane %v4527, 1
        %v4530 = vsel %vm3037, %v4525, %v4529
        %v4532 = vshrl.u32 %v4338, 16
        %v4534 = vshll.u32 %v4338, 16
        %v4536 = vrot.slane %v4534, 1
        %v4537 = vor.u32 %v4532, %v4536
        %v4539 = vshll.u32 %v4392, 16
        %v4541 = vrot.slane %v4539, 1
        %v4542 = vsel %vm3037, %v4537, %v4541
        %v4544 = vshrl.u32 %v4339, 16
        %v4546 = vshll.u32 %v4339, 16
        %v4548 = vrot.slane %v4546, 1
        %v4549 = vor.u32 %v4544, %v4548
        %v4551 = vshll.u32 %v4393, 16
        %v4553 = vrot.slane %v4551, 1
        %v4554 = vsel %vm3037, %v4549, %v4553
        %v4556 = vshrl.u32 %v4340, 16
        %v4558 = vshll.u32 %v4340, 16
        %v4560 = vrot.slane %v4558, 1
        %v4561 = vor.u32 %v4556, %v4560
        %v4563 = vshll.u32 %v4394, 16
        %v4565 = vrot.slane %v4563, 1
        %v4566 = vsel %vm3037, %v4561, %v4565
        %v4568 = vshrl.u32 %v4341, 16
        %v4570 = vshll.u32 %v4341, 16
        %v4572 = vrot.slane %v4570, 1
        %v4573 = vor.u32 %v4568, %v4572
        %v4575 = vshll.u32 %v4395, 16
        %v4577 = vrot.slane %v4575, 1
        %v4578 = vsel %vm3037, %v4573, %v4577
        %v4580 = vshrl.u32 %v4342, 16
        %v4582 = vshll.u32 %v4342, 16
        %v4584 = vrot.slane %v4582, 1
        %v4585 = vor.u32 %v4580, %v4584
        %v4587 = vshll.u32 %v4396, 16
        %v4589 = vrot.slane %v4587, 1
        %v4590 = vsel %vm3037, %v4585, %v4589
        %v4592 = vshrl.u32 %v4343, 16
        %v4594 = vshll.u32 %v4343, 16
        %v4596 = vrot.slane %v4594, 1
        %v4597 = vor.u32 %v4592, %v4596
        %v4599 = vshll.u32 %v4397, 16
        %v4601 = vrot.slane %v4599, 1
        %v4602 = vsel %vm3037, %v4597, %v4601
        %v4604 = vshrl.u32 %v4344, 16
        %v4606 = vshll.u32 %v4344, 16
        %v4608 = vrot.slane %v4606, 1
        %v4609 = vor.u32 %v4604, %v4608
        %v4611 = vshll.u32 %v4398, 16
        %v4613 = vrot.slane %v4611, 1
        %v4614 = vsel %vm3037, %v4609, %v4613
        %4615 = vrot.lane.b32.xlu0 %v4410, 4
        %v4616 = vpop.permute.xlu0 %4615
        %4617 = vrot.lane.b32.xlu0 %v4422, 4
        %v4618 = vpop.permute.xlu0 %4617
        %4619 = vrot.lane.b32.xlu0 %v4434, 4
        %v4620 = vpop.permute.xlu0 %4619
        %4621 = vrot.lane.b32.xlu0 %v4446, 4
        %v4622 = vpop.permute.xlu0 %4621
        %4623 = vrot.lane.b32.xlu0 %v4458, 4
        %v4624 = vpop.permute.xlu0 %4623
        %4625 = vrot.lane.b32.xlu0 %v4470, 4
        %v4626 = vpop.permute.xlu0 %4625
        %4627 = vrot.lane.b32.xlu0 %v4482, 4
        %v4628 = vpop.permute.xlu0 %4627
        %4629 = vrot.lane.b32.xlu0 %v4494, 4
        %v4630 = vpop.permute.xlu0 %4629
        %4631 = vrot.lane.b32.xlu0 %v4506, 4
        %v4632 = vpop.permute.xlu0 %4631
        %4633 = vrot.lane.b32.xlu0 %v4518, 4
        %v4634 = vpop.permute.xlu0 %4633
        %4635 = vrot.lane.b32.xlu0 %v4530, 4
        %v4636 = vpop.permute.xlu0 %4635
        %4637 = vrot.lane.b32.xlu0 %v4542, 4
        %v4638 = vpop.permute.xlu0 %4637
        %4639 = vrot.lane.b32.xlu0 %v4554, 4
        %v4640 = vpop.permute.xlu0 %4639
        %4641 = vrot.lane.b32.xlu0 %v4566, 4
        %v4642 = vpop.permute.xlu0 %4641
        %4643 = vrot.lane.b32.xlu0 %v4578, 4
        %v4644 = vpop.permute.xlu0 %4643
        %4645 = vrot.lane.b32.xlu0 %v4590, 4
        %v4646 = vpop.permute.xlu0 %4645
        %4647 = vrot.lane.b32.xlu0 %v4602, 4
        %v4648 = vpop.permute.xlu0 %4647
        %4649 = vrot.lane.b32.xlu0 %v4614, 4
        %v4650 = vpop.permute.xlu0 %4649
        %v4651 = vrot.slane %v4327, 1
        %v4652 = vrot.slane %v4381, 1
        %v4653 = vsel %vm3290, %v4651, %v4652
        %v4654 = vrot.slane %v4328, 1
        %v4655 = vrot.slane %v4382, 1
        %v4656 = vsel %vm3290, %v4654, %v4655
        %v4657 = vrot.slane %v4329, 1
        %v4658 = vrot.slane %v4383, 1
        %v4659 = vsel %vm3290, %v4657, %v4658
        %v4660 = vrot.slane %v4330, 1
        %v4661 = vrot.slane %v4384, 1
        %v4662 = vsel %vm3290, %v4660, %v4661
        %v4663 = vrot.slane %v4331, 1
        %v4664 = vrot.slane %v4385, 1
        %v4665 = vsel %vm3290, %v4663, %v4664
        %v4666 = vrot.slane %v4332, 1
        %v4667 = vrot.slane %v4386, 1
        %v4668 = vsel %vm3290, %v4666, %v4667
        %v4669 = vrot.slane %v4333, 1
        %v4670 = vrot.slane %v4387, 1
        %v4671 = vsel %vm3290, %v4669, %v4670
        %v4672 = vrot.slane %v4334, 1
        %v4673 = vrot.slane %v4388, 1
        %v4674 = vsel %vm3290, %v4672, %v4673
        %v4675 = vrot.slane %v4335, 1
        %v4676 = vrot.slane %v4389, 1
        %v4677 = vsel %vm3290, %v4675, %v4676
        %v4678 = vrot.slane %v4336, 1
        %v4679 = vrot.slane %v4390, 1
        %v4680 = vsel %vm3290, %v4678, %v4679
        %v4681 = vrot.slane %v4337, 1
        %v4682 = vrot.slane %v4391, 1
        %v4683 = vsel %vm3290, %v4681, %v4682
        %v4684 = vrot.slane %v4338, 1
        %v4685 = vrot.slane %v4392, 1
        %v4686 = vsel %vm3290, %v4684, %v4685
        %v4687 = vrot.slane %v4339, 1
        %v4688 = vrot.slane %v4393, 1
        %v4689 = vsel %vm3290, %v4687, %v4688
        %v4690 = vrot.slane %v4340, 1
        %v4691 = vrot.slane %v4394, 1
        %v4692 = vsel %vm3290, %v4690, %v4691
        %v4693 = vrot.slane %v4341, 1
        %v4694 = vrot.slane %v4395, 1
        %v4695 = vsel %vm3290, %v4693, %v4694
        %v4696 = vrot.slane %v4342, 1
        %v4697 = vrot.slane %v4396, 1
        %v4698 = vsel %vm3290, %v4696, %v4697
        %v4699 = vrot.slane %v4343, 1
        %v4700 = vrot.slane %v4397, 1
        %v4701 = vsel %vm3290, %v4699, %v4700
        %v4702 = vrot.slane %v4344, 1
        %v4703 = vrot.slane %v4398, 1
        %v4704 = vsel %vm3290, %v4702, %v4703
        %4705 = vrot.lane.b32.xlu0 %v4653, 8
        %v4706 = vpop.permute.xlu0 %4705
        %4707 = vrot.lane.b32.xlu0 %v4656, 8
        %v4708 = vpop.permute.xlu0 %4707
        %4709 = vrot.lane.b32.xlu0 %v4659, 8
        %v4710 = vpop.permute.xlu0 %4709
        %4711 = vrot.lane.b32.xlu0 %v4662, 8
        %v4712 = vpop.permute.xlu0 %4711
        %4713 = vrot.lane.b32.xlu0 %v4665, 8
        %v4714 = vpop.permute.xlu0 %4713
        %4715 = vrot.lane.b32.xlu0 %v4668, 8
        %v4716 = vpop.permute.xlu0 %4715
        %4717 = vrot.lane.b32.xlu0 %v4671, 8
        %v4718 = vpop.permute.xlu0 %4717
        %4719 = vrot.lane.b32.xlu0 %v4674, 8
        %v4720 = vpop.permute.xlu0 %4719
        %4721 = vrot.lane.b32.xlu0 %v4677, 8
        %v4722 = vpop.permute.xlu0 %4721
        %4723 = vrot.lane.b32.xlu0 %v4680, 8
        %v4724 = vpop.permute.xlu0 %4723
        %4725 = vrot.lane.b32.xlu0 %v4683, 8
        %v4726 = vpop.permute.xlu0 %4725
        %4727 = vrot.lane.b32.xlu0 %v4686, 8
        %v4728 = vpop.permute.xlu0 %4727
        %4729 = vrot.lane.b32.xlu0 %v4689, 8
        %v4730 = vpop.permute.xlu0 %4729
        %4731 = vrot.lane.b32.xlu0 %v4692, 8
        %v4732 = vpop.permute.xlu0 %4731
        %4733 = vrot.lane.b32.xlu0 %v4695, 8
        %v4734 = vpop.permute.xlu0 %4733
        %4735 = vrot.lane.b32.xlu0 %v4698, 8
        %v4736 = vpop.permute.xlu0 %4735
        %4737 = vrot.lane.b32.xlu0 %v4701, 8
        %v4738 = vpop.permute.xlu0 %4737
        %4739 = vrot.lane.b32.xlu0 %v4704, 8
        %v4740 = vpop.permute.xlu0 %4739
        %v4742 = vsel %vm504, %v4327, %v4616
        %v4744 = vsel %vm504, %v4328, %v4618
        %v4746 = vsel %vm504, %v4329, %v4620
        %v4748 = vsel %vm504, %v4330, %v4622
        %v4750 = vsel %vm504, %v4331, %v4624
        %v4752 = vsel %vm504, %v4332, %v4626
        %v4754 = vsel %vm504, %v4333, %v4628
        %v4756 = vsel %vm504, %v4334, %v4630
        %v4758 = vsel %vm504, %v4335, %v4632
        %v4760 = vsel %vm504, %v4336, %v4634
        %v4762 = vsel %vm504, %v4337, %v4636
        %v4764 = vsel %vm504, %v4338, %v4638
        %v4766 = vsel %vm504, %v4339, %v4640
        %v4768 = vsel %vm504, %v4340, %v4642
        %v4770 = vsel %vm504, %v4341, %v4644
        %v4772 = vsel %vm504, %v4342, %v4646
        %v4774 = vsel %vm504, %v4343, %v4648
        %v4776 = vsel %vm504, %v4344, %v4650
        %v4778 = vsel %vm3417, %v4742, %v4706
        %v4780 = vsel %vm3417, %v4744, %v4708
        %v4782 = vsel %vm3417, %v4746, %v4710
        %v4784 = vsel %vm3417, %v4748, %v4712
        %v4786 = vsel %vm3417, %v4750, %v4714
        %v4788 = vsel %vm3417, %v4752, %v4716
        %v4790 = vsel %vm3417, %v4754, %v4718
        %v4792 = vsel %vm3417, %v4756, %v4720
        %v4794 = vsel %vm3417, %v4758, %v4722
        %v4796 = vsel %vm3417, %v4760, %v4724
        %v4798 = vsel %vm3417, %v4762, %v4726
        %v4800 = vsel %vm3417, %v4764, %v4728
        %v4802 = vsel %vm3417, %v4766, %v4730
        %v4804 = vsel %vm3417, %v4768, %v4732
        %v4806 = vsel %vm3417, %v4770, %v4734
        %v4808 = vsel %vm3417, %v4772, %v4736
        %v4810 = vsel %vm3417, %v4774, %v4738
        %v4812 = vsel %vm3417, %v4776, %v4740
        %v4813 = vld [vmem:[%s7] sm:$0xf]
        %v4814 = vld [vmem:[%s7 + $0x4] sm:$0x3]
        %s4815 = scalar_lea.vmem %s7, 8
        %v4816 = vld [vmem:[%s4815] sm:$0xf]
        %v4817 = vld [vmem:[%s4815 + $0x4] sm:$0x3]
        %v4820 = vunpack.c.l.b16 %v4816
        %v4821 = vunpack.c.l.b16 %v4817
        %v4822 = vpack.c.b16 %v4821, %v4820
        %v4823 = vsel %vm3464, %v4780, 0
        %v4825 = vsel %vm3464, %v4782, 0
        %v4827 = vsel %vm3464, %v4784, 0
        %v4829 = vsel %vm3464, %v4786, 0
        %v4831 = vsel %vm3464, %v4788, 0
        %v4833 = vsel %vm3464, %v4790, 0
        %v4835 = vsel %vm3464, %v4792, 0
        %v4837 = vsel %vm3464, %v4794, 0
        %v4839 = vsel %vm3464, %v4796, 0
        %v4841 = vsel %vm3464, %v4798, 0
        %v4843 = vsel %vm3464, %v4800, 0
        %v4845 = vsel %vm3464, %v4802, 0
        %v4847 = vsel %vm3464, %v4804, 0
        %v4849 = vsel %vm3464, %v4806, 0
        %v4851 = vsel %vm3464, %v4808, 0
        %v4853 = vsel %vm3464, %v4810, 0
        %v4856 = vsel %vm1604, %v4822, 0
        %4858 = vmatpush.bf16.msra.mxu0 0
        %4859 = vmatpush.bf16.msra.mxu0 0
        %4860 = vmatpush.bf16.msra.mxu0 0
        %4861 = vmatpush.bf16.msra.mxu0 0
        %4862 = vmatpush.bf16.msra.mxu0 0
        %4863 = vmatpush.bf16.msra.mxu0 0
        %4864 = vmatpush.bf16.msra.mxu0 0
        %4865 = vmatpush.bf16.msra.mxu0 %v4856
        %4866 = vmatmul.bf16.gmra.mxu0 %v4823
        %v4867 = vpop.f32.mrf.mxu0
        %v4868 = vadd.f32 0.0, %v4867
        %v4869 = vpop.f32.mrf.mxu0
        %v4870 = vadd.f32 0.0, %v4869
        %4871 = vmatmul.bf16.gmra.mxu0 %v4825
        %v4872 = vpop.f32.mrf.mxu0
        %v4873 = vadd.f32 0.0, %v4872
        %v4874 = vpop.f32.mrf.mxu0
        %v4875 = vadd.f32 0.0, %v4874
        %4876 = vmatmul.bf16.gmra.mxu0 %v4827
        %v4877 = vpop.f32.mrf.mxu0
        %v4878 = vadd.f32 0.0, %v4877
        %v4879 = vpop.f32.mrf.mxu0
        %v4880 = vadd.f32 0.0, %v4879
        %4881 = vmatmul.bf16.gmra.mxu0 %v4829
        %v4882 = vpop.f32.mrf.mxu0
        %v4883 = vadd.f32 0.0, %v4882
        %v4884 = vpop.f32.mrf.mxu0
        %v4885 = vadd.f32 0.0, %v4884
        %4886 = vmatmul.bf16.gmra.mxu0 %v4831
        %v4887 = vpop.f32.mrf.mxu0
        %v4888 = vadd.f32 0.0, %v4887
        %v4889 = vpop.f32.mrf.mxu0
        %v4890 = vadd.f32 0.0, %v4889
        %4891 = vmatmul.bf16.gmra.mxu0 %v4833
        %v4892 = vpop.f32.mrf.mxu0
        %v4893 = vadd.f32 0.0, %v4892
        %v4894 = vpop.f32.mrf.mxu0
        %v4895 = vadd.f32 0.0, %v4894
        %4896 = vmatmul.bf16.gmra.mxu0 %v4835
        %v4897 = vpop.f32.mrf.mxu0
        %v4898 = vadd.f32 0.0, %v4897
        %v4899 = vpop.f32.mrf.mxu0
        %v4900 = vadd.f32 0.0, %v4899
        %4901 = vmatmul.bf16.gmra.mxu0 %v4837
        %v4902 = vpop.f32.mrf.mxu0
        %v4903 = vadd.f32 0.0, %v4902
        %v4904 = vpop.f32.mrf.mxu0
        %v4905 = vadd.f32 0.0, %v4904
        %4906 = vmatmul.bf16.gmra.mxu0 %v4839
        %v4907 = vpop.f32.mrf.mxu0
        %v4908 = vadd.f32 0.0, %v4907
        %v4909 = vpop.f32.mrf.mxu0
        %v4910 = vadd.f32 0.0, %v4909
        %4911 = vmatmul.bf16.gmra.mxu0 %v4841
        %v4912 = vpop.f32.mrf.mxu0
        %v4913 = vadd.f32 0.0, %v4912
        %v4914 = vpop.f32.mrf.mxu0
        %v4915 = vadd.f32 0.0, %v4914
        %4916 = vmatmul.bf16.gmra.mxu0 %v4843
        %v4917 = vpop.f32.mrf.mxu0
        %v4918 = vadd.f32 0.0, %v4917
        %v4919 = vpop.f32.mrf.mxu0
        %v4920 = vadd.f32 0.0, %v4919
        %4921 = vmatmul.bf16.gmra.mxu0 %v4845
        %v4922 = vpop.f32.mrf.mxu0
        %v4923 = vadd.f32 0.0, %v4922
        %v4924 = vpop.f32.mrf.mxu0
        %v4925 = vadd.f32 0.0, %v4924
        %4926 = vmatmul.bf16.gmra.mxu0 %v4847
        %v4927 = vpop.f32.mrf.mxu0
        %v4928 = vadd.f32 0.0, %v4927
        %v4929 = vpop.f32.mrf.mxu0
        %v4930 = vadd.f32 0.0, %v4929
        %4931 = vmatmul.bf16.gmra.mxu0 %v4849
        %v4932 = vpop.f32.mrf.mxu0
        %v4933 = vadd.f32 0.0, %v4932
        %v4934 = vpop.f32.mrf.mxu0
        %v4935 = vadd.f32 0.0, %v4934
        %4936 = vmatmul.bf16.gmra.mxu0 %v4851
        %v4937 = vpop.f32.mrf.mxu0
        %v4938 = vadd.f32 0.0, %v4937
        %v4939 = vpop.f32.mrf.mxu0
        %v4940 = vadd.f32 0.0, %v4939
        %4941 = vmatmul.bf16.gmra.mxu0 %v4853
        %v4942 = vpop.f32.mrf.mxu0
        %v4943 = vadd.f32 0.0, %v4942
        %v4944 = vpop.f32.mrf.mxu0
        %v4945 = vadd.f32 0.0, %v4944
        %4946 = vdwg.mxu0
        %v4949 = vunpack.c.l.b16 %v4813
        %v4950 = vunpack.c.l.b16 %v4814
        %v4951 = vpack.c.b16 %v4950, %v4949
        %v4952 = vsel %vm3464, %v4778, 0
        %v4955 = vsel %vm1604, %v4951, 0
        %4957 = vmatpush.bf16.msra.mxu0 0
        %4958 = vmatpush.bf16.msra.mxu0 0
        %4959 = vmatpush.bf16.msra.mxu0 0
        %4960 = vmatpush.bf16.msra.mxu0 0
        %4961 = vmatpush.bf16.msra.mxu0 0
        %4962 = vmatpush.bf16.msra.mxu0 0
        %4963 = vmatpush.bf16.msra.mxu0 0
        %4964 = vmatpush.bf16.msra.mxu0 %v4955
        %4965 = vmatmul.bf16.gmra.mxu0 %v4952
        %v4966 = vpop.f32.mrf.mxu0
        %v4967 = vadd.f32 %v4868, %v4966
        %v4968 = vpop.f32.mrf.mxu0
        %v4969 = vadd.f32 %v4870, %v4968
        %4970 = vmatmul.bf16.gmra.mxu0 %v4823
        %v4971 = vpop.f32.mrf.mxu0
        %v4972 = vadd.f32 %v4873, %v4971
        %v4973 = vpop.f32.mrf.mxu0
        %v4974 = vadd.f32 %v4875, %v4973
        %4975 = vmatmul.bf16.gmra.mxu0 %v4825
        %v4976 = vpop.f32.mrf.mxu0
        %v4977 = vadd.f32 %v4878, %v4976
        %v4978 = vpop.f32.mrf.mxu0
        %v4979 = vadd.f32 %v4880, %v4978
        %4980 = vmatmul.bf16.gmra.mxu0 %v4827
        %v4981 = vpop.f32.mrf.mxu0
        %v4982 = vadd.f32 %v4883, %v4981
        %v4983 = vpop.f32.mrf.mxu0
        %v4984 = vadd.f32 %v4885, %v4983
        %4985 = vmatmul.bf16.gmra.mxu0 %v4829
        %v4986 = vpop.f32.mrf.mxu0
        %v4987 = vadd.f32 %v4888, %v4986
        %v4988 = vpop.f32.mrf.mxu0
        %v4989 = vadd.f32 %v4890, %v4988
        %4990 = vmatmul.bf16.gmra.mxu0 %v4831
        %v4991 = vpop.f32.mrf.mxu0
        %v4992 = vadd.f32 %v4893, %v4991
        %v4993 = vpop.f32.mrf.mxu0
        %v4994 = vadd.f32 %v4895, %v4993
        %4995 = vmatmul.bf16.gmra.mxu0 %v4833
        %v4996 = vpop.f32.mrf.mxu0
        %v4997 = vadd.f32 %v4898, %v4996
        %v4998 = vpop.f32.mrf.mxu0
        %v4999 = vadd.f32 %v4900, %v4998
        %5000 = vmatmul.bf16.gmra.mxu0 %v4835
        %v5001 = vpop.f32.mrf.mxu0
        %v5002 = vadd.f32 %v4903, %v5001
        %v5003 = vpop.f32.mrf.mxu0
        %v5004 = vadd.f32 %v4905, %v5003
        %5005 = vmatmul.bf16.gmra.mxu0 %v4837
        %v5006 = vpop.f32.mrf.mxu0
        %v5007 = vadd.f32 %v4908, %v5006
        %v5008 = vpop.f32.mrf.mxu0
        %v5009 = vadd.f32 %v4910, %v5008
        %5010 = vmatmul.bf16.gmra.mxu0 %v4839
        %v5011 = vpop.f32.mrf.mxu0
        %v5012 = vadd.f32 %v4913, %v5011
        %v5013 = vpop.f32.mrf.mxu0
        %v5014 = vadd.f32 %v4915, %v5013
        %5015 = vmatmul.bf16.gmra.mxu0 %v4841
        %v5016 = vpop.f32.mrf.mxu0
        %v5017 = vadd.f32 %v4918, %v5016
        %v5018 = vpop.f32.mrf.mxu0
        %v5019 = vadd.f32 %v4920, %v5018
        %5020 = vmatmul.bf16.gmra.mxu0 %v4843
        %v5021 = vpop.f32.mrf.mxu0
        %v5022 = vadd.f32 %v4923, %v5021
        %v5023 = vpop.f32.mrf.mxu0
        %v5024 = vadd.f32 %v4925, %v5023
        %5025 = vmatmul.bf16.gmra.mxu0 %v4845
        %v5026 = vpop.f32.mrf.mxu0
        %v5027 = vadd.f32 %v4928, %v5026
        %v5028 = vpop.f32.mrf.mxu0
        %v5029 = vadd.f32 %v4930, %v5028
        %5030 = vmatmul.bf16.gmra.mxu0 %v4847
        %v5031 = vpop.f32.mrf.mxu0
        %v5032 = vadd.f32 %v4933, %v5031
        %v5033 = vpop.f32.mrf.mxu0
        %v5034 = vadd.f32 %v4935, %v5033
        %5035 = vmatmul.bf16.gmra.mxu0 %v4849
        %v5036 = vpop.f32.mrf.mxu0
        %v5037 = vadd.f32 %v4938, %v5036
        %v5038 = vpop.f32.mrf.mxu0
        %v5039 = vadd.f32 %v4940, %v5038
        %5040 = vmatmul.bf16.gmra.mxu0 %v4851
        %v5041 = vpop.f32.mrf.mxu0
        %v5042 = vadd.f32 %v4943, %v5041
        %v5043 = vpop.f32.mrf.mxu0
        %v5044 = vadd.f32 %v4945, %v5043
        %5045 = vdwg.mxu0
        %s5046 = scalar_lea.vmem %s7, 16
        %v5047 = vld [vmem:[%s5046] sm:$0xf]
        %v5048 = vld [vmem:[%s5046 + $0x4] sm:$0x3]
        %v5051 = vunpack.c.l.b16 %v5047
        %v5052 = vunpack.c.l.b16 %v5048
        %v5053 = vpack.c.b16 %v5052, %v5051
        %v5054 = vsel %vm3464, %v4812, 0
        %v5057 = vsel %vm1604, %v5053, 0
        %5059 = vmatpush.bf16.msra.mxu0 0
        %5060 = vmatpush.bf16.msra.mxu0 0
        %5061 = vmatpush.bf16.msra.mxu0 0
        %5062 = vmatpush.bf16.msra.mxu0 0
        %5063 = vmatpush.bf16.msra.mxu0 0
        %5064 = vmatpush.bf16.msra.mxu0 0
        %5065 = vmatpush.bf16.msra.mxu0 0
        %5066 = vmatpush.bf16.msra.mxu0 %v5057
        %5067 = vmatmul.bf16.gmra.mxu0 %v4825
        %v5068 = vpop.f32.mrf.mxu0
        %v5069 = vadd.f32 0.0, %v5068
        %v5070 = vpop.f32.mrf.mxu0
        %v5071 = vadd.f32 0.0, %v5070
        %5072 = vmatmul.bf16.gmra.mxu0 %v4827
        %v5073 = vpop.f32.mrf.mxu0
        %v5074 = vadd.f32 0.0, %v5073
        %v5075 = vpop.f32.mrf.mxu0
        %v5076 = vadd.f32 0.0, %v5075
        %5077 = vmatmul.bf16.gmra.mxu0 %v4829
        %v5078 = vpop.f32.mrf.mxu0
        %v5079 = vadd.f32 0.0, %v5078
        %v5080 = vpop.f32.mrf.mxu0
        %v5081 = vadd.f32 0.0, %v5080
        %5082 = vmatmul.bf16.gmra.mxu0 %v4831
        %v5083 = vpop.f32.mrf.mxu0
        %v5084 = vadd.f32 0.0, %v5083
        %v5085 = vpop.f32.mrf.mxu0
        %v5086 = vadd.f32 0.0, %v5085
        %5087 = vmatmul.bf16.gmra.mxu0 %v4833
        %v5088 = vpop.f32.mrf.mxu0
        %v5089 = vadd.f32 0.0, %v5088
        %v5090 = vpop.f32.mrf.mxu0
        %v5091 = vadd.f32 0.0, %v5090
        %5092 = vmatmul.bf16.gmra.mxu0 %v4835
        %v5093 = vpop.f32.mrf.mxu0
        %v5094 = vadd.f32 0.0, %v5093
        %v5095 = vpop.f32.mrf.mxu0
        %v5096 = vadd.f32 0.0, %v5095
        %5097 = vmatmul.bf16.gmra.mxu0 %v4837
        %v5098 = vpop.f32.mrf.mxu0
        %v5099 = vadd.f32 0.0, %v5098
        %v5100 = vpop.f32.mrf.mxu0
        %v5101 = vadd.f32 0.0, %v5100
        %5102 = vmatmul.bf16.gmra.mxu0 %v4839
        %v5103 = vpop.f32.mrf.mxu0
        %v5104 = vadd.f32 0.0, %v5103
        %v5105 = vpop.f32.mrf.mxu0
        %v5106 = vadd.f32 0.0, %v5105
        %5107 = vmatmul.bf16.gmra.mxu0 %v4841
        %v5108 = vpop.f32.mrf.mxu0
        %v5109 = vadd.f32 0.0, %v5108
        %v5110 = vpop.f32.mrf.mxu0
        %v5111 = vadd.f32 0.0, %v5110
        %5112 = vmatmul.bf16.gmra.mxu0 %v4843
        %v5113 = vpop.f32.mrf.mxu0
        %v5114 = vadd.f32 0.0, %v5113
        %v5115 = vpop.f32.mrf.mxu0
        %v5116 = vadd.f32 0.0, %v5115
        %5117 = vmatmul.bf16.gmra.mxu0 %v4845
        %v5118 = vpop.f32.mrf.mxu0
        %v5119 = vadd.f32 0.0, %v5118
        %v5120 = vpop.f32.mrf.mxu0
        %v5121 = vadd.f32 0.0, %v5120
        %5122 = vmatmul.bf16.gmra.mxu0 %v4847
        %v5123 = vpop.f32.mrf.mxu0
        %v5124 = vadd.f32 0.0, %v5123
        %v5125 = vpop.f32.mrf.mxu0
        %v5126 = vadd.f32 0.0, %v5125
        %5127 = vmatmul.bf16.gmra.mxu0 %v4849
        %v5128 = vpop.f32.mrf.mxu0
        %v5129 = vadd.f32 0.0, %v5128
        %v5130 = vpop.f32.mrf.mxu0
        %v5131 = vadd.f32 0.0, %v5130
        %5132 = vmatmul.bf16.gmra.mxu0 %v4851
        %v5133 = vpop.f32.mrf.mxu0
        %v5134 = vadd.f32 0.0, %v5133
        %v5135 = vpop.f32.mrf.mxu0
        %v5136 = vadd.f32 0.0, %v5135
        %5137 = vmatmul.bf16.gmra.mxu0 %v4853
        %v5138 = vpop.f32.mrf.mxu0
        %v5139 = vadd.f32 0.0, %v5138
        %v5140 = vpop.f32.mrf.mxu0
        %v5141 = vadd.f32 0.0, %v5140
        %5142 = vmatmul.bf16.gmra.mxu0 %v5054
        %v5143 = vpop.f32.mrf.mxu0
        %v5144 = vadd.f32 0.0, %v5143
        %v5145 = vpop.f32.mrf.mxu0
        %v5146 = vadd.f32 0.0, %v5145
        %5147 = vdwg.mxu0
        %v5148 = vadd.f32 %v4967, %v5069
        %v5149 = vadd.f32 %v4969, %v5071
        %v5150 = vadd.f32 %v4972, %v5074
        %v5151 = vadd.f32 %v4974, %v5076
        %v5152 = vadd.f32 %v4977, %v5079
        %v5153 = vadd.f32 %v4979, %v5081
        %v5154 = vadd.f32 %v4982, %v5084
        %v5155 = vadd.f32 %v4984, %v5086
        %v5156 = vadd.f32 %v4987, %v5089
        %v5157 = vadd.f32 %v4989, %v5091
        %v5158 = vadd.f32 %v4992, %v5094
        %v5159 = vadd.f32 %v4994, %v5096
        %v5160 = vadd.f32 %v4997, %v5099
        %v5161 = vadd.f32 %v4999, %v5101
        %v5162 = vadd.f32 %v5002, %v5104
        %v5163 = vadd.f32 %v5004, %v5106
        %v5164 = vadd.f32 %v5007, %v5109
        %v5165 = vadd.f32 %v5009, %v5111
        %v5166 = vadd.f32 %v5012, %v5114
        %v5167 = vadd.f32 %v5014, %v5116
        %v5168 = vadd.f32 %v5017, %v5119
        %v5169 = vadd.f32 %v5019, %v5121
        %v5170 = vadd.f32 %v5022, %v5124
        %v5171 = vadd.f32 %v5024, %v5126
        %v5172 = vadd.f32 %v5027, %v5129
        %v5173 = vadd.f32 %v5029, %v5131
        %v5174 = vadd.f32 %v5032, %v5134
        %v5175 = vadd.f32 %v5034, %v5136
        %v5176 = vadd.f32 %v5037, %v5139
        %v5177 = vadd.f32 %v5039, %v5141
        %v5178 = vadd.f32 %v5042, %v5144
        %v5179 = vadd.f32 %v5044, %v5146
        %v5180 = vld [vmem:[%s8] sm:$0x1]
        %v5182 = vperm.slane %v5180, 0
        %v5184 = vadd.f32 %v5148, %v5182
        %v5185 = vadd.f32 %v5149, %v5182
        %v5186 = vadd.f32 %v5150, %v5182
        %v5187 = vadd.f32 %v5151, %v5182
        %v5188 = vadd.f32 %v5152, %v5182
        %v5189 = vadd.f32 %v5153, %v5182
        %v5190 = vadd.f32 %v5154, %v5182
        %v5191 = vadd.f32 %v5155, %v5182
        %v5192 = vadd.f32 %v5156, %v5182
        %v5193 = vadd.f32 %v5157, %v5182
        %v5194 = vadd.f32 %v5158, %v5182
        %v5195 = vadd.f32 %v5159, %v5182
        %v5196 = vadd.f32 %v5160, %v5182
        %v5197 = vadd.f32 %v5161, %v5182
        %v5198 = vadd.f32 %v5162, %v5182
        %v5199 = vadd.f32 %v5163, %v5182
        %v5200 = vadd.f32 %v5164, %v5182
        %v5201 = vadd.f32 %v5165, %v5182
        %v5202 = vadd.f32 %v5166, %v5182
        %v5203 = vadd.f32 %v5167, %v5182
        %v5204 = vadd.f32 %v5168, %v5182
        %v5205 = vadd.f32 %v5169, %v5182
        %v5206 = vadd.f32 %v5170, %v5182
        %v5207 = vadd.f32 %v5171, %v5182
        %v5208 = vadd.f32 %v5172, %v5182
        %v5209 = vadd.f32 %v5173, %v5182
        %v5210 = vadd.f32 %v5174, %v5182
        %v5211 = vadd.f32 %v5175, %v5182
        %v5212 = vadd.f32 %v5176, %v5182
        %v5213 = vadd.f32 %v5177, %v5182
        %v5214 = vadd.f32 %v5178, %v5182
        %v5215 = vadd.f32 %v5179, %v5182
        %v5216 = vmax.f32 %v5184, 0.0
        %v5217 = vmax.f32 %v5185, 0.0
        %v5218 = vmax.f32 %v5186, 0.0
        %v5219 = vmax.f32 %v5187, 0.0
        %v5220 = vmax.f32 %v5188, 0.0
        %v5221 = vmax.f32 %v5189, 0.0
        %v5222 = vmax.f32 %v5190, 0.0
        %v5223 = vmax.f32 %v5191, 0.0
        %v5224 = vmax.f32 %v5192, 0.0
        %v5225 = vmax.f32 %v5193, 0.0
        %v5226 = vmax.f32 %v5194, 0.0
        %v5227 = vmax.f32 %v5195, 0.0
        %v5228 = vmax.f32 %v5196, 0.0
        %v5229 = vmax.f32 %v5197, 0.0
        %v5230 = vmax.f32 %v5198, 0.0
        %v5231 = vmax.f32 %v5199, 0.0
        %v5232 = vmax.f32 %v5200, 0.0
        %v5233 = vmax.f32 %v5201, 0.0
        %v5234 = vmax.f32 %v5202, 0.0
        %v5235 = vmax.f32 %v5203, 0.0
        %v5236 = vmax.f32 %v5204, 0.0
        %v5237 = vmax.f32 %v5205, 0.0
        %v5238 = vmax.f32 %v5206, 0.0
        %v5239 = vmax.f32 %v5207, 0.0
        %v5240 = vmax.f32 %v5208, 0.0
        %v5241 = vmax.f32 %v5209, 0.0
        %v5242 = vmax.f32 %v5210, 0.0
        %v5243 = vmax.f32 %v5211, 0.0
        %v5244 = vmax.f32 %v5212, 0.0
        %v5245 = vmax.f32 %v5213, 0.0
        %v5246 = vmax.f32 %v5214, 0.0
        %v5247 = vmax.f32 %v5215, 0.0
        %vm5248 = vcmask 60416
        %5249 = vst.msk [vmem:[#allocation5] sm:$0xf] %vm5248, 0
        %5250 = vst.msk [vmem:[#allocation5 + $0x4] sm:$0xf] %vm5248, 0
        %vm5251 = vcmask 57344
        %5252 = vst.msk [vmem:[#allocation5 + $0x8] sm:$0x1] %vm5251, 0
        %5253 = vst.msk [vmem:[#allocation5 + $0xc] sm:$0xf] %vm5248, 0
        %5254 = vst.msk [vmem:[#allocation5 + $0x10] sm:$0xf] %vm5248, 0
        %5255 = vst.msk [vmem:[#allocation5 + $0x14] sm:$0x1] %vm5251, 0
        %5256 = vst.msk [vmem:[#allocation5 + $0x18] sm:$0xf] %vm5248, 0
        %5257 = vst.msk [vmem:[#allocation5 + $0x1c] sm:$0xf] %vm5248, 0
        %5258 = vst.msk [vmem:[#allocation5 + $0x20] sm:$0x1] %vm5251, 0
        %5259 = vst.msk [vmem:[#allocation5 + $0x24] sm:$0xf] %vm5248, 0
        %5260 = vst.msk [vmem:[#allocation5 + $0x28] sm:$0xf] %vm5248, 0
        %5261 = vst.msk [vmem:[#allocation5 + $0x2c] sm:$0x1] %vm5251, 0
        %5262 = vst.msk [vmem:[#allocation5 + $0x30] sm:$0xf] %vm5248, 0
        %5263 = vst.msk [vmem:[#allocation5 + $0x34] sm:$0xf] %vm5248, 0
        %5264 = vst.msk [vmem:[#allocation5 + $0x38] sm:$0x1] %vm5251, 0
        %5265 = vst.msk [vmem:[#allocation5 + $0x3c] sm:$0xf] %vm5248, 0
        %5266 = vst.msk [vmem:[#allocation5 + $0x40] sm:$0xf] %vm5248, 0
        %5267 = vst.msk [vmem:[#allocation5 + $0x44] sm:$0x1] %vm5251, 0
        %5268 = vst.msk [vmem:[#allocation5 + $0x48] sm:$0xf] %vm5248, 0
        %5269 = vst.msk [vmem:[#allocation5 + $0x4c] sm:$0xf] %vm5248, 0
        %5270 = vst.msk [vmem:[#allocation5 + $0x50] sm:$0x1] %vm5251, 0
        %5271 = vst.msk [vmem:[#allocation5 + $0x54] sm:$0xf] %vm5248, 0
        %5272 = vst.msk [vmem:[#allocation5 + $0x58] sm:$0xf] %vm5248, 0
        %5273 = vst.msk [vmem:[#allocation5 + $0x5c] sm:$0x1] %vm5251, 0
        %5274 = vst.msk [vmem:[#allocation5 + $0x60] sm:$0xf] %vm5248, 0
        %5275 = vst.msk [vmem:[#allocation5 + $0x64] sm:$0xf] %vm5248, 0
        %5276 = vst.msk [vmem:[#allocation5 + $0x68] sm:$0x1] %vm5251, 0
        %5277 = vst.msk [vmem:[#allocation5 + $0x6c] sm:$0xf] %vm5248, 0
        %5278 = vst.msk [vmem:[#allocation5 + $0x70] sm:$0xf] %vm5248, 0
        %5279 = vst.msk [vmem:[#allocation5 + $0x74] sm:$0x1] %vm5251, 0
        %5280 = vst.msk [vmem:[#allocation5 + $0x78] sm:$0xf] %vm5248, 0
        %5281 = vst.msk [vmem:[#allocation5 + $0x7c] sm:$0xf] %vm5248, 0
        %5282 = vst.msk [vmem:[#allocation5 + $0x80] sm:$0x1] %vm5251, 0
        %5283 = vst.msk [vmem:[#allocation5 + $0x84] sm:$0xf] %vm5248, 0
        %5284 = vst.msk [vmem:[#allocation5 + $0x88] sm:$0xf] %vm5248, 0
        %5285 = vst.msk [vmem:[#allocation5 + $0x8c] sm:$0x1] %vm5251, 0
        %5286 = vst.msk [vmem:[#allocation5 + $0x90] sm:$0xf] %vm5248, 0
        %5287 = vst.msk [vmem:[#allocation5 + $0x94] sm:$0xf] %vm5248, 0
        %5288 = vst.msk [vmem:[#allocation5 + $0x98] sm:$0x1] %vm5251, 0
        %5289 = vst.msk [vmem:[#allocation5 + $0x9c] sm:$0xf] %vm5248, 0
        %5290 = vst.msk [vmem:[#allocation5 + $0xa0] sm:$0xf] %vm5248, 0
        %5291 = vst.msk [vmem:[#allocation5 + $0xa4] sm:$0x1] %vm5251, 0
        %5292 = vst.msk [vmem:[#allocation5 + $0xa8] sm:$0xf] %vm5248, 0
        %5293 = vst.msk [vmem:[#allocation5 + $0xac] sm:$0xf] %vm5248, 0
        %5294 = vst.msk [vmem:[#allocation5 + $0xb0] sm:$0x1] %vm5251, 0
        %5295 = vst.msk [vmem:[#allocation5 + $0xb4] sm:$0xf] %vm5248, 0
        %5296 = vst.msk [vmem:[#allocation5 + $0xb8] sm:$0xf] %vm5248, 0
        %5297 = vst.msk [vmem:[#allocation5 + $0xbc] sm:$0x1] %vm5251, 0
        %5298 = vst.msk [vmem:[#allocation5 + $0xc0] sm:$0xf] %vm5248, 0
        %5299 = vst.msk [vmem:[#allocation5 + $0xc4] sm:$0xf] %vm5248, 0
        %5300 = vst.msk [vmem:[#allocation5 + $0xc8] sm:$0x1] %vm5251, 0
        %5301 = vst.msk [vmem:[#allocation5 + $0xcc] sm:$0xf] %vm5248, 0
        %5302 = vst.msk [vmem:[#allocation5 + $0xd0] sm:$0xf] %vm5248, 0
        %5303 = vst.msk [vmem:[#allocation5 + $0xd4] sm:$0x1] %vm5251, 0
        %v5304 = vpack.c.bf16 %v5216, %v5216
        %v5305 = vpack.c.bf16 %v5217, %v5217
        %v5306 = vpack.c.bf16 %v5218, %v5218
        %v5307 = vpack.c.bf16 %v5219, %v5219
        %v5308 = vpack.c.bf16 %v5220, %v5220
        %v5309 = vpack.c.bf16 %v5221, %v5221
        %v5310 = vpack.c.bf16 %v5222, %v5222
        %v5311 = vpack.c.bf16 %v5223, %v5223
        %v5312 = vpack.c.bf16 %v5224, %v5224
        %v5313 = vpack.c.bf16 %v5225, %v5225
        %v5314 = vpack.c.bf16 %v5226, %v5226
        %v5315 = vpack.c.bf16 %v5227, %v5227
        %v5316 = vpack.c.bf16 %v5228, %v5228
        %v5317 = vpack.c.bf16 %v5229, %v5229
        %v5318 = vpack.c.bf16 %v5230, %v5230
        %v5319 = vpack.c.bf16 %v5231, %v5231
        %v5320 = vpack.c.bf16 %v5232, %v5232
        %v5321 = vpack.c.bf16 %v5233, %v5233
        %v5322 = vpack.c.bf16 %v5234, %v5234
        %v5323 = vpack.c.bf16 %v5235, %v5235
        %v5324 = vpack.c.bf16 %v5236, %v5236
        %v5325 = vpack.c.bf16 %v5237, %v5237
        %v5326 = vpack.c.bf16 %v5238, %v5238
        %v5327 = vpack.c.bf16 %v5239, %v5239
        %v5328 = vpack.c.bf16 %v5240, %v5240
        %v5329 = vpack.c.bf16 %v5241, %v5241
        %v5330 = vpack.c.bf16 %v5242, %v5242
        %v5331 = vpack.c.bf16 %v5243, %v5243
        %v5332 = vpack.c.bf16 %v5244, %v5244
        %v5333 = vpack.c.bf16 %v5245, %v5245
        %v5334 = vpack.c.bf16 %v5246, %v5246
        %v5335 = vpack.c.bf16 %v5247, %v5247
        %v5337 = vshrl.u32 %v5304, 16
        %v5339 = vrot.slane %v5337, 7
        %v5340 = vshll.u32 %v5304, 16
        %v5342 = vor.u32 %v5339, %v5340
        %v5343 = vrot.slane %v5339, 4
        %v5345 = vshrl.u32 %v5305, 16
        %v5347 = vrot.slane %v5345, 7
        %v5348 = vshll.u32 %v5305, 16
        %v5350 = vor.u32 %v5347, %v5348
        %v5351 = vsel %vm768, %v5343, %v5350
        %v5352 = vrot.slane %v5347, 4
        %v5354 = vshrl.u32 %v5306, 16
        %v5356 = vrot.slane %v5354, 7
        %v5357 = vshll.u32 %v5306, 16
        %v5359 = vor.u32 %v5356, %v5357
        %v5360 = vrot.slane %v5356, 4
        %v5362 = vshrl.u32 %v5307, 16
        %v5364 = vrot.slane %v5362, 7
        %v5365 = vshll.u32 %v5307, 16
        %v5367 = vor.u32 %v5364, %v5365
        %v5368 = vsel %vm768, %v5360, %v5367
        %v5369 = vrot.slane %v5364, 4
        %v5371 = vshrl.u32 %v5308, 16
        %v5373 = vrot.slane %v5371, 7
        %v5374 = vshll.u32 %v5308, 16
        %v5376 = vor.u32 %v5373, %v5374
        %v5377 = vrot.slane %v5373, 4
        %v5379 = vshrl.u32 %v5309, 16
        %v5381 = vrot.slane %v5379, 7
        %v5382 = vshll.u32 %v5309, 16
        %v5384 = vor.u32 %v5381, %v5382
        %v5385 = vsel %vm768, %v5377, %v5384
        %v5386 = vrot.slane %v5381, 4
        %v5388 = vshrl.u32 %v5310, 16
        %v5390 = vrot.slane %v5388, 7
        %v5391 = vshll.u32 %v5310, 16
        %v5393 = vor.u32 %v5390, %v5391
        %v5394 = vrot.slane %v5390, 4
        %v5396 = vshrl.u32 %v5311, 16
        %v5398 = vrot.slane %v5396, 7
        %v5399 = vshll.u32 %v5311, 16
        %v5401 = vor.u32 %v5398, %v5399
        %v5402 = vsel %vm768, %v5394, %v5401
        %v5403 = vrot.slane %v5398, 4
        %v5405 = vshrl.u32 %v5312, 16
        %v5407 = vrot.slane %v5405, 7
        %v5408 = vshll.u32 %v5312, 16
        %v5410 = vor.u32 %v5407, %v5408
        %v5411 = vrot.slane %v5407, 4
        %v5413 = vshrl.u32 %v5313, 16
        %v5415 = vrot.slane %v5413, 7
        %v5416 = vshll.u32 %v5313, 16
        %v5418 = vor.u32 %v5415, %v5416
        %v5419 = vsel %vm768, %v5411, %v5418
        %v5420 = vrot.slane %v5415, 4
        %v5422 = vshrl.u32 %v5314, 16
        %v5424 = vrot.slane %v5422, 7
        %v5425 = vshll.u32 %v5314, 16
        %v5427 = vor.u32 %v5424, %v5425
        %v5428 = vrot.slane %v5424, 4
        %v5430 = vshrl.u32 %v5315, 16
        %v5432 = vrot.slane %v5430, 7
        %v5433 = vshll.u32 %v5315, 16
        %v5435 = vor.u32 %v5432, %v5433
        %v5436 = vsel %vm768, %v5428, %v5435
        %v5437 = vrot.slane %v5432, 4
        %v5439 = vshrl.u32 %v5316, 16
        %v5441 = vrot.slane %v5439, 7
        %v5442 = vshll.u32 %v5316, 16
        %v5444 = vor.u32 %v5441, %v5442
        %v5445 = vrot.slane %v5441, 4
        %v5447 = vshrl.u32 %v5317, 16
        %v5449 = vrot.slane %v5447, 7
        %v5450 = vshll.u32 %v5317, 16
        %v5452 = vor.u32 %v5449, %v5450
        %v5453 = vsel %vm768, %v5445, %v5452
        %v5454 = vrot.slane %v5449, 4
        %v5456 = vshrl.u32 %v5318, 16
        %v5458 = vrot.slane %v5456, 7
        %v5459 = vshll.u32 %v5318, 16
        %v5461 = vor.u32 %v5458, %v5459
        %v5462 = vrot.slane %v5458, 4
        %v5464 = vshrl.u32 %v5319, 16
        %v5466 = vrot.slane %v5464, 7
        %v5467 = vshll.u32 %v5319, 16
        %v5469 = vor.u32 %v5466, %v5467
        %v5470 = vsel %vm768, %v5462, %v5469
        %v5471 = vrot.slane %v5466, 4
        %v5473 = vshrl.u32 %v5320, 16
        %v5475 = vrot.slane %v5473, 7
        %v5476 = vshll.u32 %v5320, 16
        %v5478 = vor.u32 %v5475, %v5476
        %v5479 = vrot.slane %v5475, 4
        %v5481 = vshrl.u32 %v5321, 16
        %v5483 = vrot.slane %v5481, 7
        %v5484 = vshll.u32 %v5321, 16
        %v5486 = vor.u32 %v5483, %v5484
        %v5487 = vsel %vm768, %v5479, %v5486
        %v5488 = vrot.slane %v5483, 4
        %v5490 = vshrl.u32 %v5322, 16
        %v5492 = vrot.slane %v5490, 7
        %v5493 = vshll.u32 %v5322, 16
        %v5495 = vor.u32 %v5492, %v5493
        %v5496 = vrot.slane %v5492, 4
        %v5498 = vshrl.u32 %v5323, 16
        %v5500 = vrot.slane %v5498, 7
        %v5501 = vshll.u32 %v5323, 16
        %v5503 = vor.u32 %v5500, %v5501
        %v5504 = vsel %vm768, %v5496, %v5503
        %v5505 = vrot.slane %v5500, 4
        %v5507 = vshrl.u32 %v5324, 16
        %v5509 = vrot.slane %v5507, 7
        %v5510 = vshll.u32 %v5324, 16
        %v5512 = vor.u32 %v5509, %v5510
        %v5513 = vrot.slane %v5509, 4
        %v5515 = vshrl.u32 %v5325, 16
        %v5517 = vrot.slane %v5515, 7
        %v5518 = vshll.u32 %v5325, 16
        %v5520 = vor.u32 %v5517, %v5518
        %v5521 = vsel %vm768, %v5513, %v5520
        %v5522 = vrot.slane %v5517, 4
        %v5524 = vshrl.u32 %v5326, 16
        %v5526 = vrot.slane %v5524, 7
        %v5527 = vshll.u32 %v5326, 16
        %v5529 = vor.u32 %v5526, %v5527
        %v5530 = vrot.slane %v5526, 4
        %v5532 = vshrl.u32 %v5327, 16
        %v5534 = vrot.slane %v5532, 7
        %v5535 = vshll.u32 %v5327, 16
        %v5537 = vor.u32 %v5534, %v5535
        %v5538 = vsel %vm768, %v5530, %v5537
        %v5539 = vrot.slane %v5534, 4
        %v5541 = vshrl.u32 %v5328, 16
        %v5543 = vrot.slane %v5541, 7
        %v5544 = vshll.u32 %v5328, 16
        %v5546 = vor.u32 %v5543, %v5544
        %v5547 = vrot.slane %v5543, 4
        %v5549 = vshrl.u32 %v5329, 16
        %v5551 = vrot.slane %v5549, 7
        %v5552 = vshll.u32 %v5329, 16
        %v5554 = vor.u32 %v5551, %v5552
        %v5555 = vsel %vm768, %v5547, %v5554
        %v5556 = vrot.slane %v5551, 4
        %v5558 = vshrl.u32 %v5330, 16
        %v5560 = vrot.slane %v5558, 7
        %v5561 = vshll.u32 %v5330, 16
        %v5563 = vor.u32 %v5560, %v5561
        %v5564 = vrot.slane %v5560, 4
        %v5566 = vshrl.u32 %v5331, 16
        %v5568 = vrot.slane %v5566, 7
        %v5569 = vshll.u32 %v5331, 16
        %v5571 = vor.u32 %v5568, %v5569
        %v5572 = vsel %vm768, %v5564, %v5571
        %v5573 = vrot.slane %v5568, 4
        %v5575 = vshrl.u32 %v5332, 16
        %v5577 = vrot.slane %v5575, 7
        %v5578 = vshll.u32 %v5332, 16
        %v5580 = vor.u32 %v5577, %v5578
        %v5581 = vrot.slane %v5577, 4
        %v5583 = vshrl.u32 %v5333, 16
        %v5585 = vrot.slane %v5583, 7
        %v5586 = vshll.u32 %v5333, 16
        %v5588 = vor.u32 %v5585, %v5586
        %v5589 = vsel %vm768, %v5581, %v5588
        %v5590 = vrot.slane %v5585, 4
        %v5592 = vshrl.u32 %v5334, 16
        %v5594 = vrot.slane %v5592, 7
        %v5595 = vshll.u32 %v5334, 16
        %v5597 = vor.u32 %v5594, %v5595
        %v5598 = vrot.slane %v5594, 4
        %v5600 = vshrl.u32 %v5335, 16
        %v5602 = vrot.slane %v5600, 7
        %v5603 = vshll.u32 %v5335, 16
        %v5605 = vor.u32 %v5602, %v5603
        %v5606 = vsel %vm768, %v5598, %v5605
        %v5607 = vrot.slane %v5602, 4
        %s5656 = scalar_lea.vmem [#allocation5], 12
        %vm5657 = vcmask 60416
        %vm5658 = vmand %vm5657, %vm1091
        %v5659 = vld [vmem:[%s5656] sm:$0xf]
        %v5660 = vsel %vm5658, %v5342, %v5659
        %5661 = vst [vmem:[%s5656] sm:$0xf] %v5660
        %5662 = vst.msk [vmem:[%s5656 + $0x4] sm:$0xf] %vm5248, %v5351
        %vm5663 = vcmask 57344
        %vm5664 = vmand %vm5663, %vm766
        %v5665 = vld [vmem:[%s5656 + $0x8] sm:$0x1]
        %v5666 = vsel %vm5664, %v5352, %v5665
        %5667 = vst [vmem:[%s5656 + $0x8] sm:$0x1] %v5666
        %v5668 = vld [vmem:[%s5656 + $0xc] sm:$0xf]
        %v5669 = vsel %vm5658, %v5359, %v5668
        %5670 = vst [vmem:[%s5656 + $0xc] sm:$0xf] %v5669
        %5671 = vst.msk [vmem:[%s5656 + $0x10] sm:$0xf] %vm5248, %v5368
        %v5672 = vld [vmem:[%s5656 + $0x14] sm:$0x1]
        %v5673 = vsel %vm5664, %v5369, %v5672
        %5674 = vst [vmem:[%s5656 + $0x14] sm:$0x1] %v5673
        %v5675 = vld [vmem:[%s5656 + $0x18] sm:$0xf]
        %v5676 = vsel %vm5658, %v5376, %v5675
        %5677 = vst [vmem:[%s5656 + $0x18] sm:$0xf] %v5676
        %5678 = vst.msk [vmem:[%s5656 + $0x1c] sm:$0xf] %vm5248, %v5385
        %v5679 = vld [vmem:[%s5656 + $0x20] sm:$0x1]
        %v5680 = vsel %vm5664, %v5386, %v5679
        %5681 = vst [vmem:[%s5656 + $0x20] sm:$0x1] %v5680
        %v5682 = vld [vmem:[%s5656 + $0x24] sm:$0xf]
        %v5683 = vsel %vm5658, %v5393, %v5682
        %5684 = vst [vmem:[%s5656 + $0x24] sm:$0xf] %v5683
        %5685 = vst.msk [vmem:[%s5656 + $0x28] sm:$0xf] %vm5248, %v5402
        %v5686 = vld [vmem:[%s5656 + $0x2c] sm:$0x1]
        %v5687 = vsel %vm5664, %v5403, %v5686
        %5688 = vst [vmem:[%s5656 + $0x2c] sm:$0x1] %v5687
        %v5689 = vld [vmem:[%s5656 + $0x30] sm:$0xf]
        %v5690 = vsel %vm5658, %v5410, %v5689
        %5691 = vst [vmem:[%s5656 + $0x30] sm:$0xf] %v5690
        %5692 = vst.msk [vmem:[%s5656 + $0x34] sm:$0xf] %vm5248, %v5419
        %v5693 = vld [vmem:[%s5656 + $0x38] sm:$0x1]
        %v5694 = vsel %vm5664, %v5420, %v5693
        %5695 = vst [vmem:[%s5656 + $0x38] sm:$0x1] %v5694
        %v5696 = vld [vmem:[%s5656 + $0x3c] sm:$0xf]
        %v5697 = vsel %vm5658, %v5427, %v5696
        %5698 = vst [vmem:[%s5656 + $0x3c] sm:$0xf] %v5697
        %5699 = vst.msk [vmem:[%s5656 + $0x40] sm:$0xf] %vm5248, %v5436
        %v5700 = vld [vmem:[%s5656 + $0x44] sm:$0x1]
        %v5701 = vsel %vm5664, %v5437, %v5700
        %5702 = vst [vmem:[%s5656 + $0x44] sm:$0x1] %v5701
        %v5703 = vld [vmem:[%s5656 + $0x48] sm:$0xf]
        %v5704 = vsel %vm5658, %v5444, %v5703
        %5705 = vst [vmem:[%s5656 + $0x48] sm:$0xf] %v5704
        %5706 = vst.msk [vmem:[%s5656 + $0x4c] sm:$0xf] %vm5248, %v5453
        %v5707 = vld [vmem:[%s5656 + $0x50] sm:$0x1]
        %v5708 = vsel %vm5664, %v5454, %v5707
        %5709 = vst [vmem:[%s5656 + $0x50] sm:$0x1] %v5708
        %v5710 = vld [vmem:[%s5656 + $0x54] sm:$0xf]
        %v5711 = vsel %vm5658, %v5461, %v5710
        %5712 = vst [vmem:[%s5656 + $0x54] sm:$0xf] %v5711
        %5713 = vst.msk [vmem:[%s5656 + $0x58] sm:$0xf] %vm5248, %v5470
        %v5714 = vld [vmem:[%s5656 + $0x5c] sm:$0x1]
        %v5715 = vsel %vm5664, %v5471, %v5714
        %5716 = vst [vmem:[%s5656 + $0x5c] sm:$0x1] %v5715
        %v5717 = vld [vmem:[%s5656 + $0x60] sm:$0xf]
        %v5718 = vsel %vm5658, %v5478, %v5717
        %5719 = vst [vmem:[%s5656 + $0x60] sm:$0xf] %v5718
        %5720 = vst.msk [vmem:[%s5656 + $0x64] sm:$0xf] %vm5248, %v5487
        %v5721 = vld [vmem:[%s5656 + $0x68] sm:$0x1]
        %v5722 = vsel %vm5664, %v5488, %v5721
        %5723 = vst [vmem:[%s5656 + $0x68] sm:$0x1] %v5722
        %v5724 = vld [vmem:[%s5656 + $0x6c] sm:$0xf]
        %v5725 = vsel %vm5658, %v5495, %v5724
        %5726 = vst [vmem:[%s5656 + $0x6c] sm:$0xf] %v5725
        %5727 = vst.msk [vmem:[%s5656 + $0x70] sm:$0xf] %vm5248, %v5504
        %v5728 = vld [vmem:[%s5656 + $0x74] sm:$0x1]
        %v5729 = vsel %vm5664, %v5505, %v5728
        %5730 = vst [vmem:[%s5656 + $0x74] sm:$0x1] %v5729
        %v5731 = vld [vmem:[%s5656 + $0x78] sm:$0xf]
        %v5732 = vsel %vm5658, %v5512, %v5731
        %5733 = vst [vmem:[%s5656 + $0x78] sm:$0xf] %v5732
        %5734 = vst.msk [vmem:[%s5656 + $0x7c] sm:$0xf] %vm5248, %v5521
        %v5735 = vld [vmem:[%s5656 + $0x80] sm:$0x1]
        %v5736 = vsel %vm5664, %v5522, %v5735
        %5737 = vst [vmem:[%s5656 + $0x80] sm:$0x1] %v5736
        %v5738 = vld [vmem:[%s5656 + $0x84] sm:$0xf]
        %v5739 = vsel %vm5658, %v5529, %v5738
        %5740 = vst [vmem:[%s5656 + $0x84] sm:$0xf] %v5739
        %5741 = vst.msk [vmem:[%s5656 + $0x88] sm:$0xf] %vm5248, %v5538
        %v5742 = vld [vmem:[%s5656 + $0x8c] sm:$0x1]
        %v5743 = vsel %vm5664, %v5539, %v5742
        %5744 = vst [vmem:[%s5656 + $0x8c] sm:$0x1] %v5743
        %v5745 = vld [vmem:[%s5656 + $0x90] sm:$0xf]
        %v5746 = vsel %vm5658, %v5546, %v5745
        %5747 = vst [vmem:[%s5656 + $0x90] sm:$0xf] %v5746
        %5748 = vst.msk [vmem:[%s5656 + $0x94] sm:$0xf] %vm5248, %v5555
        %v5749 = vld [vmem:[%s5656 + $0x98] sm:$0x1]
        %v5750 = vsel %vm5664, %v5556, %v5749
        %5751 = vst [vmem:[%s5656 + $0x98] sm:$0x1] %v5750
        %v5752 = vld [vmem:[%s5656 + $0x9c] sm:$0xf]
        %v5753 = vsel %vm5658, %v5563, %v5752
        %5754 = vst [vmem:[%s5656 + $0x9c] sm:$0xf] %v5753
        %5755 = vst.msk [vmem:[%s5656 + $0xa0] sm:$0xf] %vm5248, %v5572
        %v5756 = vld [vmem:[%s5656 + $0xa4] sm:$0x1]
        %v5757 = vsel %vm5664, %v5573, %v5756
        %5758 = vst [vmem:[%s5656 + $0xa4] sm:$0x1] %v5757
        %v5759 = vld [vmem:[%s5656 + $0xa8] sm:$0xf]
        %v5760 = vsel %vm5658, %v5580, %v5759
        %5761 = vst [vmem:[%s5656 + $0xa8] sm:$0xf] %v5760
        %5762 = vst.msk [vmem:[%s5656 + $0xac] sm:$0xf] %vm5248, %v5589
        %v5763 = vld [vmem:[%s5656 + $0xb0] sm:$0x1]
        %v5764 = vsel %vm5664, %v5590, %v5763
        %5765 = vst [vmem:[%s5656 + $0xb0] sm:$0x1] %v5764
        %v5766 = vld [vmem:[%s5656 + $0xb4] sm:$0xf]
        %v5767 = vsel %vm5658, %v5597, %v5766
        %5768 = vst [vmem:[%s5656 + $0xb4] sm:$0xf] %v5767
        %5769 = vst.msk [vmem:[%s5656 + $0xb8] sm:$0xf] %vm5248, %v5606
        %v5770 = vld [vmem:[%s5656 + $0xbc] sm:$0x1]
        %v5771 = vsel %vm5664, %v5607, %v5770
        %5772 = vst [vmem:[%s5656 + $0xbc] sm:$0x1] %v5771
        %v5773 = vld [vmem:[#allocation5] sm:$0xf]
        %v5774 = vld [vmem:[#allocation5 + $0x4] sm:$0xf]
        %v5775 = vld [vmem:[#allocation5 + $0x8] sm:$0x1]
        %v5776 = vld [vmem:[#allocation5 + $0xc] sm:$0xf]
        %v5777 = vld [vmem:[#allocation5 + $0x10] sm:$0xf]
        %v5778 = vld [vmem:[#allocation5 + $0x14] sm:$0x1]
        %v5779 = vld [vmem:[#allocation5 + $0x18] sm:$0xf]
        %v5780 = vld [vmem:[#allocation5 + $0x1c] sm:$0xf]
        %v5781 = vld [vmem:[#allocation5 + $0x20] sm:$0x1]
        %v5782 = vld [vmem:[#allocation5 + $0x24] sm:$0xf]
        %v5783 = vld [vmem:[#allocation5 + $0x28] sm:$0xf]
        %v5784 = vld [vmem:[#allocation5 + $0x2c] sm:$0x1]
        %v5785 = vld [vmem:[#allocation5 + $0x30] sm:$0xf]
        %v5786 = vld [vmem:[#allocation5 + $0x34] sm:$0xf]
        %v5787 = vld [vmem:[#allocation5 + $0x38] sm:$0x1]
        %v5788 = vld [vmem:[#allocation5 + $0x3c] sm:$0xf]
        %v5789 = vld [vmem:[#allocation5 + $0x40] sm:$0xf]
        %v5790 = vld [vmem:[#allocation5 + $0x44] sm:$0x1]
        %v5791 = vld [vmem:[#allocation5 + $0x48] sm:$0xf]
        %v5792 = vld [vmem:[#allocation5 + $0x4c] sm:$0xf]
        %v5793 = vld [vmem:[#allocation5 + $0x50] sm:$0x1]
        %v5794 = vld [vmem:[#allocation5 + $0x54] sm:$0xf]
        %v5795 = vld [vmem:[#allocation5 + $0x58] sm:$0xf]
        %v5796 = vld [vmem:[#allocation5 + $0x5c] sm:$0x1]
        %v5797 = vld [vmem:[#allocation5 + $0x60] sm:$0xf]
        %v5798 = vld [vmem:[#allocation5 + $0x64] sm:$0xf]
        %v5799 = vld [vmem:[#allocation5 + $0x68] sm:$0x1]
        %v5800 = vld [vmem:[#allocation5 + $0x6c] sm:$0xf]
        %v5801 = vld [vmem:[#allocation5 + $0x70] sm:$0xf]
        %v5802 = vld [vmem:[#allocation5 + $0x74] sm:$0x1]
        %v5803 = vld [vmem:[#allocation5 + $0x78] sm:$0xf]
        %v5804 = vld [vmem:[#allocation5 + $0x7c] sm:$0xf]
        %v5805 = vld [vmem:[#allocation5 + $0x80] sm:$0x1]
        %v5806 = vld [vmem:[#allocation5 + $0x84] sm:$0xf]
        %v5807 = vld [vmem:[#allocation5 + $0x88] sm:$0xf]
        %v5808 = vld [vmem:[#allocation5 + $0x8c] sm:$0x1]
        %v5809 = vld [vmem:[#allocation5 + $0x90] sm:$0xf]
        %v5810 = vld [vmem:[#allocation5 + $0x94] sm:$0xf]
        %v5811 = vld [vmem:[#allocation5 + $0x98] sm:$0x1]
        %v5812 = vld [vmem:[#allocation5 + $0x9c] sm:$0xf]
        %v5813 = vld [vmem:[#allocation5 + $0xa0] sm:$0xf]
        %v5814 = vld [vmem:[#allocation5 + $0xa4] sm:$0x1]
        %v5815 = vld [vmem:[#allocation5 + $0xa8] sm:$0xf]
        %v5816 = vld [vmem:[#allocation5 + $0xac] sm:$0xf]
        %v5817 = vld [vmem:[#allocation5 + $0xb0] sm:$0x1]
        %v5818 = vld [vmem:[#allocation5 + $0xb4] sm:$0xf]
        %v5819 = vld [vmem:[#allocation5 + $0xb8] sm:$0xf]
        %v5820 = vld [vmem:[#allocation5 + $0xbc] sm:$0x1]
        %v5821 = vld [vmem:[#allocation5 + $0xc0] sm:$0xf]
        %v5822 = vld [vmem:[#allocation5 + $0xc4] sm:$0xf]
        %v5823 = vld [vmem:[#allocation5 + $0xc8] sm:$0x1]
        %v5824 = vld [vmem:[#allocation5 + $0xcc] sm:$0xf]
        %v5825 = vld [vmem:[#allocation5 + $0xd0] sm:$0xf]
        %v5826 = vld [vmem:[#allocation5 + $0xd4] sm:$0x1]
        %v5863 = vunpack.c.l.b16 %v5773
        %v5864 = vunpack.c.l.b16 %v5774
        %v5865 = vunpack.c.l.b16 %v5776
        %v5866 = vunpack.c.l.b16 %v5777
        %v5867 = vunpack.c.l.b16 %v5779
        %v5868 = vunpack.c.l.b16 %v5780
        %v5869 = vunpack.c.l.b16 %v5782
        %v5870 = vunpack.c.l.b16 %v5783
        %v5871 = vunpack.c.l.b16 %v5785
        %v5872 = vunpack.c.l.b16 %v5786
        %v5873 = vunpack.c.l.b16 %v5788
        %v5874 = vunpack.c.l.b16 %v5789
        %v5875 = vunpack.c.l.b16 %v5791
        %v5876 = vunpack.c.l.b16 %v5792
        %v5877 = vunpack.c.l.b16 %v5794
        %v5878 = vunpack.c.l.b16 %v5795
        %v5879 = vunpack.c.l.b16 %v5797
        %v5880 = vunpack.c.l.b16 %v5798
        %v5881 = vunpack.c.l.b16 %v5800
        %v5882 = vunpack.c.l.b16 %v5801
        %v5883 = vunpack.c.l.b16 %v5803
        %v5884 = vunpack.c.l.b16 %v5804
        %v5885 = vunpack.c.l.b16 %v5806
        %v5886 = vunpack.c.l.b16 %v5807
        %v5887 = vunpack.c.l.b16 %v5809
        %v5888 = vunpack.c.l.b16 %v5810
        %v5889 = vunpack.c.l.b16 %v5812
        %v5890 = vunpack.c.l.b16 %v5813
        %v5891 = vunpack.c.l.b16 %v5815
        %v5892 = vunpack.c.l.b16 %v5816
        %v5893 = vunpack.c.l.b16 %v5818
        %v5894 = vunpack.c.l.b16 %v5819
        %v5895 = vunpack.c.l.b16 %v5821
        %v5896 = vunpack.c.l.b16 %v5822
        %v5897 = vunpack.c.l.b16 %v5824
        %v5898 = vunpack.c.l.b16 %v5825
        %v5899 = vpack.c.b16 %v5864, %v5863
        %v5900 = vpack.c.b16 %v5866, %v5865
        %v5901 = vpack.c.b16 %v5868, %v5867
        %v5902 = vpack.c.b16 %v5870, %v5869
        %v5903 = vpack.c.b16 %v5872, %v5871
        %v5904 = vpack.c.b16 %v5874, %v5873
        %v5905 = vpack.c.b16 %v5876, %v5875
        %v5906 = vpack.c.b16 %v5878, %v5877
        %v5907 = vpack.c.b16 %v5880, %v5879
        %v5908 = vpack.c.b16 %v5882, %v5881
        %v5909 = vpack.c.b16 %v5884, %v5883
        %v5910 = vpack.c.b16 %v5886, %v5885
        %v5911 = vpack.c.b16 %v5888, %v5887
        %v5912 = vpack.c.b16 %v5890, %v5889
        %v5913 = vpack.c.b16 %v5892, %v5891
        %v5914 = vpack.c.b16 %v5894, %v5893
        %v5915 = vpack.c.b16 %v5896, %v5895
        %v5916 = vpack.c.b16 %v5898, %v5897
        %v5935 = vunpack.c.l.b16 %v5775
        %v5936 = vunpack.c.l.b16 %v5778
        %v5937 = vunpack.c.l.b16 %v5781
        %v5938 = vunpack.c.l.b16 %v5784
        %v5939 = vunpack.c.l.b16 %v5787
        %v5940 = vunpack.c.l.b16 %v5790
        %v5941 = vunpack.c.l.b16 %v5793
        %v5942 = vunpack.c.l.b16 %v5796
        %v5943 = vunpack.c.l.b16 %v5799
        %v5944 = vunpack.c.l.b16 %v5802
        %v5945 = vunpack.c.l.b16 %v5805
        %v5946 = vunpack.c.l.b16 %v5808
        %v5947 = vunpack.c.l.b16 %v5811
        %v5948 = vunpack.c.l.b16 %v5814
        %v5949 = vunpack.c.l.b16 %v5817
        %v5950 = vunpack.c.l.b16 %v5820
        %v5951 = vunpack.c.l.b16 %v5823
        %v5952 = vunpack.c.l.b16 %v5826
        %v5953 = vpack.c.b16 %v5935, %v5935
        %v5954 = vpack.c.b16 %v5936, %v5936
        %v5955 = vpack.c.b16 %v5937, %v5937
        %v5956 = vpack.c.b16 %v5938, %v5938
        %v5957 = vpack.c.b16 %v5939, %v5939
        %v5958 = vpack.c.b16 %v5940, %v5940
        %v5959 = vpack.c.b16 %v5941, %v5941
        %v5960 = vpack.c.b16 %v5942, %v5942
        %v5961 = vpack.c.b16 %v5943, %v5943
        %v5962 = vpack.c.b16 %v5944, %v5944
        %v5963 = vpack.c.b16 %v5945, %v5945
        %v5964 = vpack.c.b16 %v5946, %v5946
        %v5965 = vpack.c.b16 %v5947, %v5947
        %v5966 = vpack.c.b16 %v5948, %v5948
        %v5967 = vpack.c.b16 %v5949, %v5949
        %v5968 = vpack.c.b16 %v5950, %v5950
        %v5969 = vpack.c.b16 %v5951, %v5951
        %v5970 = vpack.c.b16 %v5952, %v5952
        %v5972 = vshrl.u32 %v5899, 16
        %v5974 = vshll.u32 %v5899, 16
        %v5976 = vrot.slane %v5974, 1
        %v5977 = vor.u32 %v5972, %v5976
        %v5979 = vshll.u32 %v5953, 16
        %v5981 = vrot.slane %v5979, 1
        %v5982 = vsel %vm3037, %v5977, %v5981
        %v5984 = vshrl.u32 %v5900, 16
        %v5986 = vshll.u32 %v5900, 16
        %v5988 = vrot.slane %v5986, 1
        %v5989 = vor.u32 %v5984, %v5988
        %v5991 = vshll.u32 %v5954, 16
        %v5993 = vrot.slane %v5991, 1
        %v5994 = vsel %vm3037, %v5989, %v5993
        %v5996 = vshrl.u32 %v5901, 16
        %v5998 = vshll.u32 %v5901, 16
        %v6000 = vrot.slane %v5998, 1
        %v6001 = vor.u32 %v5996, %v6000
        %v6003 = vshll.u32 %v5955, 16
        %v6005 = vrot.slane %v6003, 1
        %v6006 = vsel %vm3037, %v6001, %v6005
        %v6008 = vshrl.u32 %v5902, 16
        %v6010 = vshll.u32 %v5902, 16
        %v6012 = vrot.slane %v6010, 1
        %v6013 = vor.u32 %v6008, %v6012
        %v6015 = vshll.u32 %v5956, 16
        %v6017 = vrot.slane %v6015, 1
        %v6018 = vsel %vm3037, %v6013, %v6017
        %v6020 = vshrl.u32 %v5903, 16
        %v6022 = vshll.u32 %v5903, 16
        %v6024 = vrot.slane %v6022, 1
        %v6025 = vor.u32 %v6020, %v6024
        %v6027 = vshll.u32 %v5957, 16
        %v6029 = vrot.slane %v6027, 1
        %v6030 = vsel %vm3037, %v6025, %v6029
        %v6032 = vshrl.u32 %v5904, 16
        %v6034 = vshll.u32 %v5904, 16
        %v6036 = vrot.slane %v6034, 1
        %v6037 = vor.u32 %v6032, %v6036
        %v6039 = vshll.u32 %v5958, 16
        %v6041 = vrot.slane %v6039, 1
        %v6042 = vsel %vm3037, %v6037, %v6041
        %v6044 = vshrl.u32 %v5905, 16
        %v6046 = vshll.u32 %v5905, 16
        %v6048 = vrot.slane %v6046, 1
        %v6049 = vor.u32 %v6044, %v6048
        %v6051 = vshll.u32 %v5959, 16
        %v6053 = vrot.slane %v6051, 1
        %v6054 = vsel %vm3037, %v6049, %v6053
        %v6056 = vshrl.u32 %v5906, 16
        %v6058 = vshll.u32 %v5906, 16
        %v6060 = vrot.slane %v6058, 1
        %v6061 = vor.u32 %v6056, %v6060
        %v6063 = vshll.u32 %v5960, 16
        %v6065 = vrot.slane %v6063, 1
        %v6066 = vsel %vm3037, %v6061, %v6065
        %v6068 = vshrl.u32 %v5907, 16
        %v6070 = vshll.u32 %v5907, 16
        %v6072 = vrot.slane %v6070, 1
        %v6073 = vor.u32 %v6068, %v6072
        %v6075 = vshll.u32 %v5961, 16
        %v6077 = vrot.slane %v6075, 1
        %v6078 = vsel %vm3037, %v6073, %v6077
        %v6080 = vshrl.u32 %v5908, 16
        %v6082 = vshll.u32 %v5908, 16
        %v6084 = vrot.slane %v6082, 1
        %v6085 = vor.u32 %v6080, %v6084
        %v6087 = vshll.u32 %v5962, 16
        %v6089 = vrot.slane %v6087, 1
        %v6090 = vsel %vm3037, %v6085, %v6089
        %v6092 = vshrl.u32 %v5909, 16
        %v6094 = vshll.u32 %v5909, 16
        %v6096 = vrot.slane %v6094, 1
        %v6097 = vor.u32 %v6092, %v6096
        %v6099 = vshll.u32 %v5963, 16
        %v6101 = vrot.slane %v6099, 1
        %v6102 = vsel %vm3037, %v6097, %v6101
        %v6104 = vshrl.u32 %v5910, 16
        %v6106 = vshll.u32 %v5910, 16
        %v6108 = vrot.slane %v6106, 1
        %v6109 = vor.u32 %v6104, %v6108
        %v6111 = vshll.u32 %v5964, 16
        %v6113 = vrot.slane %v6111, 1
        %v6114 = vsel %vm3037, %v6109, %v6113
        %v6116 = vshrl.u32 %v5911, 16
        %v6118 = vshll.u32 %v5911, 16
        %v6120 = vrot.slane %v6118, 1
        %v6121 = vor.u32 %v6116, %v6120
        %v6123 = vshll.u32 %v5965, 16
        %v6125 = vrot.slane %v6123, 1
        %v6126 = vsel %vm3037, %v6121, %v6125
        %v6128 = vshrl.u32 %v5912, 16
        %v6130 = vshll.u32 %v5912, 16
        %v6132 = vrot.slane %v6130, 1
        %v6133 = vor.u32 %v6128, %v6132
        %v6135 = vshll.u32 %v5966, 16
        %v6137 = vrot.slane %v6135, 1
        %v6138 = vsel %vm3037, %v6133, %v6137
        %v6140 = vshrl.u32 %v5913, 16
        %v6142 = vshll.u32 %v5913, 16
        %v6144 = vrot.slane %v6142, 1
        %v6145 = vor.u32 %v6140, %v6144
        %v6147 = vshll.u32 %v5967, 16
        %v6149 = vrot.slane %v6147, 1
        %v6150 = vsel %vm3037, %v6145, %v6149
        %v6152 = vshrl.u32 %v5914, 16
        %v6154 = vshll.u32 %v5914, 16
        %v6156 = vrot.slane %v6154, 1
        %v6157 = vor.u32 %v6152, %v6156
        %v6159 = vshll.u32 %v5968, 16
        %v6161 = vrot.slane %v6159, 1
        %v6162 = vsel %vm3037, %v6157, %v6161
        %v6164 = vshrl.u32 %v5915, 16
        %v6166 = vshll.u32 %v5915, 16
        %v6168 = vrot.slane %v6166, 1
        %v6169 = vor.u32 %v6164, %v6168
        %v6171 = vshll.u32 %v5969, 16
        %v6173 = vrot.slane %v6171, 1
        %v6174 = vsel %vm3037, %v6169, %v6173
        %v6176 = vshrl.u32 %v5916, 16
        %v6178 = vshll.u32 %v5916, 16
        %v6180 = vrot.slane %v6178, 1
        %v6181 = vor.u32 %v6176, %v6180
        %v6183 = vshll.u32 %v5970, 16
        %v6185 = vrot.slane %v6183, 1
        %v6186 = vsel %vm3037, %v6181, %v6185
        %6187 = vrot.lane.b32.xlu0 %v5982, 8
        %v6188 = vpop.permute.xlu0 %6187
        %6189 = vrot.lane.b32.xlu0 %v5994, 8
        %v6190 = vpop.permute.xlu0 %6189
        %6191 = vrot.lane.b32.xlu0 %v6006, 8
        %v6192 = vpop.permute.xlu0 %6191
        %6193 = vrot.lane.b32.xlu0 %v6018, 8
        %v6194 = vpop.permute.xlu0 %6193
        %6195 = vrot.lane.b32.xlu0 %v6030, 8
        %v6196 = vpop.permute.xlu0 %6195
        %6197 = vrot.lane.b32.xlu0 %v6042, 8
        %v6198 = vpop.permute.xlu0 %6197
        %6199 = vrot.lane.b32.xlu0 %v6054, 8
        %v6200 = vpop.permute.xlu0 %6199
        %6201 = vrot.lane.b32.xlu0 %v6066, 8
        %v6202 = vpop.permute.xlu0 %6201
        %6203 = vrot.lane.b32.xlu0 %v6078, 8
        %v6204 = vpop.permute.xlu0 %6203
        %6205 = vrot.lane.b32.xlu0 %v6090, 8
        %v6206 = vpop.permute.xlu0 %6205
        %6207 = vrot.lane.b32.xlu0 %v6102, 8
        %v6208 = vpop.permute.xlu0 %6207
        %6209 = vrot.lane.b32.xlu0 %v6114, 8
        %v6210 = vpop.permute.xlu0 %6209
        %6211 = vrot.lane.b32.xlu0 %v6126, 8
        %v6212 = vpop.permute.xlu0 %6211
        %6213 = vrot.lane.b32.xlu0 %v6138, 8
        %v6214 = vpop.permute.xlu0 %6213
        %6215 = vrot.lane.b32.xlu0 %v6150, 8
        %v6216 = vpop.permute.xlu0 %6215
        %6217 = vrot.lane.b32.xlu0 %v6162, 8
        %v6218 = vpop.permute.xlu0 %6217
        %6219 = vrot.lane.b32.xlu0 %v6174, 8
        %v6220 = vpop.permute.xlu0 %6219
        %6221 = vrot.lane.b32.xlu0 %v6186, 8
        %v6222 = vpop.permute.xlu0 %6221
        %v6223 = vrot.slane %v5899, 1
        %v6224 = vrot.slane %v5953, 1
        %v6225 = vsel %vm3290, %v6223, %v6224
        %v6226 = vrot.slane %v5900, 1
        %v6227 = vrot.slane %v5954, 1
        %v6228 = vsel %vm3290, %v6226, %v6227
        %v6229 = vrot.slane %v5901, 1
        %v6230 = vrot.slane %v5955, 1
        %v6231 = vsel %vm3290, %v6229, %v6230
        %v6232 = vrot.slane %v5902, 1
        %v6233 = vrot.slane %v5956, 1
        %v6234 = vsel %vm3290, %v6232, %v6233
        %v6235 = vrot.slane %v5903, 1
        %v6236 = vrot.slane %v5957, 1
        %v6237 = vsel %vm3290, %v6235, %v6236
        %v6238 = vrot.slane %v5904, 1
        %v6239 = vrot.slane %v5958, 1
        %v6240 = vsel %vm3290, %v6238, %v6239
        %v6241 = vrot.slane %v5905, 1
        %v6242 = vrot.slane %v5959, 1
        %v6243 = vsel %vm3290, %v6241, %v6242
        %v6244 = vrot.slane %v5906, 1
        %v6245 = vrot.slane %v5960, 1
        %v6246 = vsel %vm3290, %v6244, %v6245
        %v6247 = vrot.slane %v5907, 1
        %v6248 = vrot.slane %v5961, 1
        %v6249 = vsel %vm3290, %v6247, %v6248
        %v6250 = vrot.slane %v5908, 1
        %v6251 = vrot.slane %v5962, 1
        %v6252 = vsel %vm3290, %v6250, %v6251
        %v6253 = vrot.slane %v5909, 1
        %v6254 = vrot.slane %v5963, 1
        %v6255 = vsel %vm3290, %v6253, %v6254
        %v6256 = vrot.slane %v5910, 1
        %v6257 = vrot.slane %v5964, 1
        %v6258 = vsel %vm3290, %v6256, %v6257
        %v6259 = vrot.slane %v5911, 1
        %v6260 = vrot.slane %v5965, 1
        %v6261 = vsel %vm3290, %v6259, %v6260
        %v6262 = vrot.slane %v5912, 1
        %v6263 = vrot.slane %v5966, 1
        %v6264 = vsel %vm3290, %v6262, %v6263
        %v6265 = vrot.slane %v5913, 1
        %v6266 = vrot.slane %v5967, 1
        %v6267 = vsel %vm3290, %v6265, %v6266
        %v6268 = vrot.slane %v5914, 1
        %v6269 = vrot.slane %v5968, 1
        %v6270 = vsel %vm3290, %v6268, %v6269
        %v6271 = vrot.slane %v5915, 1
        %v6272 = vrot.slane %v5969, 1
        %v6273 = vsel %vm3290, %v6271, %v6272
        %v6274 = vrot.slane %v5916, 1
        %v6275 = vrot.slane %v5970, 1
        %v6276 = vsel %vm3290, %v6274, %v6275
        %6277 = vrot.lane.b32.xlu0 %v6225, 16
        %v6278 = vpop.permute.xlu0 %6277
        %6279 = vrot.lane.b32.xlu0 %v6228, 16
        %v6280 = vpop.permute.xlu0 %6279
        %6281 = vrot.lane.b32.xlu0 %v6231, 16
        %v6282 = vpop.permute.xlu0 %6281
        %6283 = vrot.lane.b32.xlu0 %v6234, 16
        %v6284 = vpop.permute.xlu0 %6283
        %6285 = vrot.lane.b32.xlu0 %v6237, 16
        %v6286 = vpop.permute.xlu0 %6285
        %6287 = vrot.lane.b32.xlu0 %v6240, 16
        %v6288 = vpop.permute.xlu0 %6287
        %6289 = vrot.lane.b32.xlu0 %v6243, 16
        %v6290 = vpop.permute.xlu0 %6289
        %6291 = vrot.lane.b32.xlu0 %v6246, 16
        %v6292 = vpop.permute.xlu0 %6291
        %6293 = vrot.lane.b32.xlu0 %v6249, 16
        %v6294 = vpop.permute.xlu0 %6293
        %6295 = vrot.lane.b32.xlu0 %v6252, 16
        %v6296 = vpop.permute.xlu0 %6295
        %6297 = vrot.lane.b32.xlu0 %v6255, 16
        %v6298 = vpop.permute.xlu0 %6297
        %6299 = vrot.lane.b32.xlu0 %v6258, 16
        %v6300 = vpop.permute.xlu0 %6299
        %6301 = vrot.lane.b32.xlu0 %v6261, 16
        %v6302 = vpop.permute.xlu0 %6301
        %6303 = vrot.lane.b32.xlu0 %v6264, 16
        %v6304 = vpop.permute.xlu0 %6303
        %6305 = vrot.lane.b32.xlu0 %v6267, 16
        %v6306 = vpop.permute.xlu0 %6305
        %6307 = vrot.lane.b32.xlu0 %v6270, 16
        %v6308 = vpop.permute.xlu0 %6307
        %6309 = vrot.lane.b32.xlu0 %v6273, 16
        %v6310 = vpop.permute.xlu0 %6309
        %6311 = vrot.lane.b32.xlu0 %v6276, 16
        %v6312 = vpop.permute.xlu0 %6311
        %v6314 = vsel %vm3417, %v5899, %v6188
        %v6316 = vsel %vm3417, %v5900, %v6190
        %v6318 = vsel %vm3417, %v5901, %v6192
        %v6320 = vsel %vm3417, %v5902, %v6194
        %v6322 = vsel %vm3417, %v5903, %v6196
        %v6324 = vsel %vm3417, %v5904, %v6198
        %v6326 = vsel %vm3417, %v5905, %v6200
        %v6328 = vsel %vm3417, %v5906, %v6202
        %v6330 = vsel %vm3417, %v5907, %v6204
        %v6332 = vsel %vm3417, %v5908, %v6206
        %v6334 = vsel %vm3417, %v5909, %v6208
        %v6336 = vsel %vm3417, %v5910, %v6210
        %v6338 = vsel %vm3417, %v5911, %v6212
        %v6340 = vsel %vm3417, %v5912, %v6214
        %v6342 = vsel %vm3417, %v5913, %v6216
        %v6344 = vsel %vm3417, %v5914, %v6218
        %v6346 = vsel %vm3417, %v5915, %v6220
        %v6348 = vsel %vm3417, %v5916, %v6222
        %vm6349 = vcmask 130048
        %v6351 = vsel %vm6349, %v6314, %v6278
        %v6353 = vsel %vm6349, %v6316, %v6280
        %v6355 = vsel %vm6349, %v6318, %v6282
        %v6357 = vsel %vm6349, %v6320, %v6284
        %v6359 = vsel %vm6349, %v6322, %v6286
        %v6361 = vsel %vm6349, %v6324, %v6288
        %v6363 = vsel %vm6349, %v6326, %v6290
        %v6365 = vsel %vm6349, %v6328, %v6292
        %v6367 = vsel %vm6349, %v6330, %v6294
        %v6369 = vsel %vm6349, %v6332, %v6296
        %v6371 = vsel %vm6349, %v6334, %v6298
        %v6373 = vsel %vm6349, %v6336, %v6300
        %v6375 = vsel %vm6349, %v6338, %v6302
        %v6377 = vsel %vm6349, %v6340, %v6304
        %v6379 = vsel %vm6349, %v6342, %v6306
        %v6381 = vsel %vm6349, %v6344, %v6308
        %v6383 = vsel %vm6349, %v6346, %v6310
        %v6385 = vsel %vm6349, %v6348, %v6312
        %v6386 = vld [vmem:[%s9] sm:$0xf]
        %v6387 = vld [vmem:[%s9 + $0x4] sm:$0xf]
        %v6388 = vld [vmem:[%s9 + $0x8] sm:$0xf]
        %s6389 = scalar_lea.vmem %s9, 12
        %v6390 = vld [vmem:[%s6389] sm:$0xf]
        %v6391 = vld [vmem:[%s6389 + $0x4] sm:$0xf]
        %v6392 = vld [vmem:[%s6389 + $0x8] sm:$0xf]
        %v6396 = vunpack.c.l.b16 %v6390
        %v6397 = vunpack.c.l.b16 %v6391
        %v6398 = vunpack.c.l.b16 %v6392
        %v6399 = vpack.c.b16 %v6397, %v6396
        %v6400 = vpack.c.b16 %v6398, %v6398
        %vm6402 = vcmask 195584
        %v6403 = vsel %vm6402, %v6353, 0
        %v6405 = vsel %vm6402, %v6355, 0
        %v6407 = vsel %vm6402, %v6357, 0
        %v6409 = vsel %vm6402, %v6359, 0
        %v6411 = vsel %vm6402, %v6361, 0
        %v6413 = vsel %vm6402, %v6363, 0
        %v6415 = vsel %vm6402, %v6365, 0
        %v6417 = vsel %vm6402, %v6367, 0
        %v6419 = vsel %vm6402, %v6369, 0
        %v6421 = vsel %vm6402, %v6371, 0
        %v6423 = vsel %vm6402, %v6373, 0
        %v6425 = vsel %vm6402, %v6375, 0
        %v6427 = vsel %vm6402, %v6377, 0
        %v6429 = vsel %vm6402, %v6379, 0
        %v6431 = vsel %vm6402, %v6381, 0
        %v6433 = vsel %vm6402, %v6383, 0
        %vm6435 = vcmask 1043456
        %v6437 = vsel %vm6435, %v6400, 0
        %6439 = vmatpush.bf16.msra.mxu0 0
        %6440 = vmatpush.bf16.msra.mxu0 0
        %6441 = vmatpush.bf16.msra.mxu0 0
        %6442 = vmatpush.bf16.msra.mxu0 0
        %6443 = vmatpush.bf16.msra.mxu0 0
        %6444 = vmatpush.bf16.msra.mxu0 0
        %6445 = vmatpush.bf16.msra.mxu0 %v6437
        %6446 = vmatpush.bf16.msra.mxu0 %v6399
        %6447 = vmatmul.bf16.gmra.mxu0 %v6403
        %v6448 = vpop.f32.mrf.mxu0
        %v6449 = vadd.f32 0.0, %v6448
        %v6450 = vpop.f32.mrf.mxu0
        %v6451 = vadd.f32 0.0, %v6450
        %6452 = vmatmul.bf16.gmra.mxu0 %v6405
        %v6453 = vpop.f32.mrf.mxu0
        %v6454 = vadd.f32 0.0, %v6453
        %v6455 = vpop.f32.mrf.mxu0
        %v6456 = vadd.f32 0.0, %v6455
        %6457 = vmatmul.bf16.gmra.mxu0 %v6407
        %v6458 = vpop.f32.mrf.mxu0
        %v6459 = vadd.f32 0.0, %v6458
        %v6460 = vpop.f32.mrf.mxu0
        %v6461 = vadd.f32 0.0, %v6460
        %6462 = vmatmul.bf16.gmra.mxu0 %v6409
        %v6463 = vpop.f32.mrf.mxu0
        %v6464 = vadd.f32 0.0, %v6463
        %v6465 = vpop.f32.mrf.mxu0
        %v6466 = vadd.f32 0.0, %v6465
        %6467 = vmatmul.bf16.gmra.mxu0 %v6411
        %v6468 = vpop.f32.mrf.mxu0
        %v6469 = vadd.f32 0.0, %v6468
        %v6470 = vpop.f32.mrf.mxu0
        %v6471 = vadd.f32 0.0, %v6470
        %6472 = vmatmul.bf16.gmra.mxu0 %v6413
        %v6473 = vpop.f32.mrf.mxu0
        %v6474 = vadd.f32 0.0, %v6473
        %v6475 = vpop.f32.mrf.mxu0
        %v6476 = vadd.f32 0.0, %v6475
        %6477 = vmatmul.bf16.gmra.mxu0 %v6415
        %v6478 = vpop.f32.mrf.mxu0
        %v6479 = vadd.f32 0.0, %v6478
        %v6480 = vpop.f32.mrf.mxu0
        %v6481 = vadd.f32 0.0, %v6480
        %6482 = vmatmul.bf16.gmra.mxu0 %v6417
        %v6483 = vpop.f32.mrf.mxu0
        %v6484 = vadd.f32 0.0, %v6483
        %v6485 = vpop.f32.mrf.mxu0
        %v6486 = vadd.f32 0.0, %v6485
        %6487 = vmatmul.bf16.gmra.mxu0 %v6419
        %v6488 = vpop.f32.mrf.mxu0
        %v6489 = vadd.f32 0.0, %v6488
        %v6490 = vpop.f32.mrf.mxu0
        %v6491 = vadd.f32 0.0, %v6490
        %6492 = vmatmul.bf16.gmra.mxu0 %v6421
        %v6493 = vpop.f32.mrf.mxu0
        %v6494 = vadd.f32 0.0, %v6493
        %v6495 = vpop.f32.mrf.mxu0
        %v6496 = vadd.f32 0.0, %v6495
        %6497 = vmatmul.bf16.gmra.mxu0 %v6423
        %v6498 = vpop.f32.mrf.mxu0
        %v6499 = vadd.f32 0.0, %v6498
        %v6500 = vpop.f32.mrf.mxu0
        %v6501 = vadd.f32 0.0, %v6500
        %6502 = vmatmul.bf16.gmra.mxu0 %v6425
        %v6503 = vpop.f32.mrf.mxu0
        %v6504 = vadd.f32 0.0, %v6503
        %v6505 = vpop.f32.mrf.mxu0
        %v6506 = vadd.f32 0.0, %v6505
        %6507 = vmatmul.bf16.gmra.mxu0 %v6427
        %v6508 = vpop.f32.mrf.mxu0
        %v6509 = vadd.f32 0.0, %v6508
        %v6510 = vpop.f32.mrf.mxu0
        %v6511 = vadd.f32 0.0, %v6510
        %6512 = vmatmul.bf16.gmra.mxu0 %v6429
        %v6513 = vpop.f32.mrf.mxu0
        %v6514 = vadd.f32 0.0, %v6513
        %v6515 = vpop.f32.mrf.mxu0
        %v6516 = vadd.f32 0.0, %v6515
        %6517 = vmatmul.bf16.gmra.mxu0 %v6431
        %v6518 = vpop.f32.mrf.mxu0
        %v6519 = vadd.f32 0.0, %v6518
        %v6520 = vpop.f32.mrf.mxu0
        %v6521 = vadd.f32 0.0, %v6520
        %6522 = vmatmul.bf16.gmra.mxu0 %v6433
        %v6523 = vpop.f32.mrf.mxu0
        %v6524 = vadd.f32 0.0, %v6523
        %v6525 = vpop.f32.mrf.mxu0
        %v6526 = vadd.f32 0.0, %v6525
        %6527 = vdwg.mxu0
        %v6531 = vunpack.c.l.b16 %v6386
        %v6532 = vunpack.c.l.b16 %v6387
        %v6533 = vunpack.c.l.b16 %v6388
        %v6534 = vpack.c.b16 %v6532, %v6531
        %v6535 = vpack.c.b16 %v6533, %v6533
        %v6537 = vsel %vm6402, %v6351, 0
        %v6540 = vsel %vm6435, %v6535, 0
        %6542 = vmatpush.bf16.msra.mxu0 0
        %6543 = vmatpush.bf16.msra.mxu0 0
        %6544 = vmatpush.bf16.msra.mxu0 0
        %6545 = vmatpush.bf16.msra.mxu0 0
        %6546 = vmatpush.bf16.msra.mxu0 0
        %6547 = vmatpush.bf16.msra.mxu0 0
        %6548 = vmatpush.bf16.msra.mxu0 %v6540
        %6549 = vmatpush.bf16.msra.mxu0 %v6534
        %6550 = vmatmul.bf16.gmra.mxu0 %v6537
        %v6551 = vpop.f32.mrf.mxu0
        %v6552 = vadd.f32 %v6449, %v6551
        %v6553 = vpop.f32.mrf.mxu0
        %v6554 = vadd.f32 %v6451, %v6553
        %6555 = vmatmul.bf16.gmra.mxu0 %v6403
        %v6556 = vpop.f32.mrf.mxu0
        %v6557 = vadd.f32 %v6454, %v6556
        %v6558 = vpop.f32.mrf.mxu0
        %v6559 = vadd.f32 %v6456, %v6558
        %6560 = vmatmul.bf16.gmra.mxu0 %v6405
        %v6561 = vpop.f32.mrf.mxu0
        %v6562 = vadd.f32 %v6459, %v6561
        %v6563 = vpop.f32.mrf.mxu0
        %v6564 = vadd.f32 %v6461, %v6563
        %6565 = vmatmul.bf16.gmra.mxu0 %v6407
        %v6566 = vpop.f32.mrf.mxu0
        %v6567 = vadd.f32 %v6464, %v6566
        %v6568 = vpop.f32.mrf.mxu0
        %v6569 = vadd.f32 %v6466, %v6568
        %6570 = vmatmul.bf16.gmra.mxu0 %v6409
        %v6571 = vpop.f32.mrf.mxu0
        %v6572 = vadd.f32 %v6469, %v6571
        %v6573 = vpop.f32.mrf.mxu0
        %v6574 = vadd.f32 %v6471, %v6573
        %6575 = vmatmul.bf16.gmra.mxu0 %v6411
        %v6576 = vpop.f32.mrf.mxu0
        %v6577 = vadd.f32 %v6474, %v6576
        %v6578 = vpop.f32.mrf.mxu0
        %v6579 = vadd.f32 %v6476, %v6578
        %6580 = vmatmul.bf16.gmra.mxu0 %v6413
        %v6581 = vpop.f32.mrf.mxu0
        %v6582 = vadd.f32 %v6479, %v6581
        %v6583 = vpop.f32.mrf.mxu0
        %v6584 = vadd.f32 %v6481, %v6583
        %6585 = vmatmul.bf16.gmra.mxu0 %v6415
        %v6586 = vpop.f32.mrf.mxu0
        %v6587 = vadd.f32 %v6484, %v6586
        %v6588 = vpop.f32.mrf.mxu0
        %v6589 = vadd.f32 %v6486, %v6588
        %6590 = vmatmul.bf16.gmra.mxu0 %v6417
        %v6591 = vpop.f32.mrf.mxu0
        %v6592 = vadd.f32 %v6489, %v6591
        %v6593 = vpop.f32.mrf.mxu0
        %v6594 = vadd.f32 %v6491, %v6593
        %6595 = vmatmul.bf16.gmra.mxu0 %v6419
        %v6596 = vpop.f32.mrf.mxu0
        %v6597 = vadd.f32 %v6494, %v6596
        %v6598 = vpop.f32.mrf.mxu0
        %v6599 = vadd.f32 %v6496, %v6598
        %6600 = vmatmul.bf16.gmra.mxu0 %v6421
        %v6601 = vpop.f32.mrf.mxu0
        %v6602 = vadd.f32 %v6499, %v6601
        %v6603 = vpop.f32.mrf.mxu0
        %v6604 = vadd.f32 %v6501, %v6603
        %6605 = vmatmul.bf16.gmra.mxu0 %v6423
        %v6606 = vpop.f32.mrf.mxu0
        %v6607 = vadd.f32 %v6504, %v6606
        %v6608 = vpop.f32.mrf.mxu0
        %v6609 = vadd.f32 %v6506, %v6608
        %6610 = vmatmul.bf16.gmra.mxu0 %v6425
        %v6611 = vpop.f32.mrf.mxu0
        %v6612 = vadd.f32 %v6509, %v6611
        %v6613 = vpop.f32.mrf.mxu0
        %v6614 = vadd.f32 %v6511, %v6613
        %6615 = vmatmul.bf16.gmra.mxu0 %v6427
        %v6616 = vpop.f32.mrf.mxu0
        %v6617 = vadd.f32 %v6514, %v6616
        %v6618 = vpop.f32.mrf.mxu0
        %v6619 = vadd.f32 %v6516, %v6618
        %6620 = vmatmul.bf16.gmra.mxu0 %v6429
        %v6621 = vpop.f32.mrf.mxu0
        %v6622 = vadd.f32 %v6519, %v6621
        %v6623 = vpop.f32.mrf.mxu0
        %v6624 = vadd.f32 %v6521, %v6623
        %6625 = vmatmul.bf16.gmra.mxu0 %v6431
        %v6626 = vpop.f32.mrf.mxu0
        %v6627 = vadd.f32 %v6524, %v6626
        %v6628 = vpop.f32.mrf.mxu0
        %v6629 = vadd.f32 %v6526, %v6628
        %6630 = vdwg.mxu0
        %s6631 = scalar_lea.vmem %s9, 24
        %v6632 = vld [vmem:[%s6631] sm:$0xf]
        %v6633 = vld [vmem:[%s6631 + $0x4] sm:$0xf]
        %v6634 = vld [vmem:[%s6631 + $0x8] sm:$0xf]
        %v6638 = vunpack.c.l.b16 %v6632
        %v6639 = vunpack.c.l.b16 %v6633
        %v6640 = vunpack.c.l.b16 %v6634
        %v6641 = vpack.c.b16 %v6639, %v6638
        %v6642 = vpack.c.b16 %v6640, %v6640
        %v6644 = vsel %vm6402, %v6385, 0
        %v6647 = vsel %vm6435, %v6642, 0
        %6649 = vmatpush.bf16.msra.mxu0 0
        %6650 = vmatpush.bf16.msra.mxu0 0
        %6651 = vmatpush.bf16.msra.mxu0 0
        %6652 = vmatpush.bf16.msra.mxu0 0
        %6653 = vmatpush.bf16.msra.mxu0 0
        %6654 = vmatpush.bf16.msra.mxu0 0
        %6655 = vmatpush.bf16.msra.mxu0 %v6647
        %6656 = vmatpush.bf16.msra.mxu0 %v6641
        %6657 = vmatmul.bf16.gmra.mxu0 %v6405
        %v6658 = vpop.f32.mrf.mxu0
        %v6659 = vadd.f32 0.0, %v6658
        %v6660 = vpop.f32.mrf.mxu0
        %v6661 = vadd.f32 0.0, %v6660
        %6662 = vmatmul.bf16.gmra.mxu0 %v6407
        %v6663 = vpop.f32.mrf.mxu0
        %v6664 = vadd.f32 0.0, %v6663
        %v6665 = vpop.f32.mrf.mxu0
        %v6666 = vadd.f32 0.0, %v6665
        %6667 = vmatmul.bf16.gmra.mxu0 %v6409
        %v6668 = vpop.f32.mrf.mxu0
        %v6669 = vadd.f32 0.0, %v6668
        %v6670 = vpop.f32.mrf.mxu0
        %v6671 = vadd.f32 0.0, %v6670
        %6672 = vmatmul.bf16.gmra.mxu0 %v6411
        %v6673 = vpop.f32.mrf.mxu0
        %v6674 = vadd.f32 0.0, %v6673
        %v6675 = vpop.f32.mrf.mxu0
        %v6676 = vadd.f32 0.0, %v6675
        %6677 = vmatmul.bf16.gmra.mxu0 %v6413
        %v6678 = vpop.f32.mrf.mxu0
        %v6679 = vadd.f32 0.0, %v6678
        %v6680 = vpop.f32.mrf.mxu0
        %v6681 = vadd.f32 0.0, %v6680
        %6682 = vmatmul.bf16.gmra.mxu0 %v6415
        %v6683 = vpop.f32.mrf.mxu0
        %v6684 = vadd.f32 0.0, %v6683
        %v6685 = vpop.f32.mrf.mxu0
        %v6686 = vadd.f32 0.0, %v6685
        %6687 = vmatmul.bf16.gmra.mxu0 %v6417
        %v6688 = vpop.f32.mrf.mxu0
        %v6689 = vadd.f32 0.0, %v6688
        %v6690 = vpop.f32.mrf.mxu0
        %v6691 = vadd.f32 0.0, %v6690
        %6692 = vmatmul.bf16.gmra.mxu0 %v6419
        %v6693 = vpop.f32.mrf.mxu0
        %v6694 = vadd.f32 0.0, %v6693
        %v6695 = vpop.f32.mrf.mxu0
        %v6696 = vadd.f32 0.0, %v6695
        %6697 = vmatmul.bf16.gmra.mxu0 %v6421
        %v6698 = vpop.f32.mrf.mxu0
        %v6699 = vadd.f32 0.0, %v6698
        %v6700 = vpop.f32.mrf.mxu0
        %v6701 = vadd.f32 0.0, %v6700
        %6702 = vmatmul.bf16.gmra.mxu0 %v6423
        %v6703 = vpop.f32.mrf.mxu0
        %v6704 = vadd.f32 0.0, %v6703
        %v6705 = vpop.f32.mrf.mxu0
        %v6706 = vadd.f32 0.0, %v6705
        %6707 = vmatmul.bf16.gmra.mxu0 %v6425
        %v6708 = vpop.f32.mrf.mxu0
        %v6709 = vadd.f32 0.0, %v6708
        %v6710 = vpop.f32.mrf.mxu0
        %v6711 = vadd.f32 0.0, %v6710
        %6712 = vmatmul.bf16.gmra.mxu0 %v6427
        %v6713 = vpop.f32.mrf.mxu0
        %v6714 = vadd.f32 0.0, %v6713
        %v6715 = vpop.f32.mrf.mxu0
        %v6716 = vadd.f32 0.0, %v6715
        %6717 = vmatmul.bf16.gmra.mxu0 %v6429
        %v6718 = vpop.f32.mrf.mxu0
        %v6719 = vadd.f32 0.0, %v6718
        %v6720 = vpop.f32.mrf.mxu0
        %v6721 = vadd.f32 0.0, %v6720
        %6722 = vmatmul.bf16.gmra.mxu0 %v6431
        %v6723 = vpop.f32.mrf.mxu0
        %v6724 = vadd.f32 0.0, %v6723
        %v6725 = vpop.f32.mrf.mxu0
        %v6726 = vadd.f32 0.0, %v6725
        %6727 = vmatmul.bf16.gmra.mxu0 %v6433
        %v6728 = vpop.f32.mrf.mxu0
        %v6729 = vadd.f32 0.0, %v6728
        %v6730 = vpop.f32.mrf.mxu0
        %v6731 = vadd.f32 0.0, %v6730
        %6732 = vmatmul.bf16.gmra.mxu0 %v6644
        %v6733 = vpop.f32.mrf.mxu0
        %v6734 = vadd.f32 0.0, %v6733
        %v6735 = vpop.f32.mrf.mxu0
        %v6736 = vadd.f32 0.0, %v6735
        %6737 = vdwg.mxu0
        %v6738 = vadd.f32 %v6552, %v6659
        %v6739 = vadd.f32 %v6554, %v6661
        %v6740 = vadd.f32 %v6557, %v6664
        %v6741 = vadd.f32 %v6559, %v6666
        %v6742 = vadd.f32 %v6562, %v6669
        %v6743 = vadd.f32 %v6564, %v6671
        %v6744 = vadd.f32 %v6567, %v6674
        %v6745 = vadd.f32 %v6569, %v6676
        %v6746 = vadd.f32 %v6572, %v6679
        %v6747 = vadd.f32 %v6574, %v6681
        %v6748 = vadd.f32 %v6577, %v6684
        %v6749 = vadd.f32 %v6579, %v6686
        %v6750 = vadd.f32 %v6582, %v6689
        %v6751 = vadd.f32 %v6584, %v6691
        %v6752 = vadd.f32 %v6587, %v6694
        %v6753 = vadd.f32 %v6589, %v6696
        %v6754 = vadd.f32 %v6592, %v6699
        %v6755 = vadd.f32 %v6594, %v6701
        %v6756 = vadd.f32 %v6597, %v6704
        %v6757 = vadd.f32 %v6599, %v6706
        %v6758 = vadd.f32 %v6602, %v6709
        %v6759 = vadd.f32 %v6604, %v6711
        %v6760 = vadd.f32 %v6607, %v6714
        %v6761 = vadd.f32 %v6609, %v6716
        %v6762 = vadd.f32 %v6612, %v6719
        %v6763 = vadd.f32 %v6614, %v6721
        %v6764 = vadd.f32 %v6617, %v6724
        %v6765 = vadd.f32 %v6619, %v6726
        %v6766 = vadd.f32 %v6622, %v6729
        %v6767 = vadd.f32 %v6624, %v6731
        %v6768 = vadd.f32 %v6627, %v6734
        %v6769 = vadd.f32 %v6629, %v6736
        %v6770 = vld [vmem:[%s10] sm:$0x1]
        %v6772 = vperm.slane %v6770, 0
        %v6774 = vadd.f32 %v6738, %v6772
        %v6775 = vadd.f32 %v6739, %v6772
        %v6776 = vadd.f32 %v6740, %v6772
        %v6777 = vadd.f32 %v6741, %v6772
        %v6778 = vadd.f32 %v6742, %v6772
        %v6779 = vadd.f32 %v6743, %v6772
        %v6780 = vadd.f32 %v6744, %v6772
        %v6781 = vadd.f32 %v6745, %v6772
        %v6782 = vadd.f32 %v6746, %v6772
        %v6783 = vadd.f32 %v6747, %v6772
        %v6784 = vadd.f32 %v6748, %v6772
        %v6785 = vadd.f32 %v6749, %v6772
        %v6786 = vadd.f32 %v6750, %v6772
        %v6787 = vadd.f32 %v6751, %v6772
        %v6788 = vadd.f32 %v6752, %v6772
        %v6789 = vadd.f32 %v6753, %v6772
        %v6790 = vadd.f32 %v6754, %v6772
        %v6791 = vadd.f32 %v6755, %v6772
        %v6792 = vadd.f32 %v6756, %v6772
        %v6793 = vadd.f32 %v6757, %v6772
        %v6794 = vadd.f32 %v6758, %v6772
        %v6795 = vadd.f32 %v6759, %v6772
        %v6796 = vadd.f32 %v6760, %v6772
        %v6797 = vadd.f32 %v6761, %v6772
        %v6798 = vadd.f32 %v6762, %v6772
        %v6799 = vadd.f32 %v6763, %v6772
        %v6800 = vadd.f32 %v6764, %v6772
        %v6801 = vadd.f32 %v6765, %v6772
        %v6802 = vadd.f32 %v6766, %v6772
        %v6803 = vadd.f32 %v6767, %v6772
        %v6804 = vadd.f32 %v6768, %v6772
        %v6805 = vadd.f32 %v6769, %v6772
        %v6806 = vmax.f32 %v6774, 0.0
        %v6807 = vmax.f32 %v6775, 0.0
        %v6808 = vmax.f32 %v6776, 0.0
        %v6809 = vmax.f32 %v6777, 0.0
        %v6810 = vmax.f32 %v6778, 0.0
        %v6811 = vmax.f32 %v6779, 0.0
        %v6812 = vmax.f32 %v6780, 0.0
        %v6813 = vmax.f32 %v6781, 0.0
        %v6814 = vmax.f32 %v6782, 0.0
        %v6815 = vmax.f32 %v6783, 0.0
        %v6816 = vmax.f32 %v6784, 0.0
        %v6817 = vmax.f32 %v6785, 0.0
        %v6818 = vmax.f32 %v6786, 0.0
        %v6819 = vmax.f32 %v6787, 0.0
        %v6820 = vmax.f32 %v6788, 0.0
        %v6821 = vmax.f32 %v6789, 0.0
        %v6822 = vmax.f32 %v6790, 0.0
        %v6823 = vmax.f32 %v6791, 0.0
        %v6824 = vmax.f32 %v6792, 0.0
        %v6825 = vmax.f32 %v6793, 0.0
        %v6826 = vmax.f32 %v6794, 0.0
        %v6827 = vmax.f32 %v6795, 0.0
        %v6828 = vmax.f32 %v6796, 0.0
        %v6829 = vmax.f32 %v6797, 0.0
        %v6830 = vmax.f32 %v6798, 0.0
        %v6831 = vmax.f32 %v6799, 0.0
        %v6832 = vmax.f32 %v6800, 0.0
        %v6833 = vmax.f32 %v6801, 0.0
        %v6834 = vmax.f32 %v6802, 0.0
        %v6835 = vmax.f32 %v6803, 0.0
        %v6836 = vmax.f32 %v6804, 0.0
        %v6837 = vmax.f32 %v6805, 0.0
        %6870 = vrot.lane.b32.xlu0 %v3858, 8
        %v6871 = vpop.permute.xlu0 %6870
        %6872 = vrot.lane.b32.xlu0 %v3859, 8
        %v6873 = vpop.permute.xlu0 %6872
        %6874 = vrot.lane.b32.xlu0 %v3860, 8
        %v6875 = vpop.permute.xlu0 %6874
        %6876 = vrot.lane.b32.xlu0 %v3861, 8
        %v6877 = vpop.permute.xlu0 %6876
        %6878 = vrot.lane.b32.xlu0 %v3862, 8
        %v6879 = vpop.permute.xlu0 %6878
        %6880 = vrot.lane.b32.xlu0 %v3863, 8
        %v6881 = vpop.permute.xlu0 %6880
        %6882 = vrot.lane.b32.xlu0 %v3864, 8
        %v6883 = vpop.permute.xlu0 %6882
        %6884 = vrot.lane.b32.xlu0 %v3865, 8
        %v6885 = vpop.permute.xlu0 %6884
        %6886 = vrot.lane.b32.xlu0 %v3866, 8
        %v6887 = vpop.permute.xlu0 %6886
        %6888 = vrot.lane.b32.xlu0 %v3867, 8
        %v6889 = vpop.permute.xlu0 %6888
        %6890 = vrot.lane.b32.xlu0 %v3868, 8
        %v6891 = vpop.permute.xlu0 %6890
        %6892 = vrot.lane.b32.xlu0 %v3869, 8
        %v6893 = vpop.permute.xlu0 %6892
        %6894 = vrot.lane.b32.xlu0 %v3870, 8
        %v6895 = vpop.permute.xlu0 %6894
        %6896 = vrot.lane.b32.xlu0 %v3871, 8
        %v6897 = vpop.permute.xlu0 %6896
        %6898 = vrot.lane.b32.xlu0 %v3872, 8
        %v6899 = vpop.permute.xlu0 %6898
        %6900 = vrot.lane.b32.xlu0 %v3873, 8
        %v6901 = vpop.permute.xlu0 %6900
        %6902 = vrot.lane.b32.xlu0 %v3874, 8
        %v6903 = vpop.permute.xlu0 %6902
        %6904 = vrot.lane.b32.xlu0 %v3875, 8
        %v6905 = vpop.permute.xlu0 %6904
        %6906 = vrot.lane.b32.xlu0 %v3876, 8
        %v6907 = vpop.permute.xlu0 %6906
        %6908 = vrot.lane.b32.xlu0 %v3877, 8
        %v6909 = vpop.permute.xlu0 %6908
        %6910 = vrot.lane.b32.xlu0 %v3878, 8
        %v6911 = vpop.permute.xlu0 %6910
        %6912 = vrot.lane.b32.xlu0 %v3879, 8
        %v6913 = vpop.permute.xlu0 %6912
        %6914 = vrot.lane.b32.xlu0 %v3880, 8
        %v6915 = vpop.permute.xlu0 %6914
        %6916 = vrot.lane.b32.xlu0 %v3881, 8
        %v6917 = vpop.permute.xlu0 %6916
        %6918 = vrot.lane.b32.xlu0 %v3882, 8
        %v6919 = vpop.permute.xlu0 %6918
        %6920 = vrot.lane.b32.xlu0 %v3883, 8
        %v6921 = vpop.permute.xlu0 %6920
        %6922 = vrot.lane.b32.xlu0 %v3884, 8
        %v6923 = vpop.permute.xlu0 %6922
        %6924 = vrot.lane.b32.xlu0 %v3885, 8
        %v6925 = vpop.permute.xlu0 %6924
        %6926 = vrot.lane.b32.xlu0 %v3886, 8
        %v6927 = vpop.permute.xlu0 %6926
        %6928 = vrot.lane.b32.xlu0 %v3887, 8
        %v6929 = vpop.permute.xlu0 %6928
        %6930 = vrot.lane.b32.xlu0 %v3888, 8
        %v6931 = vpop.permute.xlu0 %6930
        %6932 = vrot.lane.b32.xlu0 %v3889, 8
        %v6933 = vpop.permute.xlu0 %6932
        %6998 = vrot.lane.b32.xlu0 %v6806, 16
        %v6999 = vpop.permute.xlu0 %6998
        %7000 = vrot.lane.b32.xlu0 %v6807, 16
        %v7001 = vpop.permute.xlu0 %7000
        %7002 = vrot.lane.b32.xlu0 %v6808, 16
        %v7003 = vpop.permute.xlu0 %7002
        %7004 = vrot.lane.b32.xlu0 %v6809, 16
        %v7005 = vpop.permute.xlu0 %7004
        %7006 = vrot.lane.b32.xlu0 %v6810, 16
        %v7007 = vpop.permute.xlu0 %7006
        %7008 = vrot.lane.b32.xlu0 %v6811, 16
        %v7009 = vpop.permute.xlu0 %7008
        %7010 = vrot.lane.b32.xlu0 %v6812, 16
        %v7011 = vpop.permute.xlu0 %7010
        %7012 = vrot.lane.b32.xlu0 %v6813, 16
        %v7013 = vpop.permute.xlu0 %7012
        %7014 = vrot.lane.b32.xlu0 %v6814, 16
        %v7015 = vpop.permute.xlu0 %7014
        %7016 = vrot.lane.b32.xlu0 %v6815, 16
        %v7017 = vpop.permute.xlu0 %7016
        %7018 = vrot.lane.b32.xlu0 %v6816, 16
        %v7019 = vpop.permute.xlu0 %7018
        %7020 = vrot.lane.b32.xlu0 %v6817, 16
        %v7021 = vpop.permute.xlu0 %7020
        %7022 = vrot.lane.b32.xlu0 %v6818, 16
        %v7023 = vpop.permute.xlu0 %7022
        %7024 = vrot.lane.b32.xlu0 %v6819, 16
        %v7025 = vpop.permute.xlu0 %7024
        %7026 = vrot.lane.b32.xlu0 %v6820, 16
        %v7027 = vpop.permute.xlu0 %7026
        %7028 = vrot.lane.b32.xlu0 %v6821, 16
        %v7029 = vpop.permute.xlu0 %7028
        %7030 = vrot.lane.b32.xlu0 %v6822, 16
        %v7031 = vpop.permute.xlu0 %7030
        %7032 = vrot.lane.b32.xlu0 %v6823, 16
        %v7033 = vpop.permute.xlu0 %7032
        %7034 = vrot.lane.b32.xlu0 %v6824, 16
        %v7035 = vpop.permute.xlu0 %7034
        %7036 = vrot.lane.b32.xlu0 %v6825, 16
        %v7037 = vpop.permute.xlu0 %7036
        %7038 = vrot.lane.b32.xlu0 %v6826, 16
        %v7039 = vpop.permute.xlu0 %7038
        %7040 = vrot.lane.b32.xlu0 %v6827, 16
        %v7041 = vpop.permute.xlu0 %7040
        %7042 = vrot.lane.b32.xlu0 %v6828, 16
        %v7043 = vpop.permute.xlu0 %7042
        %7044 = vrot.lane.b32.xlu0 %v6829, 16
        %v7045 = vpop.permute.xlu0 %7044
        %7046 = vrot.lane.b32.xlu0 %v6830, 16
        %v7047 = vpop.permute.xlu0 %7046
        %7048 = vrot.lane.b32.xlu0 %v6831, 16
        %v7049 = vpop.permute.xlu0 %7048
        %7050 = vrot.lane.b32.xlu0 %v6832, 16
        %v7051 = vpop.permute.xlu0 %7050
        %7052 = vrot.lane.b32.xlu0 %v6833, 16
        %v7053 = vpop.permute.xlu0 %7052
        %7054 = vrot.lane.b32.xlu0 %v6834, 16
        %v7055 = vpop.permute.xlu0 %7054
        %7056 = vrot.lane.b32.xlu0 %v6835, 16
        %v7057 = vpop.permute.xlu0 %7056
        %7058 = vrot.lane.b32.xlu0 %v6836, 16
        %v7059 = vpop.permute.xlu0 %7058
        %7060 = vrot.lane.b32.xlu0 %v6837, 16
        %v7061 = vpop.permute.xlu0 %7060
        %7126 = vrot.lane.b32.xlu0 %v2224, 24
        %v7127 = vpop.permute.xlu0 %7126
        %7128 = vrot.lane.b32.xlu0 %v2225, 24
        %v7129 = vpop.permute.xlu0 %7128
        %7130 = vrot.lane.b32.xlu0 %v2226, 24
        %v7131 = vpop.permute.xlu0 %7130
        %7132 = vrot.lane.b32.xlu0 %v2227, 24
        %v7133 = vpop.permute.xlu0 %7132
        %7134 = vrot.lane.b32.xlu0 %v2228, 24
        %v7135 = vpop.permute.xlu0 %7134
        %7136 = vrot.lane.b32.xlu0 %v2229, 24
        %v7137 = vpop.permute.xlu0 %7136
        %7138 = vrot.lane.b32.xlu0 %v2230, 24
        %v7139 = vpop.permute.xlu0 %7138
        %7140 = vrot.lane.b32.xlu0 %v2231, 24
        %v7141 = vpop.permute.xlu0 %7140
        %7142 = vrot.lane.b32.xlu0 %v2232, 24
        %v7143 = vpop.permute.xlu0 %7142
        %7144 = vrot.lane.b32.xlu0 %v2233, 24
        %v7145 = vpop.permute.xlu0 %7144
        %7146 = vrot.lane.b32.xlu0 %v2234, 24
        %v7147 = vpop.permute.xlu0 %7146
        %7148 = vrot.lane.b32.xlu0 %v2235, 24
        %v7149 = vpop.permute.xlu0 %7148
        %7150 = vrot.lane.b32.xlu0 %v2236, 24
        %v7151 = vpop.permute.xlu0 %7150
        %7152 = vrot.lane.b32.xlu0 %v2237, 24
        %v7153 = vpop.permute.xlu0 %7152
        %7154 = vrot.lane.b32.xlu0 %v2238, 24
        %v7155 = vpop.permute.xlu0 %7154
        %7156 = vrot.lane.b32.xlu0 %v2239, 24
        %v7157 = vpop.permute.xlu0 %7156
        %7158 = vrot.lane.b32.xlu0 %v2240, 24
        %v7159 = vpop.permute.xlu0 %7158
        %7160 = vrot.lane.b32.xlu0 %v2241, 24
        %v7161 = vpop.permute.xlu0 %7160
        %7162 = vrot.lane.b32.xlu0 %v2242, 24
        %v7163 = vpop.permute.xlu0 %7162
        %7164 = vrot.lane.b32.xlu0 %v2243, 24
        %v7165 = vpop.permute.xlu0 %7164
        %7166 = vrot.lane.b32.xlu0 %v2244, 24
        %v7167 = vpop.permute.xlu0 %7166
        %7168 = vrot.lane.b32.xlu0 %v2245, 24
        %v7169 = vpop.permute.xlu0 %7168
        %7170 = vrot.lane.b32.xlu0 %v2246, 24
        %v7171 = vpop.permute.xlu0 %7170
        %7172 = vrot.lane.b32.xlu0 %v2247, 24
        %v7173 = vpop.permute.xlu0 %7172
        %7174 = vrot.lane.b32.xlu0 %v2248, 24
        %v7175 = vpop.permute.xlu0 %7174
        %7176 = vrot.lane.b32.xlu0 %v2249, 24
        %v7177 = vpop.permute.xlu0 %7176
        %7178 = vrot.lane.b32.xlu0 %v2250, 24
        %v7179 = vpop.permute.xlu0 %7178
        %7180 = vrot.lane.b32.xlu0 %v2251, 24
        %v7181 = vpop.permute.xlu0 %7180
        %7182 = vrot.lane.b32.xlu0 %v2252, 24
        %v7183 = vpop.permute.xlu0 %7182
        %7184 = vrot.lane.b32.xlu0 %v2253, 24
        %v7185 = vpop.permute.xlu0 %7184
        %7186 = vrot.lane.b32.xlu0 %v2254, 24
        %v7187 = vpop.permute.xlu0 %7186
        %7188 = vrot.lane.b32.xlu0 %v2255, 24
        %v7189 = vpop.permute.xlu0 %7188
        %v7222 = vsel %vm3417, %v646, %v6871
        %v7223 = vsel %vm3417, %v647, %v6873
        %v7224 = vsel %vm3417, %v648, %v6875
        %v7225 = vsel %vm3417, %v649, %v6877
        %v7226 = vsel %vm3417, %v650, %v6879
        %v7227 = vsel %vm3417, %v651, %v6881
        %v7228 = vsel %vm3417, %v652, %v6883
        %v7229 = vsel %vm3417, %v653, %v6885
        %v7230 = vsel %vm3417, %v654, %v6887
        %v7231 = vsel %vm3417, %v655, %v6889
        %v7232 = vsel %vm3417, %v656, %v6891
        %v7233 = vsel %vm3417, %v657, %v6893
        %v7234 = vsel %vm3417, %v658, %v6895
        %v7235 = vsel %vm3417, %v659, %v6897
        %v7236 = vsel %vm3417, %v660, %v6899
        %v7237 = vsel %vm3417, %v661, %v6901
        %v7238 = vsel %vm3417, %v662, %v6903
        %v7239 = vsel %vm3417, %v663, %v6905
        %v7240 = vsel %vm3417, %v664, %v6907
        %v7241 = vsel %vm3417, %v665, %v6909
        %v7242 = vsel %vm3417, %v666, %v6911
        %v7243 = vsel %vm3417, %v667, %v6913
        %v7244 = vsel %vm3417, %v668, %v6915
        %v7245 = vsel %vm3417, %v669, %v6917
        %v7246 = vsel %vm3417, %v670, %v6919
        %v7247 = vsel %vm3417, %v671, %v6921
        %v7248 = vsel %vm3417, %v672, %v6923
        %v7249 = vsel %vm3417, %v673, %v6925
        %v7250 = vsel %vm3417, %v674, %v6927
        %v7251 = vsel %vm3417, %v675, %v6929
        %v7252 = vsel %vm3417, %v676, %v6931
        %v7253 = vsel %vm3417, %v677, %v6933
        %v7254 = vsel %vm6349, %v7222, %v6999
        %v7255 = vsel %vm6349, %v7223, %v7001
        %v7256 = vsel %vm6349, %v7224, %v7003
        %v7257 = vsel %vm6349, %v7225, %v7005
        %v7258 = vsel %vm6349, %v7226, %v7007
        %v7259 = vsel %vm6349, %v7227, %v7009
        %v7260 = vsel %vm6349, %v7228, %v7011
        %v7261 = vsel %vm6349, %v7229, %v7013
        %v7262 = vsel %vm6349, %v7230, %v7015
        %v7263 = vsel %vm6349, %v7231, %v7017
        %v7264 = vsel %vm6349, %v7232, %v7019
        %v7265 = vsel %vm6349, %v7233, %v7021
        %v7266 = vsel %vm6349, %v7234, %v7023
        %v7267 = vsel %vm6349, %v7235, %v7025
        %v7268 = vsel %vm6349, %v7236, %v7027
        %v7269 = vsel %vm6349, %v7237, %v7029
        %v7270 = vsel %vm6349, %v7238, %v7031
        %v7271 = vsel %vm6349, %v7239, %v7033
        %v7272 = vsel %vm6349, %v7240, %v7035
        %v7273 = vsel %vm6349, %v7241, %v7037
        %v7274 = vsel %vm6349, %v7242, %v7039
        %v7275 = vsel %vm6349, %v7243, %v7041
        %v7276 = vsel %vm6349, %v7244, %v7043
        %v7277 = vsel %vm6349, %v7245, %v7045
        %v7278 = vsel %vm6349, %v7246, %v7047
        %v7279 = vsel %vm6349, %v7247, %v7049
        %v7280 = vsel %vm6349, %v7248, %v7051
        %v7281 = vsel %vm6349, %v7249, %v7053
        %v7282 = vsel %vm6349, %v7250, %v7055
        %v7283 = vsel %vm6349, %v7251, %v7057
        %v7284 = vsel %vm6349, %v7252, %v7059
        %v7285 = vsel %vm6349, %v7253, %v7061
        %v7286 = vsel %vm6402, %v7254, %v7127
        %v7287 = vsel %vm6402, %v7255, %v7129
        %v7288 = vsel %vm6402, %v7256, %v7131
        %v7289 = vsel %vm6402, %v7257, %v7133
        %v7290 = vsel %vm6402, %v7258, %v7135
        %v7291 = vsel %vm6402, %v7259, %v7137
        %v7292 = vsel %vm6402, %v7260, %v7139
        %v7293 = vsel %vm6402, %v7261, %v7141
        %v7294 = vsel %vm6402, %v7262, %v7143
        %v7295 = vsel %vm6402, %v7263, %v7145
        %v7296 = vsel %vm6402, %v7264, %v7147
        %v7297 = vsel %vm6402, %v7265, %v7149
        %v7298 = vsel %vm6402, %v7266, %v7151
        %v7299 = vsel %vm6402, %v7267, %v7153
        %v7300 = vsel %vm6402, %v7268, %v7155
        %v7301 = vsel %vm6402, %v7269, %v7157
        %v7302 = vsel %vm6402, %v7270, %v7159
        %v7303 = vsel %vm6402, %v7271, %v7161
        %v7304 = vsel %vm6402, %v7272, %v7163
        %v7305 = vsel %vm6402, %v7273, %v7165
        %v7306 = vsel %vm6402, %v7274, %v7167
        %v7307 = vsel %vm6402, %v7275, %v7169
        %v7308 = vsel %vm6402, %v7276, %v7171
        %v7309 = vsel %vm6402, %v7277, %v7173
        %v7310 = vsel %vm6402, %v7278, %v7175
        %v7311 = vsel %vm6402, %v7279, %v7177
        %v7312 = vsel %vm6402, %v7280, %v7179
        %v7313 = vsel %vm6402, %v7281, %v7181
        %v7314 = vsel %vm6402, %v7282, %v7183
        %v7315 = vsel %vm6402, %v7283, %v7185
        %v7316 = vsel %vm6402, %v7284, %v7187
        %v7317 = vsel %vm6402, %v7285, %v7189
        %vm7318 = vcmask 261120
        %7319 = vst.msk [vmem:[%s379] sm:$0xff] %vm7318, %v7286
        %7320 = vst.msk [vmem:[%s379 + $0x8] sm:$0xff] %vm7318, %v7287
        %7321 = vst.msk [vmem:[%s379 + $0x10] sm:$0xff] %vm7318, %v7288
        %7322 = vst.msk [vmem:[%s379 + $0x18] sm:$0xff] %vm7318, %v7289
        %7323 = vst.msk [vmem:[%s379 + $0x20] sm:$0xff] %vm7318, %v7290
        %7324 = vst.msk [vmem:[%s379 + $0x28] sm:$0xff] %vm7318, %v7291
        %7325 = vst.msk [vmem:[%s379 + $0x30] sm:$0xff] %vm7318, %v7292
        %7326 = vst.msk [vmem:[%s379 + $0x38] sm:$0xff] %vm7318, %v7293
        %7327 = vst.msk [vmem:[%s379 + $0x40] sm:$0xff] %vm7318, %v7294
        %7328 = vst.msk [vmem:[%s379 + $0x48] sm:$0xff] %vm7318, %v7295
        %7329 = vst.msk [vmem:[%s379 + $0x50] sm:$0xff] %vm7318, %v7296
        %7330 = vst.msk [vmem:[%s379 + $0x58] sm:$0xff] %vm7318, %v7297
        %7331 = vst.msk [vmem:[%s379 + $0x60] sm:$0xff] %vm7318, %v7298
        %7332 = vst.msk [vmem:[%s379 + $0x68] sm:$0xff] %vm7318, %v7299
        %7333 = vst.msk [vmem:[%s379 + $0x70] sm:$0xff] %vm7318, %v7300
        %7334 = vst.msk [vmem:[%s379 + $0x78] sm:$0xff] %vm7318, %v7301
        %7335 = vst.msk [vmem:[%s379 + $0x80] sm:$0xff] %vm7318, %v7302
        %7336 = vst.msk [vmem:[%s379 + $0x88] sm:$0xff] %vm7318, %v7303
        %7337 = vst.msk [vmem:[%s379 + $0x90] sm:$0xff] %vm7318, %v7304
        %7338 = vst.msk [vmem:[%s379 + $0x98] sm:$0xff] %vm7318, %v7305
        %7339 = vst.msk [vmem:[%s379 + $0xa0] sm:$0xff] %vm7318, %v7306
        %7340 = vst.msk [vmem:[%s379 + $0xa8] sm:$0xff] %vm7318, %v7307
        %7341 = vst.msk [vmem:[%s379 + $0xb0] sm:$0xff] %vm7318, %v7308
        %7342 = vst.msk [vmem:[%s379 + $0xb8] sm:$0xff] %vm7318, %v7309
        %7343 = vst.msk [vmem:[%s379 + $0xc0] sm:$0xff] %vm7318, %v7310
        %7344 = vst.msk [vmem:[%s379 + $0xc8] sm:$0xff] %vm7318, %v7311
        %7345 = vst.msk [vmem:[%s379 + $0xd0] sm:$0xff] %vm7318, %v7312
        %7346 = vst.msk [vmem:[%s379 + $0xd8] sm:$0xff] %vm7318, %v7313
        %7347 = vst.msk [vmem:[%s379 + $0xe0] sm:$0xff] %vm7318, %v7314
        %7348 = vst.msk [vmem:[%s379 + $0xe8] sm:$0xff] %vm7318, %v7315
        %7349 = vst.msk [vmem:[%s379 + $0xf0] sm:$0xff] %vm7318, %v7316
        %7350 = vst.msk [vmem:[%s379 + $0xf8] sm:$0xff] %vm7318, %v7317
        %s7351 = sand.u32 %s269, 1
        %s7352 = scalar_lea.sflag [#allocation7], %s7351
        %s7353 = sand.u32 %s269, 1
        %s7354 = smul.addr %s7353, 256
        %s7355 = scalar_lea.vmem [#allocation6], %s7354
        // Predicated region
        $region65: #{inception_forward.1} parent=63 // pred_check
          %p7356 = pneg %p279
        $region66: #{inception_forward.1} parent=63 // pred_check_branch
          %7358 = sbr.rel (%p7356) target = $region68
        $region67: #{inception_forward.1} parent=63 // pred_region
          %7360 = vsyncadd %s7352, 0
          %s7361 = smul.addr %s25, 32
          %s7362 = smul.addr %s7361, 8
          %s7363 = scalar_lea.hbm %s11, %s7362
          %s7364 = sshll.u32 %s7355, 4
          %s7365 = int_to_ptr.vmem [resolvable:$true] %s7364
          %s7366 = sshll.u32 %s7363, 4
          %s7367 = int_to_ptr.hbm [resolvable:$true] %s7366
          %7372 = dma.vmem_to_hbm [thread:$0]  %s7365, 4096, %s7367, %s7352, 128, 128, 8
        $region68: #{inception_forward.1} parent=63 // pred_fallthru
          _
      $region64: #{inception_forward.1} parent=5 // pred_fallthru
        _
      %p7373 = scmp.le.s32.totalorder 2, %s20
      // Predicated region
      $region69: #{inception_forward.1} parent=5 // pred_check
        %p7374 = pneg %p7373
      $region70: #{inception_forward.1} parent=5 // pred_check_branch
        %7376 = sbr.rel (%p7374) target = $region72
      $region71: #{inception_forward.1} parent=5 // pred_region
        %s7377 = ssub.s32 %s20, 2
        // Predicated region
        $region73: #{inception_forward.1} parent=71 // pred_check
          %p7378 = pneg %p285
        $region74: #{inception_forward.1} parent=71 // pred_check_branch
          %7380 = sbr.rel (%p7378) target = $region76
        $region75: #{inception_forward.1} parent=71 // pred_region
          %s7381 = sand.u32 %s270, 1
          %s7382 = scalar_lea.sflag [#allocation7], %s7381
          %s7383 = sand.u32 %s270, 1
          %s7384 = smul.addr %s7383, 256
          %s7385 = scalar_lea.vmem [#allocation6], %s7384
          %7387 = dma.done %s7382, 4096
        $region76: #{inception_forward.1} parent=71 // pred_fallthru
          _
      $region72: #{inception_forward.1} parent=5 // pred_fallthru
        _
    $region6: #{inception_forward.1} parent=1 // loop_footer
      %s24 = sadd.s32 1, %s20
    $region7: #{inception_forward.1} parent=1 // loop_footer_branch
      %19 = sbr.rel target = $region3
    $region8: #{inception_forward.1} parent=1 // loop_exit
      _
    %7388 = vsyncpa [#allocation7], 1
    %s7389 = scalar_lea.sflag [#allocation7], 1
    %7390 = vsyncpa %s7389, 1

</llo_original>
